<compile_context>
chip_gen: v7x
topology: tpu7x:2x2x1
jax: 0.10.0
libtpu: 0.0.40
codegen_flags: <defaults>
</compile_context>

<pallas_src>
import jax
import jax.numpy as jnp
from jax import lax
from jax.experimental import pallas as pl
from jax.experimental.pallas import tpu as pltpu

EPS = 1e-5
K = 3                 # conv kernel size
PAD = K // 2          # 'same' padding
LANE = 128            # lane width: the in-VMEM contraction group is padded to this
W_OFF = 8             # sublane-aligned offset of the image inside the padded scratch
# f32 keeps the kernel within 1e-3 of the f32 reference at these weight scales; flip to
# jnp.bfloat16 for ~2-5x MXU throughput at production channel counts (f32 accumulation).
MATMUL_DTYPE = jnp.float32


def _round_up(c, m=LANE):
    return ((c + m - 1) // m) * m


# ---------------- kernel helpers (traced inside the Pallas kernels) ----------------

def _zero_halo(pad_ref, h, w):
    """Zero only the read halo of the padded scratch (2 rows + 2 narrow columns)."""
    cp = pad_ref.shape[-1]
    wp = pad_ref.shape[1]
    z_row = jnp.zeros((PAD, wp, cp), pad_ref.dtype)
    pad_ref[0:PAD, :, :] = z_row
    pad_ref[h + PAD:h + 2 * PAD, :, :] = z_row
    z_col = jnp.zeros((h + 2 * PAD, PAD, cp), pad_ref.dtype)
    pad_ref[:, W_OFF - PAD:W_OFF, :] = z_col
    pad_ref[:, W_OFF + w:W_OFF + w + PAD, :] = z_col


def _store_interior(pad_ref, a, h, w):
    """Lane-pad the activation to the scratch channel width (in VMEM, zero-filled so
    padded weight rows can never see garbage) and store it sublane-aligned at W_OFF."""
    cp = pad_ref.shape[-1]
    c = a.shape[-1]
    a = a.astype(pad_ref.dtype)
    if cp > c:
        a = jnp.concatenate([a, jnp.zeros((h, w, cp - c), pad_ref.dtype)], axis=-1)
    pad_ref[PAD:PAD + h, W_OFF:W_OFF + w, :] = a


def _conv3x3_accum(pad_ref, w_ref, b_ref, h, w, acc=None):
    """Same-padding 3x3 conv as 9 accumulated MXU matmuls over shifted band views.

    No im2col slab is materialized: each (ky,kx) tap is a static row/sublane-shifted
    view of the padded scratch dotted against weight rows [(ky*3+kx)*CP, +CP).
    Accumulation is f32; bias added once at the end.
    """
    cp = pad_ref.shape[-1]
    for ky in range(K):
        for kx in range(K):
            band = pad_ref[ky:ky + h, W_OFF - PAD + kx:W_OFF - PAD + kx + w, :]
            band = band.reshape(h * w, cp)
            idx = ky * K + kx
            wk = w_ref[idx * cp:(idx + 1) * cp, :]
            part = jnp.dot(band, wk, preferred_element_type=jnp.float32)
            acc = part if acc is None else acc + part
    return acc + b_ref[...]


# ---------------------------------- kernel bodies -----------------------------------

def _conv1_kernel(x_ref, s1_ref, t1_ref, w1_ref, c1_ref, h1_ref, sums_ref, pad_ref):
    """h1 = conv1(relu(bn1(x))) for one batch image; also emits sum/sum^2 of h1 so
    the BN2 statistics never require re-reading h1 from HBM."""
    h, w = x_ref.shape[1], x_ref.shape[2]
    cmid = h1_ref.shape[-1]

    _zero_halo(pad_ref, h, w)
    a = jnp.maximum(x_ref[0] * s1_ref[...] + t1_ref[...], 0.0)       # BN1 + ReLU
    _store_interior(pad_ref, a, h, w)
    y = _conv3x3_accum(pad_ref, w1_ref, c1_ref, h, w)                # (h*w, cmid) f32
    h1_ref[0] = y.reshape(h, w, cmid).astype(h1_ref.dtype)

    hs = jnp.sum(y, axis=0)                                          # (cmid,)
    hss = jnp.sum(y * y, axis=0)
    sums_ref[0] = jnp.concatenate([hs[None, :], hss[None, :]], axis=0)


def _conv2_kernel(h1_ref, x_ref, s2_ref, t2_ref, w2_ref, c2_ref,
                  ss_ref, ts_ref, ws_ref, cs_ref, out_ref, pad_ref):
    """out = conv2(relu(bn2(h1))) + conv_s(bn_s(x)) for one batch image."""
    h, w = x_ref.shape[1], x_ref.shape[2]
    cout = out_ref.shape[-1]

    _zero_halo(pad_ref, h, w)

    # shortcut branch: BN_s (folded) -> conv_s ; accumulated immediately
    s = x_ref[0] * ss_ref[...] + ts_ref[...]
    _store_interior(pad_ref, s, h, w)
    acc = _conv3x3_accum(pad_ref, ws_ref, cs_ref, h, w)              # (h*w, cout) f32

    # main branch: BN2 (folded) -> ReLU -> conv2 ; scratch reused (peak = 1 buffer)
    a = jnp.maximum(h1_ref[0] * s2_ref[...] + t2_ref[...], 0.0)
    _store_interior(pad_ref, a, h, w)
    acc = _conv3x3_accum(pad_ref, w2_ref, c2_ref, h, w, acc=acc)

    out_ref[0] = acc.reshape(h, w, cout).astype(out_ref.dtype)


# ------------------------------------ wrapper ----------------------------------------

def _batch_spec(h, w, c):
    return pl.BlockSpec((1, h, w, c), lambda n: (n, 0, 0, 0))


def _full2d_spec(shape):          # full-block 2-D params (scales, shifts, weights)
    return pl.BlockSpec(shape, lambda n: (0, 0))


def _fold_bn(v, gamma, beta):
    """Training-mode BN (biased batch stats over N,H,W) folded to scale/shift.
    Single pass (sum + sum-of-squares) over the unpadded tensor."""
    m = jnp.mean(v, axis=(0, 1, 2))
    sq = jnp.mean(v * v, axis=(0, 1, 2))
    var = sq - m * m
    scale = gamma[0] * lax.rsqrt(var + EPS)
    shift = beta[0] - m * scale
    return scale[None, :], shift[None, :]


@jax.jit
def double_conv_forward(x_nchw, packed):
    # TODO(synk): if the caller can supply/consume NHWC directly, drop these two
    # transposes (each is a full HBM round trip in XLA).
    x = jnp.transpose(x_nchw, (0, 2, 3, 1)).astype(jnp.float32)      # NCHW -> NHWC
    n, h, w, cin = x.shape

    cp = packed["w1"].shape[0] // (K * K)    # lane-dense contraction / scratch width
    cmid = packed["w1"].shape[1]
    cout = packed["w2"].shape[1]

    # BN1 / BN_s stats hoisted: one pass over the natural-width x (no channel pad).
    s1, t1 = _fold_bn(x, packed["g1"], packed["b1"])
    ss, ts = _fold_bn(x, packed["gs"], packed["bs"])

    # 48 MiB leaves headroom inside v7x's 64 MiB physical VMEM; can go to ~96 MiB on
    # v5e/v6e if larger spatial tiles are used.
    cparams = pltpu.CompilerParams(
        dimension_semantics=("parallel",),           # batch axis -> both TCs on v7x
        vmem_limit_bytes=48 * 1024 * 1024)

    scratch = pltpu.VMEM((h + 2 * PAD, W_OFF + w + PAD, cp), MATMUL_DTYPE)

    # TODO(synk): for large H (or to give each v7x TensorCore >1 pipelined grid step
    # when N is tiny) add a second "parallel" grid axis over H row strips with a 1-row
    # halo; per-image blocks are fine at the small shapes exercised here.
    h1, h1_sums = pl.pallas_call(
        _conv1_kernel,
        out_shape=(jax.ShapeDtypeStruct((n, h, w, cmid), jnp.float32),
                   jax.ShapeDtypeStruct((n, 2, cmid), jnp.float32)),
        grid_spec=pltpu.PrefetchScalarGridSpec(
            num_scalar_prefetch=0,
            grid=(n,),
            in_specs=[_batch_spec(h, w, cin),
                      _full2d_spec(s1.shape), _full2d_spec(t1.shape),
                      _full2d_spec(packed["w1"].shape), _full2d_spec(packed["c1"].shape)],
            out_specs=[_batch_spec(h, w, cmid),
                       pl.BlockSpec((1, 2, cmid), lambda i: (i, 0, 0))],
            scratch_shapes=[scratch]),
        compiler_params=cparams,
    )(x, s1, t1, packed["w1"], packed["c1"])

    # BN2 folded from the in-kernel partial sums: h1 is never re-read for statistics.
    tot = jnp.sum(h1_sums, axis=0)                                   # (2, cmid)
    cnt = jnp.float32(n * h * w)
    mean2 = tot[0] / cnt
    var2 = tot[1] / cnt - mean2 * mean2
    s2 = (packed["g2"][0] * lax.rsqrt(var2 + EPS))[None, :]
    t2 = (packed["b2"][0] - mean2 * s2[0])[None, :]

    out = pl.pallas_call(
        _conv2_kernel,
        out_shape=jax.ShapeDtypeStruct((n, h, w, cout), x.dtype),
        grid_spec=pltpu.PrefetchScalarGridSpec(
            num_scalar_prefetch=0,
            grid=(n,),
            in_specs=[_batch_spec(h, w, cmid), _batch_spec(h, w, cin),
                      _full2d_spec(s2.shape), _full2d_spec(t2.shape),
                      _full2d_spec(packed["w2"].shape), _full2d_spec(packed["c2"].shape),
                      _full2d_spec(ss.shape), _full2d_spec(ts.shape),
                      _full2d_spec(packed["ws"].shape), _full2d_spec(packed["cs"].shape)],
            out_specs=_batch_spec(h, w, cout),
            scratch_shapes=[scratch]),
        compiler_params=cparams,
    )(h1, x, s2, t2, packed["w2"], packed["c2"], ss, ts, packed["ws"], packed["cs"])

    return jnp.transpose(out, (0, 3, 1, 2))                          # NHWC -> NCHW


# ------------------------------ parameter setup (glue) -------------------------------

def _spectral_normalize(w_oihw, n_iter=50):
    """Divide weight by its largest singular value (power-iteration limit)."""
    m = w_oihw.reshape(w_oihw.shape[0], -1)
    u = jnp.ones((m.shape[0],), jnp.float32)
    u = u / jnp.linalg.norm(u)
    for _ in range(n_iter):
        v = m.T @ u
        v = v / (jnp.linalg.norm(v) + 1e-12)
        u = m @ v
        u = u / (jnp.linalg.norm(u) + 1e-12)
    sigma = u @ (m @ v)
    return w_oihw / sigma


def make_params(key, cin, cout, cmid=None):
    if cmid is None:
        cmid = cout
    ks = jax.random.split(key, 12)

    def conv_w(k, ci, co):
        w = 0.3 * jax.random.normal(k, (co, ci, K, K), jnp.float32)   # OIHW (PyTorch)
        w = _spectral_normalize(w)
        return jnp.transpose(w, (2, 3, 1, 0))                          # -> HWIO

    return dict(
        g1=0.5 + jax.random.uniform(ks[0], (1, cin), jnp.float32),
        b1=0.1 * jax.random.normal(ks[1], (1, cin), jnp.float32),
        w1=conv_w(ks[2], cin, cmid),
        c1=0.1 * jax.random.normal(ks[3], (1, cmid), jnp.float32),
        g2=0.5 + jax.random.uniform(ks[4], (1, cmid), jnp.float32),
        b2=0.1 * jax.random.normal(ks[5], (1, cmid), jnp.float32),
        w2=conv_w(ks[6], cmid, cout),
        c2=0.1 * jax.random.normal(ks[7], (1, cout), jnp.float32),
        gs=0.5 + jax.random.uniform(ks[8], (1, cin), jnp.float32),
        bs=0.1 * jax.random.normal(ks[9], (1, cin), jnp.float32),
        ws=conv_w(ks[10], cin, cout),
        cs=0.1 * jax.random.normal(ks[11], (1, cout), jnp.float32),
    )


def pack_params(params):
    """PyTorch-layout params -> Pallas-ready.

    Only the conv weights get a lane-dense contraction pad: HWIO (3,3,ci,co) becomes
    (9*CP, co) with input-channel groups zero-padded to a common CP and pre-cast to
    MATMUL_DTYPE.  BN params / biases stay at natural channel width and activations
    are NOT channel-padded in HBM (that padding happens in VMEM inside the kernels).
    """
    cin = params["g1"].shape[1]
    cmid = params["w1"].shape[3]
    cp = max(_round_up(cin), _round_up(cmid))

    def pack_w(w_hwio):
        ci = w_hwio.shape[2]
        w = jnp.pad(w_hwio, ((0, 0), (0, 0), (0, cp - ci), (0, 0)))
        return w.reshape(K * K * cp, w_hwio.shape[3]).astype(MATMUL_DTYPE)

    packed = dict(params)
    packed["w1"] = pack_w(params["w1"])
    packed["w2"] = pack_w(params["w2"])
    packed["ws"] = pack_w(params["ws"])
    return packed


# ------------------------------ pure-JAX reference ------------------------------------

def reference(x_nchw, params):
    x = jnp.transpose(x_nchw, (0, 2, 3, 1))

    def bn(v, g, b):
        mean = jnp.mean(v, axis=(0, 1, 2), keepdims=True)
        var = jnp.mean(jnp.square(v - mean), axis=(0, 1, 2), keepdims=True)
        return (v - mean) * lax.rsqrt(var + EPS) * g[0] + b[0]

    def conv(v, w, c):
        return lax.conv_general_dilated(
            v, w, (1, 1), 'SAME',
            dimension_numbers=('NHWC', 'HWIO', 'NHWC')) + c[0]

    shortcut = conv(bn(x, params["gs"], params["bs"]), params["ws"], params["cs"])
    a = jnp.maximum(bn(x, params["g1"], params["b1"]), 0.0)
    a = conv(a, params["w1"], params["c1"])
    a = jnp.maximum(bn(a, params["g2"], params["b2"]), 0.0)
    a = conv(a, params["w2"], params["c2"])
    return jnp.transpose(a + shortcut, (0, 3, 1, 2))


if __name__ == "__main__":
    key = jax.random.PRNGKey(0)
    kx_, kp = jax.random.split(key)
    N, Cin, H, W, Cout = 2, 4, 16, 16, 8

    x = jax.random.normal(kx_, (N, Cin, H, W), jnp.float32)   # PyTorch-style NCHW input
    params = make_params(kp, Cin, Cout)
    packed = pack_params(params)

    out = double_conv_forward(x, packed)
    out = jax.block_until_ready(out)

    ref = reference(x, params)
    assert out.shape == (N, Cout, H, W), out.shape
    err = float(jnp.max(jnp.abs(out - ref)))
    assert jnp.allclose(out, ref, atol=1e-3, rtol=1e-3), err
    print("KERNEL_OK")
</pallas_src>

<mosaic_0001>
module attributes {stable_mosaic.version = 11 : i64} {
  func.func @_conv1_kernel(%arg0: i32, %arg1: memref<1x16x16x4xf32, #tpu.memory_space<vmem>>, %arg2: memref<1x4xf32, #tpu.memory_space<vmem>>, %arg3: memref<1x4xf32, #tpu.memory_space<vmem>>, %arg4: memref<1152x8xf32, #tpu.memory_space<vmem>>, %arg5: memref<1x8xf32, #tpu.memory_space<vmem>>, %arg6: memref<1x16x16x8xf32, #tpu.memory_space<vmem>>, %arg7: memref<1x2x8xf32, #tpu.memory_space<vmem>>, %arg8: memref<18x25x128xf32, #tpu.memory_space<vmem>>) attributes {dimension_semantics = [#tpu.dimension_semantics<parallel>], iteration_bounds = array<i64: 2>, scalar_prefetch = 0 : i64, scratch_operands = 1 : i64, tpu.core_type = #tpu.core_type<tc>, window_params = [{transform_indices = @transform_0, window_bounds = array<i64: 1, 16, 16, 4>}, {pipeline_mode = #tpu.pipeline_mode<synchronous>, transform_indices = @transform_1, window_bounds = array<i64: 1, 4>}, {pipeline_mode = #tpu.pipeline_mode<synchronous>, transform_indices = @transform_2, window_bounds = array<i64: 1, 4>}, {pipeline_mode = #tpu.pipeline_mode<synchronous>, transform_indices = @transform_3, window_bounds = array<i64: 1152, 8>}, {pipeline_mode = #tpu.pipeline_mode<synchronous>, transform_indices = @transform_4, window_bounds = array<i64: 1, 8>}, {transform_indices = @transform_5, window_bounds = array<i64: 1, 16, 16, 8>}, {transform_indices = @transform_6, window_bounds = array<i64: 1, 2, 8>}]} {
    %cst = arith.constant 0.000000e+00 : f32
    %0 = vector.broadcast %cst : f32 to vector<1x25x128xf32>
    %c0 = arith.constant 0 : index
    %c0_0 = arith.constant 0 : index
    %c0_1 = arith.constant 0 : index
    %1 = vector.load %arg8[%c0, %c0_0, %c0_1] : memref<18x25x128xf32, #tpu.memory_space<vmem>>, vector<1x25x128xf32>
    tpu.vector_store %arg8[%c0, %c0_0, %c0_1], %0 {strides = array<i32>} : memref<18x25x128xf32, #tpu.memory_space<vmem>>, vector<1x25x128xf32>,
    %c17 = arith.constant 17 : index
    %c0_2 = arith.constant 0 : index
    %c0_3 = arith.constant 0 : index
    %2 = vector.load %arg8[%c17, %c0_2, %c0_3] : memref<18x25x128xf32, #tpu.memory_space<vmem>>, vector<1x25x128xf32>
    tpu.vector_store %arg8[%c17, %c0_2, %c0_3], %0 {strides = array<i32>} : memref<18x25x128xf32, #tpu.memory_space<vmem>>, vector<1x25x128xf32>,
    %cst_4 = arith.constant 0.000000e+00 : f32
    %3 = vector.broadcast %cst_4 : f32 to vector<18x1x128xf32>
    %c0_5 = arith.constant 0 : index
    %c7 = arith.constant 7 : index
    %c0_6 = arith.constant 0 : index
    %4 = vector.load %arg8[%c0_5, %c7, %c0_6] : memref<18x25x128xf32, #tpu.memory_space<vmem>>, vector<18x1x128xf32>
    tpu.vector_store %arg8[%c0_5, %c7, %c0_6], %3 {strides = array<i32>} : memref<18x25x128xf32, #tpu.memory_space<vmem>>, vector<18x1x128xf32>,
    %c0_7 = arith.constant 0 : index
    %c24 = arith.constant 24 : index
    %c0_8 = arith.constant 0 : index
    %5 = vector.load %arg8[%c0_7, %c24, %c0_8] : memref<18x25x128xf32, #tpu.memory_space<vmem>>, vector<18x1x128xf32>
    tpu.vector_store %arg8[%c0_7, %c24, %c0_8], %3 {strides = array<i32>} : memref<18x25x128xf32, #tpu.memory_space<vmem>>, vector<18x1x128xf32>,
    %c0_9 = arith.constant 0 : index
    %c0_10 = arith.constant 0 : index
    %c0_11 = arith.constant 0 : index
    %c0_12 = arith.constant 0 : index
    %6 = vector.load %arg1[%c0_9, %c0_10, %c0_11, %c0_12] : memref<1x16x16x4xf32, #tpu.memory_space<vmem>>, vector<1x16x16x4xf32>
    %7 = vector.shape_cast %6 : vector<1x16x16x4xf32> to vector<16x16x4xf32>
    %c0_13 = arith.constant 0 : index
    %c0_14 = arith.constant 0 : index
    %8 = vector.load %arg2[%c0_13, %c0_14] : memref<1x4xf32, #tpu.memory_space<vmem>>, vector<1x4xf32>
    %9 = vector.shape_cast %8 : vector<1x4xf32> to vector<1x1x4xf32>
    %10 = vector.broadcast %9 : vector<1x1x4xf32> to vector<16x16x4xf32>
    %11 = arith.mulf %7, %10 : vector<16x16x4xf32>
    %c0_15 = arith.constant 0 : index
    %c0_16 = arith.constant 0 : index
    %12 = vector.load %arg3[%c0_15, %c0_16] : memref<1x4xf32, #tpu.memory_space<vmem>>, vector<1x4xf32>
    %13 = vector.shape_cast %12 : vector<1x4xf32> to vector<1x1x4xf32>
    %14 = vector.broadcast %13 : vector<1x1x4xf32> to vector<16x16x4xf32>
    %15 = arith.addf %11, %14 : vector<16x16x4xf32>
    %cst_17 = arith.constant 0.000000e+00 : f32
    %16 = vector.broadcast %cst_17 : f32 to vector<16x16x4xf32>
    %17 = arith.maximumf %15, %16 : vector<16x16x4xf32>
    %cst_18 = arith.constant 0.000000e+00 : f32
    %18 = vector.broadcast %cst_18 : f32 to vector<16x16x124xf32>
    %19 = tpu.concatenate %17, %18 in 2 : vector<16x16x4xf32>, vector<16x16x124xf32> -> vector<16x16x128xf32>
    %c1 = arith.constant 1 : index
    %c8 = arith.constant 8 : index
    %c0_19 = arith.constant 0 : index
    %20 = vector.load %arg8[%c1, %c8, %c0_19] : memref<18x25x128xf32, #tpu.memory_space<vmem>>, vector<16x16x128xf32>
    tpu.vector_store %arg8[%c1, %c8, %c0_19], %19 {strides = array<i32>} : memref<18x25x128xf32, #tpu.memory_space<vmem>>, vector<16x16x128xf32>,
    %c0_20 = arith.constant 0 : index
    %c7_21 = arith.constant 7 : index
    %c0_22 = arith.constant 0 : index
    %21 = vector.load %arg8[%c0_20, %c7_21, %c0_22] : memref<18x25x128xf32, #tpu.memory_space<vmem>>, vector<16x16x128xf32>
    %22 = vector.shape_cast %21 : vector<16x16x128xf32> to vector<256x128xf32>
    %c0_23 = arith.constant 0 : index
    %c0_24 = arith.constant 0 : index
    %23 = vector.load %arg4[%c0_23, %c0_24] : memref<1152x8xf32, #tpu.memory_space<vmem>>, vector<128x8xf32>
    %cst_25 = arith.constant dense<0.000000e+00> : vector<256x8xf32>
    %24 = tpu.matmul %22, %23, %cst_25 {dimension_numbers = #tpu.dot_dimension_numbers<[1], [0], [0], [1], [0, 0, 1, 1], [], []>} : vector<256x128xf32>, vector<128x8xf32>, vector<256x8xf32> -> vector<256x8xf32>
    %c0_26 = arith.constant 0 : index
    %c8_27 = arith.constant 8 : index
    %c0_28 = arith.constant 0 : index
    %25 = vector.load %arg8[%c0_26, %c8_27, %c0_28] : memref<18x25x128xf32, #tpu.memory_space<vmem>>, vector<16x16x128xf32>
    %26 = vector.shape_cast %25 : vector<16x16x128xf32> to vector<256x128xf32>
    %c128 = arith.constant 128 : index
    %c0_29 = arith.constant 0 : index
    %27 = vector.load %arg4[%c128, %c0_29] : memref<1152x8xf32, #tpu.memory_space<vmem>>, vector<128x8xf32>
    %cst_30 = arith.constant dense<0.000000e+00> : vector<256x8xf32>
    %28 = tpu.matmul %26, %27, %cst_30 {dimension_numbers = #tpu.dot_dimension_numbers<[1], [0], [0], [1], [0, 0, 1, 1], [], []>} : vector<256x128xf32>, vector<128x8xf32>, vector<256x8xf32> -> vector<256x8xf32>
    %29 = arith.addf %24, %28 : vector<256x8xf32>
    %c0_31 = arith.constant 0 : index
    %c9 = arith.constant 9 : index
    %c0_32 = arith.constant 0 : index
    %30 = vector.load %arg8[%c0_31, %c9, %c0_32] : memref<18x25x128xf32, #tpu.memory_space<vmem>>, vector<16x16x128xf32>
    %31 = vector.shape_cast %30 : vector<16x16x128xf32> to vector<256x128xf32>
    %c256 = arith.constant 256 : index
    %c0_33 = arith.constant 0 : index
    %32 = vector.load %arg4[%c256, %c0_33] : memref<1152x8xf32, #tpu.memory_space<vmem>>, vector<128x8xf32>
    %cst_34 = arith.constant dense<0.000000e+00> : vector<256x8xf32>
    %33 = tpu.matmul %31, %32, %cst_34 {dimension_numbers = #tpu.dot_dimension_numbers<[1], [0], [0], [1], [0, 0, 1, 1], [], []>} : vector<256x128xf32>, vector<128x8xf32>, vector<256x8xf32> -> vector<256x8xf32>
    %34 = arith.addf %29, %33 : vector<256x8xf32>
    %c1_35 = arith.constant 1 : index
    %c7_36 = arith.constant 7 : index
    %c0_37 = arith.constant 0 : index
    %35 = vector.load %arg8[%c1_35, %c7_36, %c0_37] : memref<18x25x128xf32, #tpu.memory_space<vmem>>, vector<16x16x128xf32>
    %36 = vector.shape_cast %35 : vector<16x16x128xf32> to vector<256x128xf32>
    %c384 = arith.constant 384 : index
    %c0_38 = arith.constant 0 : index
    %37 = vector.load %arg4[%c384, %c0_38] : memref<1152x8xf32, #tpu.memory_space<vmem>>, vector<128x8xf32>
    %cst_39 = arith.constant dense<0.000000e+00> : vector<256x8xf32>
    %38 = tpu.matmul %36, %37, %cst_39 {dimension_numbers = #tpu.dot_dimension_numbers<[1], [0], [0], [1], [0, 0, 1, 1], [], []>} : vector<256x128xf32>, vector<128x8xf32>, vector<256x8xf32> -> vector<256x8xf32>
    %39 = arith.addf %34, %38 : vector<256x8xf32>
    %c1_40 = arith.constant 1 : index
    %c8_41 = arith.constant 8 : index
    %c0_42 = arith.constant 0 : index
    %40 = vector.load %arg8[%c1_40, %c8_41, %c0_42] : memref<18x25x128xf32, #tpu.memory_space<vmem>>, vector<16x16x128xf32>
    %41 = vector.shape_cast %40 : vector<16x16x128xf32> to vector<256x128xf32>
    %c512 = arith.constant 512 : index
    %c0_43 = arith.constant 0 : index
    %42 = vector.load %arg4[%c512, %c0_43] : memref<1152x8xf32, #tpu.memory_space<vmem>>, vector<128x8xf32>
    %cst_44 = arith.constant dense<0.000000e+00> : vector<256x8xf32>
    %43 = tpu.matmul %41, %42, %cst_44 {dimension_numbers = #tpu.dot_dimension_numbers<[1], [0], [0], [1], [0, 0, 1, 1], [], []>} : vector<256x128xf32>, vector<128x8xf32>, vector<256x8xf32> -> vector<256x8xf32>
    %44 = arith.addf %39, %43 : vector<256x8xf32>
    %c1_45 = arith.constant 1 : index
    %c9_46 = arith.constant 9 : index
    %c0_47 = arith.constant 0 : index
    %45 = vector.load %arg8[%c1_45, %c9_46, %c0_47] : memref<18x25x128xf32, #tpu.memory_space<vmem>>, vector<16x16x128xf32>
    %46 = vector.shape_cast %45 : vector<16x16x128xf32> to vector<256x128xf32>
    %c640 = arith.constant 640 : index
    %c0_48 = arith.constant 0 : index
    %47 = vector.load %arg4[%c640, %c0_48] : memref<1152x8xf32, #tpu.memory_space<vmem>>, vector<128x8xf32>
    %cst_49 = arith.constant dense<0.000000e+00> : vector<256x8xf32>
    %48 = tpu.matmul %46, %47, %cst_49 {dimension_numbers = #tpu.dot_dimension_numbers<[1], [0], [0], [1], [0, 0, 1, 1], [], []>} : vector<256x128xf32>, vector<128x8xf32>, vector<256x8xf32> -> vector<256x8xf32>
    %49 = arith.addf %44, %48 : vector<256x8xf32>
    %c2 = arith.constant 2 : index
    %c7_50 = arith.constant 7 : index
    %c0_51 = arith.constant 0 : index
    %50 = vector.load %arg8[%c2, %c7_50, %c0_51] : memref<18x25x128xf32, #tpu.memory_space<vmem>>, vector<16x16x128xf32>
    %51 = vector.shape_cast %50 : vector<16x16x128xf32> to vector<256x128xf32>
    %c768 = arith.constant 768 : index
    %c0_52 = arith.constant 0 : index
    %52 = vector.load %arg4[%c768, %c0_52] : memref<1152x8xf32, #tpu.memory_space<vmem>>, vector<128x8xf32>
    %cst_53 = arith.constant dense<0.000000e+00> : vector<256x8xf32>
    %53 = tpu.matmul %51, %52, %cst_53 {dimension_numbers = #tpu.dot_dimension_numbers<[1], [0], [0], [1], [0, 0, 1, 1], [], []>} : vector<256x128xf32>, vector<128x8xf32>, vector<256x8xf32> -> vector<256x8xf32>
    %54 = arith.addf %49, %53 : vector<256x8xf32>
    %c2_54 = arith.constant 2 : index
    %c8_55 = arith.constant 8 : index
    %c0_56 = arith.constant 0 : index
    %55 = vector.load %arg8[%c2_54, %c8_55, %c0_56] : memref<18x25x128xf32, #tpu.memory_space<vmem>>, vector<16x16x128xf32>
    %56 = vector.shape_cast %55 : vector<16x16x128xf32> to vector<256x128xf32>
    %c896 = arith.constant 896 : index
    %c0_57 = arith.constant 0 : index
    %57 = vector.load %arg4[%c896, %c0_57] : memref<1152x8xf32, #tpu.memory_space<vmem>>, vector<128x8xf32>
    %cst_58 = arith.constant dense<0.000000e+00> : vector<256x8xf32>
    %58 = tpu.matmul %56, %57, %cst_58 {dimension_numbers = #tpu.dot_dimension_numbers<[1], [0], [0], [1], [0, 0, 1, 1], [], []>} : vector<256x128xf32>, vector<128x8xf32>, vector<256x8xf32> -> vector<256x8xf32>
    %59 = arith.addf %54, %58 : vector<256x8xf32>
    %c2_59 = arith.constant 2 : index
    %c9_60 = arith.constant 9 : index
    %c0_61 = arith.constant 0 : index
    %60 = vector.load %arg8[%c2_59, %c9_60, %c0_61] : memref<18x25x128xf32, #tpu.memory_space<vmem>>, vector<16x16x128xf32>
    %61 = vector.shape_cast %60 : vector<16x16x128xf32> to vector<256x128xf32>
    %c1024 = arith.constant 1024 : index
    %c0_62 = arith.constant 0 : index
    %62 = vector.load %arg4[%c1024, %c0_62] : memref<1152x8xf32, #tpu.memory_space<vmem>>, vector<128x8xf32>
    %cst_63 = arith.constant dense<0.000000e+00> : vector<256x8xf32>
    %63 = tpu.matmul %61, %62, %cst_63 {dimension_numbers = #tpu.dot_dimension_numbers<[1], [0], [0], [1], [0, 0, 1, 1], [], []>} : vector<256x128xf32>, vector<128x8xf32>, vector<256x8xf32> -> vector<256x8xf32>
    %64 = arith.addf %59, %63 : vector<256x8xf32>
    %c0_64 = arith.constant 0 : index
    %c0_65 = arith.constant 0 : index
    %65 = vector.load %arg5[%c0_64, %c0_65] : memref<1x8xf32, #tpu.memory_space<vmem>>, vector<1x8xf32>
    %66 = vector.broadcast %65 : vector<1x8xf32> to vector<256x8xf32>
    %67 = arith.addf %64, %66 : vector<256x8xf32>
    %68 = vector.shape_cast %67 : vector<256x8xf32> to vector<16x16x8xf32>
    %c0_66 = arith.constant 0 : index
    %c0_67 = arith.constant 0 : index
    %c0_68 = arith.constant 0 : index
    %c0_69 = arith.constant 0 : index
    %69 = vector.load %arg6[%c0_66, %c0_67, %c0_68, %c0_69] : memref<1x16x16x8xf32, #tpu.memory_space<vmem>>, vector<1x16x16x8xf32>
    %70 = vector.shape_cast %69 : vector<1x16x16x8xf32> to vector<16x16x8xf32>
    %71 = vector.shape_cast %68 : vector<16x16x8xf32> to vector<1x16x16x8xf32>
    tpu.vector_store %arg6[%c0_66, %c0_67, %c0_68, %c0_69], %71 {strides = array<i32>} : memref<1x16x16x8xf32, #tpu.memory_space<vmem>>, vector<1x16x16x8xf32>,
    %cst_70 = arith.constant dense<0.000000e+00> : vector<8xf32>
    %72 = vector.multi_reduction <add>, %67, %cst_70 [0] : vector<256x8xf32> to vector<8xf32>
    %73 = arith.mulf %67, %67 : vector<256x8xf32>
    %cst_71 = arith.constant dense<0.000000e+00> : vector<8xf32>
    %74 = vector.multi_reduction <add>, %73, %cst_71 [0] : vector<256x8xf32> to vector<8xf32>
    %75 = vector.shape_cast %72 : vector<8xf32> to vector<1x8xf32>
    %76 = vector.shape_cast %74 : vector<8xf32> to vector<1x8xf32>
    %77 = tpu.concatenate %75, %76 in 0 : vector<1x8xf32>, vector<1x8xf32> -> vector<2x8xf32>
    %c0_72 = arith.constant 0 : index
    %c0_73 = arith.constant 0 : index
    %c0_74 = arith.constant 0 : index
    %78 = vector.load %arg7[%c0_72, %c0_73, %c0_74] : memref<1x2x8xf32, #tpu.memory_space<vmem>>, vector<1x2x8xf32>
    %79 = vector.shape_cast %78 : vector<1x2x8xf32> to vector<2x8xf32>
    %80 = vector.shape_cast %77 : vector<2x8xf32> to vector<1x2x8xf32>
    tpu.vector_store %arg7[%c0_72, %c0_73, %c0_74], %80 {strides = array<i32>} : memref<1x2x8xf32, #tpu.memory_space<vmem>>, vector<1x2x8xf32>,
    return
  }
  func.func @transform_0(%arg0: i32) -> (i32, i32, i32, i32) {
    %c0_i32 = arith.constant 0 : i32
    %c0_i32_0 = arith.constant 0 : i32
    %c0_i32_1 = arith.constant 0 : i32
    %c0_i32_2 = arith.constant 0 : i32
    return %arg0, %c0_i32, %c0_i32_0, %c0_i32_1 : i32, i32, i32, i32
  }
  func.func @transform_1(%arg0: i32) -> (i32, i32) {
    %c0_i32 = arith.constant 0 : i32
    %c0_i32_0 = arith.constant 0 : i32
    %c0_i32_1 = arith.constant 0 : i32
    return %c0_i32, %c0_i32_0 : i32, i32
  }
  func.func @transform_2(%arg0: i32) -> (i32, i32) {
    %c0_i32 = arith.constant 0 : i32
    %c0_i32_0 = arith.constant 0 : i32
    %c0_i32_1 = arith.constant 0 : i32
    return %c0_i32, %c0_i32_0 : i32, i32
  }
  func.func @transform_3(%arg0: i32) -> (i32, i32) {
    %c0_i32 = arith.constant 0 : i32
    %c0_i32_0 = arith.constant 0 : i32
    %c0_i32_1 = arith.constant 0 : i32
    return %c0_i32, %c0_i32_0 : i32, i32
  }
  func.func @transform_4(%arg0: i32) -> (i32, i32) {
    %c0_i32 = arith.constant 0 : i32
    %c0_i32_0 = arith.constant 0 : i32
    %c0_i32_1 = arith.constant 0 : i32
    return %c0_i32, %c0_i32_0 : i32, i32
  }
  func.func @transform_5(%arg0: i32) -> (i32, i32, i32, i32) {
    %c0_i32 = arith.constant 0 : i32
    %c0_i32_0 = arith.constant 0 : i32
    %c0_i32_1 = arith.constant 0 : i32
    %c0_i32_2 = arith.constant 0 : i32
    return %arg0, %c0_i32, %c0_i32_0, %c0_i32_1 : i32, i32, i32, i32
  }
  func.func @transform_6(%arg0: i32) -> (i32, i32, i32) {
    %c0_i32 = arith.constant 0 : i32
    %c0_i32_0 = arith.constant 0 : i32
    %c0_i32_1 = arith.constant 0 : i32
    return %arg0, %c0_i32, %c0_i32_0 : i32, i32, i32
  }
}

module attributes {stable_mosaic.version = 11 : i64} {
  func.func @_conv2_kernel(%arg0: i32, %arg1: memref<1x16x16x8xf32, #tpu.memory_space<vmem>>, %arg2: memref<1x16x16x4xf32, #tpu.memory_space<vmem>>, %arg3: memref<1x8xf32, #tpu.memory_space<vmem>>, %arg4: memref<1x8xf32, #tpu.memory_space<vmem>>, %arg5: memref<1152x8xf32, #tpu.memory_space<vmem>>, %arg6: memref<1x8xf32, #tpu.memory_space<vmem>>, %arg7: memref<1x4xf32, #tpu.memory_space<vmem>>, %arg8: memref<1x4xf32, #tpu.memory_space<vmem>>, %arg9: memref<1152x8xf32, #tpu.memory_space<vmem>>, %arg10: memref<1x8xf32, #tpu.memory_space<vmem>>, %arg11: memref<1x16x16x8xf32, #tpu.memory_space<vmem>>, %arg12: memref<18x25x128xf32, #tpu.memory_space<vmem>>) attributes {dimension_semantics = [#tpu.dimension_semantics<parallel>], iteration_bounds = array<i64: 2>, scalar_prefetch = 0 : i64, scratch_operands = 1 : i64, tpu.core_type = #tpu.core_type<tc>, window_params = [{transform_indices = @transform_0, window_bounds = array<i64: 1, 16, 16, 8>}, {transform_indices = @transform_1, window_bounds = array<i64: 1, 16, 16, 4>}, {pipeline_mode = #tpu.pipeline_mode<synchronous>, transform_indices = @transform_2, window_bounds = array<i64: 1, 8>}, {pipeline_mode = #tpu.pipeline_mode<synchronous>, transform_indices = @transform_3, window_bounds = array<i64: 1, 8>}, {pipeline_mode = #tpu.pipeline_mode<synchronous>, transform_indices = @transform_4, window_bounds = array<i64: 1152, 8>}, {pipeline_mode = #tpu.pipeline_mode<synchronous>, transform_indices = @transform_5, window_bounds = array<i64: 1, 8>}, {pipeline_mode = #tpu.pipeline_mode<synchronous>, transform_indices = @transform_6, window_bounds = array<i64: 1, 4>}, {pipeline_mode = #tpu.pipeline_mode<synchronous>, transform_indices = @transform_7, window_bounds = array<i64: 1, 4>}, {pipeline_mode = #tpu.pipeline_mode<synchronous>, transform_indices = @transform_8, window_bounds = array<i64: 1152, 8>}, {pipeline_mode = #tpu.pipeline_mode<synchronous>, transform_indices = @transform_9, window_bounds = array<i64: 1, 8>}, {transform_indices = @transform_10, window_bounds = array<i64: 1, 16, 16, 8>}]} {
    %cst = arith.constant 0.000000e+00 : f32
    %0 = vector.broadcast %cst : f32 to vector<1x25x128xf32>
    %c0 = arith.constant 0 : index
    %c0_0 = arith.constant 0 : index
    %c0_1 = arith.constant 0 : index
    %1 = vector.load %arg12[%c0, %c0_0, %c0_1] : memref<18x25x128xf32, #tpu.memory_space<vmem>>, vector<1x25x128xf32>
    tpu.vector_store %arg12[%c0, %c0_0, %c0_1], %0 {strides = array<i32>} : memref<18x25x128xf32, #tpu.memory_space<vmem>>, vector<1x25x128xf32>,
    %c17 = arith.constant 17 : index
    %c0_2 = arith.constant 0 : index
    %c0_3 = arith.constant 0 : index
    %2 = vector.load %arg12[%c17, %c0_2, %c0_3] : memref<18x25x128xf32, #tpu.memory_space<vmem>>, vector<1x25x128xf32>
    tpu.vector_store %arg12[%c17, %c0_2, %c0_3], %0 {strides = array<i32>} : memref<18x25x128xf32, #tpu.memory_space<vmem>>, vector<1x25x128xf32>,
    %cst_4 = arith.constant 0.000000e+00 : f32
    %3 = vector.broadcast %cst_4 : f32 to vector<18x1x128xf32>
    %c0_5 = arith.constant 0 : index
    %c7 = arith.constant 7 : index
    %c0_6 = arith.constant 0 : index
    %4 = vector.load %arg12[%c0_5, %c7, %c0_6] : memref<18x25x128xf32, #tpu.memory_space<vmem>>, vector<18x1x128xf32>
    tpu.vector_store %arg12[%c0_5, %c7, %c0_6], %3 {strides = array<i32>} : memref<18x25x128xf32, #tpu.memory_space<vmem>>, vector<18x1x128xf32>,
    %c0_7 = arith.constant 0 : index
    %c24 = arith.constant 24 : index
    %c0_8 = arith.constant 0 : index
    %5 = vector.load %arg12[%c0_7, %c24, %c0_8] : memref<18x25x128xf32, #tpu.memory_space<vmem>>, vector<18x1x128xf32>
    tpu.vector_store %arg12[%c0_7, %c24, %c0_8], %3 {strides = array<i32>} : memref<18x25x128xf32, #tpu.memory_space<vmem>>, vector<18x1x128xf32>,
    %c0_9 = arith.constant 0 : index
    %c0_10 = arith.constant 0 : index
    %c0_11 = arith.constant 0 : index
    %c0_12 = arith.constant 0 : index
    %6 = vector.load %arg2[%c0_9, %c0_10, %c0_11, %c0_12] : memref<1x16x16x4xf32, #tpu.memory_space<vmem>>, vector<1x16x16x4xf32>
    %7 = vector.shape_cast %6 : vector<1x16x16x4xf32> to vector<16x16x4xf32>
    %c0_13 = arith.constant 0 : index
    %c0_14 = arith.constant 0 : index
    %8 = vector.load %arg7[%c0_13, %c0_14] : memref<1x4xf32, #tpu.memory_space<vmem>>, vector<1x4xf32>
    %9 = vector.shape_cast %8 : vector<1x4xf32> to vector<1x1x4xf32>
    %10 = vector.broadcast %9 : vector<1x1x4xf32> to vector<16x16x4xf32>
    %11 = arith.mulf %7, %10 : vector<16x16x4xf32>
    %c0_15 = arith.constant 0 : index
    %c0_16 = arith.constant 0 : index
    %12 = vector.load %arg8[%c0_15, %c0_16] : memref<1x4xf32, #tpu.memory_space<vmem>>, vector<1x4xf32>
    %13 = vector.shape_cast %12 : vector<1x4xf32> to vector<1x1x4xf32>
    %14 = vector.broadcast %13 : vector<1x1x4xf32> to vector<16x16x4xf32>
    %15 = arith.addf %11, %14 : vector<16x16x4xf32>
    %cst_17 = arith.constant 0.000000e+00 : f32
    %16 = vector.broadcast %cst_17 : f32 to vector<16x16x124xf32>
    %17 = tpu.concatenate %15, %16 in 2 : vector<16x16x4xf32>, vector<16x16x124xf32> -> vector<16x16x128xf32>
    %c1 = arith.constant 1 : index
    %c8 = arith.constant 8 : index
    %c0_18 = arith.constant 0 : index
    %18 = vector.load %arg12[%c1, %c8, %c0_18] : memref<18x25x128xf32, #tpu.memory_space<vmem>>, vector<16x16x128xf32>
    tpu.vector_store %arg12[%c1, %c8, %c0_18], %17 {strides = array<i32>} : memref<18x25x128xf32, #tpu.memory_space<vmem>>, vector<16x16x128xf32>,
    %c0_19 = arith.constant 0 : index
    %c7_20 = arith.constant 7 : index
    %c0_21 = arith.constant 0 : index
    %19 = vector.load %arg12[%c0_19, %c7_20, %c0_21] : memref<18x25x128xf32, #tpu.memory_space<vmem>>, vector<16x16x128xf32>
    %20 = vector.shape_cast %19 : vector<16x16x128xf32> to vector<256x128xf32>
    %c0_22 = arith.constant 0 : index
    %c0_23 = arith.constant 0 : index
    %21 = vector.load %arg9[%c0_22, %c0_23] : memref<1152x8xf32, #tpu.memory_space<vmem>>, vector<128x8xf32>
    %cst_24 = arith.constant dense<0.000000e+00> : vector<256x8xf32>
    %22 = tpu.matmul %20, %21, %cst_24 {dimension_numbers = #tpu.dot_dimension_numbers<[1], [0], [0], [1], [0, 0, 1, 1], [], []>} : vector<256x128xf32>, vector<128x8xf32>, vector<256x8xf32> -> vector<256x8xf32>
    %c0_25 = arith.constant 0 : index
    %c8_26 = arith.constant 8 : index
    %c0_27 = arith.constant 0 : index
    %23 = vector.load %arg12[%c0_25, %c8_26, %c0_27] : memref<18x25x128xf32, #tpu.memory_space<vmem>>, vector<16x16x128xf32>
    %24 = vector.shape_cast %23 : vector<16x16x128xf32> to vector<256x128xf32>
    %c128 = arith.constant 128 : index
    %c0_28 = arith.constant 0 : index
    %25 = vector.load %arg9[%c128, %c0_28] : memref<1152x8xf32, #tpu.memory_space<vmem>>, vector<128x8xf32>
    %cst_29 = arith.constant dense<0.000000e+00> : vector<256x8xf32>
    %26 = tpu.matmul %24, %25, %cst_29 {dimension_numbers = #tpu.dot_dimension_numbers<[1], [0], [0], [1], [0, 0, 1, 1], [], []>} : vector<256x128xf32>, vector<128x8xf32>, vector<256x8xf32> -> vector<256x8xf32>
    %27 = arith.addf %22, %26 : vector<256x8xf32>
    %c0_30 = arith.constant 0 : index
    %c9 = arith.constant 9 : index
    %c0_31 = arith.constant 0 : index
    %28 = vector.load %arg12[%c0_30, %c9, %c0_31] : memref<18x25x128xf32, #tpu.memory_space<vmem>>, vector<16x16x128xf32>
    %29 = vector.shape_cast %28 : vector<16x16x128xf32> to vector<256x128xf32>
    %c256 = arith.constant 256 : index
    %c0_32 = arith.constant 0 : index
    %30 = vector.load %arg9[%c256, %c0_32] : memref<1152x8xf32, #tpu.memory_space<vmem>>, vector<128x8xf32>
    %cst_33 = arith.constant dense<0.000000e+00> : vector<256x8xf32>
    %31 = tpu.matmul %29, %30, %cst_33 {dimension_numbers = #tpu.dot_dimension_numbers<[1], [0], [0], [1], [0, 0, 1, 1], [], []>} : vector<256x128xf32>, vector<128x8xf32>, vector<256x8xf32> -> vector<256x8xf32>
    %32 = arith.addf %27, %31 : vector<256x8xf32>
    %c1_34 = arith.constant 1 : index
    %c7_35 = arith.constant 7 : index
    %c0_36 = arith.constant 0 : index
    %33 = vector.load %arg12[%c1_34, %c7_35, %c0_36] : memref<18x25x128xf32, #tpu.memory_space<vmem>>, vector<16x16x128xf32>
    %34 = vector.shape_cast %33 : vector<16x16x128xf32> to vector<256x128xf32>
    %c384 = arith.constant 384 : index
    %c0_37 = arith.constant 0 : index
    %35 = vector.load %arg9[%c384, %c0_37] : memref<1152x8xf32, #tpu.memory_space<vmem>>, vector<128x8xf32>
    %cst_38 = arith.constant dense<0.000000e+00> : vector<256x8xf32>
    %36 = tpu.matmul %34, %35, %cst_38 {dimension_numbers = #tpu.dot_dimension_numbers<[1], [0], [0], [1], [0, 0, 1, 1], [], []>} : vector<256x128xf32>, vector<128x8xf32>, vector<256x8xf32> -> vector<256x8xf32>
    %37 = arith.addf %32, %36 : vector<256x8xf32>
    %c1_39 = arith.constant 1 : index
    %c8_40 = arith.constant 8 : index
    %c0_41 = arith.constant 0 : index
    %38 = vector.load %arg12[%c1_39, %c8_40, %c0_41] : memref<18x25x128xf32, #tpu.memory_space<vmem>>, vector<16x16x128xf32>
    %39 = vector.shape_cast %38 : vector<16x16x128xf32> to vector<256x128xf32>
    %c512 = arith.constant 512 : index
    %c0_42 = arith.constant 0 : index
    %40 = vector.load %arg9[%c512, %c0_42] : memref<1152x8xf32, #tpu.memory_space<vmem>>, vector<128x8xf32>
    %cst_43 = arith.constant dense<0.000000e+00> : vector<256x8xf32>
    %41 = tpu.matmul %39, %40, %cst_43 {dimension_numbers = #tpu.dot_dimension_numbers<[1], [0], [0], [1], [0, 0, 1, 1], [], []>} : vector<256x128xf32>, vector<128x8xf32>, vector<256x8xf32> -> vector<256x8xf32>
    %42 = arith.addf %37, %41 : vector<256x8xf32>
    %c1_44 = arith.constant 1 : index
    %c9_45 = arith.constant 9 : index
    %c0_46 = arith.constant 0 : index
    %43 = vector.load %arg12[%c1_44, %c9_45, %c0_46] : memref<18x25x128xf32, #tpu.memory_space<vmem>>, vector<16x16x128xf32>
    %44 = vector.shape_cast %43 : vector<16x16x128xf32> to vector<256x128xf32>
    %c640 = arith.constant 640 : index
    %c0_47 = arith.constant 0 : index
    %45 = vector.load %arg9[%c640, %c0_47] : memref<1152x8xf32, #tpu.memory_space<vmem>>, vector<128x8xf32>
    %cst_48 = arith.constant dense<0.000000e+00> : vector<256x8xf32>
    %46 = tpu.matmul %44, %45, %cst_48 {dimension_numbers = #tpu.dot_dimension_numbers<[1], [0], [0], [1], [0, 0, 1, 1], [], []>} : vector<256x128xf32>, vector<128x8xf32>, vector<256x8xf32> -> vector<256x8xf32>
    %47 = arith.addf %42, %46 : vector<256x8xf32>
    %c2 = arith.constant 2 : index
    %c7_49 = arith.constant 7 : index
    %c0_50 = arith.constant 0 : index
    %48 = vector.load %arg12[%c2, %c7_49, %c0_50] : memref<18x25x128xf32, #tpu.memory_space<vmem>>, vector<16x16x128xf32>
    %49 = vector.shape_cast %48 : vector<16x16x128xf32> to vector<256x128xf32>
    %c768 = arith.constant 768 : index
    %c0_51 = arith.constant 0 : index
    %50 = vector.load %arg9[%c768, %c0_51] : memref<1152x8xf32, #tpu.memory_space<vmem>>, vector<128x8xf32>
    %cst_52 = arith.constant dense<0.000000e+00> : vector<256x8xf32>
    %51 = tpu.matmul %49, %50, %cst_52 {dimension_numbers = #tpu.dot_dimension_numbers<[1], [0], [0], [1], [0, 0, 1, 1], [], []>} : vector<256x128xf32>, vector<128x8xf32>, vector<256x8xf32> -> vector<256x8xf32>
    %52 = arith.addf %47, %51 : vector<256x8xf32>
    %c2_53 = arith.constant 2 : index
    %c8_54 = arith.constant 8 : index
    %c0_55 = arith.constant 0 : index
    %53 = vector.load %arg12[%c2_53, %c8_54, %c0_55] : memref<18x25x128xf32, #tpu.memory_space<vmem>>, vector<16x16x128xf32>
    %54 = vector.shape_cast %53 : vector<16x16x128xf32> to vector<256x128xf32>
    %c896 = arith.constant 896 : index
    %c0_56 = arith.constant 0 : index
    %55 = vector.load %arg9[%c896, %c0_56] : memref<1152x8xf32, #tpu.memory_space<vmem>>, vector<128x8xf32>
    %cst_57 = arith.constant dense<0.000000e+00> : vector<256x8xf32>
    %56 = tpu.matmul %54, %55, %cst_57 {dimension_numbers = #tpu.dot_dimension_numbers<[1], [0], [0], [1], [0, 0, 1, 1], [], []>} : vector<256x128xf32>, vector<128x8xf32>, vector<256x8xf32> -> vector<256x8xf32>
    %57 = arith.addf %52, %56 : vector<256x8xf32>
    %c2_58 = arith.constant 2 : index
    %c9_59 = arith.constant 9 : index
    %c0_60 = arith.constant 0 : index
    %58 = vector.load %arg12[%c2_58, %c9_59, %c0_60] : memref<18x25x128xf32, #tpu.memory_space<vmem>>, vector<16x16x128xf32>
    %59 = vector.shape_cast %58 : vector<16x16x128xf32> to vector<256x128xf32>
    %c1024 = arith.constant 1024 : index
    %c0_61 = arith.constant 0 : index
    %60 = vector.load %arg9[%c1024, %c0_61] : memref<1152x8xf32, #tpu.memory_space<vmem>>, vector<128x8xf32>
    %cst_62 = arith.constant dense<0.000000e+00> : vector<256x8xf32>
    %61 = tpu.matmul %59, %60, %cst_62 {dimension_numbers = #tpu.dot_dimension_numbers<[1], [0], [0], [1], [0, 0, 1, 1], [], []>} : vector<256x128xf32>, vector<128x8xf32>, vector<256x8xf32> -> vector<256x8xf32>
    %62 = arith.addf %57, %61 : vector<256x8xf32>
    %c0_63 = arith.constant 0 : index
    %c0_64 = arith.constant 0 : index
    %63 = vector.load %arg10[%c0_63, %c0_64] : memref<1x8xf32, #tpu.memory_space<vmem>>, vector<1x8xf32>
    %64 = vector.broadcast %63 : vector<1x8xf32> to vector<256x8xf32>
    %65 = arith.addf %62, %64 : vector<256x8xf32>
    %c0_65 = arith.constant 0 : index
    %c0_66 = arith.constant 0 : index
    %c0_67 = arith.constant 0 : index
    %c0_68 = arith.constant 0 : index
    %66 = vector.load %arg1[%c0_65, %c0_66, %c0_67, %c0_68] : memref<1x16x16x8xf32, #tpu.memory_space<vmem>>, vector<1x16x16x8xf32>
    %67 = vector.shape_cast %66 : vector<1x16x16x8xf32> to vector<16x16x8xf32>
    %c0_69 = arith.constant 0 : index
    %c0_70 = arith.constant 0 : index
    %68 = vector.load %arg3[%c0_69, %c0_70] : memref<1x8xf32, #tpu.memory_space<vmem>>, vector<1x8xf32>
    %69 = vector.shape_cast %68 : vector<1x8xf32> to vector<1x1x8xf32>
    %70 = vector.broadcast %69 : vector<1x1x8xf32> to vector<16x16x8xf32>
    %71 = arith.mulf %67, %70 : vector<16x16x8xf32>
    %c0_71 = arith.constant 0 : index
    %c0_72 = arith.constant 0 : index
    %72 = vector.load %arg4[%c0_71, %c0_72] : memref<1x8xf32, #tpu.memory_space<vmem>>, vector<1x8xf32>
    %73 = vector.shape_cast %72 : vector<1x8xf32> to vector<1x1x8xf32>
    %74 = vector.broadcast %73 : vector<1x1x8xf32> to vector<16x16x8xf32>
    %75 = arith.addf %71, %74 : vector<16x16x8xf32>
    %cst_73 = arith.constant 0.000000e+00 : f32
    %76 = vector.broadcast %cst_73 : f32 to vector<16x16x8xf32>
    %77 = arith.maximumf %75, %76 : vector<16x16x8xf32>
    %cst_74 = arith.constant 0.000000e+00 : f32
    %78 = vector.broadcast %cst_74 : f32 to vector<16x16x120xf32>
    %79 = tpu.concatenate %77, %78 in 2 : vector<16x16x8xf32>, vector<16x16x120xf32> -> vector<16x16x128xf32>
    %c1_75 = arith.constant 1 : index
    %c8_76 = arith.constant 8 : index
    %c0_77 = arith.constant 0 : index
    %80 = vector.load %arg12[%c1_75, %c8_76, %c0_77] : memref<18x25x128xf32, #tpu.memory_space<vmem>>, vector<16x16x128xf32>
    tpu.vector_store %arg12[%c1_75, %c8_76, %c0_77], %79 {strides = array<i32>} : memref<18x25x128xf32, #tpu.memory_space<vmem>>, vector<16x16x128xf32>,
    %c0_78 = arith.constant 0 : index
    %c7_79 = arith.constant 7 : index
    %c0_80 = arith.constant 0 : index
    %81 = vector.load %arg12[%c0_78, %c7_79, %c0_80] : memref<18x25x128xf32, #tpu.memory_space<vmem>>, vector<16x16x128xf32>
    %82 = vector.shape_cast %81 : vector<16x16x128xf32> to vector<256x128xf32>
    %c0_81 = arith.constant 0 : index
    %c0_82 = arith.constant 0 : index
    %83 = vector.load %arg5[%c0_81, %c0_82] : memref<1152x8xf32, #tpu.memory_space<vmem>>, vector<128x8xf32>
    %cst_83 = arith.constant dense<0.000000e+00> : vector<256x8xf32>
    %84 = tpu.matmul %82, %83, %cst_83 {dimension_numbers = #tpu.dot_dimension_numbers<[1], [0], [0], [1], [0, 0, 1, 1], [], []>} : vector<256x128xf32>, vector<128x8xf32>, vector<256x8xf32> -> vector<256x8xf32>
    %85 = arith.addf %65, %84 : vector<256x8xf32>
    %c0_84 = arith.constant 0 : index
    %c8_85 = arith.constant 8 : index
    %c0_86 = arith.constant 0 : index
    %86 = vector.load %arg12[%c0_84, %c8_85, %c0_86] : memref<18x25x128xf32, #tpu.memory_space<vmem>>, vector<16x16x128xf32>
    %87 = vector.shape_cast %86 : vector<16x16x128xf32> to vector<256x128xf32>
    %c128_87 = arith.constant 128 : index
    %c0_88 = arith.constant 0 : index
    %88 = vector.load %arg5[%c128_87, %c0_88] : memref<1152x8xf32, #tpu.memory_space<vmem>>, vector<128x8xf32>
    %cst_89 = arith.constant dense<0.000000e+00> : vector<256x8xf32>
    %89 = tpu.matmul %87, %88, %cst_89 {dimension_numbers = #tpu.dot_dimension_numbers<[1], [0], [0], [1], [0, 0, 1, 1], [], []>} : vector<256x128xf32>, vector<128x8xf32>, vector<256x8xf32> -> vector<256x8xf32>
    %90 = arith.addf %85, %89 : vector<256x8xf32>
    %c0_90 = arith.constant 0 : index
    %c9_91 = arith.constant 9 : index
    %c0_92 = arith.constant 0 : index
    %91 = vector.load %arg12[%c0_90, %c9_91, %c0_92] : memref<18x25x128xf32, #tpu.memory_space<vmem>>, vector<16x16x128xf32>
    %92 = vector.shape_cast %91 : vector<16x16x128xf32> to vector<256x128xf32>
    %c256_93 = arith.constant 256 : index
    %c0_94 = arith.constant 0 : index
    %93 = vector.load %arg5[%c256_93, %c0_94] : memref<1152x8xf32, #tpu.memory_space<vmem>>, vector<128x8xf32>
    %cst_95 = arith.constant dense<0.000000e+00> : vector<256x8xf32>
    %94 = tpu.matmul %92, %93, %cst_95 {dimension_numbers = #tpu.dot_dimension_numbers<[1], [0], [0], [1], [0, 0, 1, 1], [], []>} : vector<256x128xf32>, vector<128x8xf32>, vector<256x8xf32> -> vector<256x8xf32>
    %95 = arith.addf %90, %94 : vector<256x8xf32>
    %c1_96 = arith.constant 1 : index
    %c7_97 = arith.constant 7 : index
    %c0_98 = arith.constant 0 : index
    %96 = vector.load %arg12[%c1_96, %c7_97, %c0_98] : memref<18x25x128xf32, #tpu.memory_space<vmem>>, vector<16x16x128xf32>
    %97 = vector.shape_cast %96 : vector<16x16x128xf32> to vector<256x128xf32>
    %c384_99 = arith.constant 384 : index
    %c0_100 = arith.constant 0 : index
    %98 = vector.load %arg5[%c384_99, %c0_100] : memref<1152x8xf32, #tpu.memory_space<vmem>>, vector<128x8xf32>
    %cst_101 = arith.constant dense<0.000000e+00> : vector<256x8xf32>
    %99 = tpu.matmul %97, %98, %cst_101 {dimension_numbers = #tpu.dot_dimension_numbers<[1], [0], [0], [1], [0, 0, 1, 1], [], []>} : vector<256x128xf32>, vector<128x8xf32>, vector<256x8xf32> -> vector<256x8xf32>
    %100 = arith.addf %95, %99 : vector<256x8xf32>
    %c1_102 = arith.constant 1 : index
    %c8_103 = arith.constant 8 : index
    %c0_104 = arith.constant 0 : index
    %101 = vector.load %arg12[%c1_102, %c8_103, %c0_104] : memref<18x25x128xf32, #tpu.memory_space<vmem>>, vector<16x16x128xf32>
    %102 = vector.shape_cast %101 : vector<16x16x128xf32> to vector<256x128xf32>
    %c512_105 = arith.constant 512 : index
    %c0_106 = arith.constant 0 : index
    %103 = vector.load %arg5[%c512_105, %c0_106] : memref<1152x8xf32, #tpu.memory_space<vmem>>, vector<128x8xf32>
    %cst_107 = arith.constant dense<0.000000e+00> : vector<256x8xf32>
    %104 = tpu.matmul %102, %103, %cst_107 {dimension_numbers = #tpu.dot_dimension_numbers<[1], [0], [0], [1], [0, 0, 1, 1], [], []>} : vector<256x128xf32>, vector<128x8xf32>, vector<256x8xf32> -> vector<256x8xf32>
    %105 = arith.addf %100, %104 : vector<256x8xf32>
    %c1_108 = arith.constant 1 : index
    %c9_109 = arith.constant 9 : index
    %c0_110 = arith.constant 0 : index
    %106 = vector.load %arg12[%c1_108, %c9_109, %c0_110] : memref<18x25x128xf32, #tpu.memory_space<vmem>>, vector<16x16x128xf32>
    %107 = vector.shape_cast %106 : vector<16x16x128xf32> to vector<256x128xf32>
    %c640_111 = arith.constant 640 : index
    %c0_112 = arith.constant 0 : index
    %108 = vector.load %arg5[%c640_111, %c0_112] : memref<1152x8xf32, #tpu.memory_space<vmem>>, vector<128x8xf32>
    %cst_113 = arith.constant dense<0.000000e+00> : vector<256x8xf32>
    %109 = tpu.matmul %107, %108, %cst_113 {dimension_numbers = #tpu.dot_dimension_numbers<[1], [0], [0], [1], [0, 0, 1, 1], [], []>} : vector<256x128xf32>, vector<128x8xf32>, vector<256x8xf32> -> vector<256x8xf32>
    %110 = arith.addf %105, %109 : vector<256x8xf32>
    %c2_114 = arith.constant 2 : index
    %c7_115 = arith.constant 7 : index
    %c0_116 = arith.constant 0 : index
    %111 = vector.load %arg12[%c2_114, %c7_115, %c0_116] : memref<18x25x128xf32, #tpu.memory_space<vmem>>, vector<16x16x128xf32>
    %112 = vector.shape_cast %111 : vector<16x16x128xf32> to vector<256x128xf32>
    %c768_117 = arith.constant 768 : index
    %c0_118 = arith.constant 0 : index
    %113 = vector.load %arg5[%c768_117, %c0_118] : memref<1152x8xf32, #tpu.memory_space<vmem>>, vector<128x8xf32>
    %cst_119 = arith.constant dense<0.000000e+00> : vector<256x8xf32>
    %114 = tpu.matmul %112, %113, %cst_119 {dimension_numbers = #tpu.dot_dimension_numbers<[1], [0], [0], [1], [0, 0, 1, 1], [], []>} : vector<256x128xf32>, vector<128x8xf32>, vector<256x8xf32> -> vector<256x8xf32>
    %115 = arith.addf %110, %114 : vector<256x8xf32>
    %c2_120 = arith.constant 2 : index
    %c8_121 = arith.constant 8 : index
    %c0_122 = arith.constant 0 : index
    %116 = vector.load %arg12[%c2_120, %c8_121, %c0_122] : memref<18x25x128xf32, #tpu.memory_space<vmem>>, vector<16x16x128xf32>
    %117 = vector.shape_cast %116 : vector<16x16x128xf32> to vector<256x128xf32>
    %c896_123 = arith.constant 896 : index
    %c0_124 = arith.constant 0 : index
    %118 = vector.load %arg5[%c896_123, %c0_124] : memref<1152x8xf32, #tpu.memory_space<vmem>>, vector<128x8xf32>
    %cst_125 = arith.constant dense<0.000000e+00> : vector<256x8xf32>
    %119 = tpu.matmul %117, %118, %cst_125 {dimension_numbers = #tpu.dot_dimension_numbers<[1], [0], [0], [1], [0, 0, 1, 1], [], []>} : vector<256x128xf32>, vector<128x8xf32>, vector<256x8xf32> -> vector<256x8xf32>
    %120 = arith.addf %115, %119 : vector<256x8xf32>
    %c2_126 = arith.constant 2 : index
    %c9_127 = arith.constant 9 : index
    %c0_128 = arith.constant 0 : index
    %121 = vector.load %arg12[%c2_126, %c9_127, %c0_128] : memref<18x25x128xf32, #tpu.memory_space<vmem>>, vector<16x16x128xf32>
    %122 = vector.shape_cast %121 : vector<16x16x128xf32> to vector<256x128xf32>
    %c1024_129 = arith.constant 1024 : index
    %c0_130 = arith.constant 0 : index
    %123 = vector.load %arg5[%c1024_129, %c0_130] : memref<1152x8xf32, #tpu.memory_space<vmem>>, vector<128x8xf32>
    %cst_131 = arith.constant dense<0.000000e+00> : vector<256x8xf32>
    %124 = tpu.matmul %122, %123, %cst_131 {dimension_numbers = #tpu.dot_dimension_numbers<[1], [0], [0], [1], [0, 0, 1, 1], [], []>} : vector<256x128xf32>, vector<128x8xf32>, vector<256x8xf32> -> vector<256x8xf32>
    %125 = arith.addf %120, %124 : vector<256x8xf32>
    %c0_132 = arith.constant 0 : index
    %c0_133 = arith.constant 0 : index
    %126 = vector.load %arg6[%c0_132, %c0_133] : memref<1x8xf32, #tpu.memory_space<vmem>>, vector<1x8xf32>
    %127 = vector.broadcast %126 : vector<1x8xf32> to vector<256x8xf32>
    %128 = arith.addf %125, %127 : vector<256x8xf32>
    %129 = vector.shape_cast %128 : vector<256x8xf32> to vector<16x16x8xf32>
    %c0_134 = arith.constant 0 : index
    %c0_135 = arith.constant 0 : index
    %c0_136 = arith.constant 0 : index
    %c0_137 = arith.constant 0 : index
    %130 = vector.load %arg11[%c0_134, %c0_135, %c0_136, %c0_137] : memref<1x16x16x8xf32, #tpu.memory_space<vmem>>, vector<1x16x16x8xf32>
    %131 = vector.shape_cast %130 : vector<1x16x16x8xf32> to vector<16x16x8xf32>
    %132 = vector.shape_cast %129 : vector<16x16x8xf32> to vector<1x16x16x8xf32>
    tpu.vector_store %arg11[%c0_134, %c0_135, %c0_136, %c0_137], %132 {strides = array<i32>} : memref<1x16x16x8xf32, #tpu.memory_space<vmem>>, vector<1x16x16x8xf32>,
    return
  }
  func.func @transform_0(%arg0: i32) -> (i32, i32, i32, i32) {
    %c0_i32 = arith.constant 0 : i32
    %c0_i32_0 = arith.constant 0 : i32
    %c0_i32_1 = arith.constant 0 : i32
    %c0_i32_2 = arith.constant 0 : i32
    return %arg0, %c0_i32, %c0_i32_0, %c0_i32_1 : i32, i32, i32, i32
  }
  func.func @transform_1(%arg0: i32) -> (i32, i32, i32, i32) {
    %c0_i32 = arith.constant 0 : i32
    %c0_i32_0 = arith.constant 0 : i32
    %c0_i32_1 = arith.constant 0 : i32
    %c0_i32_2 = arith.constant 0 : i32
    return %arg0, %c0_i32, %c0_i32_0, %c0_i32_1 : i32, i32, i32, i32
  }
  func.func @transform_2(%arg0: i32) -> (i32, i32) {
    %c0_i32 = arith.constant 0 : i32
    %c0_i32_0 = arith.constant 0 : i32
    %c0_i32_1 = arith.constant 0 : i32
    return %c0_i32, %c0_i32_0 : i32, i32
  }
  func.func @transform_3(%arg0: i32) -> (i32, i32) {
    %c0_i32 = arith.constant 0 : i32
    %c0_i32_0 = arith.constant 0 : i32
    %c0_i32_1 = arith.constant 0 : i32
    return %c0_i32, %c0_i32_0 : i32, i32
  }
  func.func @transform_4(%arg0: i32) -> (i32, i32) {
    %c0_i32 = arith.constant 0 : i32
    %c0_i32_0 = arith.constant 0 : i32
    %c0_i32_1 = arith.constant 0 : i32
    return %c0_i32, %c0_i32_0 : i32, i32
  }
  func.func @transform_5(%arg0: i32) -> (i32, i32) {
    %c0_i32 = arith.constant 0 : i32
    %c0_i32_0 = arith.constant 0 : i32
    %c0_i32_1 = arith.constant 0 : i32
    return %c0_i32, %c0_i32_0 : i32, i32
  }
  func.func @transform_6(%arg0: i32) -> (i32, i32) {
    %c0_i32 = arith.constant 0 : i32
    %c0_i32_0 = arith.constant 0 : i32
    %c0_i32_1 = arith.constant 0 : i32
    return %c0_i32, %c0_i32_0 : i32, i32
  }
  func.func @transform_7(%arg0: i32) -> (i32, i32) {
    %c0_i32 = arith.constant 0 : i32
    %c0_i32_0 = arith.constant 0 : i32
    %c0_i32_1 = arith.constant 0 : i32
    return %c0_i32, %c0_i32_0 : i32, i32
  }
  func.func @transform_8(%arg0: i32) -> (i32, i32) {
    %c0_i32 = arith.constant 0 : i32
    %c0_i32_0 = arith.constant 0 : i32
    %c0_i32_1 = arith.constant 0 : i32
    return %c0_i32, %c0_i32_0 : i32, i32
  }
  func.func @transform_9(%arg0: i32) -> (i32, i32) {
    %c0_i32 = arith.constant 0 : i32
    %c0_i32_0 = arith.constant 0 : i32
    %c0_i32_1 = arith.constant 0 : i32
    return %c0_i32, %c0_i32_0 : i32, i32
  }
  func.func @transform_10(%arg0: i32) -> (i32, i32, i32, i32) {
    %c0_i32 = arith.constant 0 : i32
    %c0_i32_0 = arith.constant 0 : i32
    %c0_i32_1 = arith.constant 0 : i32
    %c0_i32_2 = arith.constant 0 : i32
    return %arg0, %c0_i32, %c0_i32_0, %c0_i32_1 : i32, i32, i32, i32
  }
}

</mosaic_0001>

<llo_original>
// kernel: double_conv_forward.2
$region0: #{double_conv_forward.2}
  #allocation0 [shape = 'u32[]', space=smem, size = 0x4, offset = 0x4, fixed_abs, tag = 'smem constant byte address 0x4 - core index']
  #allocation1 [shape = 'u32[144,128]{1,0:T(1,128)}', space=vmem, size = 0x12000, scoped, tag = 'internal scratch']
  #allocation2 [shape = 'f32[18,25,128]{2,1,0:T(8,128)}', space=vmem, size = 0x48000, scoped, tag = 'scratch operand']
  %s0 = inlined_call_operand.vmem [shape: f32[2,16,16,4], index: 0, kind: input, shape index: {}]
  %s1 = inlined_call_operand.vmem [shape: f32[1,4], index: 1, kind: input, shape index: {}]
  %s2 = inlined_call_operand.vmem [shape: f32[1,4], index: 2, kind: input, shape index: {}]
  %s3 = inlined_call_operand.vmem [shape: f32[1152,8], index: 3, kind: input, shape index: {}]
  %s4 = inlined_call_operand.vmem [shape: f32[1,8], index: 4, kind: input, shape index: {}]
  %s5 = inlined_call_operand.vmem [shape: f32[2,16,16,8], index: 5, kind: output, shape index: {0}]
  %s6 = inlined_call_operand.vmem [shape: f32[2,2,8], index: 6, kind: output, shape index: {1}]
  %7 = xla_tuple %s5, %s6
  %s8 = sld [smem:[#allocation0]]
  $region61: #{double_conv_forward.2} parent=0
    _
  %s10 = ssub.s32 1, %s8
  %s11 = scalar_select 0, %s10, %s8
  loop: start=0, step=1, limit=4
  $region2: #{double_conv_forward.2} parent=0 // loop_pre_header
    _
  $region3: #{double_conv_forward.2} parent=0 // loop_header
    %s13 = sphi 0, %s17
    %p14 = scmp.ge.s32.totalorder %s13, 4
    %s23 = sphi 0, %s25
    %s26 = sphi 0, %s23
    %s27 = sphi 0, %s26
    %s43 = sphi 0, %s27
    %s47 = sphi 0, %s47
    %s49 = sphi 0, %s47
    %s50 = sphi 0, %s49
    %s64 = sphi 0, %s50
    %s68 = sphi 0, %s68
    %s70 = sphi 0, %s68
    %s71 = sphi 0, %s70
    %s85 = sphi 0, %s71
    %s89 = sphi 0, %s89
    %s91 = sphi 0, %s89
    %s92 = sphi 0, %s91
    %s106 = sphi 0, %s92
    %s110 = sphi 0, %s110
    %s112 = sphi 0, %s110
    %s113 = sphi 0, %s112
    %s127 = sphi 0, %s113
    %s133 = sphi 0, %s135
    %s136 = sphi 0, %s133
    %s137 = sphi 0, %s136
    %s153 = sphi 0, %s137
    %s159 = sphi 0, %s161
    %s162 = sphi 0, %s159
    %s163 = sphi 0, %s162
    %s179 = sphi 0, %s163
  $region4: #{double_conv_forward.2} parent=0 // loop_header_branch
    %16 = sbr.rel (%p14) target = $region8
  $region5: #{double_conv_forward.2} parent=0 // loop_body
    %s18 = ssub.s32 %s13, 1
    %s19 = ssub.s32 %s13, 2
    %s20 = sadd.s32 %s13, 1
    %s21 = ssub.s32 %s13, %s20
    %p22 = scmp.eq.s32.totalorder %s21, 0
    %s24 = sadd.s32 %s23, 1
    %s25 = scalar_select %p22, %s23, %s24
    %p28 = pneg %p22
    %p29 = scmp.eq.s32.totalorder %s13, 1
    %p30 = por %p28, %p29
    %p31 = scmp.ne.s32.totalorder %s23, %s26
    %p32 = scmp.eq.s32.totalorder %s13, 0
    %p33 = por %p31, %p32
    %p34 = scmp.ne.s32.totalorder %s23, %s26
    %p35 = scmp.eq.s32.totalorder %s18, 1
    %p36 = por %p34, %p35
    %p37 = scmp.ne.s32.totalorder %s26, %s27
    %p38 = scmp.eq.s32.totalorder %s18, 0
    %p39 = por %p37, %p38
    %p40 = scmp.ne.s32.totalorder %s26, %s27
    %p41 = scmp.eq.s32.totalorder %s19, 1
    %p42 = por %p40, %p41
    %p44 = scmp.ne.s32.totalorder %s27, %s43
    %p45 = scmp.eq.s32.totalorder %s19, 0
    %p46 = por %p44, %p45
    %s48 = sadd.s32 %s47, 1
    %p51 = scmp.eq.s32.totalorder %s13, 1
    %p52 = scmp.ne.s32.totalorder %s47, %s49
    %p53 = scmp.eq.s32.totalorder %s13, 0
    %p54 = por %p52, %p53
    %p55 = scmp.ne.s32.totalorder %s47, %s49
    %p56 = scmp.eq.s32.totalorder %s18, 1
    %p57 = por %p55, %p56
    %p58 = scmp.ne.s32.totalorder %s49, %s50
    %p59 = scmp.eq.s32.totalorder %s18, 0
    %p60 = por %p58, %p59
    %p61 = scmp.ne.s32.totalorder %s49, %s50
    %p62 = scmp.eq.s32.totalorder %s19, 1
    %p63 = por %p61, %p62
    %p65 = scmp.ne.s32.totalorder %s50, %s64
    %p66 = scmp.eq.s32.totalorder %s19, 0
    %p67 = por %p65, %p66
    %s69 = sadd.s32 %s68, 1
    %p72 = scmp.eq.s32.totalorder %s13, 1
    %p73 = scmp.ne.s32.totalorder %s68, %s70
    %p74 = scmp.eq.s32.totalorder %s13, 0
    %p75 = por %p73, %p74
    %p76 = scmp.ne.s32.totalorder %s68, %s70
    %p77 = scmp.eq.s32.totalorder %s18, 1
    %p78 = por %p76, %p77
    %p79 = scmp.ne.s32.totalorder %s70, %s71
    %p80 = scmp.eq.s32.totalorder %s18, 0
    %p81 = por %p79, %p80
    %p82 = scmp.ne.s32.totalorder %s70, %s71
    %p83 = scmp.eq.s32.totalorder %s19, 1
    %p84 = por %p82, %p83
    %p86 = scmp.ne.s32.totalorder %s71, %s85
    %p87 = scmp.eq.s32.totalorder %s19, 0
    %p88 = por %p86, %p87
    %s90 = sadd.s32 %s89, 1
    %p93 = scmp.eq.s32.totalorder %s13, 1
    %p94 = scmp.ne.s32.totalorder %s89, %s91
    %p95 = scmp.eq.s32.totalorder %s13, 0
    %p96 = por %p94, %p95
    %p97 = scmp.ne.s32.totalorder %s89, %s91
    %p98 = scmp.eq.s32.totalorder %s18, 1
    %p99 = por %p97, %p98
    %p100 = scmp.ne.s32.totalorder %s91, %s92
    %p101 = scmp.eq.s32.totalorder %s18, 0
    %p102 = por %p100, %p101
    %p103 = scmp.ne.s32.totalorder %s91, %s92
    %p104 = scmp.eq.s32.totalorder %s19, 1
    %p105 = por %p103, %p104
    %p107 = scmp.ne.s32.totalorder %s92, %s106
    %p108 = scmp.eq.s32.totalorder %s19, 0
    %p109 = por %p107, %p108
    %s111 = sadd.s32 %s110, 1
    %p114 = scmp.eq.s32.totalorder %s13, 1
    %p115 = scmp.ne.s32.totalorder %s110, %s112
    %p116 = scmp.eq.s32.totalorder %s13, 0
    %p117 = por %p115, %p116
    %p118 = scmp.ne.s32.totalorder %s110, %s112
    %p119 = scmp.eq.s32.totalorder %s18, 1
    %p120 = por %p118, %p119
    %p121 = scmp.ne.s32.totalorder %s112, %s113
    %p122 = scmp.eq.s32.totalorder %s18, 0
    %p123 = por %p121, %p122
    %p124 = scmp.ne.s32.totalorder %s112, %s113
    %p125 = scmp.eq.s32.totalorder %s19, 1
    %p126 = por %p124, %p125
    %p128 = scmp.ne.s32.totalorder %s113, %s127
    %p129 = scmp.eq.s32.totalorder %s19, 0
    %p130 = por %p128, %p129
    %s131 = ssub.s32 %s13, %s20
    %p132 = scmp.eq.s32.totalorder %s131, 0
    %s134 = sadd.s32 %s133, 1
    %s135 = scalar_select %p132, %s133, %s134
    %p138 = pneg %p132
    %p139 = scmp.eq.s32.totalorder %s13, 1
    %p140 = por %p138, %p139
    %p141 = scmp.ne.s32.totalorder %s133, %s136
    %p142 = scmp.eq.s32.totalorder %s13, 0
    %p143 = por %p141, %p142
    %p144 = scmp.ne.s32.totalorder %s133, %s136
    %p145 = scmp.eq.s32.totalorder %s18, 1
    %p146 = por %p144, %p145
    %p147 = scmp.ne.s32.totalorder %s136, %s137
    %p148 = scmp.eq.s32.totalorder %s18, 0
    %p149 = por %p147, %p148
    %p150 = scmp.ne.s32.totalorder %s136, %s137
    %p151 = scmp.eq.s32.totalorder %s19, 1
    %p152 = por %p150, %p151
    %p154 = scmp.ne.s32.totalorder %s137, %s153
    %p155 = scmp.eq.s32.totalorder %s19, 0
    %p156 = por %p154, %p155
    %s157 = ssub.s32 %s13, %s20
    %p158 = scmp.eq.s32.totalorder %s157, 0
    %s160 = sadd.s32 %s159, 1
    %s161 = scalar_select %p158, %s159, %s160
    %p164 = pneg %p158
    %p165 = scmp.eq.s32.totalorder %s13, 1
    %p166 = por %p164, %p165
    %p167 = scmp.ne.s32.totalorder %s159, %s162
    %p168 = scmp.eq.s32.totalorder %s13, 0
    %p169 = por %p167, %p168
    %p170 = scmp.ne.s32.totalorder %s159, %s162
    %p171 = scmp.eq.s32.totalorder %s18, 1
    %p172 = por %p170, %p171
    %p173 = scmp.ne.s32.totalorder %s162, %s163
    %p174 = scmp.eq.s32.totalorder %s18, 0
    %p175 = por %p173, %p174
    %p176 = scmp.ne.s32.totalorder %s162, %s163
    %p177 = scmp.eq.s32.totalorder %s19, 1
    %p178 = por %p176, %p177
    %p180 = scmp.ne.s32.totalorder %s163, %s179
    %p181 = scmp.eq.s32.totalorder %s19, 0
    %p182 = por %p180, %p181
    %p183 = scmp.le.s32.totalorder 1, %s13
    %p184 = scmp.lt.s32.totalorder %s13, 3
    %p185 = pnand %p183, %p184
    %p186 = pneg %p185
    // Predicated region
    $region9: #{double_conv_forward.2} parent=5 // pred_check
      _
    $region10: #{double_conv_forward.2} parent=5 // pred_check_branch
      %188 = sbr.rel (%p185) target = $region12
    $region11: #{double_conv_forward.2} parent=5 // pred_region
      %s189 = ssub.s32 %s13, 1
      // Predicated region
      $region13: #{double_conv_forward.2} parent=11 // pred_check
        %p190 = pneg %p60
      $region14: #{double_conv_forward.2} parent=11 // pred_check_branch
        %192 = sbr.rel (%p190) target = $region16
      $region15: #{double_conv_forward.2} parent=11 // pred_region
        _
      $region16: #{double_conv_forward.2} parent=11 // pred_fallthru
        _
      // Predicated region
      $region17: #{double_conv_forward.2} parent=11 // pred_check
        %p193 = pneg %p81
      $region18: #{double_conv_forward.2} parent=11 // pred_check_branch
        %195 = sbr.rel (%p193) target = $region20
      $region19: #{double_conv_forward.2} parent=11 // pred_region
        _
      $region20: #{double_conv_forward.2} parent=11 // pred_fallthru
        _
      // Predicated region
      $region21: #{double_conv_forward.2} parent=11 // pred_check
        %p196 = pneg %p102
      $region22: #{double_conv_forward.2} parent=11 // pred_check_branch
        %198 = sbr.rel (%p196) target = $region24
      $region23: #{double_conv_forward.2} parent=11 // pred_region
        _
      $region24: #{double_conv_forward.2} parent=11 // pred_fallthru
        _
      // Predicated region
      $region25: #{double_conv_forward.2} parent=11 // pred_check
        %p199 = pneg %p123
      $region26: #{double_conv_forward.2} parent=11 // pred_check_branch
        %201 = sbr.rel (%p199) target = $region28
      $region27: #{double_conv_forward.2} parent=11 // pred_region
        _
      $region28: #{double_conv_forward.2} parent=11 // pred_fallthru
        _
    $region12: #{double_conv_forward.2} parent=5 // pred_fallthru
      _
    %p202 = scmp.lt.s32.totalorder %s13, 2
    // Predicated region
    $region29: #{double_conv_forward.2} parent=5 // pred_check
      %p203 = pneg %p202
    $region30: #{double_conv_forward.2} parent=5 // pred_check_branch
      %205 = sbr.rel (%p203) target = $region32
    $region31: #{double_conv_forward.2} parent=5 // pred_region
      // Predicated region
      $region33: #{double_conv_forward.2} parent=31 // pred_check
        %p206 = pneg %p33
      $region34: #{double_conv_forward.2} parent=31 // pred_check_branch
        %208 = sbr.rel (%p206) target = $region36
      $region35: #{double_conv_forward.2} parent=31 // pred_region
        %p209 = scmp.lt.s32.totalorder %s13, 1
        %s210 = scalar_select %p209, %s13, 1
        %s211 = smul.addr %s210, 32
        %s212 = smul.addr %s211, 8
        %s213 = scalar_lea.vmem %s0, %s212
      $region36: #{double_conv_forward.2} parent=31 // pred_fallthru
        _
    $region32: #{double_conv_forward.2} parent=5 // pred_fallthru
      _
    %p214 = scmp.le.s32.totalorder 1, %s13
    %p215 = scmp.lt.s32.totalorder %s13, 3
    %p216 = pnand %p214, %p215
    %p217 = pneg %p216
    // Predicated region
    $region37: #{double_conv_forward.2} parent=5 // pred_check
      _
    $region38: #{double_conv_forward.2} parent=5 // pred_check_branch
      %219 = sbr.rel (%p216) target = $region40
    $region39: #{double_conv_forward.2} parent=5 // pred_region
      %s220 = ssub.s32 %s13, 1
      %p221 = scmp.lt.s32.totalorder %s18, 1
      %s222 = scalar_select %p221, %s18, 1
      %s223 = smul.addr %s222, 32
      %s224 = smul.addr %s223, 8
      %s225 = scalar_lea.vmem %s0, %s224
      %p226 = pneg %p39
      %p227 = pneg %p36
      %p228 = pneg %p60
      %p229 = pneg %p57
      %p230 = pneg %p81
      %p231 = pneg %p78
      %p232 = pneg %p102
      %p233 = pneg %p99
      %p234 = pneg %p123
      %p235 = pneg %p120
      %p236 = pneg %p149
      %p237 = pneg %p146
      %p238 = scmp.lt.s32.totalorder %s18, 1
      %s239 = scalar_select %p238, %s18, 1
      %s240 = smul.addr %s239, 32
      %s241 = smul.addr %s240, 8
      %s242 = scalar_lea.vmem %s5, %s241
      %p243 = pneg %p175
      %p244 = pneg %p172
      %p245 = scmp.lt.s32.totalorder %s18, 1
      %s246 = scalar_select %p245, %s18, 1
      %s247 = smul.addr %s246, 2
      %s248 = scalar_lea.vmem %s6, %s247
      %p249 = scmp.lt.s32.totalorder %s18, 1
      %s250 = scalar_select %p249, %s18, 1
      %s251 = smul.addr %s250, 32
      %s252 = smul.addr %s251, 8
      %s253 = scalar_lea.vmem %s0, %s252
      %p254 = scmp.lt.s32.totalorder %s18, 1
      %s255 = scalar_select %p254, %s18, 1
      %s256 = smul.addr %s255, 32
      %s257 = smul.addr %s256, 8
      %s258 = scalar_lea.vmem %s5, %s257
      %p259 = scmp.lt.s32.totalorder %s18, 1
      %s260 = scalar_select %p259, %s18, 1
      %s261 = smul.addr %s260, 2
      %s262 = scalar_lea.vmem %s6, %s261
      %263 = vst [vmem:[#allocation2] sm:$0xff] 0.0
      %264 = vst [vmem:[#allocation2 + $0x8] sm:$0xff] 0.0
      %265 = vst [vmem:[#allocation2 + $0x10] sm:$0xff] 0.0
      %266 = vst [vmem:[#allocation2 + $0x18] sm:$0x1] 0.0
      %s267 = scalar_lea.vmem [#allocation2], 544
      %268 = vst [vmem:[%s267] sm:$0xff] 0.0
      %269 = vst [vmem:[%s267 + $0x8] sm:$0xff] 0.0
      %270 = vst [vmem:[%s267 + $0x10] sm:$0xff] 0.0
      %271 = vst [vmem:[%s267 + $0x18] sm:$0x1] 0.0
      %272 = vst [vmem:[#allocation2 + $0x7] sm:$0x1] 0.0
      %273 = vst [vmem:[#allocation2 + $0x27] sm:$0x1] 0.0
      %274 = vst [vmem:[#allocation2 + $0x47] sm:$0x1] 0.0
      %275 = vst [vmem:[#allocation2 + $0x67] sm:$0x1] 0.0
      %276 = vst [vmem:[#allocation2 + $0x87] sm:$0x1] 0.0
      %277 = vst [vmem:[#allocation2 + $0xa7] sm:$0x1] 0.0
      %278 = vst [vmem:[#allocation2 + $0xc7] sm:$0x1] 0.0
      %279 = vst [vmem:[#allocation2 + $0xe7] sm:$0x1] 0.0
      %280 = vst [vmem:[#allocation2 + $0x107] sm:$0x1] 0.0
      %281 = vst [vmem:[#allocation2 + $0x127] sm:$0x1] 0.0
      %282 = vst [vmem:[#allocation2 + $0x147] sm:$0x1] 0.0
      %283 = vst [vmem:[#allocation2 + $0x167] sm:$0x1] 0.0
      %284 = vst [vmem:[#allocation2 + $0x187] sm:$0x1] 0.0
      %285 = vst [vmem:[#allocation2 + $0x1a7] sm:$0x1] 0.0
      %286 = vst [vmem:[#allocation2 + $0x1c7] sm:$0x1] 0.0
      %287 = vst [vmem:[#allocation2 + $0x1e7] sm:$0x1] 0.0
      %288 = vst [vmem:[#allocation2 + $0x207] sm:$0x1] 0.0
      %289 = vst [vmem:[#allocation2 + $0x227] sm:$0x1] 0.0
      %290 = vst [vmem:[#allocation2 + $0x18] sm:$0x1] 0.0
      %291 = vst [vmem:[#allocation2 + $0x38] sm:$0x1] 0.0
      %292 = vst [vmem:[#allocation2 + $0x58] sm:$0x1] 0.0
      %293 = vst [vmem:[#allocation2 + $0x78] sm:$0x1] 0.0
      %294 = vst [vmem:[#allocation2 + $0x98] sm:$0x1] 0.0
      %295 = vst [vmem:[#allocation2 + $0xb8] sm:$0x1] 0.0
      %296 = vst [vmem:[#allocation2 + $0xd8] sm:$0x1] 0.0
      %297 = vst [vmem:[#allocation2 + $0xf8] sm:$0x1] 0.0
      %298 = vst [vmem:[#allocation2 + $0x118] sm:$0x1] 0.0
      %299 = vst [vmem:[#allocation2 + $0x138] sm:$0x1] 0.0
      %300 = vst [vmem:[#allocation2 + $0x158] sm:$0x1] 0.0
      %301 = vst [vmem:[#allocation2 + $0x178] sm:$0x1] 0.0
      %302 = vst [vmem:[#allocation2 + $0x198] sm:$0x1] 0.0
      %303 = vst [vmem:[#allocation2 + $0x1b8] sm:$0x1] 0.0
      %304 = vst [vmem:[#allocation2 + $0x1d8] sm:$0x1] 0.0
      %305 = vst [vmem:[#allocation2 + $0x1f8] sm:$0x1] 0.0
      %306 = vst [vmem:[#allocation2 + $0x218] sm:$0x1] 0.0
      %307 = vst [vmem:[#allocation2 + $0x238] sm:$0x1] 0.0
      %v308 = vld [vmem:[%s253] sm:$0xff]
      %v309 = vld [vmem:[%s253 + $0x8] sm:$0xff]
      %v310 = vld [vmem:[%s253 + $0x10] sm:$0xff]
      %v311 = vld [vmem:[%s253 + $0x18] sm:$0xff]
      %v312 = vld [vmem:[%s253 + $0x20] sm:$0xff]
      %v313 = vld [vmem:[%s253 + $0x28] sm:$0xff]
      %v314 = vld [vmem:[%s253 + $0x30] sm:$0xff]
      %v315 = vld [vmem:[%s253 + $0x38] sm:$0xff]
      %v316 = vld [vmem:[%s253 + $0x40] sm:$0xff]
      %v317 = vld [vmem:[%s253 + $0x48] sm:$0xff]
      %v318 = vld [vmem:[%s253 + $0x50] sm:$0xff]
      %v319 = vld [vmem:[%s253 + $0x58] sm:$0xff]
      %v320 = vld [vmem:[%s253 + $0x60] sm:$0xff]
      %v321 = vld [vmem:[%s253 + $0x68] sm:$0xff]
      %v322 = vld [vmem:[%s253 + $0x70] sm:$0xff]
      %v323 = vld [vmem:[%s253 + $0x78] sm:$0xff]
      %v324 = vld [vmem:[%s253 + $0x80] sm:$0xff]
      %v325 = vld [vmem:[%s253 + $0x88] sm:$0xff]
      %v326 = vld [vmem:[%s253 + $0x90] sm:$0xff]
      %v327 = vld [vmem:[%s253 + $0x98] sm:$0xff]
      %v328 = vld [vmem:[%s253 + $0xa0] sm:$0xff]
      %v329 = vld [vmem:[%s253 + $0xa8] sm:$0xff]
      %v330 = vld [vmem:[%s253 + $0xb0] sm:$0xff]
      %v331 = vld [vmem:[%s253 + $0xb8] sm:$0xff]
      %v332 = vld [vmem:[%s253 + $0xc0] sm:$0xff]
      %v333 = vld [vmem:[%s253 + $0xc8] sm:$0xff]
      %v334 = vld [vmem:[%s253 + $0xd0] sm:$0xff]
      %v335 = vld [vmem:[%s253 + $0xd8] sm:$0xff]
      %v336 = vld [vmem:[%s253 + $0xe0] sm:$0xff]
      %v337 = vld [vmem:[%s253 + $0xe8] sm:$0xff]
      %v338 = vld [vmem:[%s253 + $0xf0] sm:$0xff]
      %v339 = vld [vmem:[%s253 + $0xf8] sm:$0xff]
      %v340 = vld [vmem:[%s1] sm:$0x1]
      %v342 = vlaneseq
      %v343 = vshrl.u32 %v342, 7
      %v344 = vsub.s32 0, %v343
      %v345 = vrot.slane %v340, %v344
      %v347 = vmul.f32 %v308, %v345
      %v348 = vmul.f32 %v309, %v345
      %v349 = vmul.f32 %v310, %v345
      %v350 = vmul.f32 %v311, %v345
      %v351 = vmul.f32 %v312, %v345
      %v352 = vmul.f32 %v313, %v345
      %v353 = vmul.f32 %v314, %v345
      %v354 = vmul.f32 %v315, %v345
      %v355 = vmul.f32 %v316, %v345
      %v356 = vmul.f32 %v317, %v345
      %v357 = vmul.f32 %v318, %v345
      %v358 = vmul.f32 %v319, %v345
      %v359 = vmul.f32 %v320, %v345
      %v360 = vmul.f32 %v321, %v345
      %v361 = vmul.f32 %v322, %v345
      %v362 = vmul.f32 %v323, %v345
      %v363 = vmul.f32 %v324, %v345
      %v364 = vmul.f32 %v325, %v345
      %v365 = vmul.f32 %v326, %v345
      %v366 = vmul.f32 %v327, %v345
      %v367 = vmul.f32 %v328, %v345
      %v368 = vmul.f32 %v329, %v345
      %v369 = vmul.f32 %v330, %v345
      %v370 = vmul.f32 %v331, %v345
      %v371 = vmul.f32 %v332, %v345
      %v372 = vmul.f32 %v333, %v345
      %v373 = vmul.f32 %v334, %v345
      %v374 = vmul.f32 %v335, %v345
      %v375 = vmul.f32 %v336, %v345
      %v376 = vmul.f32 %v337, %v345
      %v377 = vmul.f32 %v338, %v345
      %v378 = vmul.f32 %v339, %v345
      %v379 = vld [vmem:[%s2] sm:$0x1]
      %v381 = vlaneseq
      %v382 = vshrl.u32 %v381, 7
      %v383 = vsub.s32 0, %v382
      %v384 = vrot.slane %v379, %v383
      %v386 = vadd.f32 %v347, %v384
      %v387 = vadd.f32 %v348, %v384
      %v388 = vadd.f32 %v349, %v384
      %v389 = vadd.f32 %v350, %v384
      %v390 = vadd.f32 %v351, %v384
      %v391 = vadd.f32 %v352, %v384
      %v392 = vadd.f32 %v353, %v384
      %v393 = vadd.f32 %v354, %v384
      %v394 = vadd.f32 %v355, %v384
      %v395 = vadd.f32 %v356, %v384
      %v396 = vadd.f32 %v357, %v384
      %v397 = vadd.f32 %v358, %v384
      %v398 = vadd.f32 %v359, %v384
      %v399 = vadd.f32 %v360, %v384
      %v400 = vadd.f32 %v361, %v384
      %v401 = vadd.f32 %v362, %v384
      %v402 = vadd.f32 %v363, %v384
      %v403 = vadd.f32 %v364, %v384
      %v404 = vadd.f32 %v365, %v384
      %v405 = vadd.f32 %v366, %v384
      %v406 = vadd.f32 %v367, %v384
      %v407 = vadd.f32 %v368, %v384
      %v408 = vadd.f32 %v369, %v384
      %v409 = vadd.f32 %v370, %v384
      %v410 = vadd.f32 %v371, %v384
      %v411 = vadd.f32 %v372, %v384
      %v412 = vadd.f32 %v373, %v384
      %v413 = vadd.f32 %v374, %v384
      %v414 = vadd.f32 %v375, %v384
      %v415 = vadd.f32 %v376, %v384
      %v416 = vadd.f32 %v377, %v384
      %v417 = vadd.f32 %v378, %v384
      %v418 = vmax.f32 %v386, 0.0
      %v419 = vmax.f32 %v387, 0.0
      %v420 = vmax.f32 %v388, 0.0
      %v421 = vmax.f32 %v389, 0.0
      %v422 = vmax.f32 %v390, 0.0
      %v423 = vmax.f32 %v391, 0.0
      %v424 = vmax.f32 %v392, 0.0
      %v425 = vmax.f32 %v393, 0.0
      %v426 = vmax.f32 %v394, 0.0
      %v427 = vmax.f32 %v395, 0.0
      %v428 = vmax.f32 %v396, 0.0
      %v429 = vmax.f32 %v397, 0.0
      %v430 = vmax.f32 %v398, 0.0
      %v431 = vmax.f32 %v399, 0.0
      %v432 = vmax.f32 %v400, 0.0
      %v433 = vmax.f32 %v401, 0.0
      %v434 = vmax.f32 %v402, 0.0
      %v435 = vmax.f32 %v403, 0.0
      %v436 = vmax.f32 %v404, 0.0
      %v437 = vmax.f32 %v405, 0.0
      %v438 = vmax.f32 %v406, 0.0
      %v439 = vmax.f32 %v407, 0.0
      %v440 = vmax.f32 %v408, 0.0
      %v441 = vmax.f32 %v409, 0.0
      %v442 = vmax.f32 %v410, 0.0
      %v443 = vmax.f32 %v411, 0.0
      %v444 = vmax.f32 %v412, 0.0
      %v445 = vmax.f32 %v413, 0.0
      %v446 = vmax.f32 %v414, 0.0
      %v447 = vmax.f32 %v415, 0.0
      %v448 = vmax.f32 %v416, 0.0
      %v449 = vmax.f32 %v417, 0.0
      %vm450 = vcmask 31744
      %v451 = vsel %vm450, %v418, 0.0
      %v452 = vsel %vm450, %v419, 0.0
      %v453 = vsel %vm450, %v420, 0.0
      %v454 = vsel %vm450, %v421, 0.0
      %v455 = vsel %vm450, %v422, 0.0
      %v456 = vsel %vm450, %v423, 0.0
      %v457 = vsel %vm450, %v424, 0.0
      %v458 = vsel %vm450, %v425, 0.0
      %v459 = vsel %vm450, %v426, 0.0
      %v460 = vsel %vm450, %v427, 0.0
      %v461 = vsel %vm450, %v428, 0.0
      %v462 = vsel %vm450, %v429, 0.0
      %v463 = vsel %vm450, %v430, 0.0
      %v464 = vsel %vm450, %v431, 0.0
      %v465 = vsel %vm450, %v432, 0.0
      %v466 = vsel %vm450, %v433, 0.0
      %v467 = vsel %vm450, %v434, 0.0
      %v468 = vsel %vm450, %v435, 0.0
      %v469 = vsel %vm450, %v436, 0.0
      %v470 = vsel %vm450, %v437, 0.0
      %v471 = vsel %vm450, %v438, 0.0
      %v472 = vsel %vm450, %v439, 0.0
      %v473 = vsel %vm450, %v440, 0.0
      %v474 = vsel %vm450, %v441, 0.0
      %v475 = vsel %vm450, %v442, 0.0
      %v476 = vsel %vm450, %v443, 0.0
      %v477 = vsel %vm450, %v444, 0.0
      %v478 = vsel %vm450, %v445, 0.0
      %v479 = vsel %vm450, %v446, 0.0
      %v480 = vsel %vm450, %v447, 0.0
      %v481 = vsel %vm450, %v448, 0.0
      %v482 = vsel %vm450, %v449, 0.0
      %s483 = scalar_lea.vmem [#allocation2], 32
      %484 = vst [vmem:[%s483 + $0x8] sm:$0xff] %v451
      %485 = vst [vmem:[%s483 + $0x10] sm:$0xff] %v452
      %486 = vst [vmem:[%s483 + $0x28] sm:$0xff] %v453
      %487 = vst [vmem:[%s483 + $0x30] sm:$0xff] %v454
      %488 = vst [vmem:[%s483 + $0x48] sm:$0xff] %v455
      %489 = vst [vmem:[%s483 + $0x50] sm:$0xff] %v456
      %490 = vst [vmem:[%s483 + $0x68] sm:$0xff] %v457
      %491 = vst [vmem:[%s483 + $0x70] sm:$0xff] %v458
      %492 = vst [vmem:[%s483 + $0x88] sm:$0xff] %v459
      %493 = vst [vmem:[%s483 + $0x90] sm:$0xff] %v460
      %494 = vst [vmem:[%s483 + $0xa8] sm:$0xff] %v461
      %495 = vst [vmem:[%s483 + $0xb0] sm:$0xff] %v462
      %496 = vst [vmem:[%s483 + $0xc8] sm:$0xff] %v463
      %497 = vst [vmem:[%s483 + $0xd0] sm:$0xff] %v464
      %498 = vst [vmem:[%s483 + $0xe8] sm:$0xff] %v465
      %499 = vst [vmem:[%s483 + $0xf0] sm:$0xff] %v466
      %500 = vst [vmem:[%s483 + $0x108] sm:$0xff] %v467
      %501 = vst [vmem:[%s483 + $0x110] sm:$0xff] %v468
      %502 = vst [vmem:[%s483 + $0x128] sm:$0xff] %v469
      %503 = vst [vmem:[%s483 + $0x130] sm:$0xff] %v470
      %504 = vst [vmem:[%s483 + $0x148] sm:$0xff] %v471
      %505 = vst [vmem:[%s483 + $0x150] sm:$0xff] %v472
      %506 = vst [vmem:[%s483 + $0x168] sm:$0xff] %v473
      %507 = vst [vmem:[%s483 + $0x170] sm:$0xff] %v474
      %508 = vst [vmem:[%s483 + $0x188] sm:$0xff] %v475
      %509 = vst [vmem:[%s483 + $0x190] sm:$0xff] %v476
      %510 = vst [vmem:[%s483 + $0x1a8] sm:$0xff] %v477
      %511 = vst [vmem:[%s483 + $0x1b0] sm:$0xff] %v478
      %512 = vst [vmem:[%s483 + $0x1c8] sm:$0xff] %v479
      %513 = vst [vmem:[%s483 + $0x1d0] sm:$0xff] %v480
      %514 = vst [vmem:[%s483 + $0x1e8] sm:$0xff] %v481
      %515 = vst [vmem:[%s483 + $0x1f0] sm:$0xff] %v482
      %v516 = vld [vmem:[#allocation2 + $0x7] sm:$0xff]
      %v517 = vld [vmem:[#allocation2 + $0xf] sm:$0xff]
      %v518 = vld [vmem:[#allocation2 + $0x27] sm:$0xff]
      %v519 = vld [vmem:[#allocation2 + $0x2f] sm:$0xff]
      %v520 = vld [vmem:[#allocation2 + $0x47] sm:$0xff]
      %v521 = vld [vmem:[#allocation2 + $0x4f] sm:$0xff]
      %v522 = vld [vmem:[#allocation2 + $0x67] sm:$0xff]
      %v523 = vld [vmem:[#allocation2 + $0x6f] sm:$0xff]
      %v524 = vld [vmem:[#allocation2 + $0x87] sm:$0xff]
      %v525 = vld [vmem:[#allocation2 + $0x8f] sm:$0xff]
      %v526 = vld [vmem:[#allocation2 + $0xa7] sm:$0xff]
      %v527 = vld [vmem:[#allocation2 + $0xaf] sm:$0xff]
      %v528 = vld [vmem:[#allocation2 + $0xc7] sm:$0xff]
      %v529 = vld [vmem:[#allocation2 + $0xcf] sm:$0xff]
      %v530 = vld [vmem:[#allocation2 + $0xe7] sm:$0xff]
      %v531 = vld [vmem:[#allocation2 + $0xef] sm:$0xff]
      %v532 = vld [vmem:[#allocation2 + $0x107] sm:$0xff]
      %v533 = vld [vmem:[#allocation2 + $0x10f] sm:$0xff]
      %v534 = vld [vmem:[#allocation2 + $0x127] sm:$0xff]
      %v535 = vld [vmem:[#allocation2 + $0x12f] sm:$0xff]
      %v536 = vld [vmem:[#allocation2 + $0x147] sm:$0xff]
      %v537 = vld [vmem:[#allocation2 + $0x14f] sm:$0xff]
      %v538 = vld [vmem:[#allocation2 + $0x167] sm:$0xff]
      %v539 = vld [vmem:[#allocation2 + $0x16f] sm:$0xff]
      %v540 = vld [vmem:[#allocation2 + $0x187] sm:$0xff]
      %v541 = vld [vmem:[#allocation2 + $0x18f] sm:$0xff]
      %v542 = vld [vmem:[#allocation2 + $0x1a7] sm:$0xff]
      %v543 = vld [vmem:[#allocation2 + $0x1af] sm:$0xff]
      %v544 = vld [vmem:[#allocation2 + $0x1c7] sm:$0xff]
      %v545 = vld [vmem:[#allocation2 + $0x1cf] sm:$0xff]
      %v546 = vld [vmem:[#allocation2 + $0x1e7] sm:$0xff]
      %v547 = vld [vmem:[#allocation2 + $0x1ef] sm:$0xff]
      %v548 = vld [vmem:[%s3] sm:$0xff]
      %v549 = vld [vmem:[%s3 + $0x8] sm:$0xff]
      %v550 = vld [vmem:[%s3 + $0x10] sm:$0xff]
      %v551 = vld [vmem:[%s3 + $0x18] sm:$0xff]
      %v552 = vld [vmem:[%s3 + $0x20] sm:$0xff]
      %v553 = vld [vmem:[%s3 + $0x28] sm:$0xff]
      %v554 = vld [vmem:[%s3 + $0x30] sm:$0xff]
      %v555 = vld [vmem:[%s3 + $0x38] sm:$0xff]
      %v556 = vld [vmem:[%s3 + $0x40] sm:$0xff]
      %v557 = vld [vmem:[%s3 + $0x48] sm:$0xff]
      %v558 = vld [vmem:[%s3 + $0x50] sm:$0xff]
      %v559 = vld [vmem:[%s3 + $0x58] sm:$0xff]
      %v560 = vld [vmem:[%s3 + $0x60] sm:$0xff]
      %v561 = vld [vmem:[%s3 + $0x68] sm:$0xff]
      %v562 = vld [vmem:[%s3 + $0x70] sm:$0xff]
      %v563 = vld [vmem:[%s3 + $0x78] sm:$0xff]
      %v564 = vld [vmem:[#allocation2 + $0x8] sm:$0xff]
      %v565 = vld [vmem:[#allocation2 + $0x10] sm:$0xff]
      %v566 = vld [vmem:[#allocation2 + $0x28] sm:$0xff]
      %v567 = vld [vmem:[#allocation2 + $0x30] sm:$0xff]
      %v568 = vld [vmem:[#allocation2 + $0x48] sm:$0xff]
      %v569 = vld [vmem:[#allocation2 + $0x50] sm:$0xff]
      %v570 = vld [vmem:[#allocation2 + $0x68] sm:$0xff]
      %v571 = vld [vmem:[#allocation2 + $0x70] sm:$0xff]
      %v572 = vld [vmem:[#allocation2 + $0x88] sm:$0xff]
      %v573 = vld [vmem:[#allocation2 + $0x90] sm:$0xff]
      %v574 = vld [vmem:[#allocation2 + $0xa8] sm:$0xff]
      %v575 = vld [vmem:[#allocation2 + $0xb0] sm:$0xff]
      %v576 = vld [vmem:[#allocation2 + $0xc8] sm:$0xff]
      %v577 = vld [vmem:[#allocation2 + $0xd0] sm:$0xff]
      %v578 = vld [vmem:[#allocation2 + $0xe8] sm:$0xff]
      %v579 = vld [vmem:[#allocation2 + $0xf0] sm:$0xff]
      %v580 = vld [vmem:[#allocation2 + $0x108] sm:$0xff]
      %v581 = vld [vmem:[#allocation2 + $0x110] sm:$0xff]
      %v582 = vld [vmem:[#allocation2 + $0x128] sm:$0xff]
      %v583 = vld [vmem:[#allocation2 + $0x130] sm:$0xff]
      %v584 = vld [vmem:[#allocation2 + $0x148] sm:$0xff]
      %v585 = vld [vmem:[#allocation2 + $0x150] sm:$0xff]
      %v586 = vld [vmem:[#allocation2 + $0x168] sm:$0xff]
      %v587 = vld [vmem:[#allocation2 + $0x170] sm:$0xff]
      %v588 = vld [vmem:[#allocation2 + $0x188] sm:$0xff]
      %v589 = vld [vmem:[#allocation2 + $0x190] sm:$0xff]
      %v590 = vld [vmem:[#allocation2 + $0x1a8] sm:$0xff]
      %v591 = vld [vmem:[#allocation2 + $0x1b0] sm:$0xff]
      %v592 = vld [vmem:[#allocation2 + $0x1c8] sm:$0xff]
      %v593 = vld [vmem:[#allocation2 + $0x1d0] sm:$0xff]
      %v594 = vld [vmem:[#allocation2 + $0x1e8] sm:$0xff]
      %v595 = vld [vmem:[#allocation2 + $0x1f0] sm:$0xff]
      %v596 = vld [vmem:[%s3 + $0x80] sm:$0xff]
      %v597 = vld [vmem:[%s3 + $0x88] sm:$0xff]
      %v598 = vld [vmem:[%s3 + $0x90] sm:$0xff]
      %v599 = vld [vmem:[%s3 + $0x98] sm:$0xff]
      %v600 = vld [vmem:[%s3 + $0xa0] sm:$0xff]
      %v601 = vld [vmem:[%s3 + $0xa8] sm:$0xff]
      %v602 = vld [vmem:[%s3 + $0xb0] sm:$0xff]
      %v603 = vld [vmem:[%s3 + $0xb8] sm:$0xff]
      %v604 = vld [vmem:[%s3 + $0xc0] sm:$0xff]
      %v605 = vld [vmem:[%s3 + $0xc8] sm:$0xff]
      %v606 = vld [vmem:[%s3 + $0xd0] sm:$0xff]
      %v607 = vld [vmem:[%s3 + $0xd8] sm:$0xff]
      %v608 = vld [vmem:[%s3 + $0xe0] sm:$0xff]
      %v609 = vld [vmem:[%s3 + $0xe8] sm:$0xff]
      %v610 = vld [vmem:[%s3 + $0xf0] sm:$0xff]
      %v611 = vld [vmem:[%s3 + $0xf8] sm:$0xff]
      %612 = vmatprep.subr.mxu0 0.0
      %613 = vmatpush1.msra.mxu0 %v596
      %614 = vmatprep.subr.mxu0 0.0
      %615 = vmatpush1.msra.mxu0 %v597
      %616 = vmatprep.subr.mxu0 0.0
      %617 = vmatpush1.msra.mxu0 %v598
      %618 = vmatprep.subr.mxu0 0.0
      %619 = vmatpush1.msra.mxu0 %v599
      %620 = vmatprep.subr.mxu0 0.0
      %621 = vmatpush1.msra.mxu0 %v600
      %622 = vmatprep.subr.mxu0 0.0
      %623 = vmatpush1.msra.mxu0 %v601
      %624 = vmatprep.subr.mxu0 0.0
      %625 = vmatpush1.msra.mxu0 %v602
      %626 = vmatprep.subr.mxu0 0.0
      %627 = vmatpush1.msra.mxu0 %v603
      %628 = vmatprep.subr.mxu0 0.0
      %629 = vmatpush1.msra.mxu0 %v604
      %630 = vmatprep.subr.mxu0 0.0
      %631 = vmatpush1.msra.mxu0 %v605
      %632 = vmatprep.subr.mxu0 0.0
      %633 = vmatpush1.msra.mxu0 %v606
      %634 = vmatprep.subr.mxu0 0.0
      %635 = vmatpush1.msra.mxu0 %v607
      %636 = vmatprep.subr.mxu0 0.0
      %637 = vmatpush1.msra.mxu0 %v608
      %638 = vmatprep.subr.mxu0 0.0
      %639 = vmatpush1.msra.mxu0 %v609
      %640 = vmatprep.subr.mxu0 0.0
      %641 = vmatpush1.msra.mxu0 %v610
      %642 = vmatprep.subr.mxu0 0.0
      %643 = vmatpush1.msra.mxu0 %v611
      %644 = vmatprep.subr.mxu0 0.0
      %645 = vmatpush1.msra.mxu0 0.0
      %646 = vmatprep.subr.mxu0 0.0
      %647 = vmatpush1.msra.mxu0 0.0
      %648 = vmatprep.subr.mxu0 0.0
      %649 = vmatpush1.msra.mxu0 0.0
      %650 = vmatprep.subr.mxu0 0.0
      %651 = vmatpush1.msra.mxu0 0.0
      %652 = vmatprep.subr.mxu0 0.0
      %653 = vmatpush1.msra.mxu0 0.0
      %654 = vmatprep.subr.mxu0 0.0
      %655 = vmatpush1.msra.mxu0 0.0
      %656 = vmatprep.subr.mxu0 0.0
      %657 = vmatpush1.msra.mxu0 0.0
      %658 = vmatprep.subr.mxu0 0.0
      %659 = vmatpush1.msra.mxu0 0.0
      %660 = vmatprep.subr.mxu0 0.0
      %661 = vmatpush1.msra.mxu0 0.0
      %662 = vmatprep.subr.mxu0 0.0
      %663 = vmatpush1.msra.mxu0 0.0
      %664 = vmatprep.subr.mxu0 0.0
      %665 = vmatpush1.msra.mxu0 0.0
      %666 = vmatprep.subr.mxu0 0.0
      %667 = vmatpush1.msra.mxu0 0.0
      %668 = vmatprep.subr.mxu0 0.0
      %669 = vmatpush1.msra.mxu0 0.0
      %670 = vmatprep.subr.mxu0 0.0
      %671 = vmatpush1.msra.mxu0 0.0
      %672 = vmatprep.subr.mxu0 0.0
      %673 = vmatpush1.msra.mxu0 0.0
      %674 = vmatprep.subr.mxu0 0.0
      %675 = vmatpush1.msra.mxu0 0.0
      %676 = vmatprep.mubr.f32.mxu0 0.0
      %677 = vmatmul.mubr.f32.gmra.mrb[0].mxu0 %v564
      %v678 = vpop.f32.mrb[0].mxu0
      %v679 = vadd.f32 0.0, %v678
      %v680 = vpop.f32.mrb[0].mxu0
      %681 = vmatprep.mubr.f32.mxu0 0.0
      %682 = vmatmul.mubr.f32.gmra.mrb[0].mxu0 %v565
      %v683 = vpop.f32.mrb[0].mxu0
      %v684 = vadd.f32 0.0, %v683
      %v685 = vpop.f32.mrb[0].mxu0
      %686 = vmatprep.mubr.f32.mxu0 0.0
      %687 = vmatmul.mubr.f32.gmra.mrb[0].mxu0 %v566
      %v688 = vpop.f32.mrb[0].mxu0
      %v689 = vadd.f32 0.0, %v688
      %v690 = vpop.f32.mrb[0].mxu0
      %691 = vmatprep.mubr.f32.mxu0 0.0
      %692 = vmatmul.mubr.f32.gmra.mrb[0].mxu0 %v567
      %v693 = vpop.f32.mrb[0].mxu0
      %v694 = vadd.f32 0.0, %v693
      %v695 = vpop.f32.mrb[0].mxu0
      %696 = vmatprep.mubr.f32.mxu0 0.0
      %697 = vmatmul.mubr.f32.gmra.mrb[0].mxu0 %v568
      %v698 = vpop.f32.mrb[0].mxu0
      %v699 = vadd.f32 0.0, %v698
      %v700 = vpop.f32.mrb[0].mxu0
      %701 = vmatprep.mubr.f32.mxu0 0.0
      %702 = vmatmul.mubr.f32.gmra.mrb[0].mxu0 %v569
      %v703 = vpop.f32.mrb[0].mxu0
      %v704 = vadd.f32 0.0, %v703
      %v705 = vpop.f32.mrb[0].mxu0
      %706 = vmatprep.mubr.f32.mxu0 0.0
      %707 = vmatmul.mubr.f32.gmra.mrb[0].mxu0 %v570
      %v708 = vpop.f32.mrb[0].mxu0
      %v709 = vadd.f32 0.0, %v708
      %v710 = vpop.f32.mrb[0].mxu0
      %711 = vmatprep.mubr.f32.mxu0 0.0
      %712 = vmatmul.mubr.f32.gmra.mrb[0].mxu0 %v571
      %v713 = vpop.f32.mrb[0].mxu0
      %v714 = vadd.f32 0.0, %v713
      %v715 = vpop.f32.mrb[0].mxu0
      %716 = vmatprep.mubr.f32.mxu0 0.0
      %717 = vmatmul.mubr.f32.gmra.mrb[0].mxu0 %v572
      %v718 = vpop.f32.mrb[0].mxu0
      %v719 = vadd.f32 0.0, %v718
      %v720 = vpop.f32.mrb[0].mxu0
      %721 = vmatprep.mubr.f32.mxu0 0.0
      %722 = vmatmul.mubr.f32.gmra.mrb[0].mxu0 %v573
      %v723 = vpop.f32.mrb[0].mxu0
      %v724 = vadd.f32 0.0, %v723
      %v725 = vpop.f32.mrb[0].mxu0
      %726 = vmatprep.mubr.f32.mxu0 0.0
      %727 = vmatmul.mubr.f32.gmra.mrb[0].mxu0 %v574
      %v728 = vpop.f32.mrb[0].mxu0
      %v729 = vadd.f32 0.0, %v728
      %v730 = vpop.f32.mrb[0].mxu0
      %731 = vmatprep.mubr.f32.mxu0 0.0
      %732 = vmatmul.mubr.f32.gmra.mrb[0].mxu0 %v575
      %v733 = vpop.f32.mrb[0].mxu0
      %v734 = vadd.f32 0.0, %v733
      %v735 = vpop.f32.mrb[0].mxu0
      %736 = vmatprep.mubr.f32.mxu0 0.0
      %737 = vmatmul.mubr.f32.gmra.mrb[0].mxu0 %v576
      %v738 = vpop.f32.mrb[0].mxu0
      %v739 = vadd.f32 0.0, %v738
      %v740 = vpop.f32.mrb[0].mxu0
      %741 = vmatprep.mubr.f32.mxu0 0.0
      %742 = vmatmul.mubr.f32.gmra.mrb[0].mxu0 %v577
      %v743 = vpop.f32.mrb[0].mxu0
      %v744 = vadd.f32 0.0, %v743
      %v745 = vpop.f32.mrb[0].mxu0
      %746 = vmatprep.mubr.f32.mxu0 0.0
      %747 = vmatmul.mubr.f32.gmra.mrb[0].mxu0 %v578
      %v748 = vpop.f32.mrb[0].mxu0
      %v749 = vadd.f32 0.0, %v748
      %v750 = vpop.f32.mrb[0].mxu0
      %751 = vmatprep.mubr.f32.mxu0 0.0
      %752 = vmatmul.mubr.f32.gmra.mrb[0].mxu0 %v579
      %v753 = vpop.f32.mrb[0].mxu0
      %v754 = vadd.f32 0.0, %v753
      %v755 = vpop.f32.mrb[0].mxu0
      %756 = vmatprep.mubr.f32.mxu0 0.0
      %757 = vmatmul.mubr.f32.gmra.mrb[0].mxu0 %v580
      %v758 = vpop.f32.mrb[0].mxu0
      %v759 = vadd.f32 0.0, %v758
      %v760 = vpop.f32.mrb[0].mxu0
      %761 = vmatprep.mubr.f32.mxu0 0.0
      %762 = vmatmul.mubr.f32.gmra.mrb[0].mxu0 %v581
      %v763 = vpop.f32.mrb[0].mxu0
      %v764 = vadd.f32 0.0, %v763
      %v765 = vpop.f32.mrb[0].mxu0
      %766 = vmatprep.mubr.f32.mxu0 0.0
      %767 = vmatmul.mubr.f32.gmra.mrb[0].mxu0 %v582
      %v768 = vpop.f32.mrb[0].mxu0
      %v769 = vadd.f32 0.0, %v768
      %v770 = vpop.f32.mrb[0].mxu0
      %771 = vmatprep.mubr.f32.mxu0 0.0
      %772 = vmatmul.mubr.f32.gmra.mrb[0].mxu0 %v583
      %v773 = vpop.f32.mrb[0].mxu0
      %v774 = vadd.f32 0.0, %v773
      %v775 = vpop.f32.mrb[0].mxu0
      %776 = vmatprep.mubr.f32.mxu0 0.0
      %777 = vmatmul.mubr.f32.gmra.mrb[0].mxu0 %v584
      %v778 = vpop.f32.mrb[0].mxu0
      %v779 = vadd.f32 0.0, %v778
      %v780 = vpop.f32.mrb[0].mxu0
      %781 = vmatprep.mubr.f32.mxu0 0.0
      %782 = vmatmul.mubr.f32.gmra.mrb[0].mxu0 %v585
      %v783 = vpop.f32.mrb[0].mxu0
      %v784 = vadd.f32 0.0, %v783
      %v785 = vpop.f32.mrb[0].mxu0
      %786 = vmatprep.mubr.f32.mxu0 0.0
      %787 = vmatmul.mubr.f32.gmra.mrb[0].mxu0 %v586
      %v788 = vpop.f32.mrb[0].mxu0
      %v789 = vadd.f32 0.0, %v788
      %v790 = vpop.f32.mrb[0].mxu0
      %791 = vmatprep.mubr.f32.mxu0 0.0
      %792 = vmatmul.mubr.f32.gmra.mrb[0].mxu0 %v587
      %v793 = vpop.f32.mrb[0].mxu0
      %v794 = vadd.f32 0.0, %v793
      %v795 = vpop.f32.mrb[0].mxu0
      %796 = vmatprep.mubr.f32.mxu0 0.0
      %797 = vmatmul.mubr.f32.gmra.mrb[0].mxu0 %v588
      %v798 = vpop.f32.mrb[0].mxu0
      %v799 = vadd.f32 0.0, %v798
      %v800 = vpop.f32.mrb[0].mxu0
      %801 = vmatprep.mubr.f32.mxu0 0.0
      %802 = vmatmul.mubr.f32.gmra.mrb[0].mxu0 %v589
      %v803 = vpop.f32.mrb[0].mxu0
      %v804 = vadd.f32 0.0, %v803
      %v805 = vpop.f32.mrb[0].mxu0
      %806 = vmatprep.mubr.f32.mxu0 0.0
      %807 = vmatmul.mubr.f32.gmra.mrb[0].mxu0 %v590
      %v808 = vpop.f32.mrb[0].mxu0
      %v809 = vadd.f32 0.0, %v808
      %v810 = vpop.f32.mrb[0].mxu0
      %811 = vmatprep.mubr.f32.mxu0 0.0
      %812 = vmatmul.mubr.f32.gmra.mrb[0].mxu0 %v591
      %v813 = vpop.f32.mrb[0].mxu0
      %v814 = vadd.f32 0.0, %v813
      %v815 = vpop.f32.mrb[0].mxu0
      %816 = vmatprep.mubr.f32.mxu0 0.0
      %817 = vmatmul.mubr.f32.gmra.mrb[0].mxu0 %v592
      %v818 = vpop.f32.mrb[0].mxu0
      %v819 = vadd.f32 0.0, %v818
      %v820 = vpop.f32.mrb[0].mxu0
      %821 = vmatprep.mubr.f32.mxu0 0.0
      %822 = vmatmul.mubr.f32.gmra.mrb[0].mxu0 %v593
      %v823 = vpop.f32.mrb[0].mxu0
      %v824 = vadd.f32 0.0, %v823
      %v825 = vpop.f32.mrb[0].mxu0
      %826 = vmatprep.mubr.f32.mxu0 0.0
      %827 = vmatmul.mubr.f32.gmra.mrb[0].mxu0 %v594
      %v828 = vpop.f32.mrb[0].mxu0
      %v829 = vadd.f32 0.0, %v828
      %v830 = vpop.f32.mrb[0].mxu0
      %831 = vmatprep.mubr.f32.mxu0 0.0
      %832 = vmatmul.mubr.f32.gmra.mrb[0].mxu0 %v595
      %v833 = vpop.f32.mrb[0].mxu0
      %v834 = vadd.f32 0.0, %v833
      %v835 = vpop.f32.mrb[0].mxu0
      %836 = vdwg.mxu0
      %837 = vmatprep.subr.mxu0 0.0
      %838 = vmatpush1.msra.mxu0 %v548
      %839 = vmatprep.subr.mxu0 0.0
      %840 = vmatpush1.msra.mxu0 %v549
      %841 = vmatprep.subr.mxu0 0.0
      %842 = vmatpush1.msra.mxu0 %v550
      %843 = vmatprep.subr.mxu0 0.0
      %844 = vmatpush1.msra.mxu0 %v551
      %845 = vmatprep.subr.mxu0 0.0
      %846 = vmatpush1.msra.mxu0 %v552
      %847 = vmatprep.subr.mxu0 0.0
      %848 = vmatpush1.msra.mxu0 %v553
      %849 = vmatprep.subr.mxu0 0.0
      %850 = vmatpush1.msra.mxu0 %v554
      %851 = vmatprep.subr.mxu0 0.0
      %852 = vmatpush1.msra.mxu0 %v555
      %853 = vmatprep.subr.mxu0 0.0
      %854 = vmatpush1.msra.mxu0 %v556
      %855 = vmatprep.subr.mxu0 0.0
      %856 = vmatpush1.msra.mxu0 %v557
      %857 = vmatprep.subr.mxu0 0.0
      %858 = vmatpush1.msra.mxu0 %v558
      %859 = vmatprep.subr.mxu0 0.0
      %860 = vmatpush1.msra.mxu0 %v559
      %861 = vmatprep.subr.mxu0 0.0
      %862 = vmatpush1.msra.mxu0 %v560
      %863 = vmatprep.subr.mxu0 0.0
      %864 = vmatpush1.msra.mxu0 %v561
      %865 = vmatprep.subr.mxu0 0.0
      %866 = vmatpush1.msra.mxu0 %v562
      %867 = vmatprep.subr.mxu0 0.0
      %868 = vmatpush1.msra.mxu0 %v563
      %869 = vmatprep.subr.mxu0 0.0
      %870 = vmatpush1.msra.mxu0 0.0
      %871 = vmatprep.subr.mxu0 0.0
      %872 = vmatpush1.msra.mxu0 0.0
      %873 = vmatprep.subr.mxu0 0.0
      %874 = vmatpush1.msra.mxu0 0.0
      %875 = vmatprep.subr.mxu0 0.0
      %876 = vmatpush1.msra.mxu0 0.0
      %877 = vmatprep.subr.mxu0 0.0
      %878 = vmatpush1.msra.mxu0 0.0
      %879 = vmatprep.subr.mxu0 0.0
      %880 = vmatpush1.msra.mxu0 0.0
      %881 = vmatprep.subr.mxu0 0.0
      %882 = vmatpush1.msra.mxu0 0.0
      %883 = vmatprep.subr.mxu0 0.0
      %884 = vmatpush1.msra.mxu0 0.0
      %885 = vmatprep.subr.mxu0 0.0
      %886 = vmatpush1.msra.mxu0 0.0
      %887 = vmatprep.subr.mxu0 0.0
      %888 = vmatpush1.msra.mxu0 0.0
      %889 = vmatprep.subr.mxu0 0.0
      %890 = vmatpush1.msra.mxu0 0.0
      %891 = vmatprep.subr.mxu0 0.0
      %892 = vmatpush1.msra.mxu0 0.0
      %893 = vmatprep.subr.mxu0 0.0
      %894 = vmatpush1.msra.mxu0 0.0
      %895 = vmatprep.subr.mxu0 0.0
      %896 = vmatpush1.msra.mxu0 0.0
      %897 = vmatprep.subr.mxu0 0.0
      %898 = vmatpush1.msra.mxu0 0.0
      %899 = vmatprep.subr.mxu0 0.0
      %900 = vmatpush1.msra.mxu0 0.0
      %901 = vmatprep.mubr.f32.mxu0 0.0
      %902 = vmatmul.mubr.f32.gmra.mrb[0].mxu0 %v516
      %v903 = vpop.f32.mrb[0].mxu0
      %v904 = vadd.f32 %v679, %v903
      %v905 = vpop.f32.mrb[0].mxu0
      %906 = vmatprep.mubr.f32.mxu0 0.0
      %907 = vmatmul.mubr.f32.gmra.mrb[0].mxu0 %v517
      %v908 = vpop.f32.mrb[0].mxu0
      %v909 = vadd.f32 %v684, %v908
      %v910 = vpop.f32.mrb[0].mxu0
      %911 = vmatprep.mubr.f32.mxu0 0.0
      %912 = vmatmul.mubr.f32.gmra.mrb[0].mxu0 %v518
      %v913 = vpop.f32.mrb[0].mxu0
      %v914 = vadd.f32 %v689, %v913
      %v915 = vpop.f32.mrb[0].mxu0
      %916 = vmatprep.mubr.f32.mxu0 0.0
      %917 = vmatmul.mubr.f32.gmra.mrb[0].mxu0 %v519
      %v918 = vpop.f32.mrb[0].mxu0
      %v919 = vadd.f32 %v694, %v918
      %v920 = vpop.f32.mrb[0].mxu0
      %921 = vmatprep.mubr.f32.mxu0 0.0
      %922 = vmatmul.mubr.f32.gmra.mrb[0].mxu0 %v520
      %v923 = vpop.f32.mrb[0].mxu0
      %v924 = vadd.f32 %v699, %v923
      %v925 = vpop.f32.mrb[0].mxu0
      %926 = vmatprep.mubr.f32.mxu0 0.0
      %927 = vmatmul.mubr.f32.gmra.mrb[0].mxu0 %v521
      %v928 = vpop.f32.mrb[0].mxu0
      %v929 = vadd.f32 %v704, %v928
      %v930 = vpop.f32.mrb[0].mxu0
      %931 = vmatprep.mubr.f32.mxu0 0.0
      %932 = vmatmul.mubr.f32.gmra.mrb[0].mxu0 %v522
      %v933 = vpop.f32.mrb[0].mxu0
      %v934 = vadd.f32 %v709, %v933
      %v935 = vpop.f32.mrb[0].mxu0
      %936 = vmatprep.mubr.f32.mxu0 0.0
      %937 = vmatmul.mubr.f32.gmra.mrb[0].mxu0 %v523
      %v938 = vpop.f32.mrb[0].mxu0
      %v939 = vadd.f32 %v714, %v938
      %v940 = vpop.f32.mrb[0].mxu0
      %941 = vmatprep.mubr.f32.mxu0 0.0
      %942 = vmatmul.mubr.f32.gmra.mrb[0].mxu0 %v524
      %v943 = vpop.f32.mrb[0].mxu0
      %v944 = vadd.f32 %v719, %v943
      %v945 = vpop.f32.mrb[0].mxu0
      %946 = vmatprep.mubr.f32.mxu0 0.0
      %947 = vmatmul.mubr.f32.gmra.mrb[0].mxu0 %v525
      %v948 = vpop.f32.mrb[0].mxu0
      %v949 = vadd.f32 %v724, %v948
      %v950 = vpop.f32.mrb[0].mxu0
      %951 = vmatprep.mubr.f32.mxu0 0.0
      %952 = vmatmul.mubr.f32.gmra.mrb[0].mxu0 %v526
      %v953 = vpop.f32.mrb[0].mxu0
      %v954 = vadd.f32 %v729, %v953
      %v955 = vpop.f32.mrb[0].mxu0
      %956 = vmatprep.mubr.f32.mxu0 0.0
      %957 = vmatmul.mubr.f32.gmra.mrb[0].mxu0 %v527
      %v958 = vpop.f32.mrb[0].mxu0
      %v959 = vadd.f32 %v734, %v958
      %v960 = vpop.f32.mrb[0].mxu0
      %961 = vmatprep.mubr.f32.mxu0 0.0
      %962 = vmatmul.mubr.f32.gmra.mrb[0].mxu0 %v528
      %v963 = vpop.f32.mrb[0].mxu0
      %v964 = vadd.f32 %v739, %v963
      %v965 = vpop.f32.mrb[0].mxu0
      %966 = vmatprep.mubr.f32.mxu0 0.0
      %967 = vmatmul.mubr.f32.gmra.mrb[0].mxu0 %v529
      %v968 = vpop.f32.mrb[0].mxu0
      %v969 = vadd.f32 %v744, %v968
      %v970 = vpop.f32.mrb[0].mxu0
      %971 = vmatprep.mubr.f32.mxu0 0.0
      %972 = vmatmul.mubr.f32.gmra.mrb[0].mxu0 %v530
      %v973 = vpop.f32.mrb[0].mxu0
      %v974 = vadd.f32 %v749, %v973
      %v975 = vpop.f32.mrb[0].mxu0
      %976 = vmatprep.mubr.f32.mxu0 0.0
      %977 = vmatmul.mubr.f32.gmra.mrb[0].mxu0 %v531
      %v978 = vpop.f32.mrb[0].mxu0
      %v979 = vadd.f32 %v754, %v978
      %v980 = vpop.f32.mrb[0].mxu0
      %981 = vmatprep.mubr.f32.mxu0 0.0
      %982 = vmatmul.mubr.f32.gmra.mrb[0].mxu0 %v532
      %v983 = vpop.f32.mrb[0].mxu0
      %v984 = vadd.f32 %v759, %v983
      %v985 = vpop.f32.mrb[0].mxu0
      %986 = vmatprep.mubr.f32.mxu0 0.0
      %987 = vmatmul.mubr.f32.gmra.mrb[0].mxu0 %v533
      %v988 = vpop.f32.mrb[0].mxu0
      %v989 = vadd.f32 %v764, %v988
      %v990 = vpop.f32.mrb[0].mxu0
      %991 = vmatprep.mubr.f32.mxu0 0.0
      %992 = vmatmul.mubr.f32.gmra.mrb[0].mxu0 %v534
      %v993 = vpop.f32.mrb[0].mxu0
      %v994 = vadd.f32 %v769, %v993
      %v995 = vpop.f32.mrb[0].mxu0
      %996 = vmatprep.mubr.f32.mxu0 0.0
      %997 = vmatmul.mubr.f32.gmra.mrb[0].mxu0 %v535
      %v998 = vpop.f32.mrb[0].mxu0
      %v999 = vadd.f32 %v774, %v998
      %v1000 = vpop.f32.mrb[0].mxu0
      %1001 = vmatprep.mubr.f32.mxu0 0.0
      %1002 = vmatmul.mubr.f32.gmra.mrb[0].mxu0 %v536
      %v1003 = vpop.f32.mrb[0].mxu0
      %v1004 = vadd.f32 %v779, %v1003
      %v1005 = vpop.f32.mrb[0].mxu0
      %1006 = vmatprep.mubr.f32.mxu0 0.0
      %1007 = vmatmul.mubr.f32.gmra.mrb[0].mxu0 %v537
      %v1008 = vpop.f32.mrb[0].mxu0
      %v1009 = vadd.f32 %v784, %v1008
      %v1010 = vpop.f32.mrb[0].mxu0
      %1011 = vmatprep.mubr.f32.mxu0 0.0
      %1012 = vmatmul.mubr.f32.gmra.mrb[0].mxu0 %v538
      %v1013 = vpop.f32.mrb[0].mxu0
      %v1014 = vadd.f32 %v789, %v1013
      %v1015 = vpop.f32.mrb[0].mxu0
      %1016 = vmatprep.mubr.f32.mxu0 0.0
      %1017 = vmatmul.mubr.f32.gmra.mrb[0].mxu0 %v539
      %v1018 = vpop.f32.mrb[0].mxu0
      %v1019 = vadd.f32 %v794, %v1018
      %v1020 = vpop.f32.mrb[0].mxu0
      %1021 = vmatprep.mubr.f32.mxu0 0.0
      %1022 = vmatmul.mubr.f32.gmra.mrb[0].mxu0 %v540
      %v1023 = vpop.f32.mrb[0].mxu0
      %v1024 = vadd.f32 %v799, %v1023
      %v1025 = vpop.f32.mrb[0].mxu0
      %1026 = vmatprep.mubr.f32.mxu0 0.0
      %1027 = vmatmul.mubr.f32.gmra.mrb[0].mxu0 %v541
      %v1028 = vpop.f32.mrb[0].mxu0
      %v1029 = vadd.f32 %v804, %v1028
      %v1030 = vpop.f32.mrb[0].mxu0
      %1031 = vmatprep.mubr.f32.mxu0 0.0
      %1032 = vmatmul.mubr.f32.gmra.mrb[0].mxu0 %v542
      %v1033 = vpop.f32.mrb[0].mxu0
      %v1034 = vadd.f32 %v809, %v1033
      %v1035 = vpop.f32.mrb[0].mxu0
      %1036 = vmatprep.mubr.f32.mxu0 0.0
      %1037 = vmatmul.mubr.f32.gmra.mrb[0].mxu0 %v543
      %v1038 = vpop.f32.mrb[0].mxu0
      %v1039 = vadd.f32 %v814, %v1038
      %v1040 = vpop.f32.mrb[0].mxu0
      %1041 = vmatprep.mubr.f32.mxu0 0.0
      %1042 = vmatmul.mubr.f32.gmra.mrb[0].mxu0 %v544
      %v1043 = vpop.f32.mrb[0].mxu0
      %v1044 = vadd.f32 %v819, %v1043
      %v1045 = vpop.f32.mrb[0].mxu0
      %1046 = vmatprep.mubr.f32.mxu0 0.0
      %1047 = vmatmul.mubr.f32.gmra.mrb[0].mxu0 %v545
      %v1048 = vpop.f32.mrb[0].mxu0
      %v1049 = vadd.f32 %v824, %v1048
      %v1050 = vpop.f32.mrb[0].mxu0
      %1051 = vmatprep.mubr.f32.mxu0 0.0
      %1052 = vmatmul.mubr.f32.gmra.mrb[0].mxu0 %v546
      %v1053 = vpop.f32.mrb[0].mxu0
      %v1054 = vadd.f32 %v829, %v1053
      %v1055 = vpop.f32.mrb[0].mxu0
      %1056 = vmatprep.mubr.f32.mxu0 0.0
      %1057 = vmatmul.mubr.f32.gmra.mrb[0].mxu0 %v547
      %v1058 = vpop.f32.mrb[0].mxu0
      %v1059 = vadd.f32 %v834, %v1058
      %v1060 = vpop.f32.mrb[0].mxu0
      %1061 = vdwg.mxu0
      %v1062 = vld [vmem:[#allocation2 + $0x9] sm:$0xff]
      %v1063 = vld [vmem:[#allocation2 + $0x11] sm:$0xff]
      %v1064 = vld [vmem:[#allocation2 + $0x29] sm:$0xff]
      %v1065 = vld [vmem:[#allocation2 + $0x31] sm:$0xff]
      %v1066 = vld [vmem:[#allocation2 + $0x49] sm:$0xff]
      %v1067 = vld [vmem:[#allocation2 + $0x51] sm:$0xff]
      %v1068 = vld [vmem:[#allocation2 + $0x69] sm:$0xff]
      %v1069 = vld [vmem:[#allocation2 + $0x71] sm:$0xff]
      %v1070 = vld [vmem:[#allocation2 + $0x89] sm:$0xff]
      %v1071 = vld [vmem:[#allocation2 + $0x91] sm:$0xff]
      %v1072 = vld [vmem:[#allocation2 + $0xa9] sm:$0xff]
      %v1073 = vld [vmem:[#allocation2 + $0xb1] sm:$0xff]
      %v1074 = vld [vmem:[#allocation2 + $0xc9] sm:$0xff]
      %v1075 = vld [vmem:[#allocation2 + $0xd1] sm:$0xff]
      %v1076 = vld [vmem:[#allocation2 + $0xe9] sm:$0xff]
      %v1077 = vld [vmem:[#allocation2 + $0xf1] sm:$0xff]
      %v1078 = vld [vmem:[#allocation2 + $0x109] sm:$0xff]
      %v1079 = vld [vmem:[#allocation2 + $0x111] sm:$0xff]
      %v1080 = vld [vmem:[#allocation2 + $0x129] sm:$0xff]
      %v1081 = vld [vmem:[#allocation2 + $0x131] sm:$0xff]
      %v1082 = vld [vmem:[#allocation2 + $0x149] sm:$0xff]
      %v1083 = vld [vmem:[#allocation2 + $0x151] sm:$0xff]
      %v1084 = vld [vmem:[#allocation2 + $0x169] sm:$0xff]
      %v1085 = vld [vmem:[#allocation2 + $0x171] sm:$0xff]
      %v1086 = vld [vmem:[#allocation2 + $0x189] sm:$0xff]
      %v1087 = vld [vmem:[#allocation2 + $0x191] sm:$0xff]
      %v1088 = vld [vmem:[#allocation2 + $0x1a9] sm:$0xff]
      %v1089 = vld [vmem:[#allocation2 + $0x1b1] sm:$0xff]
      %v1090 = vld [vmem:[#allocation2 + $0x1c9] sm:$0xff]
      %v1091 = vld [vmem:[#allocation2 + $0x1d1] sm:$0xff]
      %v1092 = vld [vmem:[#allocation2 + $0x1e9] sm:$0xff]
      %v1093 = vld [vmem:[#allocation2 + $0x1f1] sm:$0xff]
      %v1094 = vld [vmem:[%s3 + $0x100] sm:$0xff]
      %v1095 = vld [vmem:[%s3 + $0x108] sm:$0xff]
      %v1096 = vld [vmem:[%s3 + $0x110] sm:$0xff]
      %v1097 = vld [vmem:[%s3 + $0x118] sm:$0xff]
      %v1098 = vld [vmem:[%s3 + $0x120] sm:$0xff]
      %v1099 = vld [vmem:[%s3 + $0x128] sm:$0xff]
      %v1100 = vld [vmem:[%s3 + $0x130] sm:$0xff]
      %v1101 = vld [vmem:[%s3 + $0x138] sm:$0xff]
      %v1102 = vld [vmem:[%s3 + $0x140] sm:$0xff]
      %v1103 = vld [vmem:[%s3 + $0x148] sm:$0xff]
      %v1104 = vld [vmem:[%s3 + $0x150] sm:$0xff]
      %v1105 = vld [vmem:[%s3 + $0x158] sm:$0xff]
      %v1106 = vld [vmem:[%s3 + $0x160] sm:$0xff]
      %v1107 = vld [vmem:[%s3 + $0x168] sm:$0xff]
      %v1108 = vld [vmem:[%s3 + $0x170] sm:$0xff]
      %v1109 = vld [vmem:[%s3 + $0x178] sm:$0xff]
      %1110 = vmatprep.subr.mxu0 0.0
      %1111 = vmatpush1.msra.mxu0 %v1094
      %1112 = vmatprep.subr.mxu0 0.0
      %1113 = vmatpush1.msra.mxu0 %v1095
      %1114 = vmatprep.subr.mxu0 0.0
      %1115 = vmatpush1.msra.mxu0 %v1096
      %1116 = vmatprep.subr.mxu0 0.0
      %1117 = vmatpush1.msra.mxu0 %v1097
      %1118 = vmatprep.subr.mxu0 0.0
      %1119 = vmatpush1.msra.mxu0 %v1098
      %1120 = vmatprep.subr.mxu0 0.0
      %1121 = vmatpush1.msra.mxu0 %v1099
      %1122 = vmatprep.subr.mxu0 0.0
      %1123 = vmatpush1.msra.mxu0 %v1100
      %1124 = vmatprep.subr.mxu0 0.0
      %1125 = vmatpush1.msra.mxu0 %v1101
      %1126 = vmatprep.subr.mxu0 0.0
      %1127 = vmatpush1.msra.mxu0 %v1102
      %1128 = vmatprep.subr.mxu0 0.0
      %1129 = vmatpush1.msra.mxu0 %v1103
      %1130 = vmatprep.subr.mxu0 0.0
      %1131 = vmatpush1.msra.mxu0 %v1104
      %1132 = vmatprep.subr.mxu0 0.0
      %1133 = vmatpush1.msra.mxu0 %v1105
      %1134 = vmatprep.subr.mxu0 0.0
      %1135 = vmatpush1.msra.mxu0 %v1106
      %1136 = vmatprep.subr.mxu0 0.0
      %1137 = vmatpush1.msra.mxu0 %v1107
      %1138 = vmatprep.subr.mxu0 0.0
      %1139 = vmatpush1.msra.mxu0 %v1108
      %1140 = vmatprep.subr.mxu0 0.0
      %1141 = vmatpush1.msra.mxu0 %v1109
      %1142 = vmatprep.subr.mxu0 0.0
      %1143 = vmatpush1.msra.mxu0 0.0
      %1144 = vmatprep.subr.mxu0 0.0
      %1145 = vmatpush1.msra.mxu0 0.0
      %1146 = vmatprep.subr.mxu0 0.0
      %1147 = vmatpush1.msra.mxu0 0.0
      %1148 = vmatprep.subr.mxu0 0.0
      %1149 = vmatpush1.msra.mxu0 0.0
      %1150 = vmatprep.subr.mxu0 0.0
      %1151 = vmatpush1.msra.mxu0 0.0
      %1152 = vmatprep.subr.mxu0 0.0
      %1153 = vmatpush1.msra.mxu0 0.0
      %1154 = vmatprep.subr.mxu0 0.0
      %1155 = vmatpush1.msra.mxu0 0.0
      %1156 = vmatprep.subr.mxu0 0.0
      %1157 = vmatpush1.msra.mxu0 0.0
      %1158 = vmatprep.subr.mxu0 0.0
      %1159 = vmatpush1.msra.mxu0 0.0
      %1160 = vmatprep.subr.mxu0 0.0
      %1161 = vmatpush1.msra.mxu0 0.0
      %1162 = vmatprep.subr.mxu0 0.0
      %1163 = vmatpush1.msra.mxu0 0.0
      %1164 = vmatprep.subr.mxu0 0.0
      %1165 = vmatpush1.msra.mxu0 0.0
      %1166 = vmatprep.subr.mxu0 0.0
      %1167 = vmatpush1.msra.mxu0 0.0
      %1168 = vmatprep.subr.mxu0 0.0
      %1169 = vmatpush1.msra.mxu0 0.0
      %1170 = vmatprep.subr.mxu0 0.0
      %1171 = vmatpush1.msra.mxu0 0.0
      %1172 = vmatprep.subr.mxu0 0.0
      %1173 = vmatpush1.msra.mxu0 0.0
      %1174 = vmatprep.mubr.f32.mxu0 0.0
      %1175 = vmatmul.mubr.f32.gmra.mrb[0].mxu0 %v1062
      %v1176 = vpop.f32.mrb[0].mxu0
      %v1177 = vadd.f32 0.0, %v1176
      %v1178 = vpop.f32.mrb[0].mxu0
      %1179 = vmatprep.mubr.f32.mxu0 0.0
      %1180 = vmatmul.mubr.f32.gmra.mrb[0].mxu0 %v1063
      %v1181 = vpop.f32.mrb[0].mxu0
      %v1182 = vadd.f32 0.0, %v1181
      %v1183 = vpop.f32.mrb[0].mxu0
      %1184 = vmatprep.mubr.f32.mxu0 0.0
      %1185 = vmatmul.mubr.f32.gmra.mrb[0].mxu0 %v1064
      %v1186 = vpop.f32.mrb[0].mxu0
      %v1187 = vadd.f32 0.0, %v1186
      %v1188 = vpop.f32.mrb[0].mxu0
      %1189 = vmatprep.mubr.f32.mxu0 0.0
      %1190 = vmatmul.mubr.f32.gmra.mrb[0].mxu0 %v1065
      %v1191 = vpop.f32.mrb[0].mxu0
      %v1192 = vadd.f32 0.0, %v1191
      %v1193 = vpop.f32.mrb[0].mxu0
      %1194 = vmatprep.mubr.f32.mxu0 0.0
      %1195 = vmatmul.mubr.f32.gmra.mrb[0].mxu0 %v1066
      %v1196 = vpop.f32.mrb[0].mxu0
      %v1197 = vadd.f32 0.0, %v1196
      %v1198 = vpop.f32.mrb[0].mxu0
      %1199 = vmatprep.mubr.f32.mxu0 0.0
      %1200 = vmatmul.mubr.f32.gmra.mrb[0].mxu0 %v1067
      %v1201 = vpop.f32.mrb[0].mxu0
      %v1202 = vadd.f32 0.0, %v1201
      %v1203 = vpop.f32.mrb[0].mxu0
      %1204 = vmatprep.mubr.f32.mxu0 0.0
      %1205 = vmatmul.mubr.f32.gmra.mrb[0].mxu0 %v1068
      %v1206 = vpop.f32.mrb[0].mxu0
      %v1207 = vadd.f32 0.0, %v1206
      %v1208 = vpop.f32.mrb[0].mxu0
      %1209 = vmatprep.mubr.f32.mxu0 0.0
      %1210 = vmatmul.mubr.f32.gmra.mrb[0].mxu0 %v1069
      %v1211 = vpop.f32.mrb[0].mxu0
      %v1212 = vadd.f32 0.0, %v1211
      %v1213 = vpop.f32.mrb[0].mxu0
      %1214 = vmatprep.mubr.f32.mxu0 0.0
      %1215 = vmatmul.mubr.f32.gmra.mrb[0].mxu0 %v1070
      %v1216 = vpop.f32.mrb[0].mxu0
      %v1217 = vadd.f32 0.0, %v1216
      %v1218 = vpop.f32.mrb[0].mxu0
      %1219 = vmatprep.mubr.f32.mxu0 0.0
      %1220 = vmatmul.mubr.f32.gmra.mrb[0].mxu0 %v1071
      %v1221 = vpop.f32.mrb[0].mxu0
      %v1222 = vadd.f32 0.0, %v1221
      %v1223 = vpop.f32.mrb[0].mxu0
      %1224 = vmatprep.mubr.f32.mxu0 0.0
      %1225 = vmatmul.mubr.f32.gmra.mrb[0].mxu0 %v1072
      %v1226 = vpop.f32.mrb[0].mxu0
      %v1227 = vadd.f32 0.0, %v1226
      %v1228 = vpop.f32.mrb[0].mxu0
      %1229 = vmatprep.mubr.f32.mxu0 0.0
      %1230 = vmatmul.mubr.f32.gmra.mrb[0].mxu0 %v1073
      %v1231 = vpop.f32.mrb[0].mxu0
      %v1232 = vadd.f32 0.0, %v1231
      %v1233 = vpop.f32.mrb[0].mxu0
      %1234 = vmatprep.mubr.f32.mxu0 0.0
      %1235 = vmatmul.mubr.f32.gmra.mrb[0].mxu0 %v1074
      %v1236 = vpop.f32.mrb[0].mxu0
      %v1237 = vadd.f32 0.0, %v1236
      %v1238 = vpop.f32.mrb[0].mxu0
      %1239 = vmatprep.mubr.f32.mxu0 0.0
      %1240 = vmatmul.mubr.f32.gmra.mrb[0].mxu0 %v1075
      %v1241 = vpop.f32.mrb[0].mxu0
      %v1242 = vadd.f32 0.0, %v1241
      %v1243 = vpop.f32.mrb[0].mxu0
      %1244 = vmatprep.mubr.f32.mxu0 0.0
      %1245 = vmatmul.mubr.f32.gmra.mrb[0].mxu0 %v1076
      %v1246 = vpop.f32.mrb[0].mxu0
      %v1247 = vadd.f32 0.0, %v1246
      %v1248 = vpop.f32.mrb[0].mxu0
      %1249 = vmatprep.mubr.f32.mxu0 0.0
      %1250 = vmatmul.mubr.f32.gmra.mrb[0].mxu0 %v1077
      %v1251 = vpop.f32.mrb[0].mxu0
      %v1252 = vadd.f32 0.0, %v1251
      %v1253 = vpop.f32.mrb[0].mxu0
      %1254 = vmatprep.mubr.f32.mxu0 0.0
      %1255 = vmatmul.mubr.f32.gmra.mrb[0].mxu0 %v1078
      %v1256 = vpop.f32.mrb[0].mxu0
      %v1257 = vadd.f32 0.0, %v1256
      %v1258 = vpop.f32.mrb[0].mxu0
      %1259 = vmatprep.mubr.f32.mxu0 0.0
      %1260 = vmatmul.mubr.f32.gmra.mrb[0].mxu0 %v1079
      %v1261 = vpop.f32.mrb[0].mxu0
      %v1262 = vadd.f32 0.0, %v1261
      %v1263 = vpop.f32.mrb[0].mxu0
      %1264 = vmatprep.mubr.f32.mxu0 0.0
      %1265 = vmatmul.mubr.f32.gmra.mrb[0].mxu0 %v1080
      %v1266 = vpop.f32.mrb[0].mxu0
      %v1267 = vadd.f32 0.0, %v1266
      %v1268 = vpop.f32.mrb[0].mxu0
      %1269 = vmatprep.mubr.f32.mxu0 0.0
      %1270 = vmatmul.mubr.f32.gmra.mrb[0].mxu0 %v1081
      %v1271 = vpop.f32.mrb[0].mxu0
      %v1272 = vadd.f32 0.0, %v1271
      %v1273 = vpop.f32.mrb[0].mxu0
      %1274 = vmatprep.mubr.f32.mxu0 0.0
      %1275 = vmatmul.mubr.f32.gmra.mrb[0].mxu0 %v1082
      %v1276 = vpop.f32.mrb[0].mxu0
      %v1277 = vadd.f32 0.0, %v1276
      %v1278 = vpop.f32.mrb[0].mxu0
      %1279 = vmatprep.mubr.f32.mxu0 0.0
      %1280 = vmatmul.mubr.f32.gmra.mrb[0].mxu0 %v1083
      %v1281 = vpop.f32.mrb[0].mxu0
      %v1282 = vadd.f32 0.0, %v1281
      %v1283 = vpop.f32.mrb[0].mxu0
      %1284 = vmatprep.mubr.f32.mxu0 0.0
      %1285 = vmatmul.mubr.f32.gmra.mrb[0].mxu0 %v1084
      %v1286 = vpop.f32.mrb[0].mxu0
      %v1287 = vadd.f32 0.0, %v1286
      %v1288 = vpop.f32.mrb[0].mxu0
      %1289 = vmatprep.mubr.f32.mxu0 0.0
      %1290 = vmatmul.mubr.f32.gmra.mrb[0].mxu0 %v1085
      %v1291 = vpop.f32.mrb[0].mxu0
      %v1292 = vadd.f32 0.0, %v1291
      %v1293 = vpop.f32.mrb[0].mxu0
      %1294 = vmatprep.mubr.f32.mxu0 0.0
      %1295 = vmatmul.mubr.f32.gmra.mrb[0].mxu0 %v1086
      %v1296 = vpop.f32.mrb[0].mxu0
      %v1297 = vadd.f32 0.0, %v1296
      %v1298 = vpop.f32.mrb[0].mxu0
      %1299 = vmatprep.mubr.f32.mxu0 0.0
      %1300 = vmatmul.mubr.f32.gmra.mrb[0].mxu0 %v1087
      %v1301 = vpop.f32.mrb[0].mxu0
      %v1302 = vadd.f32 0.0, %v1301
      %v1303 = vpop.f32.mrb[0].mxu0
      %1304 = vmatprep.mubr.f32.mxu0 0.0
      %1305 = vmatmul.mubr.f32.gmra.mrb[0].mxu0 %v1088
      %v1306 = vpop.f32.mrb[0].mxu0
      %v1307 = vadd.f32 0.0, %v1306
      %v1308 = vpop.f32.mrb[0].mxu0
      %1309 = vmatprep.mubr.f32.mxu0 0.0
      %1310 = vmatmul.mubr.f32.gmra.mrb[0].mxu0 %v1089
      %v1311 = vpop.f32.mrb[0].mxu0
      %v1312 = vadd.f32 0.0, %v1311
      %v1313 = vpop.f32.mrb[0].mxu0
      %1314 = vmatprep.mubr.f32.mxu0 0.0
      %1315 = vmatmul.mubr.f32.gmra.mrb[0].mxu0 %v1090
      %v1316 = vpop.f32.mrb[0].mxu0
      %v1317 = vadd.f32 0.0, %v1316
      %v1318 = vpop.f32.mrb[0].mxu0
      %1319 = vmatprep.mubr.f32.mxu0 0.0
      %1320 = vmatmul.mubr.f32.gmra.mrb[0].mxu0 %v1091
      %v1321 = vpop.f32.mrb[0].mxu0
      %v1322 = vadd.f32 0.0, %v1321
      %v1323 = vpop.f32.mrb[0].mxu0
      %1324 = vmatprep.mubr.f32.mxu0 0.0
      %1325 = vmatmul.mubr.f32.gmra.mrb[0].mxu0 %v1092
      %v1326 = vpop.f32.mrb[0].mxu0
      %v1327 = vadd.f32 0.0, %v1326
      %v1328 = vpop.f32.mrb[0].mxu0
      %1329 = vmatprep.mubr.f32.mxu0 0.0
      %1330 = vmatmul.mubr.f32.gmra.mrb[0].mxu0 %v1093
      %v1331 = vpop.f32.mrb[0].mxu0
      %v1332 = vadd.f32 0.0, %v1331
      %v1333 = vpop.f32.mrb[0].mxu0
      %1334 = vdwg.mxu0
      %v1335 = vadd.f32 %v904, %v1177
      %v1336 = vadd.f32 %v909, %v1182
      %v1337 = vadd.f32 %v914, %v1187
      %v1338 = vadd.f32 %v919, %v1192
      %v1339 = vadd.f32 %v924, %v1197
      %v1340 = vadd.f32 %v929, %v1202
      %v1341 = vadd.f32 %v934, %v1207
      %v1342 = vadd.f32 %v939, %v1212
      %v1343 = vadd.f32 %v944, %v1217
      %v1344 = vadd.f32 %v949, %v1222
      %v1345 = vadd.f32 %v954, %v1227
      %v1346 = vadd.f32 %v959, %v1232
      %v1347 = vadd.f32 %v964, %v1237
      %v1348 = vadd.f32 %v969, %v1242
      %v1349 = vadd.f32 %v974, %v1247
      %v1350 = vadd.f32 %v979, %v1252
      %v1351 = vadd.f32 %v984, %v1257
      %v1352 = vadd.f32 %v989, %v1262
      %v1353 = vadd.f32 %v994, %v1267
      %v1354 = vadd.f32 %v999, %v1272
      %v1355 = vadd.f32 %v1004, %v1277
      %v1356 = vadd.f32 %v1009, %v1282
      %v1357 = vadd.f32 %v1014, %v1287
      %v1358 = vadd.f32 %v1019, %v1292
      %v1359 = vadd.f32 %v1024, %v1297
      %v1360 = vadd.f32 %v1029, %v1302
      %v1361 = vadd.f32 %v1034, %v1307
      %v1362 = vadd.f32 %v1039, %v1312
      %v1363 = vadd.f32 %v1044, %v1317
      %v1364 = vadd.f32 %v1049, %v1322
      %v1365 = vadd.f32 %v1054, %v1327
      %v1366 = vadd.f32 %v1059, %v1332
      %v1367 = vld [vmem:[%s483 + $0x7] sm:$0xff]
      %v1368 = vld [vmem:[%s483 + $0xf] sm:$0xff]
      %v1369 = vld [vmem:[%s483 + $0x27] sm:$0xff]
      %v1370 = vld [vmem:[%s483 + $0x2f] sm:$0xff]
      %v1371 = vld [vmem:[%s483 + $0x47] sm:$0xff]
      %v1372 = vld [vmem:[%s483 + $0x4f] sm:$0xff]
      %v1373 = vld [vmem:[%s483 + $0x67] sm:$0xff]
      %v1374 = vld [vmem:[%s483 + $0x6f] sm:$0xff]
      %v1375 = vld [vmem:[%s483 + $0x87] sm:$0xff]
      %v1376 = vld [vmem:[%s483 + $0x8f] sm:$0xff]
      %v1377 = vld [vmem:[%s483 + $0xa7] sm:$0xff]
      %v1378 = vld [vmem:[%s483 + $0xaf] sm:$0xff]
      %v1379 = vld [vmem:[%s483 + $0xc7] sm:$0xff]
      %v1380 = vld [vmem:[%s483 + $0xcf] sm:$0xff]
      %v1381 = vld [vmem:[%s483 + $0xe7] sm:$0xff]
      %v1382 = vld [vmem:[%s483 + $0xef] sm:$0xff]
      %v1383 = vld [vmem:[%s483 + $0x107] sm:$0xff]
      %v1384 = vld [vmem:[%s483 + $0x10f] sm:$0xff]
      %v1385 = vld [vmem:[%s483 + $0x127] sm:$0xff]
      %v1386 = vld [vmem:[%s483 + $0x12f] sm:$0xff]
      %v1387 = vld [vmem:[%s483 + $0x147] sm:$0xff]
      %v1388 = vld [vmem:[%s483 + $0x14f] sm:$0xff]
      %v1389 = vld [vmem:[%s483 + $0x167] sm:$0xff]
      %v1390 = vld [vmem:[%s483 + $0x16f] sm:$0xff]
      %v1391 = vld [vmem:[%s483 + $0x187] sm:$0xff]
      %v1392 = vld [vmem:[%s483 + $0x18f] sm:$0xff]
      %v1393 = vld [vmem:[%s483 + $0x1a7] sm:$0xff]
      %v1394 = vld [vmem:[%s483 + $0x1af] sm:$0xff]
      %v1395 = vld [vmem:[%s483 + $0x1c7] sm:$0xff]
      %v1396 = vld [vmem:[%s483 + $0x1cf] sm:$0xff]
      %v1397 = vld [vmem:[%s483 + $0x1e7] sm:$0xff]
      %v1398 = vld [vmem:[%s483 + $0x1ef] sm:$0xff]
      %v1399 = vld [vmem:[%s3 + $0x180] sm:$0xff]
      %v1400 = vld [vmem:[%s3 + $0x188] sm:$0xff]
      %v1401 = vld [vmem:[%s3 + $0x190] sm:$0xff]
      %v1402 = vld [vmem:[%s3 + $0x198] sm:$0xff]
      %v1403 = vld [vmem:[%s3 + $0x1a0] sm:$0xff]
      %v1404 = vld [vmem:[%s3 + $0x1a8] sm:$0xff]
      %v1405 = vld [vmem:[%s3 + $0x1b0] sm:$0xff]
      %v1406 = vld [vmem:[%s3 + $0x1b8] sm:$0xff]
      %v1407 = vld [vmem:[%s3 + $0x1c0] sm:$0xff]
      %v1408 = vld [vmem:[%s3 + $0x1c8] sm:$0xff]
      %v1409 = vld [vmem:[%s3 + $0x1d0] sm:$0xff]
      %v1410 = vld [vmem:[%s3 + $0x1d8] sm:$0xff]
      %v1411 = vld [vmem:[%s3 + $0x1e0] sm:$0xff]
      %v1412 = vld [vmem:[%s3 + $0x1e8] sm:$0xff]
      %v1413 = vld [vmem:[%s3 + $0x1f0] sm:$0xff]
      %v1414 = vld [vmem:[%s3 + $0x1f8] sm:$0xff]
      %1415 = vmatprep.subr.mxu0 0.0
      %1416 = vmatpush1.msra.mxu0 %v1399
      %1417 = vmatprep.subr.mxu0 0.0
      %1418 = vmatpush1.msra.mxu0 %v1400
      %1419 = vmatprep.subr.mxu0 0.0
      %1420 = vmatpush1.msra.mxu0 %v1401
      %1421 = vmatprep.subr.mxu0 0.0
      %1422 = vmatpush1.msra.mxu0 %v1402
      %1423 = vmatprep.subr.mxu0 0.0
      %1424 = vmatpush1.msra.mxu0 %v1403
      %1425 = vmatprep.subr.mxu0 0.0
      %1426 = vmatpush1.msra.mxu0 %v1404
      %1427 = vmatprep.subr.mxu0 0.0
      %1428 = vmatpush1.msra.mxu0 %v1405
      %1429 = vmatprep.subr.mxu0 0.0
      %1430 = vmatpush1.msra.mxu0 %v1406
      %1431 = vmatprep.subr.mxu0 0.0
      %1432 = vmatpush1.msra.mxu0 %v1407
      %1433 = vmatprep.subr.mxu0 0.0
      %1434 = vmatpush1.msra.mxu0 %v1408
      %1435 = vmatprep.subr.mxu0 0.0
      %1436 = vmatpush1.msra.mxu0 %v1409
      %1437 = vmatprep.subr.mxu0 0.0
      %1438 = vmatpush1.msra.mxu0 %v1410
      %1439 = vmatprep.subr.mxu0 0.0
      %1440 = vmatpush1.msra.mxu0 %v1411
      %1441 = vmatprep.subr.mxu0 0.0
      %1442 = vmatpush1.msra.mxu0 %v1412
      %1443 = vmatprep.subr.mxu0 0.0
      %1444 = vmatpush1.msra.mxu0 %v1413
      %1445 = vmatprep.subr.mxu0 0.0
      %1446 = vmatpush1.msra.mxu0 %v1414
      %1447 = vmatprep.subr.mxu0 0.0
      %1448 = vmatpush1.msra.mxu0 0.0
      %1449 = vmatprep.subr.mxu0 0.0
      %1450 = vmatpush1.msra.mxu0 0.0
      %1451 = vmatprep.subr.mxu0 0.0
      %1452 = vmatpush1.msra.mxu0 0.0
      %1453 = vmatprep.subr.mxu0 0.0
      %1454 = vmatpush1.msra.mxu0 0.0
      %1455 = vmatprep.subr.mxu0 0.0
      %1456 = vmatpush1.msra.mxu0 0.0
      %1457 = vmatprep.subr.mxu0 0.0
      %1458 = vmatpush1.msra.mxu0 0.0
      %1459 = vmatprep.subr.mxu0 0.0
      %1460 = vmatpush1.msra.mxu0 0.0
      %1461 = vmatprep.subr.mxu0 0.0
      %1462 = vmatpush1.msra.mxu0 0.0
      %1463 = vmatprep.subr.mxu0 0.0
      %1464 = vmatpush1.msra.mxu0 0.0
      %1465 = vmatprep.subr.mxu0 0.0
      %1466 = vmatpush1.msra.mxu0 0.0
      %1467 = vmatprep.subr.mxu0 0.0
      %1468 = vmatpush1.msra.mxu0 0.0
      %1469 = vmatprep.subr.mxu0 0.0
      %1470 = vmatpush1.msra.mxu0 0.0
      %1471 = vmatprep.subr.mxu0 0.0
      %1472 = vmatpush1.msra.mxu0 0.0
      %1473 = vmatprep.subr.mxu0 0.0
      %1474 = vmatpush1.msra.mxu0 0.0
      %1475 = vmatprep.subr.mxu0 0.0
      %1476 = vmatpush1.msra.mxu0 0.0
      %1477 = vmatprep.subr.mxu0 0.0
      %1478 = vmatpush1.msra.mxu0 0.0
      %1479 = vmatprep.mubr.f32.mxu0 0.0
      %1480 = vmatmul.mubr.f32.gmra.mrb[0].mxu0 %v1367
      %v1481 = vpop.f32.mrb[0].mxu0
      %v1482 = vadd.f32 0.0, %v1481
      %v1483 = vpop.f32.mrb[0].mxu0
      %1484 = vmatprep.mubr.f32.mxu0 0.0
      %1485 = vmatmul.mubr.f32.gmra.mrb[0].mxu0 %v1368
      %v1486 = vpop.f32.mrb[0].mxu0
      %v1487 = vadd.f32 0.0, %v1486
      %v1488 = vpop.f32.mrb[0].mxu0
      %1489 = vmatprep.mubr.f32.mxu0 0.0
      %1490 = vmatmul.mubr.f32.gmra.mrb[0].mxu0 %v1369
      %v1491 = vpop.f32.mrb[0].mxu0
      %v1492 = vadd.f32 0.0, %v1491
      %v1493 = vpop.f32.mrb[0].mxu0
      %1494 = vmatprep.mubr.f32.mxu0 0.0
      %1495 = vmatmul.mubr.f32.gmra.mrb[0].mxu0 %v1370
      %v1496 = vpop.f32.mrb[0].mxu0
      %v1497 = vadd.f32 0.0, %v1496
      %v1498 = vpop.f32.mrb[0].mxu0
      %1499 = vmatprep.mubr.f32.mxu0 0.0
      %1500 = vmatmul.mubr.f32.gmra.mrb[0].mxu0 %v1371
      %v1501 = vpop.f32.mrb[0].mxu0
      %v1502 = vadd.f32 0.0, %v1501
      %v1503 = vpop.f32.mrb[0].mxu0
      %1504 = vmatprep.mubr.f32.mxu0 0.0
      %1505 = vmatmul.mubr.f32.gmra.mrb[0].mxu0 %v1372
      %v1506 = vpop.f32.mrb[0].mxu0
      %v1507 = vadd.f32 0.0, %v1506
      %v1508 = vpop.f32.mrb[0].mxu0
      %1509 = vmatprep.mubr.f32.mxu0 0.0
      %1510 = vmatmul.mubr.f32.gmra.mrb[0].mxu0 %v1373
      %v1511 = vpop.f32.mrb[0].mxu0
      %v1512 = vadd.f32 0.0, %v1511
      %v1513 = vpop.f32.mrb[0].mxu0
      %1514 = vmatprep.mubr.f32.mxu0 0.0
      %1515 = vmatmul.mubr.f32.gmra.mrb[0].mxu0 %v1374
      %v1516 = vpop.f32.mrb[0].mxu0
      %v1517 = vadd.f32 0.0, %v1516
      %v1518 = vpop.f32.mrb[0].mxu0
      %1519 = vmatprep.mubr.f32.mxu0 0.0
      %1520 = vmatmul.mubr.f32.gmra.mrb[0].mxu0 %v1375
      %v1521 = vpop.f32.mrb[0].mxu0
      %v1522 = vadd.f32 0.0, %v1521
      %v1523 = vpop.f32.mrb[0].mxu0
      %1524 = vmatprep.mubr.f32.mxu0 0.0
      %1525 = vmatmul.mubr.f32.gmra.mrb[0].mxu0 %v1376
      %v1526 = vpop.f32.mrb[0].mxu0
      %v1527 = vadd.f32 0.0, %v1526
      %v1528 = vpop.f32.mrb[0].mxu0
      %1529 = vmatprep.mubr.f32.mxu0 0.0
      %1530 = vmatmul.mubr.f32.gmra.mrb[0].mxu0 %v1377
      %v1531 = vpop.f32.mrb[0].mxu0
      %v1532 = vadd.f32 0.0, %v1531
      %v1533 = vpop.f32.mrb[0].mxu0
      %1534 = vmatprep.mubr.f32.mxu0 0.0
      %1535 = vmatmul.mubr.f32.gmra.mrb[0].mxu0 %v1378
      %v1536 = vpop.f32.mrb[0].mxu0
      %v1537 = vadd.f32 0.0, %v1536
      %v1538 = vpop.f32.mrb[0].mxu0
      %1539 = vmatprep.mubr.f32.mxu0 0.0
      %1540 = vmatmul.mubr.f32.gmra.mrb[0].mxu0 %v1379
      %v1541 = vpop.f32.mrb[0].mxu0
      %v1542 = vadd.f32 0.0, %v1541
      %v1543 = vpop.f32.mrb[0].mxu0
      %1544 = vmatprep.mubr.f32.mxu0 0.0
      %1545 = vmatmul.mubr.f32.gmra.mrb[0].mxu0 %v1380
      %v1546 = vpop.f32.mrb[0].mxu0
      %v1547 = vadd.f32 0.0, %v1546
      %v1548 = vpop.f32.mrb[0].mxu0
      %1549 = vmatprep.mubr.f32.mxu0 0.0
      %1550 = vmatmul.mubr.f32.gmra.mrb[0].mxu0 %v1381
      %v1551 = vpop.f32.mrb[0].mxu0
      %v1552 = vadd.f32 0.0, %v1551
      %v1553 = vpop.f32.mrb[0].mxu0
      %1554 = vmatprep.mubr.f32.mxu0 0.0
      %1555 = vmatmul.mubr.f32.gmra.mrb[0].mxu0 %v1382
      %v1556 = vpop.f32.mrb[0].mxu0
      %v1557 = vadd.f32 0.0, %v1556
      %v1558 = vpop.f32.mrb[0].mxu0
      %1559 = vmatprep.mubr.f32.mxu0 0.0
      %1560 = vmatmul.mubr.f32.gmra.mrb[0].mxu0 %v1383
      %v1561 = vpop.f32.mrb[0].mxu0
      %v1562 = vadd.f32 0.0, %v1561
      %v1563 = vpop.f32.mrb[0].mxu0
      %1564 = vmatprep.mubr.f32.mxu0 0.0
      %1565 = vmatmul.mubr.f32.gmra.mrb[0].mxu0 %v1384
      %v1566 = vpop.f32.mrb[0].mxu0
      %v1567 = vadd.f32 0.0, %v1566
      %v1568 = vpop.f32.mrb[0].mxu0
      %1569 = vmatprep.mubr.f32.mxu0 0.0
      %1570 = vmatmul.mubr.f32.gmra.mrb[0].mxu0 %v1385
      %v1571 = vpop.f32.mrb[0].mxu0
      %v1572 = vadd.f32 0.0, %v1571
      %v1573 = vpop.f32.mrb[0].mxu0
      %1574 = vmatprep.mubr.f32.mxu0 0.0
      %1575 = vmatmul.mubr.f32.gmra.mrb[0].mxu0 %v1386
      %v1576 = vpop.f32.mrb[0].mxu0
      %v1577 = vadd.f32 0.0, %v1576
      %v1578 = vpop.f32.mrb[0].mxu0
      %1579 = vmatprep.mubr.f32.mxu0 0.0
      %1580 = vmatmul.mubr.f32.gmra.mrb[0].mxu0 %v1387
      %v1581 = vpop.f32.mrb[0].mxu0
      %v1582 = vadd.f32 0.0, %v1581
      %v1583 = vpop.f32.mrb[0].mxu0
      %1584 = vmatprep.mubr.f32.mxu0 0.0
      %1585 = vmatmul.mubr.f32.gmra.mrb[0].mxu0 %v1388
      %v1586 = vpop.f32.mrb[0].mxu0
      %v1587 = vadd.f32 0.0, %v1586
      %v1588 = vpop.f32.mrb[0].mxu0
      %1589 = vmatprep.mubr.f32.mxu0 0.0
      %1590 = vmatmul.mubr.f32.gmra.mrb[0].mxu0 %v1389
      %v1591 = vpop.f32.mrb[0].mxu0
      %v1592 = vadd.f32 0.0, %v1591
      %v1593 = vpop.f32.mrb[0].mxu0
      %1594 = vmatprep.mubr.f32.mxu0 0.0
      %1595 = vmatmul.mubr.f32.gmra.mrb[0].mxu0 %v1390
      %v1596 = vpop.f32.mrb[0].mxu0
      %v1597 = vadd.f32 0.0, %v1596
      %v1598 = vpop.f32.mrb[0].mxu0
      %1599 = vmatprep.mubr.f32.mxu0 0.0
      %1600 = vmatmul.mubr.f32.gmra.mrb[0].mxu0 %v1391
      %v1601 = vpop.f32.mrb[0].mxu0
      %v1602 = vadd.f32 0.0, %v1601
      %v1603 = vpop.f32.mrb[0].mxu0
      %1604 = vmatprep.mubr.f32.mxu0 0.0
      %1605 = vmatmul.mubr.f32.gmra.mrb[0].mxu0 %v1392
      %v1606 = vpop.f32.mrb[0].mxu0
      %v1607 = vadd.f32 0.0, %v1606
      %v1608 = vpop.f32.mrb[0].mxu0
      %1609 = vmatprep.mubr.f32.mxu0 0.0
      %1610 = vmatmul.mubr.f32.gmra.mrb[0].mxu0 %v1393
      %v1611 = vpop.f32.mrb[0].mxu0
      %v1612 = vadd.f32 0.0, %v1611
      %v1613 = vpop.f32.mrb[0].mxu0
      %1614 = vmatprep.mubr.f32.mxu0 0.0
      %1615 = vmatmul.mubr.f32.gmra.mrb[0].mxu0 %v1394
      %v1616 = vpop.f32.mrb[0].mxu0
      %v1617 = vadd.f32 0.0, %v1616
      %v1618 = vpop.f32.mrb[0].mxu0
      %1619 = vmatprep.mubr.f32.mxu0 0.0
      %1620 = vmatmul.mubr.f32.gmra.mrb[0].mxu0 %v1395
      %v1621 = vpop.f32.mrb[0].mxu0
      %v1622 = vadd.f32 0.0, %v1621
      %v1623 = vpop.f32.mrb[0].mxu0
      %1624 = vmatprep.mubr.f32.mxu0 0.0
      %1625 = vmatmul.mubr.f32.gmra.mrb[0].mxu0 %v1396
      %v1626 = vpop.f32.mrb[0].mxu0
      %v1627 = vadd.f32 0.0, %v1626
      %v1628 = vpop.f32.mrb[0].mxu0
      %1629 = vmatprep.mubr.f32.mxu0 0.0
      %1630 = vmatmul.mubr.f32.gmra.mrb[0].mxu0 %v1397
      %v1631 = vpop.f32.mrb[0].mxu0
      %v1632 = vadd.f32 0.0, %v1631
      %v1633 = vpop.f32.mrb[0].mxu0
      %1634 = vmatprep.mubr.f32.mxu0 0.0
      %1635 = vmatmul.mubr.f32.gmra.mrb[0].mxu0 %v1398
      %v1636 = vpop.f32.mrb[0].mxu0
      %v1637 = vadd.f32 0.0, %v1636
      %v1638 = vpop.f32.mrb[0].mxu0
      %1639 = vdwg.mxu0
      %v1640 = vadd.f32 %v1335, %v1482
      %v1641 = vadd.f32 %v1336, %v1487
      %v1642 = vadd.f32 %v1337, %v1492
      %v1643 = vadd.f32 %v1338, %v1497
      %v1644 = vadd.f32 %v1339, %v1502
      %v1645 = vadd.f32 %v1340, %v1507
      %v1646 = vadd.f32 %v1341, %v1512
      %v1647 = vadd.f32 %v1342, %v1517
      %v1648 = vadd.f32 %v1343, %v1522
      %v1649 = vadd.f32 %v1344, %v1527
      %v1650 = vadd.f32 %v1345, %v1532
      %v1651 = vadd.f32 %v1346, %v1537
      %v1652 = vadd.f32 %v1347, %v1542
      %v1653 = vadd.f32 %v1348, %v1547
      %v1654 = vadd.f32 %v1349, %v1552
      %v1655 = vadd.f32 %v1350, %v1557
      %v1656 = vadd.f32 %v1351, %v1562
      %v1657 = vadd.f32 %v1352, %v1567
      %v1658 = vadd.f32 %v1353, %v1572
      %v1659 = vadd.f32 %v1354, %v1577
      %v1660 = vadd.f32 %v1355, %v1582
      %v1661 = vadd.f32 %v1356, %v1587
      %v1662 = vadd.f32 %v1357, %v1592
      %v1663 = vadd.f32 %v1358, %v1597
      %v1664 = vadd.f32 %v1359, %v1602
      %v1665 = vadd.f32 %v1360, %v1607
      %v1666 = vadd.f32 %v1361, %v1612
      %v1667 = vadd.f32 %v1362, %v1617
      %v1668 = vadd.f32 %v1363, %v1622
      %v1669 = vadd.f32 %v1364, %v1627
      %v1670 = vadd.f32 %v1365, %v1632
      %v1671 = vadd.f32 %v1366, %v1637
      %v1672 = vld [vmem:[%s483 + $0x8] sm:$0xff]
      %v1673 = vld [vmem:[%s483 + $0x10] sm:$0xff]
      %v1674 = vld [vmem:[%s483 + $0x28] sm:$0xff]
      %v1675 = vld [vmem:[%s483 + $0x30] sm:$0xff]
      %v1676 = vld [vmem:[%s483 + $0x48] sm:$0xff]
      %v1677 = vld [vmem:[%s483 + $0x50] sm:$0xff]
      %v1678 = vld [vmem:[%s483 + $0x68] sm:$0xff]
      %v1679 = vld [vmem:[%s483 + $0x70] sm:$0xff]
      %v1680 = vld [vmem:[%s483 + $0x88] sm:$0xff]
      %v1681 = vld [vmem:[%s483 + $0x90] sm:$0xff]
      %v1682 = vld [vmem:[%s483 + $0xa8] sm:$0xff]
      %v1683 = vld [vmem:[%s483 + $0xb0] sm:$0xff]
      %v1684 = vld [vmem:[%s483 + $0xc8] sm:$0xff]
      %v1685 = vld [vmem:[%s483 + $0xd0] sm:$0xff]
      %v1686 = vld [vmem:[%s483 + $0xe8] sm:$0xff]
      %v1687 = vld [vmem:[%s483 + $0xf0] sm:$0xff]
      %v1688 = vld [vmem:[%s483 + $0x108] sm:$0xff]
      %v1689 = vld [vmem:[%s483 + $0x110] sm:$0xff]
      %v1690 = vld [vmem:[%s483 + $0x128] sm:$0xff]
      %v1691 = vld [vmem:[%s483 + $0x130] sm:$0xff]
      %v1692 = vld [vmem:[%s483 + $0x148] sm:$0xff]
      %v1693 = vld [vmem:[%s483 + $0x150] sm:$0xff]
      %v1694 = vld [vmem:[%s483 + $0x168] sm:$0xff]
      %v1695 = vld [vmem:[%s483 + $0x170] sm:$0xff]
      %v1696 = vld [vmem:[%s483 + $0x188] sm:$0xff]
      %v1697 = vld [vmem:[%s483 + $0x190] sm:$0xff]
      %v1698 = vld [vmem:[%s483 + $0x1a8] sm:$0xff]
      %v1699 = vld [vmem:[%s483 + $0x1b0] sm:$0xff]
      %v1700 = vld [vmem:[%s483 + $0x1c8] sm:$0xff]
      %v1701 = vld [vmem:[%s483 + $0x1d0] sm:$0xff]
      %v1702 = vld [vmem:[%s483 + $0x1e8] sm:$0xff]
      %v1703 = vld [vmem:[%s483 + $0x1f0] sm:$0xff]
      %v1704 = vld [vmem:[%s3 + $0x200] sm:$0xff]
      %v1705 = vld [vmem:[%s3 + $0x208] sm:$0xff]
      %v1706 = vld [vmem:[%s3 + $0x210] sm:$0xff]
      %v1707 = vld [vmem:[%s3 + $0x218] sm:$0xff]
      %v1708 = vld [vmem:[%s3 + $0x220] sm:$0xff]
      %v1709 = vld [vmem:[%s3 + $0x228] sm:$0xff]
      %v1710 = vld [vmem:[%s3 + $0x230] sm:$0xff]
      %v1711 = vld [vmem:[%s3 + $0x238] sm:$0xff]
      %v1712 = vld [vmem:[%s3 + $0x240] sm:$0xff]
      %v1713 = vld [vmem:[%s3 + $0x248] sm:$0xff]
      %v1714 = vld [vmem:[%s3 + $0x250] sm:$0xff]
      %v1715 = vld [vmem:[%s3 + $0x258] sm:$0xff]
      %v1716 = vld [vmem:[%s3 + $0x260] sm:$0xff]
      %v1717 = vld [vmem:[%s3 + $0x268] sm:$0xff]
      %v1718 = vld [vmem:[%s3 + $0x270] sm:$0xff]
      %v1719 = vld [vmem:[%s3 + $0x278] sm:$0xff]
      %1720 = vmatprep.subr.mxu0 0.0
      %1721 = vmatpush1.msra.mxu0 %v1704
      %1722 = vmatprep.subr.mxu0 0.0
      %1723 = vmatpush1.msra.mxu0 %v1705
      %1724 = vmatprep.subr.mxu0 0.0
      %1725 = vmatpush1.msra.mxu0 %v1706
      %1726 = vmatprep.subr.mxu0 0.0
      %1727 = vmatpush1.msra.mxu0 %v1707
      %1728 = vmatprep.subr.mxu0 0.0
      %1729 = vmatpush1.msra.mxu0 %v1708
      %1730 = vmatprep.subr.mxu0 0.0
      %1731 = vmatpush1.msra.mxu0 %v1709
      %1732 = vmatprep.subr.mxu0 0.0
      %1733 = vmatpush1.msra.mxu0 %v1710
      %1734 = vmatprep.subr.mxu0 0.0
      %1735 = vmatpush1.msra.mxu0 %v1711
      %1736 = vmatprep.subr.mxu0 0.0
      %1737 = vmatpush1.msra.mxu0 %v1712
      %1738 = vmatprep.subr.mxu0 0.0
      %1739 = vmatpush1.msra.mxu0 %v1713
      %1740 = vmatprep.subr.mxu0 0.0
      %1741 = vmatpush1.msra.mxu0 %v1714
      %1742 = vmatprep.subr.mxu0 0.0
      %1743 = vmatpush1.msra.mxu0 %v1715
      %1744 = vmatprep.subr.mxu0 0.0
      %1745 = vmatpush1.msra.mxu0 %v1716
      %1746 = vmatprep.subr.mxu0 0.0
      %1747 = vmatpush1.msra.mxu0 %v1717
      %1748 = vmatprep.subr.mxu0 0.0
      %1749 = vmatpush1.msra.mxu0 %v1718
      %1750 = vmatprep.subr.mxu0 0.0
      %1751 = vmatpush1.msra.mxu0 %v1719
      %1752 = vmatprep.subr.mxu0 0.0
      %1753 = vmatpush1.msra.mxu0 0.0
      %1754 = vmatprep.subr.mxu0 0.0
      %1755 = vmatpush1.msra.mxu0 0.0
      %1756 = vmatprep.subr.mxu0 0.0
      %1757 = vmatpush1.msra.mxu0 0.0
      %1758 = vmatprep.subr.mxu0 0.0
      %1759 = vmatpush1.msra.mxu0 0.0
      %1760 = vmatprep.subr.mxu0 0.0
      %1761 = vmatpush1.msra.mxu0 0.0
      %1762 = vmatprep.subr.mxu0 0.0
      %1763 = vmatpush1.msra.mxu0 0.0
      %1764 = vmatprep.subr.mxu0 0.0
      %1765 = vmatpush1.msra.mxu0 0.0
      %1766 = vmatprep.subr.mxu0 0.0
      %1767 = vmatpush1.msra.mxu0 0.0
      %1768 = vmatprep.subr.mxu0 0.0
      %1769 = vmatpush1.msra.mxu0 0.0
      %1770 = vmatprep.subr.mxu0 0.0
      %1771 = vmatpush1.msra.mxu0 0.0
      %1772 = vmatprep.subr.mxu0 0.0
      %1773 = vmatpush1.msra.mxu0 0.0
      %1774 = vmatprep.subr.mxu0 0.0
      %1775 = vmatpush1.msra.mxu0 0.0
      %1776 = vmatprep.subr.mxu0 0.0
      %1777 = vmatpush1.msra.mxu0 0.0
      %1778 = vmatprep.subr.mxu0 0.0
      %1779 = vmatpush1.msra.mxu0 0.0
      %1780 = vmatprep.subr.mxu0 0.0
      %1781 = vmatpush1.msra.mxu0 0.0
      %1782 = vmatprep.subr.mxu0 0.0
      %1783 = vmatpush1.msra.mxu0 0.0
      %1784 = vmatprep.mubr.f32.mxu0 0.0
      %1785 = vmatmul.mubr.f32.gmra.mrb[0].mxu0 %v1672
      %v1786 = vpop.f32.mrb[0].mxu0
      %v1787 = vadd.f32 0.0, %v1786
      %v1788 = vpop.f32.mrb[0].mxu0
      %1789 = vmatprep.mubr.f32.mxu0 0.0
      %1790 = vmatmul.mubr.f32.gmra.mrb[0].mxu0 %v1673
      %v1791 = vpop.f32.mrb[0].mxu0
      %v1792 = vadd.f32 0.0, %v1791
      %v1793 = vpop.f32.mrb[0].mxu0
      %1794 = vmatprep.mubr.f32.mxu0 0.0
      %1795 = vmatmul.mubr.f32.gmra.mrb[0].mxu0 %v1674
      %v1796 = vpop.f32.mrb[0].mxu0
      %v1797 = vadd.f32 0.0, %v1796
      %v1798 = vpop.f32.mrb[0].mxu0
      %1799 = vmatprep.mubr.f32.mxu0 0.0
      %1800 = vmatmul.mubr.f32.gmra.mrb[0].mxu0 %v1675
      %v1801 = vpop.f32.mrb[0].mxu0
      %v1802 = vadd.f32 0.0, %v1801
      %v1803 = vpop.f32.mrb[0].mxu0
      %1804 = vmatprep.mubr.f32.mxu0 0.0
      %1805 = vmatmul.mubr.f32.gmra.mrb[0].mxu0 %v1676
      %v1806 = vpop.f32.mrb[0].mxu0
      %v1807 = vadd.f32 0.0, %v1806
      %v1808 = vpop.f32.mrb[0].mxu0
      %1809 = vmatprep.mubr.f32.mxu0 0.0
      %1810 = vmatmul.mubr.f32.gmra.mrb[0].mxu0 %v1677
      %v1811 = vpop.f32.mrb[0].mxu0
      %v1812 = vadd.f32 0.0, %v1811
      %v1813 = vpop.f32.mrb[0].mxu0
      %1814 = vmatprep.mubr.f32.mxu0 0.0
      %1815 = vmatmul.mubr.f32.gmra.mrb[0].mxu0 %v1678
      %v1816 = vpop.f32.mrb[0].mxu0
      %v1817 = vadd.f32 0.0, %v1816
      %v1818 = vpop.f32.mrb[0].mxu0
      %1819 = vmatprep.mubr.f32.mxu0 0.0
      %1820 = vmatmul.mubr.f32.gmra.mrb[0].mxu0 %v1679
      %v1821 = vpop.f32.mrb[0].mxu0
      %v1822 = vadd.f32 0.0, %v1821
      %v1823 = vpop.f32.mrb[0].mxu0
      %1824 = vmatprep.mubr.f32.mxu0 0.0
      %1825 = vmatmul.mubr.f32.gmra.mrb[0].mxu0 %v1680
      %v1826 = vpop.f32.mrb[0].mxu0
      %v1827 = vadd.f32 0.0, %v1826
      %v1828 = vpop.f32.mrb[0].mxu0
      %1829 = vmatprep.mubr.f32.mxu0 0.0
      %1830 = vmatmul.mubr.f32.gmra.mrb[0].mxu0 %v1681
      %v1831 = vpop.f32.mrb[0].mxu0
      %v1832 = vadd.f32 0.0, %v1831
      %v1833 = vpop.f32.mrb[0].mxu0
      %1834 = vmatprep.mubr.f32.mxu0 0.0
      %1835 = vmatmul.mubr.f32.gmra.mrb[0].mxu0 %v1682
      %v1836 = vpop.f32.mrb[0].mxu0
      %v1837 = vadd.f32 0.0, %v1836
      %v1838 = vpop.f32.mrb[0].mxu0
      %1839 = vmatprep.mubr.f32.mxu0 0.0
      %1840 = vmatmul.mubr.f32.gmra.mrb[0].mxu0 %v1683
      %v1841 = vpop.f32.mrb[0].mxu0
      %v1842 = vadd.f32 0.0, %v1841
      %v1843 = vpop.f32.mrb[0].mxu0
      %1844 = vmatprep.mubr.f32.mxu0 0.0
      %1845 = vmatmul.mubr.f32.gmra.mrb[0].mxu0 %v1684
      %v1846 = vpop.f32.mrb[0].mxu0
      %v1847 = vadd.f32 0.0, %v1846
      %v1848 = vpop.f32.mrb[0].mxu0
      %1849 = vmatprep.mubr.f32.mxu0 0.0
      %1850 = vmatmul.mubr.f32.gmra.mrb[0].mxu0 %v1685
      %v1851 = vpop.f32.mrb[0].mxu0
      %v1852 = vadd.f32 0.0, %v1851
      %v1853 = vpop.f32.mrb[0].mxu0
      %1854 = vmatprep.mubr.f32.mxu0 0.0
      %1855 = vmatmul.mubr.f32.gmra.mrb[0].mxu0 %v1686
      %v1856 = vpop.f32.mrb[0].mxu0
      %v1857 = vadd.f32 0.0, %v1856
      %v1858 = vpop.f32.mrb[0].mxu0
      %1859 = vmatprep.mubr.f32.mxu0 0.0
      %1860 = vmatmul.mubr.f32.gmra.mrb[0].mxu0 %v1687
      %v1861 = vpop.f32.mrb[0].mxu0
      %v1862 = vadd.f32 0.0, %v1861
      %v1863 = vpop.f32.mrb[0].mxu0
      %1864 = vmatprep.mubr.f32.mxu0 0.0
      %1865 = vmatmul.mubr.f32.gmra.mrb[0].mxu0 %v1688
      %v1866 = vpop.f32.mrb[0].mxu0
      %v1867 = vadd.f32 0.0, %v1866
      %v1868 = vpop.f32.mrb[0].mxu0
      %1869 = vmatprep.mubr.f32.mxu0 0.0
      %1870 = vmatmul.mubr.f32.gmra.mrb[0].mxu0 %v1689
      %v1871 = vpop.f32.mrb[0].mxu0
      %v1872 = vadd.f32 0.0, %v1871
      %v1873 = vpop.f32.mrb[0].mxu0
      %1874 = vmatprep.mubr.f32.mxu0 0.0
      %1875 = vmatmul.mubr.f32.gmra.mrb[0].mxu0 %v1690
      %v1876 = vpop.f32.mrb[0].mxu0
      %v1877 = vadd.f32 0.0, %v1876
      %v1878 = vpop.f32.mrb[0].mxu0
      %1879 = vmatprep.mubr.f32.mxu0 0.0
      %1880 = vmatmul.mubr.f32.gmra.mrb[0].mxu0 %v1691
      %v1881 = vpop.f32.mrb[0].mxu0
      %v1882 = vadd.f32 0.0, %v1881
      %v1883 = vpop.f32.mrb[0].mxu0
      %1884 = vmatprep.mubr.f32.mxu0 0.0
      %1885 = vmatmul.mubr.f32.gmra.mrb[0].mxu0 %v1692
      %v1886 = vpop.f32.mrb[0].mxu0
      %v1887 = vadd.f32 0.0, %v1886
      %v1888 = vpop.f32.mrb[0].mxu0
      %1889 = vmatprep.mubr.f32.mxu0 0.0
      %1890 = vmatmul.mubr.f32.gmra.mrb[0].mxu0 %v1693
      %v1891 = vpop.f32.mrb[0].mxu0
      %v1892 = vadd.f32 0.0, %v1891
      %v1893 = vpop.f32.mrb[0].mxu0
      %1894 = vmatprep.mubr.f32.mxu0 0.0
      %1895 = vmatmul.mubr.f32.gmra.mrb[0].mxu0 %v1694
      %v1896 = vpop.f32.mrb[0].mxu0
      %v1897 = vadd.f32 0.0, %v1896
      %v1898 = vpop.f32.mrb[0].mxu0
      %1899 = vmatprep.mubr.f32.mxu0 0.0
      %1900 = vmatmul.mubr.f32.gmra.mrb[0].mxu0 %v1695
      %v1901 = vpop.f32.mrb[0].mxu0
      %v1902 = vadd.f32 0.0, %v1901
      %v1903 = vpop.f32.mrb[0].mxu0
      %1904 = vmatprep.mubr.f32.mxu0 0.0
      %1905 = vmatmul.mubr.f32.gmra.mrb[0].mxu0 %v1696
      %v1906 = vpop.f32.mrb[0].mxu0
      %v1907 = vadd.f32 0.0, %v1906
      %v1908 = vpop.f32.mrb[0].mxu0
      %1909 = vmatprep.mubr.f32.mxu0 0.0
      %1910 = vmatmul.mubr.f32.gmra.mrb[0].mxu0 %v1697
      %v1911 = vpop.f32.mrb[0].mxu0
      %v1912 = vadd.f32 0.0, %v1911
      %v1913 = vpop.f32.mrb[0].mxu0
      %1914 = vmatprep.mubr.f32.mxu0 0.0
      %1915 = vmatmul.mubr.f32.gmra.mrb[0].mxu0 %v1698
      %v1916 = vpop.f32.mrb[0].mxu0
      %v1917 = vadd.f32 0.0, %v1916
      %v1918 = vpop.f32.mrb[0].mxu0
      %1919 = vmatprep.mubr.f32.mxu0 0.0
      %1920 = vmatmul.mubr.f32.gmra.mrb[0].mxu0 %v1699
      %v1921 = vpop.f32.mrb[0].mxu0
      %v1922 = vadd.f32 0.0, %v1921
      %v1923 = vpop.f32.mrb[0].mxu0
      %1924 = vmatprep.mubr.f32.mxu0 0.0
      %1925 = vmatmul.mubr.f32.gmra.mrb[0].mxu0 %v1700
      %v1926 = vpop.f32.mrb[0].mxu0
      %v1927 = vadd.f32 0.0, %v1926
      %v1928 = vpop.f32.mrb[0].mxu0
      %1929 = vmatprep.mubr.f32.mxu0 0.0
      %1930 = vmatmul.mubr.f32.gmra.mrb[0].mxu0 %v1701
      %v1931 = vpop.f32.mrb[0].mxu0
      %v1932 = vadd.f32 0.0, %v1931
      %v1933 = vpop.f32.mrb[0].mxu0
      %1934 = vmatprep.mubr.f32.mxu0 0.0
      %1935 = vmatmul.mubr.f32.gmra.mrb[0].mxu0 %v1702
      %v1936 = vpop.f32.mrb[0].mxu0
      %v1937 = vadd.f32 0.0, %v1936
      %v1938 = vpop.f32.mrb[0].mxu0
      %1939 = vmatprep.mubr.f32.mxu0 0.0
      %1940 = vmatmul.mubr.f32.gmra.mrb[0].mxu0 %v1703
      %v1941 = vpop.f32.mrb[0].mxu0
      %v1942 = vadd.f32 0.0, %v1941
      %v1943 = vpop.f32.mrb[0].mxu0
      %1944 = vdwg.mxu0
      %v1945 = vadd.f32 %v1640, %v1787
      %v1946 = vadd.f32 %v1641, %v1792
      %v1947 = vadd.f32 %v1642, %v1797
      %v1948 = vadd.f32 %v1643, %v1802
      %v1949 = vadd.f32 %v1644, %v1807
      %v1950 = vadd.f32 %v1645, %v1812
      %v1951 = vadd.f32 %v1646, %v1817
      %v1952 = vadd.f32 %v1647, %v1822
      %v1953 = vadd.f32 %v1648, %v1827
      %v1954 = vadd.f32 %v1649, %v1832
      %v1955 = vadd.f32 %v1650, %v1837
      %v1956 = vadd.f32 %v1651, %v1842
      %v1957 = vadd.f32 %v1652, %v1847
      %v1958 = vadd.f32 %v1653, %v1852
      %v1959 = vadd.f32 %v1654, %v1857
      %v1960 = vadd.f32 %v1655, %v1862
      %v1961 = vadd.f32 %v1656, %v1867
      %v1962 = vadd.f32 %v1657, %v1872
      %v1963 = vadd.f32 %v1658, %v1877
      %v1964 = vadd.f32 %v1659, %v1882
      %v1965 = vadd.f32 %v1660, %v1887
      %v1966 = vadd.f32 %v1661, %v1892
      %v1967 = vadd.f32 %v1662, %v1897
      %v1968 = vadd.f32 %v1663, %v1902
      %v1969 = vadd.f32 %v1664, %v1907
      %v1970 = vadd.f32 %v1665, %v1912
      %v1971 = vadd.f32 %v1666, %v1917
      %v1972 = vadd.f32 %v1667, %v1922
      %v1973 = vadd.f32 %v1668, %v1927
      %v1974 = vadd.f32 %v1669, %v1932
      %v1975 = vadd.f32 %v1670, %v1937
      %v1976 = vadd.f32 %v1671, %v1942
      %v1977 = vld [vmem:[%s483 + $0x9] sm:$0xff]
      %v1978 = vld [vmem:[%s483 + $0x11] sm:$0xff]
      %v1979 = vld [vmem:[%s483 + $0x29] sm:$0xff]
      %v1980 = vld [vmem:[%s483 + $0x31] sm:$0xff]
      %v1981 = vld [vmem:[%s483 + $0x49] sm:$0xff]
      %v1982 = vld [vmem:[%s483 + $0x51] sm:$0xff]
      %v1983 = vld [vmem:[%s483 + $0x69] sm:$0xff]
      %v1984 = vld [vmem:[%s483 + $0x71] sm:$0xff]
      %v1985 = vld [vmem:[%s483 + $0x89] sm:$0xff]
      %v1986 = vld [vmem:[%s483 + $0x91] sm:$0xff]
      %v1987 = vld [vmem:[%s483 + $0xa9] sm:$0xff]
      %v1988 = vld [vmem:[%s483 + $0xb1] sm:$0xff]
      %v1989 = vld [vmem:[%s483 + $0xc9] sm:$0xff]
      %v1990 = vld [vmem:[%s483 + $0xd1] sm:$0xff]
      %v1991 = vld [vmem:[%s483 + $0xe9] sm:$0xff]
      %v1992 = vld [vmem:[%s483 + $0xf1] sm:$0xff]
      %v1993 = vld [vmem:[%s483 + $0x109] sm:$0xff]
      %v1994 = vld [vmem:[%s483 + $0x111] sm:$0xff]
      %v1995 = vld [vmem:[%s483 + $0x129] sm:$0xff]
      %v1996 = vld [vmem:[%s483 + $0x131] sm:$0xff]
      %v1997 = vld [vmem:[%s483 + $0x149] sm:$0xff]
      %v1998 = vld [vmem:[%s483 + $0x151] sm:$0xff]
      %v1999 = vld [vmem:[%s483 + $0x169] sm:$0xff]
      %v2000 = vld [vmem:[%s483 + $0x171] sm:$0xff]
      %v2001 = vld [vmem:[%s483 + $0x189] sm:$0xff]
      %v2002 = vld [vmem:[%s483 + $0x191] sm:$0xff]
      %v2003 = vld [vmem:[%s483 + $0x1a9] sm:$0xff]
      %v2004 = vld [vmem:[%s483 + $0x1b1] sm:$0xff]
      %v2005 = vld [vmem:[%s483 + $0x1c9] sm:$0xff]
      %v2006 = vld [vmem:[%s483 + $0x1d1] sm:$0xff]
      %v2007 = vld [vmem:[%s483 + $0x1e9] sm:$0xff]
      %v2008 = vld [vmem:[%s483 + $0x1f1] sm:$0xff]
      %v2009 = vld [vmem:[%s3 + $0x280] sm:$0xff]
      %v2010 = vld [vmem:[%s3 + $0x288] sm:$0xff]
      %v2011 = vld [vmem:[%s3 + $0x290] sm:$0xff]
      %v2012 = vld [vmem:[%s3 + $0x298] sm:$0xff]
      %v2013 = vld [vmem:[%s3 + $0x2a0] sm:$0xff]
      %v2014 = vld [vmem:[%s3 + $0x2a8] sm:$0xff]
      %v2015 = vld [vmem:[%s3 + $0x2b0] sm:$0xff]
      %v2016 = vld [vmem:[%s3 + $0x2b8] sm:$0xff]
      %v2017 = vld [vmem:[%s3 + $0x2c0] sm:$0xff]
      %v2018 = vld [vmem:[%s3 + $0x2c8] sm:$0xff]
      %v2019 = vld [vmem:[%s3 + $0x2d0] sm:$0xff]
      %v2020 = vld [vmem:[%s3 + $0x2d8] sm:$0xff]
      %v2021 = vld [vmem:[%s3 + $0x2e0] sm:$0xff]
      %v2022 = vld [vmem:[%s3 + $0x2e8] sm:$0xff]
      %v2023 = vld [vmem:[%s3 + $0x2f0] sm:$0xff]
      %v2024 = vld [vmem:[%s3 + $0x2f8] sm:$0xff]
      %2025 = vmatprep.subr.mxu0 0.0
      %2026 = vmatpush1.msra.mxu0 %v2009
      %2027 = vmatprep.subr.mxu0 0.0
      %2028 = vmatpush1.msra.mxu0 %v2010
      %2029 = vmatprep.subr.mxu0 0.0
      %2030 = vmatpush1.msra.mxu0 %v2011
      %2031 = vmatprep.subr.mxu0 0.0
      %2032 = vmatpush1.msra.mxu0 %v2012
      %2033 = vmatprep.subr.mxu0 0.0
      %2034 = vmatpush1.msra.mxu0 %v2013
      %2035 = vmatprep.subr.mxu0 0.0
      %2036 = vmatpush1.msra.mxu0 %v2014
      %2037 = vmatprep.subr.mxu0 0.0
      %2038 = vmatpush1.msra.mxu0 %v2015
      %2039 = vmatprep.subr.mxu0 0.0
      %2040 = vmatpush1.msra.mxu0 %v2016
      %2041 = vmatprep.subr.mxu0 0.0
      %2042 = vmatpush1.msra.mxu0 %v2017
      %2043 = vmatprep.subr.mxu0 0.0
      %2044 = vmatpush1.msra.mxu0 %v2018
      %2045 = vmatprep.subr.mxu0 0.0
      %2046 = vmatpush1.msra.mxu0 %v2019
      %2047 = vmatprep.subr.mxu0 0.0
      %2048 = vmatpush1.msra.mxu0 %v2020
      %2049 = vmatprep.subr.mxu0 0.0
      %2050 = vmatpush1.msra.mxu0 %v2021
      %2051 = vmatprep.subr.mxu0 0.0
      %2052 = vmatpush1.msra.mxu0 %v2022
      %2053 = vmatprep.subr.mxu0 0.0
      %2054 = vmatpush1.msra.mxu0 %v2023
      %2055 = vmatprep.subr.mxu0 0.0
      %2056 = vmatpush1.msra.mxu0 %v2024
      %2057 = vmatprep.subr.mxu0 0.0
      %2058 = vmatpush1.msra.mxu0 0.0
      %2059 = vmatprep.subr.mxu0 0.0
      %2060 = vmatpush1.msra.mxu0 0.0
      %2061 = vmatprep.subr.mxu0 0.0
      %2062 = vmatpush1.msra.mxu0 0.0
      %2063 = vmatprep.subr.mxu0 0.0
      %2064 = vmatpush1.msra.mxu0 0.0
      %2065 = vmatprep.subr.mxu0 0.0
      %2066 = vmatpush1.msra.mxu0 0.0
      %2067 = vmatprep.subr.mxu0 0.0
      %2068 = vmatpush1.msra.mxu0 0.0
      %2069 = vmatprep.subr.mxu0 0.0
      %2070 = vmatpush1.msra.mxu0 0.0
      %2071 = vmatprep.subr.mxu0 0.0
      %2072 = vmatpush1.msra.mxu0 0.0
      %2073 = vmatprep.subr.mxu0 0.0
      %2074 = vmatpush1.msra.mxu0 0.0
      %2075 = vmatprep.subr.mxu0 0.0
      %2076 = vmatpush1.msra.mxu0 0.0
      %2077 = vmatprep.subr.mxu0 0.0
      %2078 = vmatpush1.msra.mxu0 0.0
      %2079 = vmatprep.subr.mxu0 0.0
      %2080 = vmatpush1.msra.mxu0 0.0
      %2081 = vmatprep.subr.mxu0 0.0
      %2082 = vmatpush1.msra.mxu0 0.0
      %2083 = vmatprep.subr.mxu0 0.0
      %2084 = vmatpush1.msra.mxu0 0.0
      %2085 = vmatprep.subr.mxu0 0.0
      %2086 = vmatpush1.msra.mxu0 0.0
      %2087 = vmatprep.subr.mxu0 0.0
      %2088 = vmatpush1.msra.mxu0 0.0
      %2089 = vmatprep.mubr.f32.mxu0 0.0
      %2090 = vmatmul.mubr.f32.gmra.mrb[0].mxu0 %v1977
      %v2091 = vpop.f32.mrb[0].mxu0
      %v2092 = vadd.f32 0.0, %v2091
      %v2093 = vpop.f32.mrb[0].mxu0
      %2094 = vmatprep.mubr.f32.mxu0 0.0
      %2095 = vmatmul.mubr.f32.gmra.mrb[0].mxu0 %v1978
      %v2096 = vpop.f32.mrb[0].mxu0
      %v2097 = vadd.f32 0.0, %v2096
      %v2098 = vpop.f32.mrb[0].mxu0
      %2099 = vmatprep.mubr.f32.mxu0 0.0
      %2100 = vmatmul.mubr.f32.gmra.mrb[0].mxu0 %v1979
      %v2101 = vpop.f32.mrb[0].mxu0
      %v2102 = vadd.f32 0.0, %v2101
      %v2103 = vpop.f32.mrb[0].mxu0
      %2104 = vmatprep.mubr.f32.mxu0 0.0
      %2105 = vmatmul.mubr.f32.gmra.mrb[0].mxu0 %v1980
      %v2106 = vpop.f32.mrb[0].mxu0
      %v2107 = vadd.f32 0.0, %v2106
      %v2108 = vpop.f32.mrb[0].mxu0
      %2109 = vmatprep.mubr.f32.mxu0 0.0
      %2110 = vmatmul.mubr.f32.gmra.mrb[0].mxu0 %v1981
      %v2111 = vpop.f32.mrb[0].mxu0
      %v2112 = vadd.f32 0.0, %v2111
      %v2113 = vpop.f32.mrb[0].mxu0
      %2114 = vmatprep.mubr.f32.mxu0 0.0
      %2115 = vmatmul.mubr.f32.gmra.mrb[0].mxu0 %v1982
      %v2116 = vpop.f32.mrb[0].mxu0
      %v2117 = vadd.f32 0.0, %v2116
      %v2118 = vpop.f32.mrb[0].mxu0
      %2119 = vmatprep.mubr.f32.mxu0 0.0
      %2120 = vmatmul.mubr.f32.gmra.mrb[0].mxu0 %v1983
      %v2121 = vpop.f32.mrb[0].mxu0
      %v2122 = vadd.f32 0.0, %v2121
      %v2123 = vpop.f32.mrb[0].mxu0
      %2124 = vmatprep.mubr.f32.mxu0 0.0
      %2125 = vmatmul.mubr.f32.gmra.mrb[0].mxu0 %v1984
      %v2126 = vpop.f32.mrb[0].mxu0
      %v2127 = vadd.f32 0.0, %v2126
      %v2128 = vpop.f32.mrb[0].mxu0
      %2129 = vmatprep.mubr.f32.mxu0 0.0
      %2130 = vmatmul.mubr.f32.gmra.mrb[0].mxu0 %v1985
      %v2131 = vpop.f32.mrb[0].mxu0
      %v2132 = vadd.f32 0.0, %v2131
      %v2133 = vpop.f32.mrb[0].mxu0
      %2134 = vmatprep.mubr.f32.mxu0 0.0
      %2135 = vmatmul.mubr.f32.gmra.mrb[0].mxu0 %v1986
      %v2136 = vpop.f32.mrb[0].mxu0
      %v2137 = vadd.f32 0.0, %v2136
      %v2138 = vpop.f32.mrb[0].mxu0
      %2139 = vmatprep.mubr.f32.mxu0 0.0
      %2140 = vmatmul.mubr.f32.gmra.mrb[0].mxu0 %v1987
      %v2141 = vpop.f32.mrb[0].mxu0
      %v2142 = vadd.f32 0.0, %v2141
      %v2143 = vpop.f32.mrb[0].mxu0
      %2144 = vmatprep.mubr.f32.mxu0 0.0
      %2145 = vmatmul.mubr.f32.gmra.mrb[0].mxu0 %v1988
      %v2146 = vpop.f32.mrb[0].mxu0
      %v2147 = vadd.f32 0.0, %v2146
      %v2148 = vpop.f32.mrb[0].mxu0
      %2149 = vmatprep.mubr.f32.mxu0 0.0
      %2150 = vmatmul.mubr.f32.gmra.mrb[0].mxu0 %v1989
      %v2151 = vpop.f32.mrb[0].mxu0
      %v2152 = vadd.f32 0.0, %v2151
      %v2153 = vpop.f32.mrb[0].mxu0
      %2154 = vmatprep.mubr.f32.mxu0 0.0
      %2155 = vmatmul.mubr.f32.gmra.mrb[0].mxu0 %v1990
      %v2156 = vpop.f32.mrb[0].mxu0
      %v2157 = vadd.f32 0.0, %v2156
      %v2158 = vpop.f32.mrb[0].mxu0
      %2159 = vmatprep.mubr.f32.mxu0 0.0
      %2160 = vmatmul.mubr.f32.gmra.mrb[0].mxu0 %v1991
      %v2161 = vpop.f32.mrb[0].mxu0
      %v2162 = vadd.f32 0.0, %v2161
      %v2163 = vpop.f32.mrb[0].mxu0
      %2164 = vmatprep.mubr.f32.mxu0 0.0
      %2165 = vmatmul.mubr.f32.gmra.mrb[0].mxu0 %v1992
      %v2166 = vpop.f32.mrb[0].mxu0
      %v2167 = vadd.f32 0.0, %v2166
      %v2168 = vpop.f32.mrb[0].mxu0
      %2169 = vmatprep.mubr.f32.mxu0 0.0
      %2170 = vmatmul.mubr.f32.gmra.mrb[0].mxu0 %v1993
      %v2171 = vpop.f32.mrb[0].mxu0
      %v2172 = vadd.f32 0.0, %v2171
      %v2173 = vpop.f32.mrb[0].mxu0
      %2174 = vmatprep.mubr.f32.mxu0 0.0
      %2175 = vmatmul.mubr.f32.gmra.mrb[0].mxu0 %v1994
      %v2176 = vpop.f32.mrb[0].mxu0
      %v2177 = vadd.f32 0.0, %v2176
      %v2178 = vpop.f32.mrb[0].mxu0
      %2179 = vmatprep.mubr.f32.mxu0 0.0
      %2180 = vmatmul.mubr.f32.gmra.mrb[0].mxu0 %v1995
      %v2181 = vpop.f32.mrb[0].mxu0
      %v2182 = vadd.f32 0.0, %v2181
      %v2183 = vpop.f32.mrb[0].mxu0
      %2184 = vmatprep.mubr.f32.mxu0 0.0
      %2185 = vmatmul.mubr.f32.gmra.mrb[0].mxu0 %v1996
      %v2186 = vpop.f32.mrb[0].mxu0
      %v2187 = vadd.f32 0.0, %v2186
      %v2188 = vpop.f32.mrb[0].mxu0
      %2189 = vmatprep.mubr.f32.mxu0 0.0
      %2190 = vmatmul.mubr.f32.gmra.mrb[0].mxu0 %v1997
      %v2191 = vpop.f32.mrb[0].mxu0
      %v2192 = vadd.f32 0.0, %v2191
      %v2193 = vpop.f32.mrb[0].mxu0
      %2194 = vmatprep.mubr.f32.mxu0 0.0
      %2195 = vmatmul.mubr.f32.gmra.mrb[0].mxu0 %v1998
      %v2196 = vpop.f32.mrb[0].mxu0
      %v2197 = vadd.f32 0.0, %v2196
      %v2198 = vpop.f32.mrb[0].mxu0
      %2199 = vmatprep.mubr.f32.mxu0 0.0
      %2200 = vmatmul.mubr.f32.gmra.mrb[0].mxu0 %v1999
      %v2201 = vpop.f32.mrb[0].mxu0
      %v2202 = vadd.f32 0.0, %v2201
      %v2203 = vpop.f32.mrb[0].mxu0
      %2204 = vmatprep.mubr.f32.mxu0 0.0
      %2205 = vmatmul.mubr.f32.gmra.mrb[0].mxu0 %v2000
      %v2206 = vpop.f32.mrb[0].mxu0
      %v2207 = vadd.f32 0.0, %v2206
      %v2208 = vpop.f32.mrb[0].mxu0
      %2209 = vmatprep.mubr.f32.mxu0 0.0
      %2210 = vmatmul.mubr.f32.gmra.mrb[0].mxu0 %v2001
      %v2211 = vpop.f32.mrb[0].mxu0
      %v2212 = vadd.f32 0.0, %v2211
      %v2213 = vpop.f32.mrb[0].mxu0
      %2214 = vmatprep.mubr.f32.mxu0 0.0
      %2215 = vmatmul.mubr.f32.gmra.mrb[0].mxu0 %v2002
      %v2216 = vpop.f32.mrb[0].mxu0
      %v2217 = vadd.f32 0.0, %v2216
      %v2218 = vpop.f32.mrb[0].mxu0
      %2219 = vmatprep.mubr.f32.mxu0 0.0
      %2220 = vmatmul.mubr.f32.gmra.mrb[0].mxu0 %v2003
      %v2221 = vpop.f32.mrb[0].mxu0
      %v2222 = vadd.f32 0.0, %v2221
      %v2223 = vpop.f32.mrb[0].mxu0
      %2224 = vmatprep.mubr.f32.mxu0 0.0
      %2225 = vmatmul.mubr.f32.gmra.mrb[0].mxu0 %v2004
      %v2226 = vpop.f32.mrb[0].mxu0
      %v2227 = vadd.f32 0.0, %v2226
      %v2228 = vpop.f32.mrb[0].mxu0
      %2229 = vmatprep.mubr.f32.mxu0 0.0
      %2230 = vmatmul.mubr.f32.gmra.mrb[0].mxu0 %v2005
      %v2231 = vpop.f32.mrb[0].mxu0
      %v2232 = vadd.f32 0.0, %v2231
      %v2233 = vpop.f32.mrb[0].mxu0
      %2234 = vmatprep.mubr.f32.mxu0 0.0
      %2235 = vmatmul.mubr.f32.gmra.mrb[0].mxu0 %v2006
      %v2236 = vpop.f32.mrb[0].mxu0
      %v2237 = vadd.f32 0.0, %v2236
      %v2238 = vpop.f32.mrb[0].mxu0
      %2239 = vmatprep.mubr.f32.mxu0 0.0
      %2240 = vmatmul.mubr.f32.gmra.mrb[0].mxu0 %v2007
      %v2241 = vpop.f32.mrb[0].mxu0
      %v2242 = vadd.f32 0.0, %v2241
      %v2243 = vpop.f32.mrb[0].mxu0
      %2244 = vmatprep.mubr.f32.mxu0 0.0
      %2245 = vmatmul.mubr.f32.gmra.mrb[0].mxu0 %v2008
      %v2246 = vpop.f32.mrb[0].mxu0
      %v2247 = vadd.f32 0.0, %v2246
      %v2248 = vpop.f32.mrb[0].mxu0
      %2249 = vdwg.mxu0
      %v2250 = vadd.f32 %v1945, %v2092
      %v2251 = vadd.f32 %v1946, %v2097
      %v2252 = vadd.f32 %v1947, %v2102
      %v2253 = vadd.f32 %v1948, %v2107
      %v2254 = vadd.f32 %v1949, %v2112
      %v2255 = vadd.f32 %v1950, %v2117
      %v2256 = vadd.f32 %v1951, %v2122
      %v2257 = vadd.f32 %v1952, %v2127
      %v2258 = vadd.f32 %v1953, %v2132
      %v2259 = vadd.f32 %v1954, %v2137
      %v2260 = vadd.f32 %v1955, %v2142
      %v2261 = vadd.f32 %v1956, %v2147
      %v2262 = vadd.f32 %v1957, %v2152
      %v2263 = vadd.f32 %v1958, %v2157
      %v2264 = vadd.f32 %v1959, %v2162
      %v2265 = vadd.f32 %v1960, %v2167
      %v2266 = vadd.f32 %v1961, %v2172
      %v2267 = vadd.f32 %v1962, %v2177
      %v2268 = vadd.f32 %v1963, %v2182
      %v2269 = vadd.f32 %v1964, %v2187
      %v2270 = vadd.f32 %v1965, %v2192
      %v2271 = vadd.f32 %v1966, %v2197
      %v2272 = vadd.f32 %v1967, %v2202
      %v2273 = vadd.f32 %v1968, %v2207
      %v2274 = vadd.f32 %v1969, %v2212
      %v2275 = vadd.f32 %v1970, %v2217
      %v2276 = vadd.f32 %v1971, %v2222
      %v2277 = vadd.f32 %v1972, %v2227
      %v2278 = vadd.f32 %v1973, %v2232
      %v2279 = vadd.f32 %v1974, %v2237
      %v2280 = vadd.f32 %v1975, %v2242
      %v2281 = vadd.f32 %v1976, %v2247
      %s2282 = scalar_lea.vmem [#allocation2], 64
      %v2283 = vld [vmem:[%s2282 + $0x7] sm:$0xff]
      %v2284 = vld [vmem:[%s2282 + $0xf] sm:$0xff]
      %v2285 = vld [vmem:[%s2282 + $0x27] sm:$0xff]
      %v2286 = vld [vmem:[%s2282 + $0x2f] sm:$0xff]
      %v2287 = vld [vmem:[%s2282 + $0x47] sm:$0xff]
      %v2288 = vld [vmem:[%s2282 + $0x4f] sm:$0xff]
      %v2289 = vld [vmem:[%s2282 + $0x67] sm:$0xff]
      %v2290 = vld [vmem:[%s2282 + $0x6f] sm:$0xff]
      %v2291 = vld [vmem:[%s2282 + $0x87] sm:$0xff]
      %v2292 = vld [vmem:[%s2282 + $0x8f] sm:$0xff]
      %v2293 = vld [vmem:[%s2282 + $0xa7] sm:$0xff]
      %v2294 = vld [vmem:[%s2282 + $0xaf] sm:$0xff]
      %v2295 = vld [vmem:[%s2282 + $0xc7] sm:$0xff]
      %v2296 = vld [vmem:[%s2282 + $0xcf] sm:$0xff]
      %v2297 = vld [vmem:[%s2282 + $0xe7] sm:$0xff]
      %v2298 = vld [vmem:[%s2282 + $0xef] sm:$0xff]
      %v2299 = vld [vmem:[%s2282 + $0x107] sm:$0xff]
      %v2300 = vld [vmem:[%s2282 + $0x10f] sm:$0xff]
      %v2301 = vld [vmem:[%s2282 + $0x127] sm:$0xff]
      %v2302 = vld [vmem:[%s2282 + $0x12f] sm:$0xff]
      %v2303 = vld [vmem:[%s2282 + $0x147] sm:$0xff]
      %v2304 = vld [vmem:[%s2282 + $0x14f] sm:$0xff]
      %v2305 = vld [vmem:[%s2282 + $0x167] sm:$0xff]
      %v2306 = vld [vmem:[%s2282 + $0x16f] sm:$0xff]
      %v2307 = vld [vmem:[%s2282 + $0x187] sm:$0xff]
      %v2308 = vld [vmem:[%s2282 + $0x18f] sm:$0xff]
      %v2309 = vld [vmem:[%s2282 + $0x1a7] sm:$0xff]
      %v2310 = vld [vmem:[%s2282 + $0x1af] sm:$0xff]
      %v2311 = vld [vmem:[%s2282 + $0x1c7] sm:$0xff]
      %v2312 = vld [vmem:[%s2282 + $0x1cf] sm:$0xff]
      %v2313 = vld [vmem:[%s2282 + $0x1e7] sm:$0xff]
      %v2314 = vld [vmem:[%s2282 + $0x1ef] sm:$0xff]
      %v2315 = vld [vmem:[%s3 + $0x300] sm:$0xff]
      %v2316 = vld [vmem:[%s3 + $0x308] sm:$0xff]
      %v2317 = vld [vmem:[%s3 + $0x310] sm:$0xff]
      %v2318 = vld [vmem:[%s3 + $0x318] sm:$0xff]
      %v2319 = vld [vmem:[%s3 + $0x320] sm:$0xff]
      %v2320 = vld [vmem:[%s3 + $0x328] sm:$0xff]
      %v2321 = vld [vmem:[%s3 + $0x330] sm:$0xff]
      %v2322 = vld [vmem:[%s3 + $0x338] sm:$0xff]
      %v2323 = vld [vmem:[%s3 + $0x340] sm:$0xff]
      %v2324 = vld [vmem:[%s3 + $0x348] sm:$0xff]
      %v2325 = vld [vmem:[%s3 + $0x350] sm:$0xff]
      %v2326 = vld [vmem:[%s3 + $0x358] sm:$0xff]
      %v2327 = vld [vmem:[%s3 + $0x360] sm:$0xff]
      %v2328 = vld [vmem:[%s3 + $0x368] sm:$0xff]
      %v2329 = vld [vmem:[%s3 + $0x370] sm:$0xff]
      %v2330 = vld [vmem:[%s3 + $0x378] sm:$0xff]
      %2331 = vmatprep.subr.mxu0 0.0
      %2332 = vmatpush1.msra.mxu0 %v2315
      %2333 = vmatprep.subr.mxu0 0.0
      %2334 = vmatpush1.msra.mxu0 %v2316
      %2335 = vmatprep.subr.mxu0 0.0
      %2336 = vmatpush1.msra.mxu0 %v2317
      %2337 = vmatprep.subr.mxu0 0.0
      %2338 = vmatpush1.msra.mxu0 %v2318
      %2339 = vmatprep.subr.mxu0 0.0
      %2340 = vmatpush1.msra.mxu0 %v2319
      %2341 = vmatprep.subr.mxu0 0.0
      %2342 = vmatpush1.msra.mxu0 %v2320
      %2343 = vmatprep.subr.mxu0 0.0
      %2344 = vmatpush1.msra.mxu0 %v2321
      %2345 = vmatprep.subr.mxu0 0.0
      %2346 = vmatpush1.msra.mxu0 %v2322
      %2347 = vmatprep.subr.mxu0 0.0
      %2348 = vmatpush1.msra.mxu0 %v2323
      %2349 = vmatprep.subr.mxu0 0.0
      %2350 = vmatpush1.msra.mxu0 %v2324
      %2351 = vmatprep.subr.mxu0 0.0
      %2352 = vmatpush1.msra.mxu0 %v2325
      %2353 = vmatprep.subr.mxu0 0.0
      %2354 = vmatpush1.msra.mxu0 %v2326
      %2355 = vmatprep.subr.mxu0 0.0
      %2356 = vmatpush1.msra.mxu0 %v2327
      %2357 = vmatprep.subr.mxu0 0.0
      %2358 = vmatpush1.msra.mxu0 %v2328
      %2359 = vmatprep.subr.mxu0 0.0
      %2360 = vmatpush1.msra.mxu0 %v2329
      %2361 = vmatprep.subr.mxu0 0.0
      %2362 = vmatpush1.msra.mxu0 %v2330
      %2363 = vmatprep.subr.mxu0 0.0
      %2364 = vmatpush1.msra.mxu0 0.0
      %2365 = vmatprep.subr.mxu0 0.0
      %2366 = vmatpush1.msra.mxu0 0.0
      %2367 = vmatprep.subr.mxu0 0.0
      %2368 = vmatpush1.msra.mxu0 0.0
      %2369 = vmatprep.subr.mxu0 0.0
      %2370 = vmatpush1.msra.mxu0 0.0
      %2371 = vmatprep.subr.mxu0 0.0
      %2372 = vmatpush1.msra.mxu0 0.0
      %2373 = vmatprep.subr.mxu0 0.0
      %2374 = vmatpush1.msra.mxu0 0.0
      %2375 = vmatprep.subr.mxu0 0.0
      %2376 = vmatpush1.msra.mxu0 0.0
      %2377 = vmatprep.subr.mxu0 0.0
      %2378 = vmatpush1.msra.mxu0 0.0
      %2379 = vmatprep.subr.mxu0 0.0
      %2380 = vmatpush1.msra.mxu0 0.0
      %2381 = vmatprep.subr.mxu0 0.0
      %2382 = vmatpush1.msra.mxu0 0.0
      %2383 = vmatprep.subr.mxu0 0.0
      %2384 = vmatpush1.msra.mxu0 0.0
      %2385 = vmatprep.subr.mxu0 0.0
      %2386 = vmatpush1.msra.mxu0 0.0
      %2387 = vmatprep.subr.mxu0 0.0
      %2388 = vmatpush1.msra.mxu0 0.0
      %2389 = vmatprep.subr.mxu0 0.0
      %2390 = vmatpush1.msra.mxu0 0.0
      %2391 = vmatprep.subr.mxu0 0.0
      %2392 = vmatpush1.msra.mxu0 0.0
      %2393 = vmatprep.subr.mxu0 0.0
      %2394 = vmatpush1.msra.mxu0 0.0
      %2395 = vmatprep.mubr.f32.mxu0 0.0
      %2396 = vmatmul.mubr.f32.gmra.mrb[0].mxu0 %v2283
      %v2397 = vpop.f32.mrb[0].mxu0
      %v2398 = vadd.f32 0.0, %v2397
      %v2399 = vpop.f32.mrb[0].mxu0
      %2400 = vmatprep.mubr.f32.mxu0 0.0
      %2401 = vmatmul.mubr.f32.gmra.mrb[0].mxu0 %v2284
      %v2402 = vpop.f32.mrb[0].mxu0
      %v2403 = vadd.f32 0.0, %v2402
      %v2404 = vpop.f32.mrb[0].mxu0
      %2405 = vmatprep.mubr.f32.mxu0 0.0
      %2406 = vmatmul.mubr.f32.gmra.mrb[0].mxu0 %v2285
      %v2407 = vpop.f32.mrb[0].mxu0
      %v2408 = vadd.f32 0.0, %v2407
      %v2409 = vpop.f32.mrb[0].mxu0
      %2410 = vmatprep.mubr.f32.mxu0 0.0
      %2411 = vmatmul.mubr.f32.gmra.mrb[0].mxu0 %v2286
      %v2412 = vpop.f32.mrb[0].mxu0
      %v2413 = vadd.f32 0.0, %v2412
      %v2414 = vpop.f32.mrb[0].mxu0
      %2415 = vmatprep.mubr.f32.mxu0 0.0
      %2416 = vmatmul.mubr.f32.gmra.mrb[0].mxu0 %v2287
      %v2417 = vpop.f32.mrb[0].mxu0
      %v2418 = vadd.f32 0.0, %v2417
      %v2419 = vpop.f32.mrb[0].mxu0
      %2420 = vmatprep.mubr.f32.mxu0 0.0
      %2421 = vmatmul.mubr.f32.gmra.mrb[0].mxu0 %v2288
      %v2422 = vpop.f32.mrb[0].mxu0
      %v2423 = vadd.f32 0.0, %v2422
      %v2424 = vpop.f32.mrb[0].mxu0
      %2425 = vmatprep.mubr.f32.mxu0 0.0
      %2426 = vmatmul.mubr.f32.gmra.mrb[0].mxu0 %v2289
      %v2427 = vpop.f32.mrb[0].mxu0
      %v2428 = vadd.f32 0.0, %v2427
      %v2429 = vpop.f32.mrb[0].mxu0
      %2430 = vmatprep.mubr.f32.mxu0 0.0
      %2431 = vmatmul.mubr.f32.gmra.mrb[0].mxu0 %v2290
      %v2432 = vpop.f32.mrb[0].mxu0
      %v2433 = vadd.f32 0.0, %v2432
      %v2434 = vpop.f32.mrb[0].mxu0
      %2435 = vmatprep.mubr.f32.mxu0 0.0
      %2436 = vmatmul.mubr.f32.gmra.mrb[0].mxu0 %v2291
      %v2437 = vpop.f32.mrb[0].mxu0
      %v2438 = vadd.f32 0.0, %v2437
      %v2439 = vpop.f32.mrb[0].mxu0
      %2440 = vmatprep.mubr.f32.mxu0 0.0
      %2441 = vmatmul.mubr.f32.gmra.mrb[0].mxu0 %v2292
      %v2442 = vpop.f32.mrb[0].mxu0
      %v2443 = vadd.f32 0.0, %v2442
      %v2444 = vpop.f32.mrb[0].mxu0
      %2445 = vmatprep.mubr.f32.mxu0 0.0
      %2446 = vmatmul.mubr.f32.gmra.mrb[0].mxu0 %v2293
      %v2447 = vpop.f32.mrb[0].mxu0
      %v2448 = vadd.f32 0.0, %v2447
      %v2449 = vpop.f32.mrb[0].mxu0
      %2450 = vmatprep.mubr.f32.mxu0 0.0
      %2451 = vmatmul.mubr.f32.gmra.mrb[0].mxu0 %v2294
      %v2452 = vpop.f32.mrb[0].mxu0
      %v2453 = vadd.f32 0.0, %v2452
      %v2454 = vpop.f32.mrb[0].mxu0
      %2455 = vmatprep.mubr.f32.mxu0 0.0
      %2456 = vmatmul.mubr.f32.gmra.mrb[0].mxu0 %v2295
      %v2457 = vpop.f32.mrb[0].mxu0
      %v2458 = vadd.f32 0.0, %v2457
      %v2459 = vpop.f32.mrb[0].mxu0
      %2460 = vmatprep.mubr.f32.mxu0 0.0
      %2461 = vmatmul.mubr.f32.gmra.mrb[0].mxu0 %v2296
      %v2462 = vpop.f32.mrb[0].mxu0
      %v2463 = vadd.f32 0.0, %v2462
      %v2464 = vpop.f32.mrb[0].mxu0
      %2465 = vmatprep.mubr.f32.mxu0 0.0
      %2466 = vmatmul.mubr.f32.gmra.mrb[0].mxu0 %v2297
      %v2467 = vpop.f32.mrb[0].mxu0
      %v2468 = vadd.f32 0.0, %v2467
      %v2469 = vpop.f32.mrb[0].mxu0
      %2470 = vmatprep.mubr.f32.mxu0 0.0
      %2471 = vmatmul.mubr.f32.gmra.mrb[0].mxu0 %v2298
      %v2472 = vpop.f32.mrb[0].mxu0
      %v2473 = vadd.f32 0.0, %v2472
      %v2474 = vpop.f32.mrb[0].mxu0
      %2475 = vmatprep.mubr.f32.mxu0 0.0
      %2476 = vmatmul.mubr.f32.gmra.mrb[0].mxu0 %v2299
      %v2477 = vpop.f32.mrb[0].mxu0
      %v2478 = vadd.f32 0.0, %v2477
      %v2479 = vpop.f32.mrb[0].mxu0
      %2480 = vmatprep.mubr.f32.mxu0 0.0
      %2481 = vmatmul.mubr.f32.gmra.mrb[0].mxu0 %v2300
      %v2482 = vpop.f32.mrb[0].mxu0
      %v2483 = vadd.f32 0.0, %v2482
      %v2484 = vpop.f32.mrb[0].mxu0
      %2485 = vmatprep.mubr.f32.mxu0 0.0
      %2486 = vmatmul.mubr.f32.gmra.mrb[0].mxu0 %v2301
      %v2487 = vpop.f32.mrb[0].mxu0
      %v2488 = vadd.f32 0.0, %v2487
      %v2489 = vpop.f32.mrb[0].mxu0
      %2490 = vmatprep.mubr.f32.mxu0 0.0
      %2491 = vmatmul.mubr.f32.gmra.mrb[0].mxu0 %v2302
      %v2492 = vpop.f32.mrb[0].mxu0
      %v2493 = vadd.f32 0.0, %v2492
      %v2494 = vpop.f32.mrb[0].mxu0
      %2495 = vmatprep.mubr.f32.mxu0 0.0
      %2496 = vmatmul.mubr.f32.gmra.mrb[0].mxu0 %v2303
      %v2497 = vpop.f32.mrb[0].mxu0
      %v2498 = vadd.f32 0.0, %v2497
      %v2499 = vpop.f32.mrb[0].mxu0
      %2500 = vmatprep.mubr.f32.mxu0 0.0
      %2501 = vmatmul.mubr.f32.gmra.mrb[0].mxu0 %v2304
      %v2502 = vpop.f32.mrb[0].mxu0
      %v2503 = vadd.f32 0.0, %v2502
      %v2504 = vpop.f32.mrb[0].mxu0
      %2505 = vmatprep.mubr.f32.mxu0 0.0
      %2506 = vmatmul.mubr.f32.gmra.mrb[0].mxu0 %v2305
      %v2507 = vpop.f32.mrb[0].mxu0
      %v2508 = vadd.f32 0.0, %v2507
      %v2509 = vpop.f32.mrb[0].mxu0
      %2510 = vmatprep.mubr.f32.mxu0 0.0
      %2511 = vmatmul.mubr.f32.gmra.mrb[0].mxu0 %v2306
      %v2512 = vpop.f32.mrb[0].mxu0
      %v2513 = vadd.f32 0.0, %v2512
      %v2514 = vpop.f32.mrb[0].mxu0
      %2515 = vmatprep.mubr.f32.mxu0 0.0
      %2516 = vmatmul.mubr.f32.gmra.mrb[0].mxu0 %v2307
      %v2517 = vpop.f32.mrb[0].mxu0
      %v2518 = vadd.f32 0.0, %v2517
      %v2519 = vpop.f32.mrb[0].mxu0
      %2520 = vmatprep.mubr.f32.mxu0 0.0
      %2521 = vmatmul.mubr.f32.gmra.mrb[0].mxu0 %v2308
      %v2522 = vpop.f32.mrb[0].mxu0
      %v2523 = vadd.f32 0.0, %v2522
      %v2524 = vpop.f32.mrb[0].mxu0
      %2525 = vmatprep.mubr.f32.mxu0 0.0
      %2526 = vmatmul.mubr.f32.gmra.mrb[0].mxu0 %v2309
      %v2527 = vpop.f32.mrb[0].mxu0
      %v2528 = vadd.f32 0.0, %v2527
      %v2529 = vpop.f32.mrb[0].mxu0
      %2530 = vmatprep.mubr.f32.mxu0 0.0
      %2531 = vmatmul.mubr.f32.gmra.mrb[0].mxu0 %v2310
      %v2532 = vpop.f32.mrb[0].mxu0
      %v2533 = vadd.f32 0.0, %v2532
      %v2534 = vpop.f32.mrb[0].mxu0
      %2535 = vmatprep.mubr.f32.mxu0 0.0
      %2536 = vmatmul.mubr.f32.gmra.mrb[0].mxu0 %v2311
      %v2537 = vpop.f32.mrb[0].mxu0
      %v2538 = vadd.f32 0.0, %v2537
      %v2539 = vpop.f32.mrb[0].mxu0
      %2540 = vmatprep.mubr.f32.mxu0 0.0
      %2541 = vmatmul.mubr.f32.gmra.mrb[0].mxu0 %v2312
      %v2542 = vpop.f32.mrb[0].mxu0
      %v2543 = vadd.f32 0.0, %v2542
      %v2544 = vpop.f32.mrb[0].mxu0
      %2545 = vmatprep.mubr.f32.mxu0 0.0
      %2546 = vmatmul.mubr.f32.gmra.mrb[0].mxu0 %v2313
      %v2547 = vpop.f32.mrb[0].mxu0
      %v2548 = vadd.f32 0.0, %v2547
      %v2549 = vpop.f32.mrb[0].mxu0
      %2550 = vmatprep.mubr.f32.mxu0 0.0
      %2551 = vmatmul.mubr.f32.gmra.mrb[0].mxu0 %v2314
      %v2552 = vpop.f32.mrb[0].mxu0
      %v2553 = vadd.f32 0.0, %v2552
      %v2554 = vpop.f32.mrb[0].mxu0
      %2555 = vdwg.mxu0
      %v2556 = vadd.f32 %v2250, %v2398
      %v2557 = vadd.f32 %v2251, %v2403
      %v2558 = vadd.f32 %v2252, %v2408
      %v2559 = vadd.f32 %v2253, %v2413
      %v2560 = vadd.f32 %v2254, %v2418
      %v2561 = vadd.f32 %v2255, %v2423
      %v2562 = vadd.f32 %v2256, %v2428
      %v2563 = vadd.f32 %v2257, %v2433
      %v2564 = vadd.f32 %v2258, %v2438
      %v2565 = vadd.f32 %v2259, %v2443
      %v2566 = vadd.f32 %v2260, %v2448
      %v2567 = vadd.f32 %v2261, %v2453
      %v2568 = vadd.f32 %v2262, %v2458
      %v2569 = vadd.f32 %v2263, %v2463
      %v2570 = vadd.f32 %v2264, %v2468
      %v2571 = vadd.f32 %v2265, %v2473
      %v2572 = vadd.f32 %v2266, %v2478
      %v2573 = vadd.f32 %v2267, %v2483
      %v2574 = vadd.f32 %v2268, %v2488
      %v2575 = vadd.f32 %v2269, %v2493
      %v2576 = vadd.f32 %v2270, %v2498
      %v2577 = vadd.f32 %v2271, %v2503
      %v2578 = vadd.f32 %v2272, %v2508
      %v2579 = vadd.f32 %v2273, %v2513
      %v2580 = vadd.f32 %v2274, %v2518
      %v2581 = vadd.f32 %v2275, %v2523
      %v2582 = vadd.f32 %v2276, %v2528
      %v2583 = vadd.f32 %v2277, %v2533
      %v2584 = vadd.f32 %v2278, %v2538
      %v2585 = vadd.f32 %v2279, %v2543
      %v2586 = vadd.f32 %v2280, %v2548
      %v2587 = vadd.f32 %v2281, %v2553
      %v2588 = vld [vmem:[%s2282 + $0x8] sm:$0xff]
      %v2589 = vld [vmem:[%s2282 + $0x10] sm:$0xff]
      %v2590 = vld [vmem:[%s2282 + $0x28] sm:$0xff]
      %v2591 = vld [vmem:[%s2282 + $0x30] sm:$0xff]
      %v2592 = vld [vmem:[%s2282 + $0x48] sm:$0xff]
      %v2593 = vld [vmem:[%s2282 + $0x50] sm:$0xff]
      %v2594 = vld [vmem:[%s2282 + $0x68] sm:$0xff]
      %v2595 = vld [vmem:[%s2282 + $0x70] sm:$0xff]
      %v2596 = vld [vmem:[%s2282 + $0x88] sm:$0xff]
      %v2597 = vld [vmem:[%s2282 + $0x90] sm:$0xff]
      %v2598 = vld [vmem:[%s2282 + $0xa8] sm:$0xff]
      %v2599 = vld [vmem:[%s2282 + $0xb0] sm:$0xff]
      %v2600 = vld [vmem:[%s2282 + $0xc8] sm:$0xff]
      %v2601 = vld [vmem:[%s2282 + $0xd0] sm:$0xff]
      %v2602 = vld [vmem:[%s2282 + $0xe8] sm:$0xff]
      %v2603 = vld [vmem:[%s2282 + $0xf0] sm:$0xff]
      %v2604 = vld [vmem:[%s2282 + $0x108] sm:$0xff]
      %v2605 = vld [vmem:[%s2282 + $0x110] sm:$0xff]
      %v2606 = vld [vmem:[%s2282 + $0x128] sm:$0xff]
      %v2607 = vld [vmem:[%s2282 + $0x130] sm:$0xff]
      %v2608 = vld [vmem:[%s2282 + $0x148] sm:$0xff]
      %v2609 = vld [vmem:[%s2282 + $0x150] sm:$0xff]
      %v2610 = vld [vmem:[%s2282 + $0x168] sm:$0xff]
      %v2611 = vld [vmem:[%s2282 + $0x170] sm:$0xff]
      %v2612 = vld [vmem:[%s2282 + $0x188] sm:$0xff]
      %v2613 = vld [vmem:[%s2282 + $0x190] sm:$0xff]
      %v2614 = vld [vmem:[%s2282 + $0x1a8] sm:$0xff]
      %v2615 = vld [vmem:[%s2282 + $0x1b0] sm:$0xff]
      %v2616 = vld [vmem:[%s2282 + $0x1c8] sm:$0xff]
      %v2617 = vld [vmem:[%s2282 + $0x1d0] sm:$0xff]
      %v2618 = vld [vmem:[%s2282 + $0x1e8] sm:$0xff]
      %v2619 = vld [vmem:[%s2282 + $0x1f0] sm:$0xff]
      %v2620 = vld [vmem:[%s3 + $0x380] sm:$0xff]
      %v2621 = vld [vmem:[%s3 + $0x388] sm:$0xff]
      %v2622 = vld [vmem:[%s3 + $0x390] sm:$0xff]
      %v2623 = vld [vmem:[%s3 + $0x398] sm:$0xff]
      %v2624 = vld [vmem:[%s3 + $0x3a0] sm:$0xff]
      %v2625 = vld [vmem:[%s3 + $0x3a8] sm:$0xff]
      %v2626 = vld [vmem:[%s3 + $0x3b0] sm:$0xff]
      %v2627 = vld [vmem:[%s3 + $0x3b8] sm:$0xff]
      %v2628 = vld [vmem:[%s3 + $0x3c0] sm:$0xff]
      %v2629 = vld [vmem:[%s3 + $0x3c8] sm:$0xff]
      %v2630 = vld [vmem:[%s3 + $0x3d0] sm:$0xff]
      %v2631 = vld [vmem:[%s3 + $0x3d8] sm:$0xff]
      %v2632 = vld [vmem:[%s3 + $0x3e0] sm:$0xff]
      %v2633 = vld [vmem:[%s3 + $0x3e8] sm:$0xff]
      %v2634 = vld [vmem:[%s3 + $0x3f0] sm:$0xff]
      %v2635 = vld [vmem:[%s3 + $0x3f8] sm:$0xff]
      %2636 = vmatprep.subr.mxu0 0.0
      %2637 = vmatpush1.msra.mxu0 %v2620
      %2638 = vmatprep.subr.mxu0 0.0
      %2639 = vmatpush1.msra.mxu0 %v2621
      %2640 = vmatprep.subr.mxu0 0.0
      %2641 = vmatpush1.msra.mxu0 %v2622
      %2642 = vmatprep.subr.mxu0 0.0
      %2643 = vmatpush1.msra.mxu0 %v2623
      %2644 = vmatprep.subr.mxu0 0.0
      %2645 = vmatpush1.msra.mxu0 %v2624
      %2646 = vmatprep.subr.mxu0 0.0
      %2647 = vmatpush1.msra.mxu0 %v2625
      %2648 = vmatprep.subr.mxu0 0.0
      %2649 = vmatpush1.msra.mxu0 %v2626
      %2650 = vmatprep.subr.mxu0 0.0
      %2651 = vmatpush1.msra.mxu0 %v2627
      %2652 = vmatprep.subr.mxu0 0.0
      %2653 = vmatpush1.msra.mxu0 %v2628
      %2654 = vmatprep.subr.mxu0 0.0
      %2655 = vmatpush1.msra.mxu0 %v2629
      %2656 = vmatprep.subr.mxu0 0.0
      %2657 = vmatpush1.msra.mxu0 %v2630
      %2658 = vmatprep.subr.mxu0 0.0
      %2659 = vmatpush1.msra.mxu0 %v2631
      %2660 = vmatprep.subr.mxu0 0.0
      %2661 = vmatpush1.msra.mxu0 %v2632
      %2662 = vmatprep.subr.mxu0 0.0
      %2663 = vmatpush1.msra.mxu0 %v2633
      %2664 = vmatprep.subr.mxu0 0.0
      %2665 = vmatpush1.msra.mxu0 %v2634
      %2666 = vmatprep.subr.mxu0 0.0
      %2667 = vmatpush1.msra.mxu0 %v2635
      %2668 = vmatprep.subr.mxu0 0.0
      %2669 = vmatpush1.msra.mxu0 0.0
      %2670 = vmatprep.subr.mxu0 0.0
      %2671 = vmatpush1.msra.mxu0 0.0
      %2672 = vmatprep.subr.mxu0 0.0
      %2673 = vmatpush1.msra.mxu0 0.0
      %2674 = vmatprep.subr.mxu0 0.0
      %2675 = vmatpush1.msra.mxu0 0.0
      %2676 = vmatprep.subr.mxu0 0.0
      %2677 = vmatpush1.msra.mxu0 0.0
      %2678 = vmatprep.subr.mxu0 0.0
      %2679 = vmatpush1.msra.mxu0 0.0
      %2680 = vmatprep.subr.mxu0 0.0
      %2681 = vmatpush1.msra.mxu0 0.0
      %2682 = vmatprep.subr.mxu0 0.0
      %2683 = vmatpush1.msra.mxu0 0.0
      %2684 = vmatprep.subr.mxu0 0.0
      %2685 = vmatpush1.msra.mxu0 0.0
      %2686 = vmatprep.subr.mxu0 0.0
      %2687 = vmatpush1.msra.mxu0 0.0
      %2688 = vmatprep.subr.mxu0 0.0
      %2689 = vmatpush1.msra.mxu0 0.0
      %2690 = vmatprep.subr.mxu0 0.0
      %2691 = vmatpush1.msra.mxu0 0.0
      %2692 = vmatprep.subr.mxu0 0.0
      %2693 = vmatpush1.msra.mxu0 0.0
      %2694 = vmatprep.subr.mxu0 0.0
      %2695 = vmatpush1.msra.mxu0 0.0
      %2696 = vmatprep.subr.mxu0 0.0
      %2697 = vmatpush1.msra.mxu0 0.0
      %2698 = vmatprep.subr.mxu0 0.0
      %2699 = vmatpush1.msra.mxu0 0.0
      %2700 = vmatprep.mubr.f32.mxu0 0.0
      %2701 = vmatmul.mubr.f32.gmra.mrb[0].mxu0 %v2588
      %v2702 = vpop.f32.mrb[0].mxu0
      %v2703 = vadd.f32 0.0, %v2702
      %v2704 = vpop.f32.mrb[0].mxu0
      %2705 = vmatprep.mubr.f32.mxu0 0.0
      %2706 = vmatmul.mubr.f32.gmra.mrb[0].mxu0 %v2589
      %v2707 = vpop.f32.mrb[0].mxu0
      %v2708 = vadd.f32 0.0, %v2707
      %v2709 = vpop.f32.mrb[0].mxu0
      %2710 = vmatprep.mubr.f32.mxu0 0.0
      %2711 = vmatmul.mubr.f32.gmra.mrb[0].mxu0 %v2590
      %v2712 = vpop.f32.mrb[0].mxu0
      %v2713 = vadd.f32 0.0, %v2712
      %v2714 = vpop.f32.mrb[0].mxu0
      %2715 = vmatprep.mubr.f32.mxu0 0.0
      %2716 = vmatmul.mubr.f32.gmra.mrb[0].mxu0 %v2591
      %v2717 = vpop.f32.mrb[0].mxu0
      %v2718 = vadd.f32 0.0, %v2717
      %v2719 = vpop.f32.mrb[0].mxu0
      %2720 = vmatprep.mubr.f32.mxu0 0.0
      %2721 = vmatmul.mubr.f32.gmra.mrb[0].mxu0 %v2592
      %v2722 = vpop.f32.mrb[0].mxu0
      %v2723 = vadd.f32 0.0, %v2722
      %v2724 = vpop.f32.mrb[0].mxu0
      %2725 = vmatprep.mubr.f32.mxu0 0.0
      %2726 = vmatmul.mubr.f32.gmra.mrb[0].mxu0 %v2593
      %v2727 = vpop.f32.mrb[0].mxu0
      %v2728 = vadd.f32 0.0, %v2727
      %v2729 = vpop.f32.mrb[0].mxu0
      %2730 = vmatprep.mubr.f32.mxu0 0.0
      %2731 = vmatmul.mubr.f32.gmra.mrb[0].mxu0 %v2594
      %v2732 = vpop.f32.mrb[0].mxu0
      %v2733 = vadd.f32 0.0, %v2732
      %v2734 = vpop.f32.mrb[0].mxu0
      %2735 = vmatprep.mubr.f32.mxu0 0.0
      %2736 = vmatmul.mubr.f32.gmra.mrb[0].mxu0 %v2595
      %v2737 = vpop.f32.mrb[0].mxu0
      %v2738 = vadd.f32 0.0, %v2737
      %v2739 = vpop.f32.mrb[0].mxu0
      %2740 = vmatprep.mubr.f32.mxu0 0.0
      %2741 = vmatmul.mubr.f32.gmra.mrb[0].mxu0 %v2596
      %v2742 = vpop.f32.mrb[0].mxu0
      %v2743 = vadd.f32 0.0, %v2742
      %v2744 = vpop.f32.mrb[0].mxu0
      %2745 = vmatprep.mubr.f32.mxu0 0.0
      %2746 = vmatmul.mubr.f32.gmra.mrb[0].mxu0 %v2597
      %v2747 = vpop.f32.mrb[0].mxu0
      %v2748 = vadd.f32 0.0, %v2747
      %v2749 = vpop.f32.mrb[0].mxu0
      %2750 = vmatprep.mubr.f32.mxu0 0.0
      %2751 = vmatmul.mubr.f32.gmra.mrb[0].mxu0 %v2598
      %v2752 = vpop.f32.mrb[0].mxu0
      %v2753 = vadd.f32 0.0, %v2752
      %v2754 = vpop.f32.mrb[0].mxu0
      %2755 = vmatprep.mubr.f32.mxu0 0.0
      %2756 = vmatmul.mubr.f32.gmra.mrb[0].mxu0 %v2599
      %v2757 = vpop.f32.mrb[0].mxu0
      %v2758 = vadd.f32 0.0, %v2757
      %v2759 = vpop.f32.mrb[0].mxu0
      %2760 = vmatprep.mubr.f32.mxu0 0.0
      %2761 = vmatmul.mubr.f32.gmra.mrb[0].mxu0 %v2600
      %v2762 = vpop.f32.mrb[0].mxu0
      %v2763 = vadd.f32 0.0, %v2762
      %v2764 = vpop.f32.mrb[0].mxu0
      %2765 = vmatprep.mubr.f32.mxu0 0.0
      %2766 = vmatmul.mubr.f32.gmra.mrb[0].mxu0 %v2601
      %v2767 = vpop.f32.mrb[0].mxu0
      %v2768 = vadd.f32 0.0, %v2767
      %v2769 = vpop.f32.mrb[0].mxu0
      %2770 = vmatprep.mubr.f32.mxu0 0.0
      %2771 = vmatmul.mubr.f32.gmra.mrb[0].mxu0 %v2602
      %v2772 = vpop.f32.mrb[0].mxu0
      %v2773 = vadd.f32 0.0, %v2772
      %v2774 = vpop.f32.mrb[0].mxu0
      %2775 = vmatprep.mubr.f32.mxu0 0.0
      %2776 = vmatmul.mubr.f32.gmra.mrb[0].mxu0 %v2603
      %v2777 = vpop.f32.mrb[0].mxu0
      %v2778 = vadd.f32 0.0, %v2777
      %v2779 = vpop.f32.mrb[0].mxu0
      %2780 = vmatprep.mubr.f32.mxu0 0.0
      %2781 = vmatmul.mubr.f32.gmra.mrb[0].mxu0 %v2604
      %v2782 = vpop.f32.mrb[0].mxu0
      %v2783 = vadd.f32 0.0, %v2782
      %v2784 = vpop.f32.mrb[0].mxu0
      %2785 = vmatprep.mubr.f32.mxu0 0.0
      %2786 = vmatmul.mubr.f32.gmra.mrb[0].mxu0 %v2605
      %v2787 = vpop.f32.mrb[0].mxu0
      %v2788 = vadd.f32 0.0, %v2787
      %v2789 = vpop.f32.mrb[0].mxu0
      %2790 = vmatprep.mubr.f32.mxu0 0.0
      %2791 = vmatmul.mubr.f32.gmra.mrb[0].mxu0 %v2606
      %v2792 = vpop.f32.mrb[0].mxu0
      %v2793 = vadd.f32 0.0, %v2792
      %v2794 = vpop.f32.mrb[0].mxu0
      %2795 = vmatprep.mubr.f32.mxu0 0.0
      %2796 = vmatmul.mubr.f32.gmra.mrb[0].mxu0 %v2607
      %v2797 = vpop.f32.mrb[0].mxu0
      %v2798 = vadd.f32 0.0, %v2797
      %v2799 = vpop.f32.mrb[0].mxu0
      %2800 = vmatprep.mubr.f32.mxu0 0.0
      %2801 = vmatmul.mubr.f32.gmra.mrb[0].mxu0 %v2608
      %v2802 = vpop.f32.mrb[0].mxu0
      %v2803 = vadd.f32 0.0, %v2802
      %v2804 = vpop.f32.mrb[0].mxu0
      %2805 = vmatprep.mubr.f32.mxu0 0.0
      %2806 = vmatmul.mubr.f32.gmra.mrb[0].mxu0 %v2609
      %v2807 = vpop.f32.mrb[0].mxu0
      %v2808 = vadd.f32 0.0, %v2807
      %v2809 = vpop.f32.mrb[0].mxu0
      %2810 = vmatprep.mubr.f32.mxu0 0.0
      %2811 = vmatmul.mubr.f32.gmra.mrb[0].mxu0 %v2610
      %v2812 = vpop.f32.mrb[0].mxu0
      %v2813 = vadd.f32 0.0, %v2812
      %v2814 = vpop.f32.mrb[0].mxu0
      %2815 = vmatprep.mubr.f32.mxu0 0.0
      %2816 = vmatmul.mubr.f32.gmra.mrb[0].mxu0 %v2611
      %v2817 = vpop.f32.mrb[0].mxu0
      %v2818 = vadd.f32 0.0, %v2817
      %v2819 = vpop.f32.mrb[0].mxu0
      %2820 = vmatprep.mubr.f32.mxu0 0.0
      %2821 = vmatmul.mubr.f32.gmra.mrb[0].mxu0 %v2612
      %v2822 = vpop.f32.mrb[0].mxu0
      %v2823 = vadd.f32 0.0, %v2822
      %v2824 = vpop.f32.mrb[0].mxu0
      %2825 = vmatprep.mubr.f32.mxu0 0.0
      %2826 = vmatmul.mubr.f32.gmra.mrb[0].mxu0 %v2613
      %v2827 = vpop.f32.mrb[0].mxu0
      %v2828 = vadd.f32 0.0, %v2827
      %v2829 = vpop.f32.mrb[0].mxu0
      %2830 = vmatprep.mubr.f32.mxu0 0.0
      %2831 = vmatmul.mubr.f32.gmra.mrb[0].mxu0 %v2614
      %v2832 = vpop.f32.mrb[0].mxu0
      %v2833 = vadd.f32 0.0, %v2832
      %v2834 = vpop.f32.mrb[0].mxu0
      %2835 = vmatprep.mubr.f32.mxu0 0.0
      %2836 = vmatmul.mubr.f32.gmra.mrb[0].mxu0 %v2615
      %v2837 = vpop.f32.mrb[0].mxu0
      %v2838 = vadd.f32 0.0, %v2837
      %v2839 = vpop.f32.mrb[0].mxu0
      %2840 = vmatprep.mubr.f32.mxu0 0.0
      %2841 = vmatmul.mubr.f32.gmra.mrb[0].mxu0 %v2616
      %v2842 = vpop.f32.mrb[0].mxu0
      %v2843 = vadd.f32 0.0, %v2842
      %v2844 = vpop.f32.mrb[0].mxu0
      %2845 = vmatprep.mubr.f32.mxu0 0.0
      %2846 = vmatmul.mubr.f32.gmra.mrb[0].mxu0 %v2617
      %v2847 = vpop.f32.mrb[0].mxu0
      %v2848 = vadd.f32 0.0, %v2847
      %v2849 = vpop.f32.mrb[0].mxu0
      %2850 = vmatprep.mubr.f32.mxu0 0.0
      %2851 = vmatmul.mubr.f32.gmra.mrb[0].mxu0 %v2618
      %v2852 = vpop.f32.mrb[0].mxu0
      %v2853 = vadd.f32 0.0, %v2852
      %v2854 = vpop.f32.mrb[0].mxu0
      %2855 = vmatprep.mubr.f32.mxu0 0.0
      %2856 = vmatmul.mubr.f32.gmra.mrb[0].mxu0 %v2619
      %v2857 = vpop.f32.mrb[0].mxu0
      %v2858 = vadd.f32 0.0, %v2857
      %v2859 = vpop.f32.mrb[0].mxu0
      %2860 = vdwg.mxu0
      %v2861 = vadd.f32 %v2556, %v2703
      %v2862 = vadd.f32 %v2557, %v2708
      %v2863 = vadd.f32 %v2558, %v2713
      %v2864 = vadd.f32 %v2559, %v2718
      %v2865 = vadd.f32 %v2560, %v2723
      %v2866 = vadd.f32 %v2561, %v2728
      %v2867 = vadd.f32 %v2562, %v2733
      %v2868 = vadd.f32 %v2563, %v2738
      %v2869 = vadd.f32 %v2564, %v2743
      %v2870 = vadd.f32 %v2565, %v2748
      %v2871 = vadd.f32 %v2566, %v2753
      %v2872 = vadd.f32 %v2567, %v2758
      %v2873 = vadd.f32 %v2568, %v2763
      %v2874 = vadd.f32 %v2569, %v2768
      %v2875 = vadd.f32 %v2570, %v2773
      %v2876 = vadd.f32 %v2571, %v2778
      %v2877 = vadd.f32 %v2572, %v2783
      %v2878 = vadd.f32 %v2573, %v2788
      %v2879 = vadd.f32 %v2574, %v2793
      %v2880 = vadd.f32 %v2575, %v2798
      %v2881 = vadd.f32 %v2576, %v2803
      %v2882 = vadd.f32 %v2577, %v2808
      %v2883 = vadd.f32 %v2578, %v2813
      %v2884 = vadd.f32 %v2579, %v2818
      %v2885 = vadd.f32 %v2580, %v2823
      %v2886 = vadd.f32 %v2581, %v2828
      %v2887 = vadd.f32 %v2582, %v2833
      %v2888 = vadd.f32 %v2583, %v2838
      %v2889 = vadd.f32 %v2584, %v2843
      %v2890 = vadd.f32 %v2585, %v2848
      %v2891 = vadd.f32 %v2586, %v2853
      %v2892 = vadd.f32 %v2587, %v2858
      %v2893 = vld [vmem:[%s2282 + $0x9] sm:$0xff]
      %v2894 = vld [vmem:[%s2282 + $0x11] sm:$0xff]
      %v2895 = vld [vmem:[%s2282 + $0x29] sm:$0xff]
      %v2896 = vld [vmem:[%s2282 + $0x31] sm:$0xff]
      %v2897 = vld [vmem:[%s2282 + $0x49] sm:$0xff]
      %v2898 = vld [vmem:[%s2282 + $0x51] sm:$0xff]
      %v2899 = vld [vmem:[%s2282 + $0x69] sm:$0xff]
      %v2900 = vld [vmem:[%s2282 + $0x71] sm:$0xff]
      %v2901 = vld [vmem:[%s2282 + $0x89] sm:$0xff]
      %v2902 = vld [vmem:[%s2282 + $0x91] sm:$0xff]
      %v2903 = vld [vmem:[%s2282 + $0xa9] sm:$0xff]
      %v2904 = vld [vmem:[%s2282 + $0xb1] sm:$0xff]
      %v2905 = vld [vmem:[%s2282 + $0xc9] sm:$0xff]
      %v2906 = vld [vmem:[%s2282 + $0xd1] sm:$0xff]
      %v2907 = vld [vmem:[%s2282 + $0xe9] sm:$0xff]
      %v2908 = vld [vmem:[%s2282 + $0xf1] sm:$0xff]
      %v2909 = vld [vmem:[%s2282 + $0x109] sm:$0xff]
      %v2910 = vld [vmem:[%s2282 + $0x111] sm:$0xff]
      %v2911 = vld [vmem:[%s2282 + $0x129] sm:$0xff]
      %v2912 = vld [vmem:[%s2282 + $0x131] sm:$0xff]
      %v2913 = vld [vmem:[%s2282 + $0x149] sm:$0xff]
      %v2914 = vld [vmem:[%s2282 + $0x151] sm:$0xff]
      %v2915 = vld [vmem:[%s2282 + $0x169] sm:$0xff]
      %v2916 = vld [vmem:[%s2282 + $0x171] sm:$0xff]
      %v2917 = vld [vmem:[%s2282 + $0x189] sm:$0xff]
      %v2918 = vld [vmem:[%s2282 + $0x191] sm:$0xff]
      %v2919 = vld [vmem:[%s2282 + $0x1a9] sm:$0xff]
      %v2920 = vld [vmem:[%s2282 + $0x1b1] sm:$0xff]
      %v2921 = vld [vmem:[%s2282 + $0x1c9] sm:$0xff]
      %v2922 = vld [vmem:[%s2282 + $0x1d1] sm:$0xff]
      %v2923 = vld [vmem:[%s2282 + $0x1e9] sm:$0xff]
      %v2924 = vld [vmem:[%s2282 + $0x1f1] sm:$0xff]
      %v2925 = vld [vmem:[%s3 + $0x400] sm:$0xff]
      %v2926 = vld [vmem:[%s3 + $0x408] sm:$0xff]
      %v2927 = vld [vmem:[%s3 + $0x410] sm:$0xff]
      %v2928 = vld [vmem:[%s3 + $0x418] sm:$0xff]
      %v2929 = vld [vmem:[%s3 + $0x420] sm:$0xff]
      %v2930 = vld [vmem:[%s3 + $0x428] sm:$0xff]
      %v2931 = vld [vmem:[%s3 + $0x430] sm:$0xff]
      %v2932 = vld [vmem:[%s3 + $0x438] sm:$0xff]
      %v2933 = vld [vmem:[%s3 + $0x440] sm:$0xff]
      %v2934 = vld [vmem:[%s3 + $0x448] sm:$0xff]
      %v2935 = vld [vmem:[%s3 + $0x450] sm:$0xff]
      %v2936 = vld [vmem:[%s3 + $0x458] sm:$0xff]
      %v2937 = vld [vmem:[%s3 + $0x460] sm:$0xff]
      %v2938 = vld [vmem:[%s3 + $0x468] sm:$0xff]
      %v2939 = vld [vmem:[%s3 + $0x470] sm:$0xff]
      %v2940 = vld [vmem:[%s3 + $0x478] sm:$0xff]
      %2941 = vmatprep.subr.mxu0 0.0
      %2942 = vmatpush1.msra.mxu0 %v2925
      %2943 = vmatprep.subr.mxu0 0.0
      %2944 = vmatpush1.msra.mxu0 %v2926
      %2945 = vmatprep.subr.mxu0 0.0
      %2946 = vmatpush1.msra.mxu0 %v2927
      %2947 = vmatprep.subr.mxu0 0.0
      %2948 = vmatpush1.msra.mxu0 %v2928
      %2949 = vmatprep.subr.mxu0 0.0
      %2950 = vmatpush1.msra.mxu0 %v2929
      %2951 = vmatprep.subr.mxu0 0.0
      %2952 = vmatpush1.msra.mxu0 %v2930
      %2953 = vmatprep.subr.mxu0 0.0
      %2954 = vmatpush1.msra.mxu0 %v2931
      %2955 = vmatprep.subr.mxu0 0.0
      %2956 = vmatpush1.msra.mxu0 %v2932
      %2957 = vmatprep.subr.mxu0 0.0
      %2958 = vmatpush1.msra.mxu0 %v2933
      %2959 = vmatprep.subr.mxu0 0.0
      %2960 = vmatpush1.msra.mxu0 %v2934
      %2961 = vmatprep.subr.mxu0 0.0
      %2962 = vmatpush1.msra.mxu0 %v2935
      %2963 = vmatprep.subr.mxu0 0.0
      %2964 = vmatpush1.msra.mxu0 %v2936
      %2965 = vmatprep.subr.mxu0 0.0
      %2966 = vmatpush1.msra.mxu0 %v2937
      %2967 = vmatprep.subr.mxu0 0.0
      %2968 = vmatpush1.msra.mxu0 %v2938
      %2969 = vmatprep.subr.mxu0 0.0
      %2970 = vmatpush1.msra.mxu0 %v2939
      %2971 = vmatprep.subr.mxu0 0.0
      %2972 = vmatpush1.msra.mxu0 %v2940
      %2973 = vmatprep.subr.mxu0 0.0
      %2974 = vmatpush1.msra.mxu0 0.0
      %2975 = vmatprep.subr.mxu0 0.0
      %2976 = vmatpush1.msra.mxu0 0.0
      %2977 = vmatprep.subr.mxu0 0.0
      %2978 = vmatpush1.msra.mxu0 0.0
      %2979 = vmatprep.subr.mxu0 0.0
      %2980 = vmatpush1.msra.mxu0 0.0
      %2981 = vmatprep.subr.mxu0 0.0
      %2982 = vmatpush1.msra.mxu0 0.0
      %2983 = vmatprep.subr.mxu0 0.0
      %2984 = vmatpush1.msra.mxu0 0.0
      %2985 = vmatprep.subr.mxu0 0.0
      %2986 = vmatpush1.msra.mxu0 0.0
      %2987 = vmatprep.subr.mxu0 0.0
      %2988 = vmatpush1.msra.mxu0 0.0
      %2989 = vmatprep.subr.mxu0 0.0
      %2990 = vmatpush1.msra.mxu0 0.0
      %2991 = vmatprep.subr.mxu0 0.0
      %2992 = vmatpush1.msra.mxu0 0.0
      %2993 = vmatprep.subr.mxu0 0.0
      %2994 = vmatpush1.msra.mxu0 0.0
      %2995 = vmatprep.subr.mxu0 0.0
      %2996 = vmatpush1.msra.mxu0 0.0
      %2997 = vmatprep.subr.mxu0 0.0
      %2998 = vmatpush1.msra.mxu0 0.0
      %2999 = vmatprep.subr.mxu0 0.0
      %3000 = vmatpush1.msra.mxu0 0.0
      %3001 = vmatprep.subr.mxu0 0.0
      %3002 = vmatpush1.msra.mxu0 0.0
      %3003 = vmatprep.subr.mxu0 0.0
      %3004 = vmatpush1.msra.mxu0 0.0
      %3005 = vmatprep.mubr.f32.mxu0 0.0
      %3006 = vmatmul.mubr.f32.gmra.mrb[0].mxu0 %v2893
      %v3007 = vpop.f32.mrb[0].mxu0
      %v3008 = vadd.f32 0.0, %v3007
      %v3009 = vpop.f32.mrb[0].mxu0
      %3010 = vmatprep.mubr.f32.mxu0 0.0
      %3011 = vmatmul.mubr.f32.gmra.mrb[0].mxu0 %v2894
      %v3012 = vpop.f32.mrb[0].mxu0
      %v3013 = vadd.f32 0.0, %v3012
      %v3014 = vpop.f32.mrb[0].mxu0
      %3015 = vmatprep.mubr.f32.mxu0 0.0
      %3016 = vmatmul.mubr.f32.gmra.mrb[0].mxu0 %v2895
      %v3017 = vpop.f32.mrb[0].mxu0
      %v3018 = vadd.f32 0.0, %v3017
      %v3019 = vpop.f32.mrb[0].mxu0
      %3020 = vmatprep.mubr.f32.mxu0 0.0
      %3021 = vmatmul.mubr.f32.gmra.mrb[0].mxu0 %v2896
      %v3022 = vpop.f32.mrb[0].mxu0
      %v3023 = vadd.f32 0.0, %v3022
      %v3024 = vpop.f32.mrb[0].mxu0
      %3025 = vmatprep.mubr.f32.mxu0 0.0
      %3026 = vmatmul.mubr.f32.gmra.mrb[0].mxu0 %v2897
      %v3027 = vpop.f32.mrb[0].mxu0
      %v3028 = vadd.f32 0.0, %v3027
      %v3029 = vpop.f32.mrb[0].mxu0
      %3030 = vmatprep.mubr.f32.mxu0 0.0
      %3031 = vmatmul.mubr.f32.gmra.mrb[0].mxu0 %v2898
      %v3032 = vpop.f32.mrb[0].mxu0
      %v3033 = vadd.f32 0.0, %v3032
      %v3034 = vpop.f32.mrb[0].mxu0
      %3035 = vmatprep.mubr.f32.mxu0 0.0
      %3036 = vmatmul.mubr.f32.gmra.mrb[0].mxu0 %v2899
      %v3037 = vpop.f32.mrb[0].mxu0
      %v3038 = vadd.f32 0.0, %v3037
      %v3039 = vpop.f32.mrb[0].mxu0
      %3040 = vmatprep.mubr.f32.mxu0 0.0
      %3041 = vmatmul.mubr.f32.gmra.mrb[0].mxu0 %v2900
      %v3042 = vpop.f32.mrb[0].mxu0
      %v3043 = vadd.f32 0.0, %v3042
      %v3044 = vpop.f32.mrb[0].mxu0
      %3045 = vmatprep.mubr.f32.mxu0 0.0
      %3046 = vmatmul.mubr.f32.gmra.mrb[0].mxu0 %v2901
      %v3047 = vpop.f32.mrb[0].mxu0
      %v3048 = vadd.f32 0.0, %v3047
      %v3049 = vpop.f32.mrb[0].mxu0
      %3050 = vmatprep.mubr.f32.mxu0 0.0
      %3051 = vmatmul.mubr.f32.gmra.mrb[0].mxu0 %v2902
      %v3052 = vpop.f32.mrb[0].mxu0
      %v3053 = vadd.f32 0.0, %v3052
      %v3054 = vpop.f32.mrb[0].mxu0
      %3055 = vmatprep.mubr.f32.mxu0 0.0
      %3056 = vmatmul.mubr.f32.gmra.mrb[0].mxu0 %v2903
      %v3057 = vpop.f32.mrb[0].mxu0
      %v3058 = vadd.f32 0.0, %v3057
      %v3059 = vpop.f32.mrb[0].mxu0
      %3060 = vmatprep.mubr.f32.mxu0 0.0
      %3061 = vmatmul.mubr.f32.gmra.mrb[0].mxu0 %v2904
      %v3062 = vpop.f32.mrb[0].mxu0
      %v3063 = vadd.f32 0.0, %v3062
      %v3064 = vpop.f32.mrb[0].mxu0
      %3065 = vmatprep.mubr.f32.mxu0 0.0
      %3066 = vmatmul.mubr.f32.gmra.mrb[0].mxu0 %v2905
      %v3067 = vpop.f32.mrb[0].mxu0
      %v3068 = vadd.f32 0.0, %v3067
      %v3069 = vpop.f32.mrb[0].mxu0
      %3070 = vmatprep.mubr.f32.mxu0 0.0
      %3071 = vmatmul.mubr.f32.gmra.mrb[0].mxu0 %v2906
      %v3072 = vpop.f32.mrb[0].mxu0
      %v3073 = vadd.f32 0.0, %v3072
      %v3074 = vpop.f32.mrb[0].mxu0
      %3075 = vmatprep.mubr.f32.mxu0 0.0
      %3076 = vmatmul.mubr.f32.gmra.mrb[0].mxu0 %v2907
      %v3077 = vpop.f32.mrb[0].mxu0
      %v3078 = vadd.f32 0.0, %v3077
      %v3079 = vpop.f32.mrb[0].mxu0
      %3080 = vmatprep.mubr.f32.mxu0 0.0
      %3081 = vmatmul.mubr.f32.gmra.mrb[0].mxu0 %v2908
      %v3082 = vpop.f32.mrb[0].mxu0
      %v3083 = vadd.f32 0.0, %v3082
      %v3084 = vpop.f32.mrb[0].mxu0
      %3085 = vmatprep.mubr.f32.mxu0 0.0
      %3086 = vmatmul.mubr.f32.gmra.mrb[0].mxu0 %v2909
      %v3087 = vpop.f32.mrb[0].mxu0
      %v3088 = vadd.f32 0.0, %v3087
      %v3089 = vpop.f32.mrb[0].mxu0
      %3090 = vmatprep.mubr.f32.mxu0 0.0
      %3091 = vmatmul.mubr.f32.gmra.mrb[0].mxu0 %v2910
      %v3092 = vpop.f32.mrb[0].mxu0
      %v3093 = vadd.f32 0.0, %v3092
      %v3094 = vpop.f32.mrb[0].mxu0
      %3095 = vmatprep.mubr.f32.mxu0 0.0
      %3096 = vmatmul.mubr.f32.gmra.mrb[0].mxu0 %v2911
      %v3097 = vpop.f32.mrb[0].mxu0
      %v3098 = vadd.f32 0.0, %v3097
      %v3099 = vpop.f32.mrb[0].mxu0
      %3100 = vmatprep.mubr.f32.mxu0 0.0
      %3101 = vmatmul.mubr.f32.gmra.mrb[0].mxu0 %v2912
      %v3102 = vpop.f32.mrb[0].mxu0
      %v3103 = vadd.f32 0.0, %v3102
      %v3104 = vpop.f32.mrb[0].mxu0
      %3105 = vmatprep.mubr.f32.mxu0 0.0
      %3106 = vmatmul.mubr.f32.gmra.mrb[0].mxu0 %v2913
      %v3107 = vpop.f32.mrb[0].mxu0
      %v3108 = vadd.f32 0.0, %v3107
      %v3109 = vpop.f32.mrb[0].mxu0
      %3110 = vmatprep.mubr.f32.mxu0 0.0
      %3111 = vmatmul.mubr.f32.gmra.mrb[0].mxu0 %v2914
      %v3112 = vpop.f32.mrb[0].mxu0
      %v3113 = vadd.f32 0.0, %v3112
      %v3114 = vpop.f32.mrb[0].mxu0
      %3115 = vmatprep.mubr.f32.mxu0 0.0
      %3116 = vmatmul.mubr.f32.gmra.mrb[0].mxu0 %v2915
      %v3117 = vpop.f32.mrb[0].mxu0
      %v3118 = vadd.f32 0.0, %v3117
      %v3119 = vpop.f32.mrb[0].mxu0
      %3120 = vmatprep.mubr.f32.mxu0 0.0
      %3121 = vmatmul.mubr.f32.gmra.mrb[0].mxu0 %v2916
      %v3122 = vpop.f32.mrb[0].mxu0
      %v3123 = vadd.f32 0.0, %v3122
      %v3124 = vpop.f32.mrb[0].mxu0
      %3125 = vmatprep.mubr.f32.mxu0 0.0
      %3126 = vmatmul.mubr.f32.gmra.mrb[0].mxu0 %v2917
      %v3127 = vpop.f32.mrb[0].mxu0
      %v3128 = vadd.f32 0.0, %v3127
      %v3129 = vpop.f32.mrb[0].mxu0
      %3130 = vmatprep.mubr.f32.mxu0 0.0
      %3131 = vmatmul.mubr.f32.gmra.mrb[0].mxu0 %v2918
      %v3132 = vpop.f32.mrb[0].mxu0
      %v3133 = vadd.f32 0.0, %v3132
      %v3134 = vpop.f32.mrb[0].mxu0
      %3135 = vmatprep.mubr.f32.mxu0 0.0
      %3136 = vmatmul.mubr.f32.gmra.mrb[0].mxu0 %v2919
      %v3137 = vpop.f32.mrb[0].mxu0
      %v3138 = vadd.f32 0.0, %v3137
      %v3139 = vpop.f32.mrb[0].mxu0
      %3140 = vmatprep.mubr.f32.mxu0 0.0
      %3141 = vmatmul.mubr.f32.gmra.mrb[0].mxu0 %v2920
      %v3142 = vpop.f32.mrb[0].mxu0
      %v3143 = vadd.f32 0.0, %v3142
      %v3144 = vpop.f32.mrb[0].mxu0
      %3145 = vmatprep.mubr.f32.mxu0 0.0
      %3146 = vmatmul.mubr.f32.gmra.mrb[0].mxu0 %v2921
      %v3147 = vpop.f32.mrb[0].mxu0
      %v3148 = vadd.f32 0.0, %v3147
      %v3149 = vpop.f32.mrb[0].mxu0
      %3150 = vmatprep.mubr.f32.mxu0 0.0
      %3151 = vmatmul.mubr.f32.gmra.mrb[0].mxu0 %v2922
      %v3152 = vpop.f32.mrb[0].mxu0
      %v3153 = vadd.f32 0.0, %v3152
      %v3154 = vpop.f32.mrb[0].mxu0
      %3155 = vmatprep.mubr.f32.mxu0 0.0
      %3156 = vmatmul.mubr.f32.gmra.mrb[0].mxu0 %v2923
      %v3157 = vpop.f32.mrb[0].mxu0
      %v3158 = vadd.f32 0.0, %v3157
      %v3159 = vpop.f32.mrb[0].mxu0
      %3160 = vmatprep.mubr.f32.mxu0 0.0
      %3161 = vmatmul.mubr.f32.gmra.mrb[0].mxu0 %v2924
      %v3162 = vpop.f32.mrb[0].mxu0
      %v3163 = vadd.f32 0.0, %v3162
      %v3164 = vpop.f32.mrb[0].mxu0
      %3165 = vdwg.mxu0
      %v3166 = vadd.f32 %v2861, %v3008
      %v3167 = vadd.f32 %v2862, %v3013
      %v3168 = vadd.f32 %v2863, %v3018
      %v3169 = vadd.f32 %v2864, %v3023
      %v3170 = vadd.f32 %v2865, %v3028
      %v3171 = vadd.f32 %v2866, %v3033
      %v3172 = vadd.f32 %v2867, %v3038
      %v3173 = vadd.f32 %v2868, %v3043
      %v3174 = vadd.f32 %v2869, %v3048
      %v3175 = vadd.f32 %v2870, %v3053
      %v3176 = vadd.f32 %v2871, %v3058
      %v3177 = vadd.f32 %v2872, %v3063
      %v3178 = vadd.f32 %v2873, %v3068
      %v3179 = vadd.f32 %v2874, %v3073
      %v3180 = vadd.f32 %v2875, %v3078
      %v3181 = vadd.f32 %v2876, %v3083
      %v3182 = vadd.f32 %v2877, %v3088
      %v3183 = vadd.f32 %v2878, %v3093
      %v3184 = vadd.f32 %v2879, %v3098
      %v3185 = vadd.f32 %v2880, %v3103
      %v3186 = vadd.f32 %v2881, %v3108
      %v3187 = vadd.f32 %v2882, %v3113
      %v3188 = vadd.f32 %v2883, %v3118
      %v3189 = vadd.f32 %v2884, %v3123
      %v3190 = vadd.f32 %v2885, %v3128
      %v3191 = vadd.f32 %v2886, %v3133
      %v3192 = vadd.f32 %v2887, %v3138
      %v3193 = vadd.f32 %v2888, %v3143
      %v3194 = vadd.f32 %v2889, %v3148
      %v3195 = vadd.f32 %v2890, %v3153
      %v3196 = vadd.f32 %v2891, %v3158
      %v3197 = vadd.f32 %v2892, %v3163
      %v3198 = vld [vmem:[%s4] sm:$0x1]
      %v3200 = vlaneseq
      %v3201 = vshrl.u32 %v3200, 7
      %v3202 = vsub.s32 0, %v3201
      %v3203 = vrot.slane %v3198, %v3202
      %v3205 = vadd.f32 %v3166, %v3203
      %v3206 = vadd.f32 %v3167, %v3203
      %v3207 = vadd.f32 %v3168, %v3203
      %v3208 = vadd.f32 %v3169, %v3203
      %v3209 = vadd.f32 %v3170, %v3203
      %v3210 = vadd.f32 %v3171, %v3203
      %v3211 = vadd.f32 %v3172, %v3203
      %v3212 = vadd.f32 %v3173, %v3203
      %v3213 = vadd.f32 %v3174, %v3203
      %v3214 = vadd.f32 %v3175, %v3203
      %v3215 = vadd.f32 %v3176, %v3203
      %v3216 = vadd.f32 %v3177, %v3203
      %v3217 = vadd.f32 %v3178, %v3203
      %v3218 = vadd.f32 %v3179, %v3203
      %v3219 = vadd.f32 %v3180, %v3203
      %v3220 = vadd.f32 %v3181, %v3203
      %v3221 = vadd.f32 %v3182, %v3203
      %v3222 = vadd.f32 %v3183, %v3203
      %v3223 = vadd.f32 %v3184, %v3203
      %v3224 = vadd.f32 %v3185, %v3203
      %v3225 = vadd.f32 %v3186, %v3203
      %v3226 = vadd.f32 %v3187, %v3203
      %v3227 = vadd.f32 %v3188, %v3203
      %v3228 = vadd.f32 %v3189, %v3203
      %v3229 = vadd.f32 %v3190, %v3203
      %v3230 = vadd.f32 %v3191, %v3203
      %v3231 = vadd.f32 %v3192, %v3203
      %v3232 = vadd.f32 %v3193, %v3203
      %v3233 = vadd.f32 %v3194, %v3203
      %v3234 = vadd.f32 %v3195, %v3203
      %v3235 = vadd.f32 %v3196, %v3203
      %v3236 = vadd.f32 %v3197, %v3203
      %vm3237 = vcmask 64512
      %3238 = vst.msk [vmem:[%s258] sm:$0xff] %vm3237, %v3205
      %3239 = vst.msk [vmem:[%s258 + $0x8] sm:$0xff] %vm3237, %v3206
      %3240 = vst.msk [vmem:[%s258 + $0x10] sm:$0xff] %vm3237, %v3207
      %3241 = vst.msk [vmem:[%s258 + $0x18] sm:$0xff] %vm3237, %v3208
      %3242 = vst.msk [vmem:[%s258 + $0x20] sm:$0xff] %vm3237, %v3209
      %3243 = vst.msk [vmem:[%s258 + $0x28] sm:$0xff] %vm3237, %v3210
      %3244 = vst.msk [vmem:[%s258 + $0x30] sm:$0xff] %vm3237, %v3211
      %3245 = vst.msk [vmem:[%s258 + $0x38] sm:$0xff] %vm3237, %v3212
      %3246 = vst.msk [vmem:[%s258 + $0x40] sm:$0xff] %vm3237, %v3213
      %3247 = vst.msk [vmem:[%s258 + $0x48] sm:$0xff] %vm3237, %v3214
      %3248 = vst.msk [vmem:[%s258 + $0x50] sm:$0xff] %vm3237, %v3215
      %3249 = vst.msk [vmem:[%s258 + $0x58] sm:$0xff] %vm3237, %v3216
      %3250 = vst.msk [vmem:[%s258 + $0x60] sm:$0xff] %vm3237, %v3217
      %3251 = vst.msk [vmem:[%s258 + $0x68] sm:$0xff] %vm3237, %v3218
      %3252 = vst.msk [vmem:[%s258 + $0x70] sm:$0xff] %vm3237, %v3219
      %3253 = vst.msk [vmem:[%s258 + $0x78] sm:$0xff] %vm3237, %v3220
      %3254 = vst.msk [vmem:[%s258 + $0x80] sm:$0xff] %vm3237, %v3221
      %3255 = vst.msk [vmem:[%s258 + $0x88] sm:$0xff] %vm3237, %v3222
      %3256 = vst.msk [vmem:[%s258 + $0x90] sm:$0xff] %vm3237, %v3223
      %3257 = vst.msk [vmem:[%s258 + $0x98] sm:$0xff] %vm3237, %v3224
      %3258 = vst.msk [vmem:[%s258 + $0xa0] sm:$0xff] %vm3237, %v3225
      %3259 = vst.msk [vmem:[%s258 + $0xa8] sm:$0xff] %vm3237, %v3226
      %3260 = vst.msk [vmem:[%s258 + $0xb0] sm:$0xff] %vm3237, %v3227
      %3261 = vst.msk [vmem:[%s258 + $0xb8] sm:$0xff] %vm3237, %v3228
      %3262 = vst.msk [vmem:[%s258 + $0xc0] sm:$0xff] %vm3237, %v3229
      %3263 = vst.msk [vmem:[%s258 + $0xc8] sm:$0xff] %vm3237, %v3230
      %3264 = vst.msk [vmem:[%s258 + $0xd0] sm:$0xff] %vm3237, %v3231
      %3265 = vst.msk [vmem:[%s258 + $0xd8] sm:$0xff] %vm3237, %v3232
      %3266 = vst.msk [vmem:[%s258 + $0xe0] sm:$0xff] %vm3237, %v3233
      %3267 = vst.msk [vmem:[%s258 + $0xe8] sm:$0xff] %vm3237, %v3234
      %3268 = vst.msk [vmem:[%s258 + $0xf0] sm:$0xff] %vm3237, %v3235
      %3269 = vst.msk [vmem:[%s258 + $0xf8] sm:$0xff] %vm3237, %v3236
      %v3270 = vsel %vm3237, %v3205, 0.0
      %v3271 = vsel %vm3237, %v3206, 0.0
      %v3272 = vadd.f32 %v3270, %v3271
      %v3273 = vsel %vm3237, %v3207, 0.0
      %v3274 = vadd.f32 %v3272, %v3273
      %v3275 = vsel %vm3237, %v3208, 0.0
      %v3276 = vadd.f32 %v3274, %v3275
      %v3277 = vsel %vm3237, %v3209, 0.0
      %v3278 = vadd.f32 %v3276, %v3277
      %v3279 = vsel %vm3237, %v3210, 0.0
      %v3280 = vadd.f32 %v3278, %v3279
      %v3281 = vsel %vm3237, %v3211, 0.0
      %v3282 = vadd.f32 %v3280, %v3281
      %v3283 = vsel %vm3237, %v3212, 0.0
      %v3284 = vadd.f32 %v3282, %v3283
      %v3285 = vsel %vm3237, %v3213, 0.0
      %v3286 = vadd.f32 %v3284, %v3285
      %v3287 = vsel %vm3237, %v3214, 0.0
      %v3288 = vadd.f32 %v3286, %v3287
      %v3289 = vsel %vm3237, %v3215, 0.0
      %v3290 = vadd.f32 %v3288, %v3289
      %v3291 = vsel %vm3237, %v3216, 0.0
      %v3292 = vadd.f32 %v3290, %v3291
      %v3293 = vsel %vm3237, %v3217, 0.0
      %v3294 = vadd.f32 %v3292, %v3293
      %v3295 = vsel %vm3237, %v3218, 0.0
      %v3296 = vadd.f32 %v3294, %v3295
      %v3297 = vsel %vm3237, %v3219, 0.0
      %v3298 = vadd.f32 %v3296, %v3297
      %v3299 = vsel %vm3237, %v3220, 0.0
      %v3300 = vadd.f32 %v3298, %v3299
      %v3301 = vsel %vm3237, %v3221, 0.0
      %v3302 = vadd.f32 %v3300, %v3301
      %v3303 = vsel %vm3237, %v3222, 0.0
      %v3304 = vadd.f32 %v3302, %v3303
      %v3305 = vsel %vm3237, %v3223, 0.0
      %v3306 = vadd.f32 %v3304, %v3305
      %v3307 = vsel %vm3237, %v3224, 0.0
      %v3308 = vadd.f32 %v3306, %v3307
      %v3309 = vsel %vm3237, %v3225, 0.0
      %v3310 = vadd.f32 %v3308, %v3309
      %v3311 = vsel %vm3237, %v3226, 0.0
      %v3312 = vadd.f32 %v3310, %v3311
      %v3313 = vsel %vm3237, %v3227, 0.0
      %v3314 = vadd.f32 %v3312, %v3313
      %v3315 = vsel %vm3237, %v3228, 0.0
      %v3316 = vadd.f32 %v3314, %v3315
      %v3317 = vsel %vm3237, %v3229, 0.0
      %v3318 = vadd.f32 %v3316, %v3317
      %v3319 = vsel %vm3237, %v3230, 0.0
      %v3320 = vadd.f32 %v3318, %v3319
      %v3321 = vsel %vm3237, %v3231, 0.0
      %v3322 = vadd.f32 %v3320, %v3321
      %v3323 = vsel %vm3237, %v3232, 0.0
      %v3324 = vadd.f32 %v3322, %v3323
      %v3325 = vsel %vm3237, %v3233, 0.0
      %v3326 = vadd.f32 %v3324, %v3325
      %v3327 = vsel %vm3237, %v3234, 0.0
      %v3328 = vadd.f32 %v3326, %v3327
      %v3329 = vsel %vm3237, %v3235, 0.0
      %v3330 = vadd.f32 %v3328, %v3329
      %v3331 = vsel %vm3237, %v3236, 0.0
      %v3332 = vadd.f32 %v3330, %v3331
      %v3333 = vrot.slane %v3332, 4
      %v3334 = vadd.f32 %v3332, %v3333
      %v3335 = vrot.slane %v3334, 2
      %v3336 = vadd.f32 %v3334, %v3335
      %v3337 = vrot.slane %v3336, 1
      %v3338 = vadd.f32 %v3336, %v3337
      %v3339 = vmul.f32 %v3205, %v3205
      %v3340 = vmul.f32 %v3206, %v3206
      %v3341 = vmul.f32 %v3207, %v3207
      %v3342 = vmul.f32 %v3208, %v3208
      %v3343 = vmul.f32 %v3209, %v3209
      %v3344 = vmul.f32 %v3210, %v3210
      %v3345 = vmul.f32 %v3211, %v3211
      %v3346 = vmul.f32 %v3212, %v3212
      %v3347 = vmul.f32 %v3213, %v3213
      %v3348 = vmul.f32 %v3214, %v3214
      %v3349 = vmul.f32 %v3215, %v3215
      %v3350 = vmul.f32 %v3216, %v3216
      %v3351 = vmul.f32 %v3217, %v3217
      %v3352 = vmul.f32 %v3218, %v3218
      %v3353 = vmul.f32 %v3219, %v3219
      %v3354 = vmul.f32 %v3220, %v3220
      %v3355 = vmul.f32 %v3221, %v3221
      %v3356 = vmul.f32 %v3222, %v3222
      %v3357 = vmul.f32 %v3223, %v3223
      %v3358 = vmul.f32 %v3224, %v3224
      %v3359 = vmul.f32 %v3225, %v3225
      %v3360 = vmul.f32 %v3226, %v3226
      %v3361 = vmul.f32 %v3227, %v3227
      %v3362 = vmul.f32 %v3228, %v3228
      %v3363 = vmul.f32 %v3229, %v3229
      %v3364 = vmul.f32 %v3230, %v3230
      %v3365 = vmul.f32 %v3231, %v3231
      %v3366 = vmul.f32 %v3232, %v3232
      %v3367 = vmul.f32 %v3233, %v3233
      %v3368 = vmul.f32 %v3234, %v3234
      %v3369 = vmul.f32 %v3235, %v3235
      %v3370 = vmul.f32 %v3236, %v3236
      %v3371 = vsel %vm3237, %v3339, 0.0
      %v3372 = vsel %vm3237, %v3340, 0.0
      %v3373 = vadd.f32 %v3371, %v3372
      %v3374 = vsel %vm3237, %v3341, 0.0
      %v3375 = vadd.f32 %v3373, %v3374
      %v3376 = vsel %vm3237, %v3342, 0.0
      %v3377 = vadd.f32 %v3375, %v3376
      %v3378 = vsel %vm3237, %v3343, 0.0
      %v3379 = vadd.f32 %v3377, %v3378
      %v3380 = vsel %vm3237, %v3344, 0.0
      %v3381 = vadd.f32 %v3379, %v3380
      %v3382 = vsel %vm3237, %v3345, 0.0
      %v3383 = vadd.f32 %v3381, %v3382
      %v3384 = vsel %vm3237, %v3346, 0.0
      %v3385 = vadd.f32 %v3383, %v3384
      %v3386 = vsel %vm3237, %v3347, 0.0
      %v3387 = vadd.f32 %v3385, %v3386
      %v3388 = vsel %vm3237, %v3348, 0.0
      %v3389 = vadd.f32 %v3387, %v3388
      %v3390 = vsel %vm3237, %v3349, 0.0
      %v3391 = vadd.f32 %v3389, %v3390
      %v3392 = vsel %vm3237, %v3350, 0.0
      %v3393 = vadd.f32 %v3391, %v3392
      %v3394 = vsel %vm3237, %v3351, 0.0
      %v3395 = vadd.f32 %v3393, %v3394
      %v3396 = vsel %vm3237, %v3352, 0.0
      %v3397 = vadd.f32 %v3395, %v3396
      %v3398 = vsel %vm3237, %v3353, 0.0
      %v3399 = vadd.f32 %v3397, %v3398
      %v3400 = vsel %vm3237, %v3354, 0.0
      %v3401 = vadd.f32 %v3399, %v3400
      %v3402 = vsel %vm3237, %v3355, 0.0
      %v3403 = vadd.f32 %v3401, %v3402
      %v3404 = vsel %vm3237, %v3356, 0.0
      %v3405 = vadd.f32 %v3403, %v3404
      %v3406 = vsel %vm3237, %v3357, 0.0
      %v3407 = vadd.f32 %v3405, %v3406
      %v3408 = vsel %vm3237, %v3358, 0.0
      %v3409 = vadd.f32 %v3407, %v3408
      %v3410 = vsel %vm3237, %v3359, 0.0
      %v3411 = vadd.f32 %v3409, %v3410
      %v3412 = vsel %vm3237, %v3360, 0.0
      %v3413 = vadd.f32 %v3411, %v3412
      %v3414 = vsel %vm3237, %v3361, 0.0
      %v3415 = vadd.f32 %v3413, %v3414
      %v3416 = vsel %vm3237, %v3362, 0.0
      %v3417 = vadd.f32 %v3415, %v3416
      %v3418 = vsel %vm3237, %v3363, 0.0
      %v3419 = vadd.f32 %v3417, %v3418
      %v3420 = vsel %vm3237, %v3364, 0.0
      %v3421 = vadd.f32 %v3419, %v3420
      %v3422 = vsel %vm3237, %v3365, 0.0
      %v3423 = vadd.f32 %v3421, %v3422
      %v3424 = vsel %vm3237, %v3366, 0.0
      %v3425 = vadd.f32 %v3423, %v3424
      %v3426 = vsel %vm3237, %v3367, 0.0
      %v3427 = vadd.f32 %v3425, %v3426
      %v3428 = vsel %vm3237, %v3368, 0.0
      %v3429 = vadd.f32 %v3427, %v3428
      %v3430 = vsel %vm3237, %v3369, 0.0
      %v3431 = vadd.f32 %v3429, %v3430
      %v3432 = vsel %vm3237, %v3370, 0.0
      %v3433 = vadd.f32 %v3431, %v3432
      %v3434 = vrot.slane %v3433, 4
      %v3435 = vadd.f32 %v3433, %v3434
      %v3436 = vrot.slane %v3435, 2
      %v3437 = vadd.f32 %v3435, %v3436
      %v3438 = vrot.slane %v3437, 1
      %v3439 = vadd.f32 %v3437, %v3438
      %vm3440 = vcmask 1040384
      %v3441 = vsel %vm3440, %v3338, %v3439
      %vm3442 = vcmask 58368
      %3443 = vst.msk [vmem:[%s262] sm:$0x3] %vm3442, %v3441
      %p3444 = scmp.lt.s32.totalorder %s18, 1
      %s3445 = scalar_select %p3444, %s18, 1
      %s3446 = smul.addr %s3445, 32
      %s3447 = smul.addr %s3446, 8
      %s3448 = scalar_lea.vmem %s5, %s3447
      %p3449 = scmp.lt.s32.totalorder %s18, 1
      %s3450 = scalar_select %p3449, %s18, 1
      %s3451 = smul.addr %s3450, 2
      %s3452 = scalar_lea.vmem %s6, %s3451
      // Predicated region
      $region41: #{double_conv_forward.2} parent=39 // pred_check
        %p3453 = pneg %p146
      $region42: #{double_conv_forward.2} parent=39 // pred_check_branch
        %3455 = sbr.rel (%p3453) target = $region44
      $region43: #{double_conv_forward.2} parent=39 // pred_region
        _
      $region44: #{double_conv_forward.2} parent=39 // pred_fallthru
        _
      // Predicated region
      $region45: #{double_conv_forward.2} parent=39 // pred_check
        %p3456 = pneg %p172
      $region46: #{double_conv_forward.2} parent=39 // pred_check_branch
        %3458 = sbr.rel (%p3456) target = $region48
      $region47: #{double_conv_forward.2} parent=39 // pred_region
        _
      $region48: #{double_conv_forward.2} parent=39 // pred_fallthru
        _
    $region40: #{double_conv_forward.2} parent=5 // pred_fallthru
      _
    %p3459 = scmp.le.s32.totalorder 2, %s13
    // Predicated region
    $region49: #{double_conv_forward.2} parent=5 // pred_check
      %p3460 = pneg %p3459
    $region50: #{double_conv_forward.2} parent=5 // pred_check_branch
      %3462 = sbr.rel (%p3460) target = $region52
    $region51: #{double_conv_forward.2} parent=5 // pred_region
      %s3463 = ssub.s32 %s13, 2
      // Predicated region
      $region53: #{double_conv_forward.2} parent=51 // pred_check
        %p3464 = pneg %p152
      $region54: #{double_conv_forward.2} parent=51 // pred_check_branch
        %3466 = sbr.rel (%p3464) target = $region56
      $region55: #{double_conv_forward.2} parent=51 // pred_region
        %p3467 = scmp.lt.s32.totalorder %s19, 1
        %s3468 = scalar_select %p3467, %s19, 1
        %s3469 = smul.addr %s3468, 32
        %s3470 = smul.addr %s3469, 8
        %s3471 = scalar_lea.vmem %s5, %s3470
      $region56: #{double_conv_forward.2} parent=51 // pred_fallthru
        _
      // Predicated region
      $region57: #{double_conv_forward.2} parent=51 // pred_check
        %p3472 = pneg %p178
      $region58: #{double_conv_forward.2} parent=51 // pred_check_branch
        %3474 = sbr.rel (%p3472) target = $region60
      $region59: #{double_conv_forward.2} parent=51 // pred_region
        %p3475 = scmp.lt.s32.totalorder %s19, 1
        %s3476 = scalar_select %p3475, %s19, 1
        %s3477 = smul.addr %s3476, 2
        %s3478 = scalar_lea.vmem %s6, %s3477
      $region60: #{double_conv_forward.2} parent=51 // pred_fallthru
        _
    $region52: #{double_conv_forward.2} parent=5 // pred_fallthru
      _
  $region6: #{double_conv_forward.2} parent=0 // loop_footer
    %s17 = sadd.s32 1, %s13
  $region7: #{double_conv_forward.2} parent=0 // loop_footer_branch
    %12 = sbr.rel target = $region3
  $region8: #{double_conv_forward.2} parent=0 // loop_exit
    _

// kernel: double_conv_forward.3
$region0: #{double_conv_forward.3}
  #allocation0 [shape = 'u32[]', space=smem, size = 0x4, offset = 0x4, fixed_abs, tag = 'smem constant byte address 0x4 - core index']
  #allocation1 [shape = 'u32[144,128]{1,0:T(1,128)}', space=vmem, size = 0x12000, scoped, tag = 'internal scratch']
  #allocation2 [shape = 'f32[18,25,128]{2,1,0:T(8,128)}', space=vmem, size = 0x48000, scoped, tag = 'scratch operand']
  %s0 = inlined_call_operand.vmem [shape: f32[2,16,16,8], index: 0, kind: input, shape index: {}]
  %s1 = inlined_call_operand.vmem [shape: f32[2,16,16,4], index: 1, kind: input, shape index: {}]
  %s2 = inlined_call_operand.vmem [shape: f32[1,8], index: 2, kind: input, shape index: {}]
  %s3 = inlined_call_operand.vmem [shape: f32[1,8], index: 3, kind: input, shape index: {}]
  %s4 = inlined_call_operand.vmem [shape: f32[1152,8], index: 4, kind: input, shape index: {}]
  %s5 = inlined_call_operand.vmem [shape: f32[1,8], index: 5, kind: input, shape index: {}]
  %s6 = inlined_call_operand.vmem [shape: f32[1,4], index: 6, kind: input, shape index: {}]
  %s7 = inlined_call_operand.vmem [shape: f32[1,4], index: 7, kind: input, shape index: {}]
  %s8 = inlined_call_operand.vmem [shape: f32[1152,8], index: 8, kind: input, shape index: {}]
  %s9 = inlined_call_operand.vmem [shape: f32[1,8], index: 9, kind: input, shape index: {}]
  %s10 = inlined_call_operand.vmem [shape: f32[2,16,16,8], index: 10, kind: output, shape index: {}]
  %s11 = sld [smem:[#allocation0]]
  $region73: #{double_conv_forward.3} parent=0
    _
  %s13 = ssub.s32 1, %s11
  %s14 = scalar_select 0, %s13, %s11
  loop: start=0, step=1, limit=4
  $region2: #{double_conv_forward.3} parent=0 // loop_pre_header
    _
  $region3: #{double_conv_forward.3} parent=0 // loop_header
    %s16 = sphi 0, %s20
    %p17 = scmp.ge.s32.totalorder %s16, 4
    %s26 = sphi 0, %s28
    %s29 = sphi 0, %s26
    %s30 = sphi 0, %s29
    %s46 = sphi 0, %s30
    %s52 = sphi 0, %s54
    %s55 = sphi 0, %s52
    %s56 = sphi 0, %s55
    %s72 = sphi 0, %s56
    %s76 = sphi 0, %s76
    %s78 = sphi 0, %s76
    %s79 = sphi 0, %s78
    %s93 = sphi 0, %s79
    %s97 = sphi 0, %s97
    %s99 = sphi 0, %s97
    %s100 = sphi 0, %s99
    %s114 = sphi 0, %s100
    %s118 = sphi 0, %s118
    %s120 = sphi 0, %s118
    %s121 = sphi 0, %s120
    %s135 = sphi 0, %s121
    %s139 = sphi 0, %s139
    %s141 = sphi 0, %s139
    %s142 = sphi 0, %s141
    %s156 = sphi 0, %s142
    %s160 = sphi 0, %s160
    %s162 = sphi 0, %s160
    %s163 = sphi 0, %s162
    %s177 = sphi 0, %s163
    %s181 = sphi 0, %s181
    %s183 = sphi 0, %s181
    %s184 = sphi 0, %s183
    %s198 = sphi 0, %s184
    %s202 = sphi 0, %s202
    %s204 = sphi 0, %s202
    %s205 = sphi 0, %s204
    %s219 = sphi 0, %s205
    %s223 = sphi 0, %s223
    %s225 = sphi 0, %s223
    %s226 = sphi 0, %s225
    %s240 = sphi 0, %s226
    %s246 = sphi 0, %s248
    %s249 = sphi 0, %s246
    %s250 = sphi 0, %s249
    %s266 = sphi 0, %s250
  $region4: #{double_conv_forward.3} parent=0 // loop_header_branch
    %19 = sbr.rel (%p17) target = $region8
  $region5: #{double_conv_forward.3} parent=0 // loop_body
    %s21 = ssub.s32 %s16, 1
    %s22 = ssub.s32 %s16, 2
    %s23 = sadd.s32 %s16, 1
    %s24 = ssub.s32 %s16, %s23
    %p25 = scmp.eq.s32.totalorder %s24, 0
    %s27 = sadd.s32 %s26, 1
    %s28 = scalar_select %p25, %s26, %s27
    %p31 = pneg %p25
    %p32 = scmp.eq.s32.totalorder %s16, 1
    %p33 = por %p31, %p32
    %p34 = scmp.ne.s32.totalorder %s26, %s29
    %p35 = scmp.eq.s32.totalorder %s16, 0
    %p36 = por %p34, %p35
    %p37 = scmp.ne.s32.totalorder %s26, %s29
    %p38 = scmp.eq.s32.totalorder %s21, 1
    %p39 = por %p37, %p38
    %p40 = scmp.ne.s32.totalorder %s29, %s30
    %p41 = scmp.eq.s32.totalorder %s21, 0
    %p42 = por %p40, %p41
    %p43 = scmp.ne.s32.totalorder %s29, %s30
    %p44 = scmp.eq.s32.totalorder %s22, 1
    %p45 = por %p43, %p44
    %p47 = scmp.ne.s32.totalorder %s30, %s46
    %p48 = scmp.eq.s32.totalorder %s22, 0
    %p49 = por %p47, %p48
    %s50 = ssub.s32 %s16, %s23
    %p51 = scmp.eq.s32.totalorder %s50, 0
    %s53 = sadd.s32 %s52, 1
    %s54 = scalar_select %p51, %s52, %s53
    %p57 = pneg %p51
    %p58 = scmp.eq.s32.totalorder %s16, 1
    %p59 = por %p57, %p58
    %p60 = scmp.ne.s32.totalorder %s52, %s55
    %p61 = scmp.eq.s32.totalorder %s16, 0
    %p62 = por %p60, %p61
    %p63 = scmp.ne.s32.totalorder %s52, %s55
    %p64 = scmp.eq.s32.totalorder %s21, 1
    %p65 = por %p63, %p64
    %p66 = scmp.ne.s32.totalorder %s55, %s56
    %p67 = scmp.eq.s32.totalorder %s21, 0
    %p68 = por %p66, %p67
    %p69 = scmp.ne.s32.totalorder %s55, %s56
    %p70 = scmp.eq.s32.totalorder %s22, 1
    %p71 = por %p69, %p70
    %p73 = scmp.ne.s32.totalorder %s56, %s72
    %p74 = scmp.eq.s32.totalorder %s22, 0
    %p75 = por %p73, %p74
    %s77 = sadd.s32 %s76, 1
    %p80 = scmp.eq.s32.totalorder %s16, 1
    %p81 = scmp.ne.s32.totalorder %s76, %s78
    %p82 = scmp.eq.s32.totalorder %s16, 0
    %p83 = por %p81, %p82
    %p84 = scmp.ne.s32.totalorder %s76, %s78
    %p85 = scmp.eq.s32.totalorder %s21, 1
    %p86 = por %p84, %p85
    %p87 = scmp.ne.s32.totalorder %s78, %s79
    %p88 = scmp.eq.s32.totalorder %s21, 0
    %p89 = por %p87, %p88
    %p90 = scmp.ne.s32.totalorder %s78, %s79
    %p91 = scmp.eq.s32.totalorder %s22, 1
    %p92 = por %p90, %p91
    %p94 = scmp.ne.s32.totalorder %s79, %s93
    %p95 = scmp.eq.s32.totalorder %s22, 0
    %p96 = por %p94, %p95
    %s98 = sadd.s32 %s97, 1
    %p101 = scmp.eq.s32.totalorder %s16, 1
    %p102 = scmp.ne.s32.totalorder %s97, %s99
    %p103 = scmp.eq.s32.totalorder %s16, 0
    %p104 = por %p102, %p103
    %p105 = scmp.ne.s32.totalorder %s97, %s99
    %p106 = scmp.eq.s32.totalorder %s21, 1
    %p107 = por %p105, %p106
    %p108 = scmp.ne.s32.totalorder %s99, %s100
    %p109 = scmp.eq.s32.totalorder %s21, 0
    %p110 = por %p108, %p109
    %p111 = scmp.ne.s32.totalorder %s99, %s100
    %p112 = scmp.eq.s32.totalorder %s22, 1
    %p113 = por %p111, %p112
    %p115 = scmp.ne.s32.totalorder %s100, %s114
    %p116 = scmp.eq.s32.totalorder %s22, 0
    %p117 = por %p115, %p116
    %s119 = sadd.s32 %s118, 1
    %p122 = scmp.eq.s32.totalorder %s16, 1
    %p123 = scmp.ne.s32.totalorder %s118, %s120
    %p124 = scmp.eq.s32.totalorder %s16, 0
    %p125 = por %p123, %p124
    %p126 = scmp.ne.s32.totalorder %s118, %s120
    %p127 = scmp.eq.s32.totalorder %s21, 1
    %p128 = por %p126, %p127
    %p129 = scmp.ne.s32.totalorder %s120, %s121
    %p130 = scmp.eq.s32.totalorder %s21, 0
    %p131 = por %p129, %p130
    %p132 = scmp.ne.s32.totalorder %s120, %s121
    %p133 = scmp.eq.s32.totalorder %s22, 1
    %p134 = por %p132, %p133
    %p136 = scmp.ne.s32.totalorder %s121, %s135
    %p137 = scmp.eq.s32.totalorder %s22, 0
    %p138 = por %p136, %p137
    %s140 = sadd.s32 %s139, 1
    %p143 = scmp.eq.s32.totalorder %s16, 1
    %p144 = scmp.ne.s32.totalorder %s139, %s141
    %p145 = scmp.eq.s32.totalorder %s16, 0
    %p146 = por %p144, %p145
    %p147 = scmp.ne.s32.totalorder %s139, %s141
    %p148 = scmp.eq.s32.totalorder %s21, 1
    %p149 = por %p147, %p148
    %p150 = scmp.ne.s32.totalorder %s141, %s142
    %p151 = scmp.eq.s32.totalorder %s21, 0
    %p152 = por %p150, %p151
    %p153 = scmp.ne.s32.totalorder %s141, %s142
    %p154 = scmp.eq.s32.totalorder %s22, 1
    %p155 = por %p153, %p154
    %p157 = scmp.ne.s32.totalorder %s142, %s156
    %p158 = scmp.eq.s32.totalorder %s22, 0
    %p159 = por %p157, %p158
    %s161 = sadd.s32 %s160, 1
    %p164 = scmp.eq.s32.totalorder %s16, 1
    %p165 = scmp.ne.s32.totalorder %s160, %s162
    %p166 = scmp.eq.s32.totalorder %s16, 0
    %p167 = por %p165, %p166
    %p168 = scmp.ne.s32.totalorder %s160, %s162
    %p169 = scmp.eq.s32.totalorder %s21, 1
    %p170 = por %p168, %p169
    %p171 = scmp.ne.s32.totalorder %s162, %s163
    %p172 = scmp.eq.s32.totalorder %s21, 0
    %p173 = por %p171, %p172
    %p174 = scmp.ne.s32.totalorder %s162, %s163
    %p175 = scmp.eq.s32.totalorder %s22, 1
    %p176 = por %p174, %p175
    %p178 = scmp.ne.s32.totalorder %s163, %s177
    %p179 = scmp.eq.s32.totalorder %s22, 0
    %p180 = por %p178, %p179
    %s182 = sadd.s32 %s181, 1
    %p185 = scmp.eq.s32.totalorder %s16, 1
    %p186 = scmp.ne.s32.totalorder %s181, %s183
    %p187 = scmp.eq.s32.totalorder %s16, 0
    %p188 = por %p186, %p187
    %p189 = scmp.ne.s32.totalorder %s181, %s183
    %p190 = scmp.eq.s32.totalorder %s21, 1
    %p191 = por %p189, %p190
    %p192 = scmp.ne.s32.totalorder %s183, %s184
    %p193 = scmp.eq.s32.totalorder %s21, 0
    %p194 = por %p192, %p193
    %p195 = scmp.ne.s32.totalorder %s183, %s184
    %p196 = scmp.eq.s32.totalorder %s22, 1
    %p197 = por %p195, %p196
    %p199 = scmp.ne.s32.totalorder %s184, %s198
    %p200 = scmp.eq.s32.totalorder %s22, 0
    %p201 = por %p199, %p200
    %s203 = sadd.s32 %s202, 1
    %p206 = scmp.eq.s32.totalorder %s16, 1
    %p207 = scmp.ne.s32.totalorder %s202, %s204
    %p208 = scmp.eq.s32.totalorder %s16, 0
    %p209 = por %p207, %p208
    %p210 = scmp.ne.s32.totalorder %s202, %s204
    %p211 = scmp.eq.s32.totalorder %s21, 1
    %p212 = por %p210, %p211
    %p213 = scmp.ne.s32.totalorder %s204, %s205
    %p214 = scmp.eq.s32.totalorder %s21, 0
    %p215 = por %p213, %p214
    %p216 = scmp.ne.s32.totalorder %s204, %s205
    %p217 = scmp.eq.s32.totalorder %s22, 1
    %p218 = por %p216, %p217
    %p220 = scmp.ne.s32.totalorder %s205, %s219
    %p221 = scmp.eq.s32.totalorder %s22, 0
    %p222 = por %p220, %p221
    %s224 = sadd.s32 %s223, 1
    %p227 = scmp.eq.s32.totalorder %s16, 1
    %p228 = scmp.ne.s32.totalorder %s223, %s225
    %p229 = scmp.eq.s32.totalorder %s16, 0
    %p230 = por %p228, %p229
    %p231 = scmp.ne.s32.totalorder %s223, %s225
    %p232 = scmp.eq.s32.totalorder %s21, 1
    %p233 = por %p231, %p232
    %p234 = scmp.ne.s32.totalorder %s225, %s226
    %p235 = scmp.eq.s32.totalorder %s21, 0
    %p236 = por %p234, %p235
    %p237 = scmp.ne.s32.totalorder %s225, %s226
    %p238 = scmp.eq.s32.totalorder %s22, 1
    %p239 = por %p237, %p238
    %p241 = scmp.ne.s32.totalorder %s226, %s240
    %p242 = scmp.eq.s32.totalorder %s22, 0
    %p243 = por %p241, %p242
    %s244 = ssub.s32 %s16, %s23
    %p245 = scmp.eq.s32.totalorder %s244, 0
    %s247 = sadd.s32 %s246, 1
    %s248 = scalar_select %p245, %s246, %s247
    %p251 = pneg %p245
    %p252 = scmp.eq.s32.totalorder %s16, 1
    %p253 = por %p251, %p252
    %p254 = scmp.ne.s32.totalorder %s246, %s249
    %p255 = scmp.eq.s32.totalorder %s16, 0
    %p256 = por %p254, %p255
    %p257 = scmp.ne.s32.totalorder %s246, %s249
    %p258 = scmp.eq.s32.totalorder %s21, 1
    %p259 = por %p257, %p258
    %p260 = scmp.ne.s32.totalorder %s249, %s250
    %p261 = scmp.eq.s32.totalorder %s21, 0
    %p262 = por %p260, %p261
    %p263 = scmp.ne.s32.totalorder %s249, %s250
    %p264 = scmp.eq.s32.totalorder %s22, 1
    %p265 = por %p263, %p264
    %p267 = scmp.ne.s32.totalorder %s250, %s266
    %p268 = scmp.eq.s32.totalorder %s22, 0
    %p269 = por %p267, %p268
    %p270 = scmp.le.s32.totalorder 1, %s16
    %p271 = scmp.lt.s32.totalorder %s16, 3
    %p272 = pnand %p270, %p271
    %p273 = pneg %p272
    // Predicated region
    $region9: #{double_conv_forward.3} parent=5 // pred_check
      _
    $region10: #{double_conv_forward.3} parent=5 // pred_check_branch
      %275 = sbr.rel (%p272) target = $region12
    $region11: #{double_conv_forward.3} parent=5 // pred_region
      %s276 = ssub.s32 %s16, 1
      // Predicated region
      $region13: #{double_conv_forward.3} parent=11 // pred_check
        %p277 = pneg %p89
      $region14: #{double_conv_forward.3} parent=11 // pred_check_branch
        %279 = sbr.rel (%p277) target = $region16
      $region15: #{double_conv_forward.3} parent=11 // pred_region
        _
      $region16: #{double_conv_forward.3} parent=11 // pred_fallthru
        _
      // Predicated region
      $region17: #{double_conv_forward.3} parent=11 // pred_check
        %p280 = pneg %p110
      $region18: #{double_conv_forward.3} parent=11 // pred_check_branch
        %282 = sbr.rel (%p280) target = $region20
      $region19: #{double_conv_forward.3} parent=11 // pred_region
        _
      $region20: #{double_conv_forward.3} parent=11 // pred_fallthru
        _
      // Predicated region
      $region21: #{double_conv_forward.3} parent=11 // pred_check
        %p283 = pneg %p131
      $region22: #{double_conv_forward.3} parent=11 // pred_check_branch
        %285 = sbr.rel (%p283) target = $region24
      $region23: #{double_conv_forward.3} parent=11 // pred_region
        _
      $region24: #{double_conv_forward.3} parent=11 // pred_fallthru
        _
      // Predicated region
      $region25: #{double_conv_forward.3} parent=11 // pred_check
        %p286 = pneg %p152
      $region26: #{double_conv_forward.3} parent=11 // pred_check_branch
        %288 = sbr.rel (%p286) target = $region28
      $region27: #{double_conv_forward.3} parent=11 // pred_region
        _
      $region28: #{double_conv_forward.3} parent=11 // pred_fallthru
        _
      // Predicated region
      $region29: #{double_conv_forward.3} parent=11 // pred_check
        %p289 = pneg %p173
      $region30: #{double_conv_forward.3} parent=11 // pred_check_branch
        %291 = sbr.rel (%p289) target = $region32
      $region31: #{double_conv_forward.3} parent=11 // pred_region
        _
      $region32: #{double_conv_forward.3} parent=11 // pred_fallthru
        _
      // Predicated region
      $region33: #{double_conv_forward.3} parent=11 // pred_check
        %p292 = pneg %p194
      $region34: #{double_conv_forward.3} parent=11 // pred_check_branch
        %294 = sbr.rel (%p292) target = $region36
      $region35: #{double_conv_forward.3} parent=11 // pred_region
        _
      $region36: #{double_conv_forward.3} parent=11 // pred_fallthru
        _
      // Predicated region
      $region37: #{double_conv_forward.3} parent=11 // pred_check
        %p295 = pneg %p215
      $region38: #{double_conv_forward.3} parent=11 // pred_check_branch
        %297 = sbr.rel (%p295) target = $region40
      $region39: #{double_conv_forward.3} parent=11 // pred_region
        _
      $region40: #{double_conv_forward.3} parent=11 // pred_fallthru
        _
      // Predicated region
      $region41: #{double_conv_forward.3} parent=11 // pred_check
        %p298 = pneg %p236
      $region42: #{double_conv_forward.3} parent=11 // pred_check_branch
        %300 = sbr.rel (%p298) target = $region44
      $region43: #{double_conv_forward.3} parent=11 // pred_region
        _
      $region44: #{double_conv_forward.3} parent=11 // pred_fallthru
        _
    $region12: #{double_conv_forward.3} parent=5 // pred_fallthru
      _
    %p301 = scmp.lt.s32.totalorder %s16, 2
    // Predicated region
    $region45: #{double_conv_forward.3} parent=5 // pred_check
      %p302 = pneg %p301
    $region46: #{double_conv_forward.3} parent=5 // pred_check_branch
      %304 = sbr.rel (%p302) target = $region48
    $region47: #{double_conv_forward.3} parent=5 // pred_region
      // Predicated region
      $region49: #{double_conv_forward.3} parent=47 // pred_check
        %p305 = pneg %p36
      $region50: #{double_conv_forward.3} parent=47 // pred_check_branch
        %307 = sbr.rel (%p305) target = $region52
      $region51: #{double_conv_forward.3} parent=47 // pred_region
        %p308 = scmp.lt.s32.totalorder %s16, 1
        %s309 = scalar_select %p308, %s16, 1
        %s310 = smul.addr %s309, 32
        %s311 = smul.addr %s310, 8
        %s312 = scalar_lea.vmem %s0, %s311
      $region52: #{double_conv_forward.3} parent=47 // pred_fallthru
        _
      // Predicated region
      $region53: #{double_conv_forward.3} parent=47 // pred_check
        %p313 = pneg %p62
      $region54: #{double_conv_forward.3} parent=47 // pred_check_branch
        %315 = sbr.rel (%p313) target = $region56
      $region55: #{double_conv_forward.3} parent=47 // pred_region
        %p316 = scmp.lt.s32.totalorder %s16, 1
        %s317 = scalar_select %p316, %s16, 1
        %s318 = smul.addr %s317, 32
        %s319 = smul.addr %s318, 8
        %s320 = scalar_lea.vmem %s1, %s319
      $region56: #{double_conv_forward.3} parent=47 // pred_fallthru
        _
    $region48: #{double_conv_forward.3} parent=5 // pred_fallthru
      _
    %p321 = scmp.le.s32.totalorder 1, %s16
    %p322 = scmp.lt.s32.totalorder %s16, 3
    %p323 = pnand %p321, %p322
    %p324 = pneg %p323
    // Predicated region
    $region57: #{double_conv_forward.3} parent=5 // pred_check
      _
    $region58: #{double_conv_forward.3} parent=5 // pred_check_branch
      %326 = sbr.rel (%p323) target = $region60
    $region59: #{double_conv_forward.3} parent=5 // pred_region
      %s327 = ssub.s32 %s16, 1
      %p328 = scmp.lt.s32.totalorder %s21, 1
      %s329 = scalar_select %p328, %s21, 1
      %s330 = smul.addr %s329, 32
      %s331 = smul.addr %s330, 8
      %s332 = scalar_lea.vmem %s0, %s331
      %p333 = pneg %p42
      %p334 = pneg %p39
      %p335 = scmp.lt.s32.totalorder %s21, 1
      %s336 = scalar_select %p335, %s21, 1
      %s337 = smul.addr %s336, 32
      %s338 = smul.addr %s337, 8
      %s339 = scalar_lea.vmem %s1, %s338
      %p340 = pneg %p68
      %p341 = pneg %p65
      %p342 = pneg %p89
      %p343 = pneg %p86
      %p344 = pneg %p110
      %p345 = pneg %p107
      %p346 = pneg %p131
      %p347 = pneg %p128
      %p348 = pneg %p152
      %p349 = pneg %p149
      %p350 = pneg %p173
      %p351 = pneg %p170
      %p352 = pneg %p194
      %p353 = pneg %p191
      %p354 = pneg %p215
      %p355 = pneg %p212
      %p356 = pneg %p236
      %p357 = pneg %p233
      %p358 = pneg %p262
      %p359 = pneg %p259
      %p360 = scmp.lt.s32.totalorder %s21, 1
      %s361 = scalar_select %p360, %s21, 1
      %s362 = smul.addr %s361, 32
      %s363 = smul.addr %s362, 8
      %s364 = scalar_lea.vmem %s10, %s363
      %p365 = scmp.lt.s32.totalorder %s21, 1
      %s366 = scalar_select %p365, %s21, 1
      %s367 = smul.addr %s366, 32
      %s368 = smul.addr %s367, 8
      %s369 = scalar_lea.vmem %s0, %s368
      %p370 = scmp.lt.s32.totalorder %s21, 1
      %s371 = scalar_select %p370, %s21, 1
      %s372 = smul.addr %s371, 32
      %s373 = smul.addr %s372, 8
      %s374 = scalar_lea.vmem %s1, %s373
      %p375 = scmp.lt.s32.totalorder %s21, 1
      %s376 = scalar_select %p375, %s21, 1
      %s377 = smul.addr %s376, 32
      %s378 = smul.addr %s377, 8
      %s379 = scalar_lea.vmem %s10, %s378
      %380 = vst [vmem:[#allocation2] sm:$0xff] 0.0
      %381 = vst [vmem:[#allocation2 + $0x8] sm:$0xff] 0.0
      %382 = vst [vmem:[#allocation2 + $0x10] sm:$0xff] 0.0
      %383 = vst [vmem:[#allocation2 + $0x18] sm:$0x1] 0.0
      %s384 = scalar_lea.vmem [#allocation2], 544
      %385 = vst [vmem:[%s384] sm:$0xff] 0.0
      %386 = vst [vmem:[%s384 + $0x8] sm:$0xff] 0.0
      %387 = vst [vmem:[%s384 + $0x10] sm:$0xff] 0.0
      %388 = vst [vmem:[%s384 + $0x18] sm:$0x1] 0.0
      %389 = vst [vmem:[#allocation2 + $0x7] sm:$0x1] 0.0
      %390 = vst [vmem:[#allocation2 + $0x27] sm:$0x1] 0.0
      %391 = vst [vmem:[#allocation2 + $0x47] sm:$0x1] 0.0
      %392 = vst [vmem:[#allocation2 + $0x67] sm:$0x1] 0.0
      %393 = vst [vmem:[#allocation2 + $0x87] sm:$0x1] 0.0
      %394 = vst [vmem:[#allocation2 + $0xa7] sm:$0x1] 0.0
      %395 = vst [vmem:[#allocation2 + $0xc7] sm:$0x1] 0.0
      %396 = vst [vmem:[#allocation2 + $0xe7] sm:$0x1] 0.0
      %397 = vst [vmem:[#allocation2 + $0x107] sm:$0x1] 0.0
      %398 = vst [vmem:[#allocation2 + $0x127] sm:$0x1] 0.0
      %399 = vst [vmem:[#allocation2 + $0x147] sm:$0x1] 0.0
      %400 = vst [vmem:[#allocation2 + $0x167] sm:$0x1] 0.0
      %401 = vst [vmem:[#allocation2 + $0x187] sm:$0x1] 0.0
      %402 = vst [vmem:[#allocation2 + $0x1a7] sm:$0x1] 0.0
      %403 = vst [vmem:[#allocation2 + $0x1c7] sm:$0x1] 0.0
      %404 = vst [vmem:[#allocation2 + $0x1e7] sm:$0x1] 0.0
      %405 = vst [vmem:[#allocation2 + $0x207] sm:$0x1] 0.0
      %406 = vst [vmem:[#allocation2 + $0x227] sm:$0x1] 0.0
      %407 = vst [vmem:[#allocation2 + $0x18] sm:$0x1] 0.0
      %408 = vst [vmem:[#allocation2 + $0x38] sm:$0x1] 0.0
      %409 = vst [vmem:[#allocation2 + $0x58] sm:$0x1] 0.0
      %410 = vst [vmem:[#allocation2 + $0x78] sm:$0x1] 0.0
      %411 = vst [vmem:[#allocation2 + $0x98] sm:$0x1] 0.0
      %412 = vst [vmem:[#allocation2 + $0xb8] sm:$0x1] 0.0
      %413 = vst [vmem:[#allocation2 + $0xd8] sm:$0x1] 0.0
      %414 = vst [vmem:[#allocation2 + $0xf8] sm:$0x1] 0.0
      %415 = vst [vmem:[#allocation2 + $0x118] sm:$0x1] 0.0
      %416 = vst [vmem:[#allocation2 + $0x138] sm:$0x1] 0.0
      %417 = vst [vmem:[#allocation2 + $0x158] sm:$0x1] 0.0
      %418 = vst [vmem:[#allocation2 + $0x178] sm:$0x1] 0.0
      %419 = vst [vmem:[#allocation2 + $0x198] sm:$0x1] 0.0
      %420 = vst [vmem:[#allocation2 + $0x1b8] sm:$0x1] 0.0
      %421 = vst [vmem:[#allocation2 + $0x1d8] sm:$0x1] 0.0
      %422 = vst [vmem:[#allocation2 + $0x1f8] sm:$0x1] 0.0
      %423 = vst [vmem:[#allocation2 + $0x218] sm:$0x1] 0.0
      %424 = vst [vmem:[#allocation2 + $0x238] sm:$0x1] 0.0
      %v425 = vld [vmem:[%s374] sm:$0xff]
      %v426 = vld [vmem:[%s374 + $0x8] sm:$0xff]
      %v427 = vld [vmem:[%s374 + $0x10] sm:$0xff]
      %v428 = vld [vmem:[%s374 + $0x18] sm:$0xff]
      %v429 = vld [vmem:[%s374 + $0x20] sm:$0xff]
      %v430 = vld [vmem:[%s374 + $0x28] sm:$0xff]
      %v431 = vld [vmem:[%s374 + $0x30] sm:$0xff]
      %v432 = vld [vmem:[%s374 + $0x38] sm:$0xff]
      %v433 = vld [vmem:[%s374 + $0x40] sm:$0xff]
      %v434 = vld [vmem:[%s374 + $0x48] sm:$0xff]
      %v435 = vld [vmem:[%s374 + $0x50] sm:$0xff]
      %v436 = vld [vmem:[%s374 + $0x58] sm:$0xff]
      %v437 = vld [vmem:[%s374 + $0x60] sm:$0xff]
      %v438 = vld [vmem:[%s374 + $0x68] sm:$0xff]
      %v439 = vld [vmem:[%s374 + $0x70] sm:$0xff]
      %v440 = vld [vmem:[%s374 + $0x78] sm:$0xff]
      %v441 = vld [vmem:[%s374 + $0x80] sm:$0xff]
      %v442 = vld [vmem:[%s374 + $0x88] sm:$0xff]
      %v443 = vld [vmem:[%s374 + $0x90] sm:$0xff]
      %v444 = vld [vmem:[%s374 + $0x98] sm:$0xff]
      %v445 = vld [vmem:[%s374 + $0xa0] sm:$0xff]
      %v446 = vld [vmem:[%s374 + $0xa8] sm:$0xff]
      %v447 = vld [vmem:[%s374 + $0xb0] sm:$0xff]
      %v448 = vld [vmem:[%s374 + $0xb8] sm:$0xff]
      %v449 = vld [vmem:[%s374 + $0xc0] sm:$0xff]
      %v450 = vld [vmem:[%s374 + $0xc8] sm:$0xff]
      %v451 = vld [vmem:[%s374 + $0xd0] sm:$0xff]
      %v452 = vld [vmem:[%s374 + $0xd8] sm:$0xff]
      %v453 = vld [vmem:[%s374 + $0xe0] sm:$0xff]
      %v454 = vld [vmem:[%s374 + $0xe8] sm:$0xff]
      %v455 = vld [vmem:[%s374 + $0xf0] sm:$0xff]
      %v456 = vld [vmem:[%s374 + $0xf8] sm:$0xff]
      %v457 = vld [vmem:[%s6] sm:$0x1]
      %v459 = vlaneseq
      %v460 = vshrl.u32 %v459, 7
      %v461 = vsub.s32 0, %v460
      %v462 = vrot.slane %v457, %v461
      %v464 = vmul.f32 %v425, %v462
      %v465 = vmul.f32 %v426, %v462
      %v466 = vmul.f32 %v427, %v462
      %v467 = vmul.f32 %v428, %v462
      %v468 = vmul.f32 %v429, %v462
      %v469 = vmul.f32 %v430, %v462
      %v470 = vmul.f32 %v431, %v462
      %v471 = vmul.f32 %v432, %v462
      %v472 = vmul.f32 %v433, %v462
      %v473 = vmul.f32 %v434, %v462
      %v474 = vmul.f32 %v435, %v462
      %v475 = vmul.f32 %v436, %v462
      %v476 = vmul.f32 %v437, %v462
      %v477 = vmul.f32 %v438, %v462
      %v478 = vmul.f32 %v439, %v462
      %v479 = vmul.f32 %v440, %v462
      %v480 = vmul.f32 %v441, %v462
      %v481 = vmul.f32 %v442, %v462
      %v482 = vmul.f32 %v443, %v462
      %v483 = vmul.f32 %v444, %v462
      %v484 = vmul.f32 %v445, %v462
      %v485 = vmul.f32 %v446, %v462
      %v486 = vmul.f32 %v447, %v462
      %v487 = vmul.f32 %v448, %v462
      %v488 = vmul.f32 %v449, %v462
      %v489 = vmul.f32 %v450, %v462
      %v490 = vmul.f32 %v451, %v462
      %v491 = vmul.f32 %v452, %v462
      %v492 = vmul.f32 %v453, %v462
      %v493 = vmul.f32 %v454, %v462
      %v494 = vmul.f32 %v455, %v462
      %v495 = vmul.f32 %v456, %v462
      %v496 = vld [vmem:[%s7] sm:$0x1]
      %v498 = vlaneseq
      %v499 = vshrl.u32 %v498, 7
      %v500 = vsub.s32 0, %v499
      %v501 = vrot.slane %v496, %v500
      %v503 = vadd.f32 %v464, %v501
      %v504 = vadd.f32 %v465, %v501
      %v505 = vadd.f32 %v466, %v501
      %v506 = vadd.f32 %v467, %v501
      %v507 = vadd.f32 %v468, %v501
      %v508 = vadd.f32 %v469, %v501
      %v509 = vadd.f32 %v470, %v501
      %v510 = vadd.f32 %v471, %v501
      %v511 = vadd.f32 %v472, %v501
      %v512 = vadd.f32 %v473, %v501
      %v513 = vadd.f32 %v474, %v501
      %v514 = vadd.f32 %v475, %v501
      %v515 = vadd.f32 %v476, %v501
      %v516 = vadd.f32 %v477, %v501
      %v517 = vadd.f32 %v478, %v501
      %v518 = vadd.f32 %v479, %v501
      %v519 = vadd.f32 %v480, %v501
      %v520 = vadd.f32 %v481, %v501
      %v521 = vadd.f32 %v482, %v501
      %v522 = vadd.f32 %v483, %v501
      %v523 = vadd.f32 %v484, %v501
      %v524 = vadd.f32 %v485, %v501
      %v525 = vadd.f32 %v486, %v501
      %v526 = vadd.f32 %v487, %v501
      %v527 = vadd.f32 %v488, %v501
      %v528 = vadd.f32 %v489, %v501
      %v529 = vadd.f32 %v490, %v501
      %v530 = vadd.f32 %v491, %v501
      %v531 = vadd.f32 %v492, %v501
      %v532 = vadd.f32 %v493, %v501
      %v533 = vadd.f32 %v494, %v501
      %v534 = vadd.f32 %v495, %v501
      %vm535 = vcmask 31744
      %v536 = vsel %vm535, %v503, 0.0
      %v537 = vsel %vm535, %v504, 0.0
      %v538 = vsel %vm535, %v505, 0.0
      %v539 = vsel %vm535, %v506, 0.0
      %v540 = vsel %vm535, %v507, 0.0
      %v541 = vsel %vm535, %v508, 0.0
      %v542 = vsel %vm535, %v509, 0.0
      %v543 = vsel %vm535, %v510, 0.0
      %v544 = vsel %vm535, %v511, 0.0
      %v545 = vsel %vm535, %v512, 0.0
      %v546 = vsel %vm535, %v513, 0.0
      %v547 = vsel %vm535, %v514, 0.0
      %v548 = vsel %vm535, %v515, 0.0
      %v549 = vsel %vm535, %v516, 0.0
      %v550 = vsel %vm535, %v517, 0.0
      %v551 = vsel %vm535, %v518, 0.0
      %v552 = vsel %vm535, %v519, 0.0
      %v553 = vsel %vm535, %v520, 0.0
      %v554 = vsel %vm535, %v521, 0.0
      %v555 = vsel %vm535, %v522, 0.0
      %v556 = vsel %vm535, %v523, 0.0
      %v557 = vsel %vm535, %v524, 0.0
      %v558 = vsel %vm535, %v525, 0.0
      %v559 = vsel %vm535, %v526, 0.0
      %v560 = vsel %vm535, %v527, 0.0
      %v561 = vsel %vm535, %v528, 0.0
      %v562 = vsel %vm535, %v529, 0.0
      %v563 = vsel %vm535, %v530, 0.0
      %v564 = vsel %vm535, %v531, 0.0
      %v565 = vsel %vm535, %v532, 0.0
      %v566 = vsel %vm535, %v533, 0.0
      %v567 = vsel %vm535, %v534, 0.0
      %s568 = scalar_lea.vmem [#allocation2], 32
      %569 = vst [vmem:[%s568 + $0x8] sm:$0xff] %v536
      %570 = vst [vmem:[%s568 + $0x10] sm:$0xff] %v537
      %571 = vst [vmem:[%s568 + $0x28] sm:$0xff] %v538
      %572 = vst [vmem:[%s568 + $0x30] sm:$0xff] %v539
      %573 = vst [vmem:[%s568 + $0x48] sm:$0xff] %v540
      %574 = vst [vmem:[%s568 + $0x50] sm:$0xff] %v541
      %575 = vst [vmem:[%s568 + $0x68] sm:$0xff] %v542
      %576 = vst [vmem:[%s568 + $0x70] sm:$0xff] %v543
      %577 = vst [vmem:[%s568 + $0x88] sm:$0xff] %v544
      %578 = vst [vmem:[%s568 + $0x90] sm:$0xff] %v545
      %579 = vst [vmem:[%s568 + $0xa8] sm:$0xff] %v546
      %580 = vst [vmem:[%s568 + $0xb0] sm:$0xff] %v547
      %581 = vst [vmem:[%s568 + $0xc8] sm:$0xff] %v548
      %582 = vst [vmem:[%s568 + $0xd0] sm:$0xff] %v549
      %583 = vst [vmem:[%s568 + $0xe8] sm:$0xff] %v550
      %584 = vst [vmem:[%s568 + $0xf0] sm:$0xff] %v551
      %585 = vst [vmem:[%s568 + $0x108] sm:$0xff] %v552
      %586 = vst [vmem:[%s568 + $0x110] sm:$0xff] %v553
      %587 = vst [vmem:[%s568 + $0x128] sm:$0xff] %v554
      %588 = vst [vmem:[%s568 + $0x130] sm:$0xff] %v555
      %589 = vst [vmem:[%s568 + $0x148] sm:$0xff] %v556
      %590 = vst [vmem:[%s568 + $0x150] sm:$0xff] %v557
      %591 = vst [vmem:[%s568 + $0x168] sm:$0xff] %v558
      %592 = vst [vmem:[%s568 + $0x170] sm:$0xff] %v559
      %593 = vst [vmem:[%s568 + $0x188] sm:$0xff] %v560
      %594 = vst [vmem:[%s568 + $0x190] sm:$0xff] %v561
      %595 = vst [vmem:[%s568 + $0x1a8] sm:$0xff] %v562
      %596 = vst [vmem:[%s568 + $0x1b0] sm:$0xff] %v563
      %597 = vst [vmem:[%s568 + $0x1c8] sm:$0xff] %v564
      %598 = vst [vmem:[%s568 + $0x1d0] sm:$0xff] %v565
      %599 = vst [vmem:[%s568 + $0x1e8] sm:$0xff] %v566
      %600 = vst [vmem:[%s568 + $0x1f0] sm:$0xff] %v567
      %v601 = vld [vmem:[#allocation2 + $0x7] sm:$0xff]
      %v602 = vld [vmem:[#allocation2 + $0xf] sm:$0xff]
      %v603 = vld [vmem:[#allocation2 + $0x27] sm:$0xff]
      %v604 = vld [vmem:[#allocation2 + $0x2f] sm:$0xff]
      %v605 = vld [vmem:[#allocation2 + $0x47] sm:$0xff]
      %v606 = vld [vmem:[#allocation2 + $0x4f] sm:$0xff]
      %v607 = vld [vmem:[#allocation2 + $0x67] sm:$0xff]
      %v608 = vld [vmem:[#allocation2 + $0x6f] sm:$0xff]
      %v609 = vld [vmem:[#allocation2 + $0x87] sm:$0xff]
      %v610 = vld [vmem:[#allocation2 + $0x8f] sm:$0xff]
      %v611 = vld [vmem:[#allocation2 + $0xa7] sm:$0xff]
      %v612 = vld [vmem:[#allocation2 + $0xaf] sm:$0xff]
      %v613 = vld [vmem:[#allocation2 + $0xc7] sm:$0xff]
      %v614 = vld [vmem:[#allocation2 + $0xcf] sm:$0xff]
      %v615 = vld [vmem:[#allocation2 + $0xe7] sm:$0xff]
      %v616 = vld [vmem:[#allocation2 + $0xef] sm:$0xff]
      %v617 = vld [vmem:[#allocation2 + $0x107] sm:$0xff]
      %v618 = vld [vmem:[#allocation2 + $0x10f] sm:$0xff]
      %v619 = vld [vmem:[#allocation2 + $0x127] sm:$0xff]
      %v620 = vld [vmem:[#allocation2 + $0x12f] sm:$0xff]
      %v621 = vld [vmem:[#allocation2 + $0x147] sm:$0xff]
      %v622 = vld [vmem:[#allocation2 + $0x14f] sm:$0xff]
      %v623 = vld [vmem:[#allocation2 + $0x167] sm:$0xff]
      %v624 = vld [vmem:[#allocation2 + $0x16f] sm:$0xff]
      %v625 = vld [vmem:[#allocation2 + $0x187] sm:$0xff]
      %v626 = vld [vmem:[#allocation2 + $0x18f] sm:$0xff]
      %v627 = vld [vmem:[#allocation2 + $0x1a7] sm:$0xff]
      %v628 = vld [vmem:[#allocation2 + $0x1af] sm:$0xff]
      %v629 = vld [vmem:[#allocation2 + $0x1c7] sm:$0xff]
      %v630 = vld [vmem:[#allocation2 + $0x1cf] sm:$0xff]
      %v631 = vld [vmem:[#allocation2 + $0x1e7] sm:$0xff]
      %v632 = vld [vmem:[#allocation2 + $0x1ef] sm:$0xff]
      %v633 = vld [vmem:[%s8] sm:$0xff]
      %v634 = vld [vmem:[%s8 + $0x8] sm:$0xff]
      %v635 = vld [vmem:[%s8 + $0x10] sm:$0xff]
      %v636 = vld [vmem:[%s8 + $0x18] sm:$0xff]
      %v637 = vld [vmem:[%s8 + $0x20] sm:$0xff]
      %v638 = vld [vmem:[%s8 + $0x28] sm:$0xff]
      %v639 = vld [vmem:[%s8 + $0x30] sm:$0xff]
      %v640 = vld [vmem:[%s8 + $0x38] sm:$0xff]
      %v641 = vld [vmem:[%s8 + $0x40] sm:$0xff]
      %v642 = vld [vmem:[%s8 + $0x48] sm:$0xff]
      %v643 = vld [vmem:[%s8 + $0x50] sm:$0xff]
      %v644 = vld [vmem:[%s8 + $0x58] sm:$0xff]
      %v645 = vld [vmem:[%s8 + $0x60] sm:$0xff]
      %v646 = vld [vmem:[%s8 + $0x68] sm:$0xff]
      %v647 = vld [vmem:[%s8 + $0x70] sm:$0xff]
      %v648 = vld [vmem:[%s8 + $0x78] sm:$0xff]
      %v649 = vld [vmem:[#allocation2 + $0x8] sm:$0xff]
      %v650 = vld [vmem:[#allocation2 + $0x10] sm:$0xff]
      %v651 = vld [vmem:[#allocation2 + $0x28] sm:$0xff]
      %v652 = vld [vmem:[#allocation2 + $0x30] sm:$0xff]
      %v653 = vld [vmem:[#allocation2 + $0x48] sm:$0xff]
      %v654 = vld [vmem:[#allocation2 + $0x50] sm:$0xff]
      %v655 = vld [vmem:[#allocation2 + $0x68] sm:$0xff]
      %v656 = vld [vmem:[#allocation2 + $0x70] sm:$0xff]
      %v657 = vld [vmem:[#allocation2 + $0x88] sm:$0xff]
      %v658 = vld [vmem:[#allocation2 + $0x90] sm:$0xff]
      %v659 = vld [vmem:[#allocation2 + $0xa8] sm:$0xff]
      %v660 = vld [vmem:[#allocation2 + $0xb0] sm:$0xff]
      %v661 = vld [vmem:[#allocation2 + $0xc8] sm:$0xff]
      %v662 = vld [vmem:[#allocation2 + $0xd0] sm:$0xff]
      %v663 = vld [vmem:[#allocation2 + $0xe8] sm:$0xff]
      %v664 = vld [vmem:[#allocation2 + $0xf0] sm:$0xff]
      %v665 = vld [vmem:[#allocation2 + $0x108] sm:$0xff]
      %v666 = vld [vmem:[#allocation2 + $0x110] sm:$0xff]
      %v667 = vld [vmem:[#allocation2 + $0x128] sm:$0xff]
      %v668 = vld [vmem:[#allocation2 + $0x130] sm:$0xff]
      %v669 = vld [vmem:[#allocation2 + $0x148] sm:$0xff]
      %v670 = vld [vmem:[#allocation2 + $0x150] sm:$0xff]
      %v671 = vld [vmem:[#allocation2 + $0x168] sm:$0xff]
      %v672 = vld [vmem:[#allocation2 + $0x170] sm:$0xff]
      %v673 = vld [vmem:[#allocation2 + $0x188] sm:$0xff]
      %v674 = vld [vmem:[#allocation2 + $0x190] sm:$0xff]
      %v675 = vld [vmem:[#allocation2 + $0x1a8] sm:$0xff]
      %v676 = vld [vmem:[#allocation2 + $0x1b0] sm:$0xff]
      %v677 = vld [vmem:[#allocation2 + $0x1c8] sm:$0xff]
      %v678 = vld [vmem:[#allocation2 + $0x1d0] sm:$0xff]
      %v679 = vld [vmem:[#allocation2 + $0x1e8] sm:$0xff]
      %v680 = vld [vmem:[#allocation2 + $0x1f0] sm:$0xff]
      %v681 = vld [vmem:[%s8 + $0x80] sm:$0xff]
      %v682 = vld [vmem:[%s8 + $0x88] sm:$0xff]
      %v683 = vld [vmem:[%s8 + $0x90] sm:$0xff]
      %v684 = vld [vmem:[%s8 + $0x98] sm:$0xff]
      %v685 = vld [vmem:[%s8 + $0xa0] sm:$0xff]
      %v686 = vld [vmem:[%s8 + $0xa8] sm:$0xff]
      %v687 = vld [vmem:[%s8 + $0xb0] sm:$0xff]
      %v688 = vld [vmem:[%s8 + $0xb8] sm:$0xff]
      %v689 = vld [vmem:[%s8 + $0xc0] sm:$0xff]
      %v690 = vld [vmem:[%s8 + $0xc8] sm:$0xff]
      %v691 = vld [vmem:[%s8 + $0xd0] sm:$0xff]
      %v692 = vld [vmem:[%s8 + $0xd8] sm:$0xff]
      %v693 = vld [vmem:[%s8 + $0xe0] sm:$0xff]
      %v694 = vld [vmem:[%s8 + $0xe8] sm:$0xff]
      %v695 = vld [vmem:[%s8 + $0xf0] sm:$0xff]
      %v696 = vld [vmem:[%s8 + $0xf8] sm:$0xff]
      %697 = vmatprep.subr.mxu0 0.0
      %698 = vmatpush1.msra.mxu0 %v681
      %699 = vmatprep.subr.mxu0 0.0
      %700 = vmatpush1.msra.mxu0 %v682
      %701 = vmatprep.subr.mxu0 0.0
      %702 = vmatpush1.msra.mxu0 %v683
      %703 = vmatprep.subr.mxu0 0.0
      %704 = vmatpush1.msra.mxu0 %v684
      %705 = vmatprep.subr.mxu0 0.0
      %706 = vmatpush1.msra.mxu0 %v685
      %707 = vmatprep.subr.mxu0 0.0
      %708 = vmatpush1.msra.mxu0 %v686
      %709 = vmatprep.subr.mxu0 0.0
      %710 = vmatpush1.msra.mxu0 %v687
      %711 = vmatprep.subr.mxu0 0.0
      %712 = vmatpush1.msra.mxu0 %v688
      %713 = vmatprep.subr.mxu0 0.0
      %714 = vmatpush1.msra.mxu0 %v689
      %715 = vmatprep.subr.mxu0 0.0
      %716 = vmatpush1.msra.mxu0 %v690
      %717 = vmatprep.subr.mxu0 0.0
      %718 = vmatpush1.msra.mxu0 %v691
      %719 = vmatprep.subr.mxu0 0.0
      %720 = vmatpush1.msra.mxu0 %v692
      %721 = vmatprep.subr.mxu0 0.0
      %722 = vmatpush1.msra.mxu0 %v693
      %723 = vmatprep.subr.mxu0 0.0
      %724 = vmatpush1.msra.mxu0 %v694
      %725 = vmatprep.subr.mxu0 0.0
      %726 = vmatpush1.msra.mxu0 %v695
      %727 = vmatprep.subr.mxu0 0.0
      %728 = vmatpush1.msra.mxu0 %v696
      %729 = vmatprep.subr.mxu0 0.0
      %730 = vmatpush1.msra.mxu0 0.0
      %731 = vmatprep.subr.mxu0 0.0
      %732 = vmatpush1.msra.mxu0 0.0
      %733 = vmatprep.subr.mxu0 0.0
      %734 = vmatpush1.msra.mxu0 0.0
      %735 = vmatprep.subr.mxu0 0.0
      %736 = vmatpush1.msra.mxu0 0.0
      %737 = vmatprep.subr.mxu0 0.0
      %738 = vmatpush1.msra.mxu0 0.0
      %739 = vmatprep.subr.mxu0 0.0
      %740 = vmatpush1.msra.mxu0 0.0
      %741 = vmatprep.subr.mxu0 0.0
      %742 = vmatpush1.msra.mxu0 0.0
      %743 = vmatprep.subr.mxu0 0.0
      %744 = vmatpush1.msra.mxu0 0.0
      %745 = vmatprep.subr.mxu0 0.0
      %746 = vmatpush1.msra.mxu0 0.0
      %747 = vmatprep.subr.mxu0 0.0
      %748 = vmatpush1.msra.mxu0 0.0
      %749 = vmatprep.subr.mxu0 0.0
      %750 = vmatpush1.msra.mxu0 0.0
      %751 = vmatprep.subr.mxu0 0.0
      %752 = vmatpush1.msra.mxu0 0.0
      %753 = vmatprep.subr.mxu0 0.0
      %754 = vmatpush1.msra.mxu0 0.0
      %755 = vmatprep.subr.mxu0 0.0
      %756 = vmatpush1.msra.mxu0 0.0
      %757 = vmatprep.subr.mxu0 0.0
      %758 = vmatpush1.msra.mxu0 0.0
      %759 = vmatprep.subr.mxu0 0.0
      %760 = vmatpush1.msra.mxu0 0.0
      %761 = vmatprep.mubr.f32.mxu0 0.0
      %762 = vmatmul.mubr.f32.gmra.mrb[0].mxu0 %v649
      %v763 = vpop.f32.mrb[0].mxu0
      %v764 = vadd.f32 0.0, %v763
      %v765 = vpop.f32.mrb[0].mxu0
      %766 = vmatprep.mubr.f32.mxu0 0.0
      %767 = vmatmul.mubr.f32.gmra.mrb[0].mxu0 %v650
      %v768 = vpop.f32.mrb[0].mxu0
      %v769 = vadd.f32 0.0, %v768
      %v770 = vpop.f32.mrb[0].mxu0
      %771 = vmatprep.mubr.f32.mxu0 0.0
      %772 = vmatmul.mubr.f32.gmra.mrb[0].mxu0 %v651
      %v773 = vpop.f32.mrb[0].mxu0
      %v774 = vadd.f32 0.0, %v773
      %v775 = vpop.f32.mrb[0].mxu0
      %776 = vmatprep.mubr.f32.mxu0 0.0
      %777 = vmatmul.mubr.f32.gmra.mrb[0].mxu0 %v652
      %v778 = vpop.f32.mrb[0].mxu0
      %v779 = vadd.f32 0.0, %v778
      %v780 = vpop.f32.mrb[0].mxu0
      %781 = vmatprep.mubr.f32.mxu0 0.0
      %782 = vmatmul.mubr.f32.gmra.mrb[0].mxu0 %v653
      %v783 = vpop.f32.mrb[0].mxu0
      %v784 = vadd.f32 0.0, %v783
      %v785 = vpop.f32.mrb[0].mxu0
      %786 = vmatprep.mubr.f32.mxu0 0.0
      %787 = vmatmul.mubr.f32.gmra.mrb[0].mxu0 %v654
      %v788 = vpop.f32.mrb[0].mxu0
      %v789 = vadd.f32 0.0, %v788
      %v790 = vpop.f32.mrb[0].mxu0
      %791 = vmatprep.mubr.f32.mxu0 0.0
      %792 = vmatmul.mubr.f32.gmra.mrb[0].mxu0 %v655
      %v793 = vpop.f32.mrb[0].mxu0
      %v794 = vadd.f32 0.0, %v793
      %v795 = vpop.f32.mrb[0].mxu0
      %796 = vmatprep.mubr.f32.mxu0 0.0
      %797 = vmatmul.mubr.f32.gmra.mrb[0].mxu0 %v656
      %v798 = vpop.f32.mrb[0].mxu0
      %v799 = vadd.f32 0.0, %v798
      %v800 = vpop.f32.mrb[0].mxu0
      %801 = vmatprep.mubr.f32.mxu0 0.0
      %802 = vmatmul.mubr.f32.gmra.mrb[0].mxu0 %v657
      %v803 = vpop.f32.mrb[0].mxu0
      %v804 = vadd.f32 0.0, %v803
      %v805 = vpop.f32.mrb[0].mxu0
      %806 = vmatprep.mubr.f32.mxu0 0.0
      %807 = vmatmul.mubr.f32.gmra.mrb[0].mxu0 %v658
      %v808 = vpop.f32.mrb[0].mxu0
      %v809 = vadd.f32 0.0, %v808
      %v810 = vpop.f32.mrb[0].mxu0
      %811 = vmatprep.mubr.f32.mxu0 0.0
      %812 = vmatmul.mubr.f32.gmra.mrb[0].mxu0 %v659
      %v813 = vpop.f32.mrb[0].mxu0
      %v814 = vadd.f32 0.0, %v813
      %v815 = vpop.f32.mrb[0].mxu0
      %816 = vmatprep.mubr.f32.mxu0 0.0
      %817 = vmatmul.mubr.f32.gmra.mrb[0].mxu0 %v660
      %v818 = vpop.f32.mrb[0].mxu0
      %v819 = vadd.f32 0.0, %v818
      %v820 = vpop.f32.mrb[0].mxu0
      %821 = vmatprep.mubr.f32.mxu0 0.0
      %822 = vmatmul.mubr.f32.gmra.mrb[0].mxu0 %v661
      %v823 = vpop.f32.mrb[0].mxu0
      %v824 = vadd.f32 0.0, %v823
      %v825 = vpop.f32.mrb[0].mxu0
      %826 = vmatprep.mubr.f32.mxu0 0.0
      %827 = vmatmul.mubr.f32.gmra.mrb[0].mxu0 %v662
      %v828 = vpop.f32.mrb[0].mxu0
      %v829 = vadd.f32 0.0, %v828
      %v830 = vpop.f32.mrb[0].mxu0
      %831 = vmatprep.mubr.f32.mxu0 0.0
      %832 = vmatmul.mubr.f32.gmra.mrb[0].mxu0 %v663
      %v833 = vpop.f32.mrb[0].mxu0
      %v834 = vadd.f32 0.0, %v833
      %v835 = vpop.f32.mrb[0].mxu0
      %836 = vmatprep.mubr.f32.mxu0 0.0
      %837 = vmatmul.mubr.f32.gmra.mrb[0].mxu0 %v664
      %v838 = vpop.f32.mrb[0].mxu0
      %v839 = vadd.f32 0.0, %v838
      %v840 = vpop.f32.mrb[0].mxu0
      %841 = vmatprep.mubr.f32.mxu0 0.0
      %842 = vmatmul.mubr.f32.gmra.mrb[0].mxu0 %v665
      %v843 = vpop.f32.mrb[0].mxu0
      %v844 = vadd.f32 0.0, %v843
      %v845 = vpop.f32.mrb[0].mxu0
      %846 = vmatprep.mubr.f32.mxu0 0.0
      %847 = vmatmul.mubr.f32.gmra.mrb[0].mxu0 %v666
      %v848 = vpop.f32.mrb[0].mxu0
      %v849 = vadd.f32 0.0, %v848
      %v850 = vpop.f32.mrb[0].mxu0
      %851 = vmatprep.mubr.f32.mxu0 0.0
      %852 = vmatmul.mubr.f32.gmra.mrb[0].mxu0 %v667
      %v853 = vpop.f32.mrb[0].mxu0
      %v854 = vadd.f32 0.0, %v853
      %v855 = vpop.f32.mrb[0].mxu0
      %856 = vmatprep.mubr.f32.mxu0 0.0
      %857 = vmatmul.mubr.f32.gmra.mrb[0].mxu0 %v668
      %v858 = vpop.f32.mrb[0].mxu0
      %v859 = vadd.f32 0.0, %v858
      %v860 = vpop.f32.mrb[0].mxu0
      %861 = vmatprep.mubr.f32.mxu0 0.0
      %862 = vmatmul.mubr.f32.gmra.mrb[0].mxu0 %v669
      %v863 = vpop.f32.mrb[0].mxu0
      %v864 = vadd.f32 0.0, %v863
      %v865 = vpop.f32.mrb[0].mxu0
      %866 = vmatprep.mubr.f32.mxu0 0.0
      %867 = vmatmul.mubr.f32.gmra.mrb[0].mxu0 %v670
      %v868 = vpop.f32.mrb[0].mxu0
      %v869 = vadd.f32 0.0, %v868
      %v870 = vpop.f32.mrb[0].mxu0
      %871 = vmatprep.mubr.f32.mxu0 0.0
      %872 = vmatmul.mubr.f32.gmra.mrb[0].mxu0 %v671
      %v873 = vpop.f32.mrb[0].mxu0
      %v874 = vadd.f32 0.0, %v873
      %v875 = vpop.f32.mrb[0].mxu0
      %876 = vmatprep.mubr.f32.mxu0 0.0
      %877 = vmatmul.mubr.f32.gmra.mrb[0].mxu0 %v672
      %v878 = vpop.f32.mrb[0].mxu0
      %v879 = vadd.f32 0.0, %v878
      %v880 = vpop.f32.mrb[0].mxu0
      %881 = vmatprep.mubr.f32.mxu0 0.0
      %882 = vmatmul.mubr.f32.gmra.mrb[0].mxu0 %v673
      %v883 = vpop.f32.mrb[0].mxu0
      %v884 = vadd.f32 0.0, %v883
      %v885 = vpop.f32.mrb[0].mxu0
      %886 = vmatprep.mubr.f32.mxu0 0.0
      %887 = vmatmul.mubr.f32.gmra.mrb[0].mxu0 %v674
      %v888 = vpop.f32.mrb[0].mxu0
      %v889 = vadd.f32 0.0, %v888
      %v890 = vpop.f32.mrb[0].mxu0
      %891 = vmatprep.mubr.f32.mxu0 0.0
      %892 = vmatmul.mubr.f32.gmra.mrb[0].mxu0 %v675
      %v893 = vpop.f32.mrb[0].mxu0
      %v894 = vadd.f32 0.0, %v893
      %v895 = vpop.f32.mrb[0].mxu0
      %896 = vmatprep.mubr.f32.mxu0 0.0
      %897 = vmatmul.mubr.f32.gmra.mrb[0].mxu0 %v676
      %v898 = vpop.f32.mrb[0].mxu0
      %v899 = vadd.f32 0.0, %v898
      %v900 = vpop.f32.mrb[0].mxu0
      %901 = vmatprep.mubr.f32.mxu0 0.0
      %902 = vmatmul.mubr.f32.gmra.mrb[0].mxu0 %v677
      %v903 = vpop.f32.mrb[0].mxu0
      %v904 = vadd.f32 0.0, %v903
      %v905 = vpop.f32.mrb[0].mxu0
      %906 = vmatprep.mubr.f32.mxu0 0.0
      %907 = vmatmul.mubr.f32.gmra.mrb[0].mxu0 %v678
      %v908 = vpop.f32.mrb[0].mxu0
      %v909 = vadd.f32 0.0, %v908
      %v910 = vpop.f32.mrb[0].mxu0
      %911 = vmatprep.mubr.f32.mxu0 0.0
      %912 = vmatmul.mubr.f32.gmra.mrb[0].mxu0 %v679
      %v913 = vpop.f32.mrb[0].mxu0
      %v914 = vadd.f32 0.0, %v913
      %v915 = vpop.f32.mrb[0].mxu0
      %916 = vmatprep.mubr.f32.mxu0 0.0
      %917 = vmatmul.mubr.f32.gmra.mrb[0].mxu0 %v680
      %v918 = vpop.f32.mrb[0].mxu0
      %v919 = vadd.f32 0.0, %v918
      %v920 = vpop.f32.mrb[0].mxu0
      %921 = vdwg.mxu0
      %922 = vmatprep.subr.mxu0 0.0
      %923 = vmatpush1.msra.mxu0 %v633
      %924 = vmatprep.subr.mxu0 0.0
      %925 = vmatpush1.msra.mxu0 %v634
      %926 = vmatprep.subr.mxu0 0.0
      %927 = vmatpush1.msra.mxu0 %v635
      %928 = vmatprep.subr.mxu0 0.0
      %929 = vmatpush1.msra.mxu0 %v636
      %930 = vmatprep.subr.mxu0 0.0
      %931 = vmatpush1.msra.mxu0 %v637
      %932 = vmatprep.subr.mxu0 0.0
      %933 = vmatpush1.msra.mxu0 %v638
      %934 = vmatprep.subr.mxu0 0.0
      %935 = vmatpush1.msra.mxu0 %v639
      %936 = vmatprep.subr.mxu0 0.0
      %937 = vmatpush1.msra.mxu0 %v640
      %938 = vmatprep.subr.mxu0 0.0
      %939 = vmatpush1.msra.mxu0 %v641
      %940 = vmatprep.subr.mxu0 0.0
      %941 = vmatpush1.msra.mxu0 %v642
      %942 = vmatprep.subr.mxu0 0.0
      %943 = vmatpush1.msra.mxu0 %v643
      %944 = vmatprep.subr.mxu0 0.0
      %945 = vmatpush1.msra.mxu0 %v644
      %946 = vmatprep.subr.mxu0 0.0
      %947 = vmatpush1.msra.mxu0 %v645
      %948 = vmatprep.subr.mxu0 0.0
      %949 = vmatpush1.msra.mxu0 %v646
      %950 = vmatprep.subr.mxu0 0.0
      %951 = vmatpush1.msra.mxu0 %v647
      %952 = vmatprep.subr.mxu0 0.0
      %953 = vmatpush1.msra.mxu0 %v648
      %954 = vmatprep.subr.mxu0 0.0
      %955 = vmatpush1.msra.mxu0 0.0
      %956 = vmatprep.subr.mxu0 0.0
      %957 = vmatpush1.msra.mxu0 0.0
      %958 = vmatprep.subr.mxu0 0.0
      %959 = vmatpush1.msra.mxu0 0.0
      %960 = vmatprep.subr.mxu0 0.0
      %961 = vmatpush1.msra.mxu0 0.0
      %962 = vmatprep.subr.mxu0 0.0
      %963 = vmatpush1.msra.mxu0 0.0
      %964 = vmatprep.subr.mxu0 0.0
      %965 = vmatpush1.msra.mxu0 0.0
      %966 = vmatprep.subr.mxu0 0.0
      %967 = vmatpush1.msra.mxu0 0.0
      %968 = vmatprep.subr.mxu0 0.0
      %969 = vmatpush1.msra.mxu0 0.0
      %970 = vmatprep.subr.mxu0 0.0
      %971 = vmatpush1.msra.mxu0 0.0
      %972 = vmatprep.subr.mxu0 0.0
      %973 = vmatpush1.msra.mxu0 0.0
      %974 = vmatprep.subr.mxu0 0.0
      %975 = vmatpush1.msra.mxu0 0.0
      %976 = vmatprep.subr.mxu0 0.0
      %977 = vmatpush1.msra.mxu0 0.0
      %978 = vmatprep.subr.mxu0 0.0
      %979 = vmatpush1.msra.mxu0 0.0
      %980 = vmatprep.subr.mxu0 0.0
      %981 = vmatpush1.msra.mxu0 0.0
      %982 = vmatprep.subr.mxu0 0.0
      %983 = vmatpush1.msra.mxu0 0.0
      %984 = vmatprep.subr.mxu0 0.0
      %985 = vmatpush1.msra.mxu0 0.0
      %986 = vmatprep.mubr.f32.mxu0 0.0
      %987 = vmatmul.mubr.f32.gmra.mrb[0].mxu0 %v601
      %v988 = vpop.f32.mrb[0].mxu0
      %v989 = vadd.f32 %v764, %v988
      %v990 = vpop.f32.mrb[0].mxu0
      %991 = vmatprep.mubr.f32.mxu0 0.0
      %992 = vmatmul.mubr.f32.gmra.mrb[0].mxu0 %v602
      %v993 = vpop.f32.mrb[0].mxu0
      %v994 = vadd.f32 %v769, %v993
      %v995 = vpop.f32.mrb[0].mxu0
      %996 = vmatprep.mubr.f32.mxu0 0.0
      %997 = vmatmul.mubr.f32.gmra.mrb[0].mxu0 %v603
      %v998 = vpop.f32.mrb[0].mxu0
      %v999 = vadd.f32 %v774, %v998
      %v1000 = vpop.f32.mrb[0].mxu0
      %1001 = vmatprep.mubr.f32.mxu0 0.0
      %1002 = vmatmul.mubr.f32.gmra.mrb[0].mxu0 %v604
      %v1003 = vpop.f32.mrb[0].mxu0
      %v1004 = vadd.f32 %v779, %v1003
      %v1005 = vpop.f32.mrb[0].mxu0
      %1006 = vmatprep.mubr.f32.mxu0 0.0
      %1007 = vmatmul.mubr.f32.gmra.mrb[0].mxu0 %v605
      %v1008 = vpop.f32.mrb[0].mxu0
      %v1009 = vadd.f32 %v784, %v1008
      %v1010 = vpop.f32.mrb[0].mxu0
      %1011 = vmatprep.mubr.f32.mxu0 0.0
      %1012 = vmatmul.mubr.f32.gmra.mrb[0].mxu0 %v606
      %v1013 = vpop.f32.mrb[0].mxu0
      %v1014 = vadd.f32 %v789, %v1013
      %v1015 = vpop.f32.mrb[0].mxu0
      %1016 = vmatprep.mubr.f32.mxu0 0.0
      %1017 = vmatmul.mubr.f32.gmra.mrb[0].mxu0 %v607
      %v1018 = vpop.f32.mrb[0].mxu0
      %v1019 = vadd.f32 %v794, %v1018
      %v1020 = vpop.f32.mrb[0].mxu0
      %1021 = vmatprep.mubr.f32.mxu0 0.0
      %1022 = vmatmul.mubr.f32.gmra.mrb[0].mxu0 %v608
      %v1023 = vpop.f32.mrb[0].mxu0
      %v1024 = vadd.f32 %v799, %v1023
      %v1025 = vpop.f32.mrb[0].mxu0
      %1026 = vmatprep.mubr.f32.mxu0 0.0
      %1027 = vmatmul.mubr.f32.gmra.mrb[0].mxu0 %v609
      %v1028 = vpop.f32.mrb[0].mxu0
      %v1029 = vadd.f32 %v804, %v1028
      %v1030 = vpop.f32.mrb[0].mxu0
      %1031 = vmatprep.mubr.f32.mxu0 0.0
      %1032 = vmatmul.mubr.f32.gmra.mrb[0].mxu0 %v610
      %v1033 = vpop.f32.mrb[0].mxu0
      %v1034 = vadd.f32 %v809, %v1033
      %v1035 = vpop.f32.mrb[0].mxu0
      %1036 = vmatprep.mubr.f32.mxu0 0.0
      %1037 = vmatmul.mubr.f32.gmra.mrb[0].mxu0 %v611
      %v1038 = vpop.f32.mrb[0].mxu0
      %v1039 = vadd.f32 %v814, %v1038
      %v1040 = vpop.f32.mrb[0].mxu0
      %1041 = vmatprep.mubr.f32.mxu0 0.0
      %1042 = vmatmul.mubr.f32.gmra.mrb[0].mxu0 %v612
      %v1043 = vpop.f32.mrb[0].mxu0
      %v1044 = vadd.f32 %v819, %v1043
      %v1045 = vpop.f32.mrb[0].mxu0
      %1046 = vmatprep.mubr.f32.mxu0 0.0
      %1047 = vmatmul.mubr.f32.gmra.mrb[0].mxu0 %v613
      %v1048 = vpop.f32.mrb[0].mxu0
      %v1049 = vadd.f32 %v824, %v1048
      %v1050 = vpop.f32.mrb[0].mxu0
      %1051 = vmatprep.mubr.f32.mxu0 0.0
      %1052 = vmatmul.mubr.f32.gmra.mrb[0].mxu0 %v614
      %v1053 = vpop.f32.mrb[0].mxu0
      %v1054 = vadd.f32 %v829, %v1053
      %v1055 = vpop.f32.mrb[0].mxu0
      %1056 = vmatprep.mubr.f32.mxu0 0.0
      %1057 = vmatmul.mubr.f32.gmra.mrb[0].mxu0 %v615
      %v1058 = vpop.f32.mrb[0].mxu0
      %v1059 = vadd.f32 %v834, %v1058
      %v1060 = vpop.f32.mrb[0].mxu0
      %1061 = vmatprep.mubr.f32.mxu0 0.0
      %1062 = vmatmul.mubr.f32.gmra.mrb[0].mxu0 %v616
      %v1063 = vpop.f32.mrb[0].mxu0
      %v1064 = vadd.f32 %v839, %v1063
      %v1065 = vpop.f32.mrb[0].mxu0
      %1066 = vmatprep.mubr.f32.mxu0 0.0
      %1067 = vmatmul.mubr.f32.gmra.mrb[0].mxu0 %v617
      %v1068 = vpop.f32.mrb[0].mxu0
      %v1069 = vadd.f32 %v844, %v1068
      %v1070 = vpop.f32.mrb[0].mxu0
      %1071 = vmatprep.mubr.f32.mxu0 0.0
      %1072 = vmatmul.mubr.f32.gmra.mrb[0].mxu0 %v618
      %v1073 = vpop.f32.mrb[0].mxu0
      %v1074 = vadd.f32 %v849, %v1073
      %v1075 = vpop.f32.mrb[0].mxu0
      %1076 = vmatprep.mubr.f32.mxu0 0.0
      %1077 = vmatmul.mubr.f32.gmra.mrb[0].mxu0 %v619
      %v1078 = vpop.f32.mrb[0].mxu0
      %v1079 = vadd.f32 %v854, %v1078
      %v1080 = vpop.f32.mrb[0].mxu0
      %1081 = vmatprep.mubr.f32.mxu0 0.0
      %1082 = vmatmul.mubr.f32.gmra.mrb[0].mxu0 %v620
      %v1083 = vpop.f32.mrb[0].mxu0
      %v1084 = vadd.f32 %v859, %v1083
      %v1085 = vpop.f32.mrb[0].mxu0
      %1086 = vmatprep.mubr.f32.mxu0 0.0
      %1087 = vmatmul.mubr.f32.gmra.mrb[0].mxu0 %v621
      %v1088 = vpop.f32.mrb[0].mxu0
      %v1089 = vadd.f32 %v864, %v1088
      %v1090 = vpop.f32.mrb[0].mxu0
      %1091 = vmatprep.mubr.f32.mxu0 0.0
      %1092 = vmatmul.mubr.f32.gmra.mrb[0].mxu0 %v622
      %v1093 = vpop.f32.mrb[0].mxu0
      %v1094 = vadd.f32 %v869, %v1093
      %v1095 = vpop.f32.mrb[0].mxu0
      %1096 = vmatprep.mubr.f32.mxu0 0.0
      %1097 = vmatmul.mubr.f32.gmra.mrb[0].mxu0 %v623
      %v1098 = vpop.f32.mrb[0].mxu0
      %v1099 = vadd.f32 %v874, %v1098
      %v1100 = vpop.f32.mrb[0].mxu0
      %1101 = vmatprep.mubr.f32.mxu0 0.0
      %1102 = vmatmul.mubr.f32.gmra.mrb[0].mxu0 %v624
      %v1103 = vpop.f32.mrb[0].mxu0
      %v1104 = vadd.f32 %v879, %v1103
      %v1105 = vpop.f32.mrb[0].mxu0
      %1106 = vmatprep.mubr.f32.mxu0 0.0
      %1107 = vmatmul.mubr.f32.gmra.mrb[0].mxu0 %v625
      %v1108 = vpop.f32.mrb[0].mxu0
      %v1109 = vadd.f32 %v884, %v1108
      %v1110 = vpop.f32.mrb[0].mxu0
      %1111 = vmatprep.mubr.f32.mxu0 0.0
      %1112 = vmatmul.mubr.f32.gmra.mrb[0].mxu0 %v626
      %v1113 = vpop.f32.mrb[0].mxu0
      %v1114 = vadd.f32 %v889, %v1113
      %v1115 = vpop.f32.mrb[0].mxu0
      %1116 = vmatprep.mubr.f32.mxu0 0.0
      %1117 = vmatmul.mubr.f32.gmra.mrb[0].mxu0 %v627
      %v1118 = vpop.f32.mrb[0].mxu0
      %v1119 = vadd.f32 %v894, %v1118
      %v1120 = vpop.f32.mrb[0].mxu0
      %1121 = vmatprep.mubr.f32.mxu0 0.0
      %1122 = vmatmul.mubr.f32.gmra.mrb[0].mxu0 %v628
      %v1123 = vpop.f32.mrb[0].mxu0
      %v1124 = vadd.f32 %v899, %v1123
      %v1125 = vpop.f32.mrb[0].mxu0
      %1126 = vmatprep.mubr.f32.mxu0 0.0
      %1127 = vmatmul.mubr.f32.gmra.mrb[0].mxu0 %v629
      %v1128 = vpop.f32.mrb[0].mxu0
      %v1129 = vadd.f32 %v904, %v1128
      %v1130 = vpop.f32.mrb[0].mxu0
      %1131 = vmatprep.mubr.f32.mxu0 0.0
      %1132 = vmatmul.mubr.f32.gmra.mrb[0].mxu0 %v630
      %v1133 = vpop.f32.mrb[0].mxu0
      %v1134 = vadd.f32 %v909, %v1133
      %v1135 = vpop.f32.mrb[0].mxu0
      %1136 = vmatprep.mubr.f32.mxu0 0.0
      %1137 = vmatmul.mubr.f32.gmra.mrb[0].mxu0 %v631
      %v1138 = vpop.f32.mrb[0].mxu0
      %v1139 = vadd.f32 %v914, %v1138
      %v1140 = vpop.f32.mrb[0].mxu0
      %1141 = vmatprep.mubr.f32.mxu0 0.0
      %1142 = vmatmul.mubr.f32.gmra.mrb[0].mxu0 %v632
      %v1143 = vpop.f32.mrb[0].mxu0
      %v1144 = vadd.f32 %v919, %v1143
      %v1145 = vpop.f32.mrb[0].mxu0
      %1146 = vdwg.mxu0
      %v1147 = vld [vmem:[#allocation2 + $0x9] sm:$0xff]
      %v1148 = vld [vmem:[#allocation2 + $0x11] sm:$0xff]
      %v1149 = vld [vmem:[#allocation2 + $0x29] sm:$0xff]
      %v1150 = vld [vmem:[#allocation2 + $0x31] sm:$0xff]
      %v1151 = vld [vmem:[#allocation2 + $0x49] sm:$0xff]
      %v1152 = vld [vmem:[#allocation2 + $0x51] sm:$0xff]
      %v1153 = vld [vmem:[#allocation2 + $0x69] sm:$0xff]
      %v1154 = vld [vmem:[#allocation2 + $0x71] sm:$0xff]
      %v1155 = vld [vmem:[#allocation2 + $0x89] sm:$0xff]
      %v1156 = vld [vmem:[#allocation2 + $0x91] sm:$0xff]
      %v1157 = vld [vmem:[#allocation2 + $0xa9] sm:$0xff]
      %v1158 = vld [vmem:[#allocation2 + $0xb1] sm:$0xff]
      %v1159 = vld [vmem:[#allocation2 + $0xc9] sm:$0xff]
      %v1160 = vld [vmem:[#allocation2 + $0xd1] sm:$0xff]
      %v1161 = vld [vmem:[#allocation2 + $0xe9] sm:$0xff]
      %v1162 = vld [vmem:[#allocation2 + $0xf1] sm:$0xff]
      %v1163 = vld [vmem:[#allocation2 + $0x109] sm:$0xff]
      %v1164 = vld [vmem:[#allocation2 + $0x111] sm:$0xff]
      %v1165 = vld [vmem:[#allocation2 + $0x129] sm:$0xff]
      %v1166 = vld [vmem:[#allocation2 + $0x131] sm:$0xff]
      %v1167 = vld [vmem:[#allocation2 + $0x149] sm:$0xff]
      %v1168 = vld [vmem:[#allocation2 + $0x151] sm:$0xff]
      %v1169 = vld [vmem:[#allocation2 + $0x169] sm:$0xff]
      %v1170 = vld [vmem:[#allocation2 + $0x171] sm:$0xff]
      %v1171 = vld [vmem:[#allocation2 + $0x189] sm:$0xff]
      %v1172 = vld [vmem:[#allocation2 + $0x191] sm:$0xff]
      %v1173 = vld [vmem:[#allocation2 + $0x1a9] sm:$0xff]
      %v1174 = vld [vmem:[#allocation2 + $0x1b1] sm:$0xff]
      %v1175 = vld [vmem:[#allocation2 + $0x1c9] sm:$0xff]
      %v1176 = vld [vmem:[#allocation2 + $0x1d1] sm:$0xff]
      %v1177 = vld [vmem:[#allocation2 + $0x1e9] sm:$0xff]
      %v1178 = vld [vmem:[#allocation2 + $0x1f1] sm:$0xff]
      %v1179 = vld [vmem:[%s8 + $0x100] sm:$0xff]
      %v1180 = vld [vmem:[%s8 + $0x108] sm:$0xff]
      %v1181 = vld [vmem:[%s8 + $0x110] sm:$0xff]
      %v1182 = vld [vmem:[%s8 + $0x118] sm:$0xff]
      %v1183 = vld [vmem:[%s8 + $0x120] sm:$0xff]
      %v1184 = vld [vmem:[%s8 + $0x128] sm:$0xff]
      %v1185 = vld [vmem:[%s8 + $0x130] sm:$0xff]
      %v1186 = vld [vmem:[%s8 + $0x138] sm:$0xff]
      %v1187 = vld [vmem:[%s8 + $0x140] sm:$0xff]
      %v1188 = vld [vmem:[%s8 + $0x148] sm:$0xff]
      %v1189 = vld [vmem:[%s8 + $0x150] sm:$0xff]
      %v1190 = vld [vmem:[%s8 + $0x158] sm:$0xff]
      %v1191 = vld [vmem:[%s8 + $0x160] sm:$0xff]
      %v1192 = vld [vmem:[%s8 + $0x168] sm:$0xff]
      %v1193 = vld [vmem:[%s8 + $0x170] sm:$0xff]
      %v1194 = vld [vmem:[%s8 + $0x178] sm:$0xff]
      %1195 = vmatprep.subr.mxu0 0.0
      %1196 = vmatpush1.msra.mxu0 %v1179
      %1197 = vmatprep.subr.mxu0 0.0
      %1198 = vmatpush1.msra.mxu0 %v1180
      %1199 = vmatprep.subr.mxu0 0.0
      %1200 = vmatpush1.msra.mxu0 %v1181
      %1201 = vmatprep.subr.mxu0 0.0
      %1202 = vmatpush1.msra.mxu0 %v1182
      %1203 = vmatprep.subr.mxu0 0.0
      %1204 = vmatpush1.msra.mxu0 %v1183
      %1205 = vmatprep.subr.mxu0 0.0
      %1206 = vmatpush1.msra.mxu0 %v1184
      %1207 = vmatprep.subr.mxu0 0.0
      %1208 = vmatpush1.msra.mxu0 %v1185
      %1209 = vmatprep.subr.mxu0 0.0
      %1210 = vmatpush1.msra.mxu0 %v1186
      %1211 = vmatprep.subr.mxu0 0.0
      %1212 = vmatpush1.msra.mxu0 %v1187
      %1213 = vmatprep.subr.mxu0 0.0
      %1214 = vmatpush1.msra.mxu0 %v1188
      %1215 = vmatprep.subr.mxu0 0.0
      %1216 = vmatpush1.msra.mxu0 %v1189
      %1217 = vmatprep.subr.mxu0 0.0
      %1218 = vmatpush1.msra.mxu0 %v1190
      %1219 = vmatprep.subr.mxu0 0.0
      %1220 = vmatpush1.msra.mxu0 %v1191
      %1221 = vmatprep.subr.mxu0 0.0
      %1222 = vmatpush1.msra.mxu0 %v1192
      %1223 = vmatprep.subr.mxu0 0.0
      %1224 = vmatpush1.msra.mxu0 %v1193
      %1225 = vmatprep.subr.mxu0 0.0
      %1226 = vmatpush1.msra.mxu0 %v1194
      %1227 = vmatprep.subr.mxu0 0.0
      %1228 = vmatpush1.msra.mxu0 0.0
      %1229 = vmatprep.subr.mxu0 0.0
      %1230 = vmatpush1.msra.mxu0 0.0
      %1231 = vmatprep.subr.mxu0 0.0
      %1232 = vmatpush1.msra.mxu0 0.0
      %1233 = vmatprep.subr.mxu0 0.0
      %1234 = vmatpush1.msra.mxu0 0.0
      %1235 = vmatprep.subr.mxu0 0.0
      %1236 = vmatpush1.msra.mxu0 0.0
      %1237 = vmatprep.subr.mxu0 0.0
      %1238 = vmatpush1.msra.mxu0 0.0
      %1239 = vmatprep.subr.mxu0 0.0
      %1240 = vmatpush1.msra.mxu0 0.0
      %1241 = vmatprep.subr.mxu0 0.0
      %1242 = vmatpush1.msra.mxu0 0.0
      %1243 = vmatprep.subr.mxu0 0.0
      %1244 = vmatpush1.msra.mxu0 0.0
      %1245 = vmatprep.subr.mxu0 0.0
      %1246 = vmatpush1.msra.mxu0 0.0
      %1247 = vmatprep.subr.mxu0 0.0
      %1248 = vmatpush1.msra.mxu0 0.0
      %1249 = vmatprep.subr.mxu0 0.0
      %1250 = vmatpush1.msra.mxu0 0.0
      %1251 = vmatprep.subr.mxu0 0.0
      %1252 = vmatpush1.msra.mxu0 0.0
      %1253 = vmatprep.subr.mxu0 0.0
      %1254 = vmatpush1.msra.mxu0 0.0
      %1255 = vmatprep.subr.mxu0 0.0
      %1256 = vmatpush1.msra.mxu0 0.0
      %1257 = vmatprep.subr.mxu0 0.0
      %1258 = vmatpush1.msra.mxu0 0.0
      %1259 = vmatprep.mubr.f32.mxu0 0.0
      %1260 = vmatmul.mubr.f32.gmra.mrb[0].mxu0 %v1147
      %v1261 = vpop.f32.mrb[0].mxu0
      %v1262 = vadd.f32 0.0, %v1261
      %v1263 = vpop.f32.mrb[0].mxu0
      %1264 = vmatprep.mubr.f32.mxu0 0.0
      %1265 = vmatmul.mubr.f32.gmra.mrb[0].mxu0 %v1148
      %v1266 = vpop.f32.mrb[0].mxu0
      %v1267 = vadd.f32 0.0, %v1266
      %v1268 = vpop.f32.mrb[0].mxu0
      %1269 = vmatprep.mubr.f32.mxu0 0.0
      %1270 = vmatmul.mubr.f32.gmra.mrb[0].mxu0 %v1149
      %v1271 = vpop.f32.mrb[0].mxu0
      %v1272 = vadd.f32 0.0, %v1271
      %v1273 = vpop.f32.mrb[0].mxu0
      %1274 = vmatprep.mubr.f32.mxu0 0.0
      %1275 = vmatmul.mubr.f32.gmra.mrb[0].mxu0 %v1150
      %v1276 = vpop.f32.mrb[0].mxu0
      %v1277 = vadd.f32 0.0, %v1276
      %v1278 = vpop.f32.mrb[0].mxu0
      %1279 = vmatprep.mubr.f32.mxu0 0.0
      %1280 = vmatmul.mubr.f32.gmra.mrb[0].mxu0 %v1151
      %v1281 = vpop.f32.mrb[0].mxu0
      %v1282 = vadd.f32 0.0, %v1281
      %v1283 = vpop.f32.mrb[0].mxu0
      %1284 = vmatprep.mubr.f32.mxu0 0.0
      %1285 = vmatmul.mubr.f32.gmra.mrb[0].mxu0 %v1152
      %v1286 = vpop.f32.mrb[0].mxu0
      %v1287 = vadd.f32 0.0, %v1286
      %v1288 = vpop.f32.mrb[0].mxu0
      %1289 = vmatprep.mubr.f32.mxu0 0.0
      %1290 = vmatmul.mubr.f32.gmra.mrb[0].mxu0 %v1153
      %v1291 = vpop.f32.mrb[0].mxu0
      %v1292 = vadd.f32 0.0, %v1291
      %v1293 = vpop.f32.mrb[0].mxu0
      %1294 = vmatprep.mubr.f32.mxu0 0.0
      %1295 = vmatmul.mubr.f32.gmra.mrb[0].mxu0 %v1154
      %v1296 = vpop.f32.mrb[0].mxu0
      %v1297 = vadd.f32 0.0, %v1296
      %v1298 = vpop.f32.mrb[0].mxu0
      %1299 = vmatprep.mubr.f32.mxu0 0.0
      %1300 = vmatmul.mubr.f32.gmra.mrb[0].mxu0 %v1155
      %v1301 = vpop.f32.mrb[0].mxu0
      %v1302 = vadd.f32 0.0, %v1301
      %v1303 = vpop.f32.mrb[0].mxu0
      %1304 = vmatprep.mubr.f32.mxu0 0.0
      %1305 = vmatmul.mubr.f32.gmra.mrb[0].mxu0 %v1156
      %v1306 = vpop.f32.mrb[0].mxu0
      %v1307 = vadd.f32 0.0, %v1306
      %v1308 = vpop.f32.mrb[0].mxu0
      %1309 = vmatprep.mubr.f32.mxu0 0.0
      %1310 = vmatmul.mubr.f32.gmra.mrb[0].mxu0 %v1157
      %v1311 = vpop.f32.mrb[0].mxu0
      %v1312 = vadd.f32 0.0, %v1311
      %v1313 = vpop.f32.mrb[0].mxu0
      %1314 = vmatprep.mubr.f32.mxu0 0.0
      %1315 = vmatmul.mubr.f32.gmra.mrb[0].mxu0 %v1158
      %v1316 = vpop.f32.mrb[0].mxu0
      %v1317 = vadd.f32 0.0, %v1316
      %v1318 = vpop.f32.mrb[0].mxu0
      %1319 = vmatprep.mubr.f32.mxu0 0.0
      %1320 = vmatmul.mubr.f32.gmra.mrb[0].mxu0 %v1159
      %v1321 = vpop.f32.mrb[0].mxu0
      %v1322 = vadd.f32 0.0, %v1321
      %v1323 = vpop.f32.mrb[0].mxu0
      %1324 = vmatprep.mubr.f32.mxu0 0.0
      %1325 = vmatmul.mubr.f32.gmra.mrb[0].mxu0 %v1160
      %v1326 = vpop.f32.mrb[0].mxu0
      %v1327 = vadd.f32 0.0, %v1326
      %v1328 = vpop.f32.mrb[0].mxu0
      %1329 = vmatprep.mubr.f32.mxu0 0.0
      %1330 = vmatmul.mubr.f32.gmra.mrb[0].mxu0 %v1161
      %v1331 = vpop.f32.mrb[0].mxu0
      %v1332 = vadd.f32 0.0, %v1331
      %v1333 = vpop.f32.mrb[0].mxu0
      %1334 = vmatprep.mubr.f32.mxu0 0.0
      %1335 = vmatmul.mubr.f32.gmra.mrb[0].mxu0 %v1162
      %v1336 = vpop.f32.mrb[0].mxu0
      %v1337 = vadd.f32 0.0, %v1336
      %v1338 = vpop.f32.mrb[0].mxu0
      %1339 = vmatprep.mubr.f32.mxu0 0.0
      %1340 = vmatmul.mubr.f32.gmra.mrb[0].mxu0 %v1163
      %v1341 = vpop.f32.mrb[0].mxu0
      %v1342 = vadd.f32 0.0, %v1341
      %v1343 = vpop.f32.mrb[0].mxu0
      %1344 = vmatprep.mubr.f32.mxu0 0.0
      %1345 = vmatmul.mubr.f32.gmra.mrb[0].mxu0 %v1164
      %v1346 = vpop.f32.mrb[0].mxu0
      %v1347 = vadd.f32 0.0, %v1346
      %v1348 = vpop.f32.mrb[0].mxu0
      %1349 = vmatprep.mubr.f32.mxu0 0.0
      %1350 = vmatmul.mubr.f32.gmra.mrb[0].mxu0 %v1165
      %v1351 = vpop.f32.mrb[0].mxu0
      %v1352 = vadd.f32 0.0, %v1351
      %v1353 = vpop.f32.mrb[0].mxu0
      %1354 = vmatprep.mubr.f32.mxu0 0.0
      %1355 = vmatmul.mubr.f32.gmra.mrb[0].mxu0 %v1166
      %v1356 = vpop.f32.mrb[0].mxu0
      %v1357 = vadd.f32 0.0, %v1356
      %v1358 = vpop.f32.mrb[0].mxu0
      %1359 = vmatprep.mubr.f32.mxu0 0.0
      %1360 = vmatmul.mubr.f32.gmra.mrb[0].mxu0 %v1167
      %v1361 = vpop.f32.mrb[0].mxu0
      %v1362 = vadd.f32 0.0, %v1361
      %v1363 = vpop.f32.mrb[0].mxu0
      %1364 = vmatprep.mubr.f32.mxu0 0.0
      %1365 = vmatmul.mubr.f32.gmra.mrb[0].mxu0 %v1168
      %v1366 = vpop.f32.mrb[0].mxu0
      %v1367 = vadd.f32 0.0, %v1366
      %v1368 = vpop.f32.mrb[0].mxu0
      %1369 = vmatprep.mubr.f32.mxu0 0.0
      %1370 = vmatmul.mubr.f32.gmra.mrb[0].mxu0 %v1169
      %v1371 = vpop.f32.mrb[0].mxu0
      %v1372 = vadd.f32 0.0, %v1371
      %v1373 = vpop.f32.mrb[0].mxu0
      %1374 = vmatprep.mubr.f32.mxu0 0.0
      %1375 = vmatmul.mubr.f32.gmra.mrb[0].mxu0 %v1170
      %v1376 = vpop.f32.mrb[0].mxu0
      %v1377 = vadd.f32 0.0, %v1376
      %v1378 = vpop.f32.mrb[0].mxu0
      %1379 = vmatprep.mubr.f32.mxu0 0.0
      %1380 = vmatmul.mubr.f32.gmra.mrb[0].mxu0 %v1171
      %v1381 = vpop.f32.mrb[0].mxu0
      %v1382 = vadd.f32 0.0, %v1381
      %v1383 = vpop.f32.mrb[0].mxu0
      %1384 = vmatprep.mubr.f32.mxu0 0.0
      %1385 = vmatmul.mubr.f32.gmra.mrb[0].mxu0 %v1172
      %v1386 = vpop.f32.mrb[0].mxu0
      %v1387 = vadd.f32 0.0, %v1386
      %v1388 = vpop.f32.mrb[0].mxu0
      %1389 = vmatprep.mubr.f32.mxu0 0.0
      %1390 = vmatmul.mubr.f32.gmra.mrb[0].mxu0 %v1173
      %v1391 = vpop.f32.mrb[0].mxu0
      %v1392 = vadd.f32 0.0, %v1391
      %v1393 = vpop.f32.mrb[0].mxu0
      %1394 = vmatprep.mubr.f32.mxu0 0.0
      %1395 = vmatmul.mubr.f32.gmra.mrb[0].mxu0 %v1174
      %v1396 = vpop.f32.mrb[0].mxu0
      %v1397 = vadd.f32 0.0, %v1396
      %v1398 = vpop.f32.mrb[0].mxu0
      %1399 = vmatprep.mubr.f32.mxu0 0.0
      %1400 = vmatmul.mubr.f32.gmra.mrb[0].mxu0 %v1175
      %v1401 = vpop.f32.mrb[0].mxu0
      %v1402 = vadd.f32 0.0, %v1401
      %v1403 = vpop.f32.mrb[0].mxu0
      %1404 = vmatprep.mubr.f32.mxu0 0.0
      %1405 = vmatmul.mubr.f32.gmra.mrb[0].mxu0 %v1176
      %v1406 = vpop.f32.mrb[0].mxu0
      %v1407 = vadd.f32 0.0, %v1406
      %v1408 = vpop.f32.mrb[0].mxu0
      %1409 = vmatprep.mubr.f32.mxu0 0.0
      %1410 = vmatmul.mubr.f32.gmra.mrb[0].mxu0 %v1177
      %v1411 = vpop.f32.mrb[0].mxu0
      %v1412 = vadd.f32 0.0, %v1411
      %v1413 = vpop.f32.mrb[0].mxu0
      %1414 = vmatprep.mubr.f32.mxu0 0.0
      %1415 = vmatmul.mubr.f32.gmra.mrb[0].mxu0 %v1178
      %v1416 = vpop.f32.mrb[0].mxu0
      %v1417 = vadd.f32 0.0, %v1416
      %v1418 = vpop.f32.mrb[0].mxu0
      %1419 = vdwg.mxu0
      %v1420 = vadd.f32 %v989, %v1262
      %v1421 = vadd.f32 %v994, %v1267
      %v1422 = vadd.f32 %v999, %v1272
      %v1423 = vadd.f32 %v1004, %v1277
      %v1424 = vadd.f32 %v1009, %v1282
      %v1425 = vadd.f32 %v1014, %v1287
      %v1426 = vadd.f32 %v1019, %v1292
      %v1427 = vadd.f32 %v1024, %v1297
      %v1428 = vadd.f32 %v1029, %v1302
      %v1429 = vadd.f32 %v1034, %v1307
      %v1430 = vadd.f32 %v1039, %v1312
      %v1431 = vadd.f32 %v1044, %v1317
      %v1432 = vadd.f32 %v1049, %v1322
      %v1433 = vadd.f32 %v1054, %v1327
      %v1434 = vadd.f32 %v1059, %v1332
      %v1435 = vadd.f32 %v1064, %v1337
      %v1436 = vadd.f32 %v1069, %v1342
      %v1437 = vadd.f32 %v1074, %v1347
      %v1438 = vadd.f32 %v1079, %v1352
      %v1439 = vadd.f32 %v1084, %v1357
      %v1440 = vadd.f32 %v1089, %v1362
      %v1441 = vadd.f32 %v1094, %v1367
      %v1442 = vadd.f32 %v1099, %v1372
      %v1443 = vadd.f32 %v1104, %v1377
      %v1444 = vadd.f32 %v1109, %v1382
      %v1445 = vadd.f32 %v1114, %v1387
      %v1446 = vadd.f32 %v1119, %v1392
      %v1447 = vadd.f32 %v1124, %v1397
      %v1448 = vadd.f32 %v1129, %v1402
      %v1449 = vadd.f32 %v1134, %v1407
      %v1450 = vadd.f32 %v1139, %v1412
      %v1451 = vadd.f32 %v1144, %v1417
      %v1452 = vld [vmem:[%s568 + $0x7] sm:$0xff]
      %v1453 = vld [vmem:[%s568 + $0xf] sm:$0xff]
      %v1454 = vld [vmem:[%s568 + $0x27] sm:$0xff]
      %v1455 = vld [vmem:[%s568 + $0x2f] sm:$0xff]
      %v1456 = vld [vmem:[%s568 + $0x47] sm:$0xff]
      %v1457 = vld [vmem:[%s568 + $0x4f] sm:$0xff]
      %v1458 = vld [vmem:[%s568 + $0x67] sm:$0xff]
      %v1459 = vld [vmem:[%s568 + $0x6f] sm:$0xff]
      %v1460 = vld [vmem:[%s568 + $0x87] sm:$0xff]
      %v1461 = vld [vmem:[%s568 + $0x8f] sm:$0xff]
      %v1462 = vld [vmem:[%s568 + $0xa7] sm:$0xff]
      %v1463 = vld [vmem:[%s568 + $0xaf] sm:$0xff]
      %v1464 = vld [vmem:[%s568 + $0xc7] sm:$0xff]
      %v1465 = vld [vmem:[%s568 + $0xcf] sm:$0xff]
      %v1466 = vld [vmem:[%s568 + $0xe7] sm:$0xff]
      %v1467 = vld [vmem:[%s568 + $0xef] sm:$0xff]
      %v1468 = vld [vmem:[%s568 + $0x107] sm:$0xff]
      %v1469 = vld [vmem:[%s568 + $0x10f] sm:$0xff]
      %v1470 = vld [vmem:[%s568 + $0x127] sm:$0xff]
      %v1471 = vld [vmem:[%s568 + $0x12f] sm:$0xff]
      %v1472 = vld [vmem:[%s568 + $0x147] sm:$0xff]
      %v1473 = vld [vmem:[%s568 + $0x14f] sm:$0xff]
      %v1474 = vld [vmem:[%s568 + $0x167] sm:$0xff]
      %v1475 = vld [vmem:[%s568 + $0x16f] sm:$0xff]
      %v1476 = vld [vmem:[%s568 + $0x187] sm:$0xff]
      %v1477 = vld [vmem:[%s568 + $0x18f] sm:$0xff]
      %v1478 = vld [vmem:[%s568 + $0x1a7] sm:$0xff]
      %v1479 = vld [vmem:[%s568 + $0x1af] sm:$0xff]
      %v1480 = vld [vmem:[%s568 + $0x1c7] sm:$0xff]
      %v1481 = vld [vmem:[%s568 + $0x1cf] sm:$0xff]
      %v1482 = vld [vmem:[%s568 + $0x1e7] sm:$0xff]
      %v1483 = vld [vmem:[%s568 + $0x1ef] sm:$0xff]
      %v1484 = vld [vmem:[%s8 + $0x180] sm:$0xff]
      %v1485 = vld [vmem:[%s8 + $0x188] sm:$0xff]
      %v1486 = vld [vmem:[%s8 + $0x190] sm:$0xff]
      %v1487 = vld [vmem:[%s8 + $0x198] sm:$0xff]
      %v1488 = vld [vmem:[%s8 + $0x1a0] sm:$0xff]
      %v1489 = vld [vmem:[%s8 + $0x1a8] sm:$0xff]
      %v1490 = vld [vmem:[%s8 + $0x1b0] sm:$0xff]
      %v1491 = vld [vmem:[%s8 + $0x1b8] sm:$0xff]
      %v1492 = vld [vmem:[%s8 + $0x1c0] sm:$0xff]
      %v1493 = vld [vmem:[%s8 + $0x1c8] sm:$0xff]
      %v1494 = vld [vmem:[%s8 + $0x1d0] sm:$0xff]
      %v1495 = vld [vmem:[%s8 + $0x1d8] sm:$0xff]
      %v1496 = vld [vmem:[%s8 + $0x1e0] sm:$0xff]
      %v1497 = vld [vmem:[%s8 + $0x1e8] sm:$0xff]
      %v1498 = vld [vmem:[%s8 + $0x1f0] sm:$0xff]
      %v1499 = vld [vmem:[%s8 + $0x1f8] sm:$0xff]
      %1500 = vmatprep.subr.mxu0 0.0
      %1501 = vmatpush1.msra.mxu0 %v1484
      %1502 = vmatprep.subr.mxu0 0.0
      %1503 = vmatpush1.msra.mxu0 %v1485
      %1504 = vmatprep.subr.mxu0 0.0
      %1505 = vmatpush1.msra.mxu0 %v1486
      %1506 = vmatprep.subr.mxu0 0.0
      %1507 = vmatpush1.msra.mxu0 %v1487
      %1508 = vmatprep.subr.mxu0 0.0
      %1509 = vmatpush1.msra.mxu0 %v1488
      %1510 = vmatprep.subr.mxu0 0.0
      %1511 = vmatpush1.msra.mxu0 %v1489
      %1512 = vmatprep.subr.mxu0 0.0
      %1513 = vmatpush1.msra.mxu0 %v1490
      %1514 = vmatprep.subr.mxu0 0.0
      %1515 = vmatpush1.msra.mxu0 %v1491
      %1516 = vmatprep.subr.mxu0 0.0
      %1517 = vmatpush1.msra.mxu0 %v1492
      %1518 = vmatprep.subr.mxu0 0.0
      %1519 = vmatpush1.msra.mxu0 %v1493
      %1520 = vmatprep.subr.mxu0 0.0
      %1521 = vmatpush1.msra.mxu0 %v1494
      %1522 = vmatprep.subr.mxu0 0.0
      %1523 = vmatpush1.msra.mxu0 %v1495
      %1524 = vmatprep.subr.mxu0 0.0
      %1525 = vmatpush1.msra.mxu0 %v1496
      %1526 = vmatprep.subr.mxu0 0.0
      %1527 = vmatpush1.msra.mxu0 %v1497
      %1528 = vmatprep.subr.mxu0 0.0
      %1529 = vmatpush1.msra.mxu0 %v1498
      %1530 = vmatprep.subr.mxu0 0.0
      %1531 = vmatpush1.msra.mxu0 %v1499
      %1532 = vmatprep.subr.mxu0 0.0
      %1533 = vmatpush1.msra.mxu0 0.0
      %1534 = vmatprep.subr.mxu0 0.0
      %1535 = vmatpush1.msra.mxu0 0.0
      %1536 = vmatprep.subr.mxu0 0.0
      %1537 = vmatpush1.msra.mxu0 0.0
      %1538 = vmatprep.subr.mxu0 0.0
      %1539 = vmatpush1.msra.mxu0 0.0
      %1540 = vmatprep.subr.mxu0 0.0
      %1541 = vmatpush1.msra.mxu0 0.0
      %1542 = vmatprep.subr.mxu0 0.0
      %1543 = vmatpush1.msra.mxu0 0.0
      %1544 = vmatprep.subr.mxu0 0.0
      %1545 = vmatpush1.msra.mxu0 0.0
      %1546 = vmatprep.subr.mxu0 0.0
      %1547 = vmatpush1.msra.mxu0 0.0
      %1548 = vmatprep.subr.mxu0 0.0
      %1549 = vmatpush1.msra.mxu0 0.0
      %1550 = vmatprep.subr.mxu0 0.0
      %1551 = vmatpush1.msra.mxu0 0.0
      %1552 = vmatprep.subr.mxu0 0.0
      %1553 = vmatpush1.msra.mxu0 0.0
      %1554 = vmatprep.subr.mxu0 0.0
      %1555 = vmatpush1.msra.mxu0 0.0
      %1556 = vmatprep.subr.mxu0 0.0
      %1557 = vmatpush1.msra.mxu0 0.0
      %1558 = vmatprep.subr.mxu0 0.0
      %1559 = vmatpush1.msra.mxu0 0.0
      %1560 = vmatprep.subr.mxu0 0.0
      %1561 = vmatpush1.msra.mxu0 0.0
      %1562 = vmatprep.subr.mxu0 0.0
      %1563 = vmatpush1.msra.mxu0 0.0
      %1564 = vmatprep.mubr.f32.mxu0 0.0
      %1565 = vmatmul.mubr.f32.gmra.mrb[0].mxu0 %v1452
      %v1566 = vpop.f32.mrb[0].mxu0
      %v1567 = vadd.f32 0.0, %v1566
      %v1568 = vpop.f32.mrb[0].mxu0
      %1569 = vmatprep.mubr.f32.mxu0 0.0
      %1570 = vmatmul.mubr.f32.gmra.mrb[0].mxu0 %v1453
      %v1571 = vpop.f32.mrb[0].mxu0
      %v1572 = vadd.f32 0.0, %v1571
      %v1573 = vpop.f32.mrb[0].mxu0
      %1574 = vmatprep.mubr.f32.mxu0 0.0
      %1575 = vmatmul.mubr.f32.gmra.mrb[0].mxu0 %v1454
      %v1576 = vpop.f32.mrb[0].mxu0
      %v1577 = vadd.f32 0.0, %v1576
      %v1578 = vpop.f32.mrb[0].mxu0
      %1579 = vmatprep.mubr.f32.mxu0 0.0
      %1580 = vmatmul.mubr.f32.gmra.mrb[0].mxu0 %v1455
      %v1581 = vpop.f32.mrb[0].mxu0
      %v1582 = vadd.f32 0.0, %v1581
      %v1583 = vpop.f32.mrb[0].mxu0
      %1584 = vmatprep.mubr.f32.mxu0 0.0
      %1585 = vmatmul.mubr.f32.gmra.mrb[0].mxu0 %v1456
      %v1586 = vpop.f32.mrb[0].mxu0
      %v1587 = vadd.f32 0.0, %v1586
      %v1588 = vpop.f32.mrb[0].mxu0
      %1589 = vmatprep.mubr.f32.mxu0 0.0
      %1590 = vmatmul.mubr.f32.gmra.mrb[0].mxu0 %v1457
      %v1591 = vpop.f32.mrb[0].mxu0
      %v1592 = vadd.f32 0.0, %v1591
      %v1593 = vpop.f32.mrb[0].mxu0
      %1594 = vmatprep.mubr.f32.mxu0 0.0
      %1595 = vmatmul.mubr.f32.gmra.mrb[0].mxu0 %v1458
      %v1596 = vpop.f32.mrb[0].mxu0
      %v1597 = vadd.f32 0.0, %v1596
      %v1598 = vpop.f32.mrb[0].mxu0
      %1599 = vmatprep.mubr.f32.mxu0 0.0
      %1600 = vmatmul.mubr.f32.gmra.mrb[0].mxu0 %v1459
      %v1601 = vpop.f32.mrb[0].mxu0
      %v1602 = vadd.f32 0.0, %v1601
      %v1603 = vpop.f32.mrb[0].mxu0
      %1604 = vmatprep.mubr.f32.mxu0 0.0
      %1605 = vmatmul.mubr.f32.gmra.mrb[0].mxu0 %v1460
      %v1606 = vpop.f32.mrb[0].mxu0
      %v1607 = vadd.f32 0.0, %v1606
      %v1608 = vpop.f32.mrb[0].mxu0
      %1609 = vmatprep.mubr.f32.mxu0 0.0
      %1610 = vmatmul.mubr.f32.gmra.mrb[0].mxu0 %v1461
      %v1611 = vpop.f32.mrb[0].mxu0
      %v1612 = vadd.f32 0.0, %v1611
      %v1613 = vpop.f32.mrb[0].mxu0
      %1614 = vmatprep.mubr.f32.mxu0 0.0
      %1615 = vmatmul.mubr.f32.gmra.mrb[0].mxu0 %v1462
      %v1616 = vpop.f32.mrb[0].mxu0
      %v1617 = vadd.f32 0.0, %v1616
      %v1618 = vpop.f32.mrb[0].mxu0
      %1619 = vmatprep.mubr.f32.mxu0 0.0
      %1620 = vmatmul.mubr.f32.gmra.mrb[0].mxu0 %v1463
      %v1621 = vpop.f32.mrb[0].mxu0
      %v1622 = vadd.f32 0.0, %v1621
      %v1623 = vpop.f32.mrb[0].mxu0
      %1624 = vmatprep.mubr.f32.mxu0 0.0
      %1625 = vmatmul.mubr.f32.gmra.mrb[0].mxu0 %v1464
      %v1626 = vpop.f32.mrb[0].mxu0
      %v1627 = vadd.f32 0.0, %v1626
      %v1628 = vpop.f32.mrb[0].mxu0
      %1629 = vmatprep.mubr.f32.mxu0 0.0
      %1630 = vmatmul.mubr.f32.gmra.mrb[0].mxu0 %v1465
      %v1631 = vpop.f32.mrb[0].mxu0
      %v1632 = vadd.f32 0.0, %v1631
      %v1633 = vpop.f32.mrb[0].mxu0
      %1634 = vmatprep.mubr.f32.mxu0 0.0
      %1635 = vmatmul.mubr.f32.gmra.mrb[0].mxu0 %v1466
      %v1636 = vpop.f32.mrb[0].mxu0
      %v1637 = vadd.f32 0.0, %v1636
      %v1638 = vpop.f32.mrb[0].mxu0
      %1639 = vmatprep.mubr.f32.mxu0 0.0
      %1640 = vmatmul.mubr.f32.gmra.mrb[0].mxu0 %v1467
      %v1641 = vpop.f32.mrb[0].mxu0
      %v1642 = vadd.f32 0.0, %v1641
      %v1643 = vpop.f32.mrb[0].mxu0
      %1644 = vmatprep.mubr.f32.mxu0 0.0
      %1645 = vmatmul.mubr.f32.gmra.mrb[0].mxu0 %v1468
      %v1646 = vpop.f32.mrb[0].mxu0
      %v1647 = vadd.f32 0.0, %v1646
      %v1648 = vpop.f32.mrb[0].mxu0
      %1649 = vmatprep.mubr.f32.mxu0 0.0
      %1650 = vmatmul.mubr.f32.gmra.mrb[0].mxu0 %v1469
      %v1651 = vpop.f32.mrb[0].mxu0
      %v1652 = vadd.f32 0.0, %v1651
      %v1653 = vpop.f32.mrb[0].mxu0
      %1654 = vmatprep.mubr.f32.mxu0 0.0
      %1655 = vmatmul.mubr.f32.gmra.mrb[0].mxu0 %v1470
      %v1656 = vpop.f32.mrb[0].mxu0
      %v1657 = vadd.f32 0.0, %v1656
      %v1658 = vpop.f32.mrb[0].mxu0
      %1659 = vmatprep.mubr.f32.mxu0 0.0
      %1660 = vmatmul.mubr.f32.gmra.mrb[0].mxu0 %v1471
      %v1661 = vpop.f32.mrb[0].mxu0
      %v1662 = vadd.f32 0.0, %v1661
      %v1663 = vpop.f32.mrb[0].mxu0
      %1664 = vmatprep.mubr.f32.mxu0 0.0
      %1665 = vmatmul.mubr.f32.gmra.mrb[0].mxu0 %v1472
      %v1666 = vpop.f32.mrb[0].mxu0
      %v1667 = vadd.f32 0.0, %v1666
      %v1668 = vpop.f32.mrb[0].mxu0
      %1669 = vmatprep.mubr.f32.mxu0 0.0
      %1670 = vmatmul.mubr.f32.gmra.mrb[0].mxu0 %v1473
      %v1671 = vpop.f32.mrb[0].mxu0
      %v1672 = vadd.f32 0.0, %v1671
      %v1673 = vpop.f32.mrb[0].mxu0
      %1674 = vmatprep.mubr.f32.mxu0 0.0
      %1675 = vmatmul.mubr.f32.gmra.mrb[0].mxu0 %v1474
      %v1676 = vpop.f32.mrb[0].mxu0
      %v1677 = vadd.f32 0.0, %v1676
      %v1678 = vpop.f32.mrb[0].mxu0
      %1679 = vmatprep.mubr.f32.mxu0 0.0
      %1680 = vmatmul.mubr.f32.gmra.mrb[0].mxu0 %v1475
      %v1681 = vpop.f32.mrb[0].mxu0
      %v1682 = vadd.f32 0.0, %v1681
      %v1683 = vpop.f32.mrb[0].mxu0
      %1684 = vmatprep.mubr.f32.mxu0 0.0
      %1685 = vmatmul.mubr.f32.gmra.mrb[0].mxu0 %v1476
      %v1686 = vpop.f32.mrb[0].mxu0
      %v1687 = vadd.f32 0.0, %v1686
      %v1688 = vpop.f32.mrb[0].mxu0
      %1689 = vmatprep.mubr.f32.mxu0 0.0
      %1690 = vmatmul.mubr.f32.gmra.mrb[0].mxu0 %v1477
      %v1691 = vpop.f32.mrb[0].mxu0
      %v1692 = vadd.f32 0.0, %v1691
      %v1693 = vpop.f32.mrb[0].mxu0
      %1694 = vmatprep.mubr.f32.mxu0 0.0
      %1695 = vmatmul.mubr.f32.gmra.mrb[0].mxu0 %v1478
      %v1696 = vpop.f32.mrb[0].mxu0
      %v1697 = vadd.f32 0.0, %v1696
      %v1698 = vpop.f32.mrb[0].mxu0
      %1699 = vmatprep.mubr.f32.mxu0 0.0
      %1700 = vmatmul.mubr.f32.gmra.mrb[0].mxu0 %v1479
      %v1701 = vpop.f32.mrb[0].mxu0
      %v1702 = vadd.f32 0.0, %v1701
      %v1703 = vpop.f32.mrb[0].mxu0
      %1704 = vmatprep.mubr.f32.mxu0 0.0
      %1705 = vmatmul.mubr.f32.gmra.mrb[0].mxu0 %v1480
      %v1706 = vpop.f32.mrb[0].mxu0
      %v1707 = vadd.f32 0.0, %v1706
      %v1708 = vpop.f32.mrb[0].mxu0
      %1709 = vmatprep.mubr.f32.mxu0 0.0
      %1710 = vmatmul.mubr.f32.gmra.mrb[0].mxu0 %v1481
      %v1711 = vpop.f32.mrb[0].mxu0
      %v1712 = vadd.f32 0.0, %v1711
      %v1713 = vpop.f32.mrb[0].mxu0
      %1714 = vmatprep.mubr.f32.mxu0 0.0
      %1715 = vmatmul.mubr.f32.gmra.mrb[0].mxu0 %v1482
      %v1716 = vpop.f32.mrb[0].mxu0
      %v1717 = vadd.f32 0.0, %v1716
      %v1718 = vpop.f32.mrb[0].mxu0
      %1719 = vmatprep.mubr.f32.mxu0 0.0
      %1720 = vmatmul.mubr.f32.gmra.mrb[0].mxu0 %v1483
      %v1721 = vpop.f32.mrb[0].mxu0
      %v1722 = vadd.f32 0.0, %v1721
      %v1723 = vpop.f32.mrb[0].mxu0
      %1724 = vdwg.mxu0
      %v1725 = vadd.f32 %v1420, %v1567
      %v1726 = vadd.f32 %v1421, %v1572
      %v1727 = vadd.f32 %v1422, %v1577
      %v1728 = vadd.f32 %v1423, %v1582
      %v1729 = vadd.f32 %v1424, %v1587
      %v1730 = vadd.f32 %v1425, %v1592
      %v1731 = vadd.f32 %v1426, %v1597
      %v1732 = vadd.f32 %v1427, %v1602
      %v1733 = vadd.f32 %v1428, %v1607
      %v1734 = vadd.f32 %v1429, %v1612
      %v1735 = vadd.f32 %v1430, %v1617
      %v1736 = vadd.f32 %v1431, %v1622
      %v1737 = vadd.f32 %v1432, %v1627
      %v1738 = vadd.f32 %v1433, %v1632
      %v1739 = vadd.f32 %v1434, %v1637
      %v1740 = vadd.f32 %v1435, %v1642
      %v1741 = vadd.f32 %v1436, %v1647
      %v1742 = vadd.f32 %v1437, %v1652
      %v1743 = vadd.f32 %v1438, %v1657
      %v1744 = vadd.f32 %v1439, %v1662
      %v1745 = vadd.f32 %v1440, %v1667
      %v1746 = vadd.f32 %v1441, %v1672
      %v1747 = vadd.f32 %v1442, %v1677
      %v1748 = vadd.f32 %v1443, %v1682
      %v1749 = vadd.f32 %v1444, %v1687
      %v1750 = vadd.f32 %v1445, %v1692
      %v1751 = vadd.f32 %v1446, %v1697
      %v1752 = vadd.f32 %v1447, %v1702
      %v1753 = vadd.f32 %v1448, %v1707
      %v1754 = vadd.f32 %v1449, %v1712
      %v1755 = vadd.f32 %v1450, %v1717
      %v1756 = vadd.f32 %v1451, %v1722
      %v1757 = vld [vmem:[%s568 + $0x8] sm:$0xff]
      %v1758 = vld [vmem:[%s568 + $0x10] sm:$0xff]
      %v1759 = vld [vmem:[%s568 + $0x28] sm:$0xff]
      %v1760 = vld [vmem:[%s568 + $0x30] sm:$0xff]
      %v1761 = vld [vmem:[%s568 + $0x48] sm:$0xff]
      %v1762 = vld [vmem:[%s568 + $0x50] sm:$0xff]
      %v1763 = vld [vmem:[%s568 + $0x68] sm:$0xff]
      %v1764 = vld [vmem:[%s568 + $0x70] sm:$0xff]
      %v1765 = vld [vmem:[%s568 + $0x88] sm:$0xff]
      %v1766 = vld [vmem:[%s568 + $0x90] sm:$0xff]
      %v1767 = vld [vmem:[%s568 + $0xa8] sm:$0xff]
      %v1768 = vld [vmem:[%s568 + $0xb0] sm:$0xff]
      %v1769 = vld [vmem:[%s568 + $0xc8] sm:$0xff]
      %v1770 = vld [vmem:[%s568 + $0xd0] sm:$0xff]
      %v1771 = vld [vmem:[%s568 + $0xe8] sm:$0xff]
      %v1772 = vld [vmem:[%s568 + $0xf0] sm:$0xff]
      %v1773 = vld [vmem:[%s568 + $0x108] sm:$0xff]
      %v1774 = vld [vmem:[%s568 + $0x110] sm:$0xff]
      %v1775 = vld [vmem:[%s568 + $0x128] sm:$0xff]
      %v1776 = vld [vmem:[%s568 + $0x130] sm:$0xff]
      %v1777 = vld [vmem:[%s568 + $0x148] sm:$0xff]
      %v1778 = vld [vmem:[%s568 + $0x150] sm:$0xff]
      %v1779 = vld [vmem:[%s568 + $0x168] sm:$0xff]
      %v1780 = vld [vmem:[%s568 + $0x170] sm:$0xff]
      %v1781 = vld [vmem:[%s568 + $0x188] sm:$0xff]
      %v1782 = vld [vmem:[%s568 + $0x190] sm:$0xff]
      %v1783 = vld [vmem:[%s568 + $0x1a8] sm:$0xff]
      %v1784 = vld [vmem:[%s568 + $0x1b0] sm:$0xff]
      %v1785 = vld [vmem:[%s568 + $0x1c8] sm:$0xff]
      %v1786 = vld [vmem:[%s568 + $0x1d0] sm:$0xff]
      %v1787 = vld [vmem:[%s568 + $0x1e8] sm:$0xff]
      %v1788 = vld [vmem:[%s568 + $0x1f0] sm:$0xff]
      %v1789 = vld [vmem:[%s8 + $0x200] sm:$0xff]
      %v1790 = vld [vmem:[%s8 + $0x208] sm:$0xff]
      %v1791 = vld [vmem:[%s8 + $0x210] sm:$0xff]
      %v1792 = vld [vmem:[%s8 + $0x218] sm:$0xff]
      %v1793 = vld [vmem:[%s8 + $0x220] sm:$0xff]
      %v1794 = vld [vmem:[%s8 + $0x228] sm:$0xff]
      %v1795 = vld [vmem:[%s8 + $0x230] sm:$0xff]
      %v1796 = vld [vmem:[%s8 + $0x238] sm:$0xff]
      %v1797 = vld [vmem:[%s8 + $0x240] sm:$0xff]
      %v1798 = vld [vmem:[%s8 + $0x248] sm:$0xff]
      %v1799 = vld [vmem:[%s8 + $0x250] sm:$0xff]
      %v1800 = vld [vmem:[%s8 + $0x258] sm:$0xff]
      %v1801 = vld [vmem:[%s8 + $0x260] sm:$0xff]
      %v1802 = vld [vmem:[%s8 + $0x268] sm:$0xff]
      %v1803 = vld [vmem:[%s8 + $0x270] sm:$0xff]
      %v1804 = vld [vmem:[%s8 + $0x278] sm:$0xff]
      %1805 = vmatprep.subr.mxu0 0.0
      %1806 = vmatpush1.msra.mxu0 %v1789
      %1807 = vmatprep.subr.mxu0 0.0
      %1808 = vmatpush1.msra.mxu0 %v1790
      %1809 = vmatprep.subr.mxu0 0.0
      %1810 = vmatpush1.msra.mxu0 %v1791
      %1811 = vmatprep.subr.mxu0 0.0
      %1812 = vmatpush1.msra.mxu0 %v1792
      %1813 = vmatprep.subr.mxu0 0.0
      %1814 = vmatpush1.msra.mxu0 %v1793
      %1815 = vmatprep.subr.mxu0 0.0
      %1816 = vmatpush1.msra.mxu0 %v1794
      %1817 = vmatprep.subr.mxu0 0.0
      %1818 = vmatpush1.msra.mxu0 %v1795
      %1819 = vmatprep.subr.mxu0 0.0
      %1820 = vmatpush1.msra.mxu0 %v1796
      %1821 = vmatprep.subr.mxu0 0.0
      %1822 = vmatpush1.msra.mxu0 %v1797
      %1823 = vmatprep.subr.mxu0 0.0
      %1824 = vmatpush1.msra.mxu0 %v1798
      %1825 = vmatprep.subr.mxu0 0.0
      %1826 = vmatpush1.msra.mxu0 %v1799
      %1827 = vmatprep.subr.mxu0 0.0
      %1828 = vmatpush1.msra.mxu0 %v1800
      %1829 = vmatprep.subr.mxu0 0.0
      %1830 = vmatpush1.msra.mxu0 %v1801
      %1831 = vmatprep.subr.mxu0 0.0
      %1832 = vmatpush1.msra.mxu0 %v1802
      %1833 = vmatprep.subr.mxu0 0.0
      %1834 = vmatpush1.msra.mxu0 %v1803
      %1835 = vmatprep.subr.mxu0 0.0
      %1836 = vmatpush1.msra.mxu0 %v1804
      %1837 = vmatprep.subr.mxu0 0.0
      %1838 = vmatpush1.msra.mxu0 0.0
      %1839 = vmatprep.subr.mxu0 0.0
      %1840 = vmatpush1.msra.mxu0 0.0
      %1841 = vmatprep.subr.mxu0 0.0
      %1842 = vmatpush1.msra.mxu0 0.0
      %1843 = vmatprep.subr.mxu0 0.0
      %1844 = vmatpush1.msra.mxu0 0.0
      %1845 = vmatprep.subr.mxu0 0.0
      %1846 = vmatpush1.msra.mxu0 0.0
      %1847 = vmatprep.subr.mxu0 0.0
      %1848 = vmatpush1.msra.mxu0 0.0
      %1849 = vmatprep.subr.mxu0 0.0
      %1850 = vmatpush1.msra.mxu0 0.0
      %1851 = vmatprep.subr.mxu0 0.0
      %1852 = vmatpush1.msra.mxu0 0.0
      %1853 = vmatprep.subr.mxu0 0.0
      %1854 = vmatpush1.msra.mxu0 0.0
      %1855 = vmatprep.subr.mxu0 0.0
      %1856 = vmatpush1.msra.mxu0 0.0
      %1857 = vmatprep.subr.mxu0 0.0
      %1858 = vmatpush1.msra.mxu0 0.0
      %1859 = vmatprep.subr.mxu0 0.0
      %1860 = vmatpush1.msra.mxu0 0.0
      %1861 = vmatprep.subr.mxu0 0.0
      %1862 = vmatpush1.msra.mxu0 0.0
      %1863 = vmatprep.subr.mxu0 0.0
      %1864 = vmatpush1.msra.mxu0 0.0
      %1865 = vmatprep.subr.mxu0 0.0
      %1866 = vmatpush1.msra.mxu0 0.0
      %1867 = vmatprep.subr.mxu0 0.0
      %1868 = vmatpush1.msra.mxu0 0.0
      %1869 = vmatprep.mubr.f32.mxu0 0.0
      %1870 = vmatmul.mubr.f32.gmra.mrb[0].mxu0 %v1757
      %v1871 = vpop.f32.mrb[0].mxu0
      %v1872 = vadd.f32 0.0, %v1871
      %v1873 = vpop.f32.mrb[0].mxu0
      %1874 = vmatprep.mubr.f32.mxu0 0.0
      %1875 = vmatmul.mubr.f32.gmra.mrb[0].mxu0 %v1758
      %v1876 = vpop.f32.mrb[0].mxu0
      %v1877 = vadd.f32 0.0, %v1876
      %v1878 = vpop.f32.mrb[0].mxu0
      %1879 = vmatprep.mubr.f32.mxu0 0.0
      %1880 = vmatmul.mubr.f32.gmra.mrb[0].mxu0 %v1759
      %v1881 = vpop.f32.mrb[0].mxu0
      %v1882 = vadd.f32 0.0, %v1881
      %v1883 = vpop.f32.mrb[0].mxu0
      %1884 = vmatprep.mubr.f32.mxu0 0.0
      %1885 = vmatmul.mubr.f32.gmra.mrb[0].mxu0 %v1760
      %v1886 = vpop.f32.mrb[0].mxu0
      %v1887 = vadd.f32 0.0, %v1886
      %v1888 = vpop.f32.mrb[0].mxu0
      %1889 = vmatprep.mubr.f32.mxu0 0.0
      %1890 = vmatmul.mubr.f32.gmra.mrb[0].mxu0 %v1761
      %v1891 = vpop.f32.mrb[0].mxu0
      %v1892 = vadd.f32 0.0, %v1891
      %v1893 = vpop.f32.mrb[0].mxu0
      %1894 = vmatprep.mubr.f32.mxu0 0.0
      %1895 = vmatmul.mubr.f32.gmra.mrb[0].mxu0 %v1762
      %v1896 = vpop.f32.mrb[0].mxu0
      %v1897 = vadd.f32 0.0, %v1896
      %v1898 = vpop.f32.mrb[0].mxu0
      %1899 = vmatprep.mubr.f32.mxu0 0.0
      %1900 = vmatmul.mubr.f32.gmra.mrb[0].mxu0 %v1763
      %v1901 = vpop.f32.mrb[0].mxu0
      %v1902 = vadd.f32 0.0, %v1901
      %v1903 = vpop.f32.mrb[0].mxu0
      %1904 = vmatprep.mubr.f32.mxu0 0.0
      %1905 = vmatmul.mubr.f32.gmra.mrb[0].mxu0 %v1764
      %v1906 = vpop.f32.mrb[0].mxu0
      %v1907 = vadd.f32 0.0, %v1906
      %v1908 = vpop.f32.mrb[0].mxu0
      %1909 = vmatprep.mubr.f32.mxu0 0.0
      %1910 = vmatmul.mubr.f32.gmra.mrb[0].mxu0 %v1765
      %v1911 = vpop.f32.mrb[0].mxu0
      %v1912 = vadd.f32 0.0, %v1911
      %v1913 = vpop.f32.mrb[0].mxu0
      %1914 = vmatprep.mubr.f32.mxu0 0.0
      %1915 = vmatmul.mubr.f32.gmra.mrb[0].mxu0 %v1766
      %v1916 = vpop.f32.mrb[0].mxu0
      %v1917 = vadd.f32 0.0, %v1916
      %v1918 = vpop.f32.mrb[0].mxu0
      %1919 = vmatprep.mubr.f32.mxu0 0.0
      %1920 = vmatmul.mubr.f32.gmra.mrb[0].mxu0 %v1767
      %v1921 = vpop.f32.mrb[0].mxu0
      %v1922 = vadd.f32 0.0, %v1921
      %v1923 = vpop.f32.mrb[0].mxu0
      %1924 = vmatprep.mubr.f32.mxu0 0.0
      %1925 = vmatmul.mubr.f32.gmra.mrb[0].mxu0 %v1768
      %v1926 = vpop.f32.mrb[0].mxu0
      %v1927 = vadd.f32 0.0, %v1926
      %v1928 = vpop.f32.mrb[0].mxu0
      %1929 = vmatprep.mubr.f32.mxu0 0.0
      %1930 = vmatmul.mubr.f32.gmra.mrb[0].mxu0 %v1769
      %v1931 = vpop.f32.mrb[0].mxu0
      %v1932 = vadd.f32 0.0, %v1931
      %v1933 = vpop.f32.mrb[0].mxu0
      %1934 = vmatprep.mubr.f32.mxu0 0.0
      %1935 = vmatmul.mubr.f32.gmra.mrb[0].mxu0 %v1770
      %v1936 = vpop.f32.mrb[0].mxu0
      %v1937 = vadd.f32 0.0, %v1936
      %v1938 = vpop.f32.mrb[0].mxu0
      %1939 = vmatprep.mubr.f32.mxu0 0.0
      %1940 = vmatmul.mubr.f32.gmra.mrb[0].mxu0 %v1771
      %v1941 = vpop.f32.mrb[0].mxu0
      %v1942 = vadd.f32 0.0, %v1941
      %v1943 = vpop.f32.mrb[0].mxu0
      %1944 = vmatprep.mubr.f32.mxu0 0.0
      %1945 = vmatmul.mubr.f32.gmra.mrb[0].mxu0 %v1772
      %v1946 = vpop.f32.mrb[0].mxu0
      %v1947 = vadd.f32 0.0, %v1946
      %v1948 = vpop.f32.mrb[0].mxu0
      %1949 = vmatprep.mubr.f32.mxu0 0.0
      %1950 = vmatmul.mubr.f32.gmra.mrb[0].mxu0 %v1773
      %v1951 = vpop.f32.mrb[0].mxu0
      %v1952 = vadd.f32 0.0, %v1951
      %v1953 = vpop.f32.mrb[0].mxu0
      %1954 = vmatprep.mubr.f32.mxu0 0.0
      %1955 = vmatmul.mubr.f32.gmra.mrb[0].mxu0 %v1774
      %v1956 = vpop.f32.mrb[0].mxu0
      %v1957 = vadd.f32 0.0, %v1956
      %v1958 = vpop.f32.mrb[0].mxu0
      %1959 = vmatprep.mubr.f32.mxu0 0.0
      %1960 = vmatmul.mubr.f32.gmra.mrb[0].mxu0 %v1775
      %v1961 = vpop.f32.mrb[0].mxu0
      %v1962 = vadd.f32 0.0, %v1961
      %v1963 = vpop.f32.mrb[0].mxu0
      %1964 = vmatprep.mubr.f32.mxu0 0.0
      %1965 = vmatmul.mubr.f32.gmra.mrb[0].mxu0 %v1776
      %v1966 = vpop.f32.mrb[0].mxu0
      %v1967 = vadd.f32 0.0, %v1966
      %v1968 = vpop.f32.mrb[0].mxu0
      %1969 = vmatprep.mubr.f32.mxu0 0.0
      %1970 = vmatmul.mubr.f32.gmra.mrb[0].mxu0 %v1777
      %v1971 = vpop.f32.mrb[0].mxu0
      %v1972 = vadd.f32 0.0, %v1971
      %v1973 = vpop.f32.mrb[0].mxu0
      %1974 = vmatprep.mubr.f32.mxu0 0.0
      %1975 = vmatmul.mubr.f32.gmra.mrb[0].mxu0 %v1778
      %v1976 = vpop.f32.mrb[0].mxu0
      %v1977 = vadd.f32 0.0, %v1976
      %v1978 = vpop.f32.mrb[0].mxu0
      %1979 = vmatprep.mubr.f32.mxu0 0.0
      %1980 = vmatmul.mubr.f32.gmra.mrb[0].mxu0 %v1779
      %v1981 = vpop.f32.mrb[0].mxu0
      %v1982 = vadd.f32 0.0, %v1981
      %v1983 = vpop.f32.mrb[0].mxu0
      %1984 = vmatprep.mubr.f32.mxu0 0.0
      %1985 = vmatmul.mubr.f32.gmra.mrb[0].mxu0 %v1780
      %v1986 = vpop.f32.mrb[0].mxu0
      %v1987 = vadd.f32 0.0, %v1986
      %v1988 = vpop.f32.mrb[0].mxu0
      %1989 = vmatprep.mubr.f32.mxu0 0.0
      %1990 = vmatmul.mubr.f32.gmra.mrb[0].mxu0 %v1781
      %v1991 = vpop.f32.mrb[0].mxu0
      %v1992 = vadd.f32 0.0, %v1991
      %v1993 = vpop.f32.mrb[0].mxu0
      %1994 = vmatprep.mubr.f32.mxu0 0.0
      %1995 = vmatmul.mubr.f32.gmra.mrb[0].mxu0 %v1782
      %v1996 = vpop.f32.mrb[0].mxu0
      %v1997 = vadd.f32 0.0, %v1996
      %v1998 = vpop.f32.mrb[0].mxu0
      %1999 = vmatprep.mubr.f32.mxu0 0.0
      %2000 = vmatmul.mubr.f32.gmra.mrb[0].mxu0 %v1783
      %v2001 = vpop.f32.mrb[0].mxu0
      %v2002 = vadd.f32 0.0, %v2001
      %v2003 = vpop.f32.mrb[0].mxu0
      %2004 = vmatprep.mubr.f32.mxu0 0.0
      %2005 = vmatmul.mubr.f32.gmra.mrb[0].mxu0 %v1784
      %v2006 = vpop.f32.mrb[0].mxu0
      %v2007 = vadd.f32 0.0, %v2006
      %v2008 = vpop.f32.mrb[0].mxu0
      %2009 = vmatprep.mubr.f32.mxu0 0.0
      %2010 = vmatmul.mubr.f32.gmra.mrb[0].mxu0 %v1785
      %v2011 = vpop.f32.mrb[0].mxu0
      %v2012 = vadd.f32 0.0, %v2011
      %v2013 = vpop.f32.mrb[0].mxu0
      %2014 = vmatprep.mubr.f32.mxu0 0.0
      %2015 = vmatmul.mubr.f32.gmra.mrb[0].mxu0 %v1786
      %v2016 = vpop.f32.mrb[0].mxu0
      %v2017 = vadd.f32 0.0, %v2016
      %v2018 = vpop.f32.mrb[0].mxu0
      %2019 = vmatprep.mubr.f32.mxu0 0.0
      %2020 = vmatmul.mubr.f32.gmra.mrb[0].mxu0 %v1787
      %v2021 = vpop.f32.mrb[0].mxu0
      %v2022 = vadd.f32 0.0, %v2021
      %v2023 = vpop.f32.mrb[0].mxu0
      %2024 = vmatprep.mubr.f32.mxu0 0.0
      %2025 = vmatmul.mubr.f32.gmra.mrb[0].mxu0 %v1788
      %v2026 = vpop.f32.mrb[0].mxu0
      %v2027 = vadd.f32 0.0, %v2026
      %v2028 = vpop.f32.mrb[0].mxu0
      %2029 = vdwg.mxu0
      %v2030 = vadd.f32 %v1725, %v1872
      %v2031 = vadd.f32 %v1726, %v1877
      %v2032 = vadd.f32 %v1727, %v1882
      %v2033 = vadd.f32 %v1728, %v1887
      %v2034 = vadd.f32 %v1729, %v1892
      %v2035 = vadd.f32 %v1730, %v1897
      %v2036 = vadd.f32 %v1731, %v1902
      %v2037 = vadd.f32 %v1732, %v1907
      %v2038 = vadd.f32 %v1733, %v1912
      %v2039 = vadd.f32 %v1734, %v1917
      %v2040 = vadd.f32 %v1735, %v1922
      %v2041 = vadd.f32 %v1736, %v1927
      %v2042 = vadd.f32 %v1737, %v1932
      %v2043 = vadd.f32 %v1738, %v1937
      %v2044 = vadd.f32 %v1739, %v1942
      %v2045 = vadd.f32 %v1740, %v1947
      %v2046 = vadd.f32 %v1741, %v1952
      %v2047 = vadd.f32 %v1742, %v1957
      %v2048 = vadd.f32 %v1743, %v1962
      %v2049 = vadd.f32 %v1744, %v1967
      %v2050 = vadd.f32 %v1745, %v1972
      %v2051 = vadd.f32 %v1746, %v1977
      %v2052 = vadd.f32 %v1747, %v1982
      %v2053 = vadd.f32 %v1748, %v1987
      %v2054 = vadd.f32 %v1749, %v1992
      %v2055 = vadd.f32 %v1750, %v1997
      %v2056 = vadd.f32 %v1751, %v2002
      %v2057 = vadd.f32 %v1752, %v2007
      %v2058 = vadd.f32 %v1753, %v2012
      %v2059 = vadd.f32 %v1754, %v2017
      %v2060 = vadd.f32 %v1755, %v2022
      %v2061 = vadd.f32 %v1756, %v2027
      %v2062 = vld [vmem:[%s568 + $0x9] sm:$0xff]
      %v2063 = vld [vmem:[%s568 + $0x11] sm:$0xff]
      %v2064 = vld [vmem:[%s568 + $0x29] sm:$0xff]
      %v2065 = vld [vmem:[%s568 + $0x31] sm:$0xff]
      %v2066 = vld [vmem:[%s568 + $0x49] sm:$0xff]
      %v2067 = vld [vmem:[%s568 + $0x51] sm:$0xff]
      %v2068 = vld [vmem:[%s568 + $0x69] sm:$0xff]
      %v2069 = vld [vmem:[%s568 + $0x71] sm:$0xff]
      %v2070 = vld [vmem:[%s568 + $0x89] sm:$0xff]
      %v2071 = vld [vmem:[%s568 + $0x91] sm:$0xff]
      %v2072 = vld [vmem:[%s568 + $0xa9] sm:$0xff]
      %v2073 = vld [vmem:[%s568 + $0xb1] sm:$0xff]
      %v2074 = vld [vmem:[%s568 + $0xc9] sm:$0xff]
      %v2075 = vld [vmem:[%s568 + $0xd1] sm:$0xff]
      %v2076 = vld [vmem:[%s568 + $0xe9] sm:$0xff]
      %v2077 = vld [vmem:[%s568 + $0xf1] sm:$0xff]
      %v2078 = vld [vmem:[%s568 + $0x109] sm:$0xff]
      %v2079 = vld [vmem:[%s568 + $0x111] sm:$0xff]
      %v2080 = vld [vmem:[%s568 + $0x129] sm:$0xff]
      %v2081 = vld [vmem:[%s568 + $0x131] sm:$0xff]
      %v2082 = vld [vmem:[%s568 + $0x149] sm:$0xff]
      %v2083 = vld [vmem:[%s568 + $0x151] sm:$0xff]
      %v2084 = vld [vmem:[%s568 + $0x169] sm:$0xff]
      %v2085 = vld [vmem:[%s568 + $0x171] sm:$0xff]
      %v2086 = vld [vmem:[%s568 + $0x189] sm:$0xff]
      %v2087 = vld [vmem:[%s568 + $0x191] sm:$0xff]
      %v2088 = vld [vmem:[%s568 + $0x1a9] sm:$0xff]
      %v2089 = vld [vmem:[%s568 + $0x1b1] sm:$0xff]
      %v2090 = vld [vmem:[%s568 + $0x1c9] sm:$0xff]
      %v2091 = vld [vmem:[%s568 + $0x1d1] sm:$0xff]
      %v2092 = vld [vmem:[%s568 + $0x1e9] sm:$0xff]
      %v2093 = vld [vmem:[%s568 + $0x1f1] sm:$0xff]
      %v2094 = vld [vmem:[%s8 + $0x280] sm:$0xff]
      %v2095 = vld [vmem:[%s8 + $0x288] sm:$0xff]
      %v2096 = vld [vmem:[%s8 + $0x290] sm:$0xff]
      %v2097 = vld [vmem:[%s8 + $0x298] sm:$0xff]
      %v2098 = vld [vmem:[%s8 + $0x2a0] sm:$0xff]
      %v2099 = vld [vmem:[%s8 + $0x2a8] sm:$0xff]
      %v2100 = vld [vmem:[%s8 + $0x2b0] sm:$0xff]
      %v2101 = vld [vmem:[%s8 + $0x2b8] sm:$0xff]
      %v2102 = vld [vmem:[%s8 + $0x2c0] sm:$0xff]
      %v2103 = vld [vmem:[%s8 + $0x2c8] sm:$0xff]
      %v2104 = vld [vmem:[%s8 + $0x2d0] sm:$0xff]
      %v2105 = vld [vmem:[%s8 + $0x2d8] sm:$0xff]
      %v2106 = vld [vmem:[%s8 + $0x2e0] sm:$0xff]
      %v2107 = vld [vmem:[%s8 + $0x2e8] sm:$0xff]
      %v2108 = vld [vmem:[%s8 + $0x2f0] sm:$0xff]
      %v2109 = vld [vmem:[%s8 + $0x2f8] sm:$0xff]
      %2110 = vmatprep.subr.mxu0 0.0
      %2111 = vmatpush1.msra.mxu0 %v2094
      %2112 = vmatprep.subr.mxu0 0.0
      %2113 = vmatpush1.msra.mxu0 %v2095
      %2114 = vmatprep.subr.mxu0 0.0
      %2115 = vmatpush1.msra.mxu0 %v2096
      %2116 = vmatprep.subr.mxu0 0.0
      %2117 = vmatpush1.msra.mxu0 %v2097
      %2118 = vmatprep.subr.mxu0 0.0
      %2119 = vmatpush1.msra.mxu0 %v2098
      %2120 = vmatprep.subr.mxu0 0.0
      %2121 = vmatpush1.msra.mxu0 %v2099
      %2122 = vmatprep.subr.mxu0 0.0
      %2123 = vmatpush1.msra.mxu0 %v2100
      %2124 = vmatprep.subr.mxu0 0.0
      %2125 = vmatpush1.msra.mxu0 %v2101
      %2126 = vmatprep.subr.mxu0 0.0
      %2127 = vmatpush1.msra.mxu0 %v2102
      %2128 = vmatprep.subr.mxu0 0.0
      %2129 = vmatpush1.msra.mxu0 %v2103
      %2130 = vmatprep.subr.mxu0 0.0
      %2131 = vmatpush1.msra.mxu0 %v2104
      %2132 = vmatprep.subr.mxu0 0.0
      %2133 = vmatpush1.msra.mxu0 %v2105
      %2134 = vmatprep.subr.mxu0 0.0
      %2135 = vmatpush1.msra.mxu0 %v2106
      %2136 = vmatprep.subr.mxu0 0.0
      %2137 = vmatpush1.msra.mxu0 %v2107
      %2138 = vmatprep.subr.mxu0 0.0
      %2139 = vmatpush1.msra.mxu0 %v2108
      %2140 = vmatprep.subr.mxu0 0.0
      %2141 = vmatpush1.msra.mxu0 %v2109
      %2142 = vmatprep.subr.mxu0 0.0
      %2143 = vmatpush1.msra.mxu0 0.0
      %2144 = vmatprep.subr.mxu0 0.0
      %2145 = vmatpush1.msra.mxu0 0.0
      %2146 = vmatprep.subr.mxu0 0.0
      %2147 = vmatpush1.msra.mxu0 0.0
      %2148 = vmatprep.subr.mxu0 0.0
      %2149 = vmatpush1.msra.mxu0 0.0
      %2150 = vmatprep.subr.mxu0 0.0
      %2151 = vmatpush1.msra.mxu0 0.0
      %2152 = vmatprep.subr.mxu0 0.0
      %2153 = vmatpush1.msra.mxu0 0.0
      %2154 = vmatprep.subr.mxu0 0.0
      %2155 = vmatpush1.msra.mxu0 0.0
      %2156 = vmatprep.subr.mxu0 0.0
      %2157 = vmatpush1.msra.mxu0 0.0
      %2158 = vmatprep.subr.mxu0 0.0
      %2159 = vmatpush1.msra.mxu0 0.0
      %2160 = vmatprep.subr.mxu0 0.0
      %2161 = vmatpush1.msra.mxu0 0.0
      %2162 = vmatprep.subr.mxu0 0.0
      %2163 = vmatpush1.msra.mxu0 0.0
      %2164 = vmatprep.subr.mxu0 0.0
      %2165 = vmatpush1.msra.mxu0 0.0
      %2166 = vmatprep.subr.mxu0 0.0
      %2167 = vmatpush1.msra.mxu0 0.0
      %2168 = vmatprep.subr.mxu0 0.0
      %2169 = vmatpush1.msra.mxu0 0.0
      %2170 = vmatprep.subr.mxu0 0.0
      %2171 = vmatpush1.msra.mxu0 0.0
      %2172 = vmatprep.subr.mxu0 0.0
      %2173 = vmatpush1.msra.mxu0 0.0
      %2174 = vmatprep.mubr.f32.mxu0 0.0
      %2175 = vmatmul.mubr.f32.gmra.mrb[0].mxu0 %v2062
      %v2176 = vpop.f32.mrb[0].mxu0
      %v2177 = vadd.f32 0.0, %v2176
      %v2178 = vpop.f32.mrb[0].mxu0
      %2179 = vmatprep.mubr.f32.mxu0 0.0
      %2180 = vmatmul.mubr.f32.gmra.mrb[0].mxu0 %v2063
      %v2181 = vpop.f32.mrb[0].mxu0
      %v2182 = vadd.f32 0.0, %v2181
      %v2183 = vpop.f32.mrb[0].mxu0
      %2184 = vmatprep.mubr.f32.mxu0 0.0
      %2185 = vmatmul.mubr.f32.gmra.mrb[0].mxu0 %v2064
      %v2186 = vpop.f32.mrb[0].mxu0
      %v2187 = vadd.f32 0.0, %v2186
      %v2188 = vpop.f32.mrb[0].mxu0
      %2189 = vmatprep.mubr.f32.mxu0 0.0
      %2190 = vmatmul.mubr.f32.gmra.mrb[0].mxu0 %v2065
      %v2191 = vpop.f32.mrb[0].mxu0
      %v2192 = vadd.f32 0.0, %v2191
      %v2193 = vpop.f32.mrb[0].mxu0
      %2194 = vmatprep.mubr.f32.mxu0 0.0
      %2195 = vmatmul.mubr.f32.gmra.mrb[0].mxu0 %v2066
      %v2196 = vpop.f32.mrb[0].mxu0
      %v2197 = vadd.f32 0.0, %v2196
      %v2198 = vpop.f32.mrb[0].mxu0
      %2199 = vmatprep.mubr.f32.mxu0 0.0
      %2200 = vmatmul.mubr.f32.gmra.mrb[0].mxu0 %v2067
      %v2201 = vpop.f32.mrb[0].mxu0
      %v2202 = vadd.f32 0.0, %v2201
      %v2203 = vpop.f32.mrb[0].mxu0
      %2204 = vmatprep.mubr.f32.mxu0 0.0
      %2205 = vmatmul.mubr.f32.gmra.mrb[0].mxu0 %v2068
      %v2206 = vpop.f32.mrb[0].mxu0
      %v2207 = vadd.f32 0.0, %v2206
      %v2208 = vpop.f32.mrb[0].mxu0
      %2209 = vmatprep.mubr.f32.mxu0 0.0
      %2210 = vmatmul.mubr.f32.gmra.mrb[0].mxu0 %v2069
      %v2211 = vpop.f32.mrb[0].mxu0
      %v2212 = vadd.f32 0.0, %v2211
      %v2213 = vpop.f32.mrb[0].mxu0
      %2214 = vmatprep.mubr.f32.mxu0 0.0
      %2215 = vmatmul.mubr.f32.gmra.mrb[0].mxu0 %v2070
      %v2216 = vpop.f32.mrb[0].mxu0
      %v2217 = vadd.f32 0.0, %v2216
      %v2218 = vpop.f32.mrb[0].mxu0
      %2219 = vmatprep.mubr.f32.mxu0 0.0
      %2220 = vmatmul.mubr.f32.gmra.mrb[0].mxu0 %v2071
      %v2221 = vpop.f32.mrb[0].mxu0
      %v2222 = vadd.f32 0.0, %v2221
      %v2223 = vpop.f32.mrb[0].mxu0
      %2224 = vmatprep.mubr.f32.mxu0 0.0
      %2225 = vmatmul.mubr.f32.gmra.mrb[0].mxu0 %v2072
      %v2226 = vpop.f32.mrb[0].mxu0
      %v2227 = vadd.f32 0.0, %v2226
      %v2228 = vpop.f32.mrb[0].mxu0
      %2229 = vmatprep.mubr.f32.mxu0 0.0
      %2230 = vmatmul.mubr.f32.gmra.mrb[0].mxu0 %v2073
      %v2231 = vpop.f32.mrb[0].mxu0
      %v2232 = vadd.f32 0.0, %v2231
      %v2233 = vpop.f32.mrb[0].mxu0
      %2234 = vmatprep.mubr.f32.mxu0 0.0
      %2235 = vmatmul.mubr.f32.gmra.mrb[0].mxu0 %v2074
      %v2236 = vpop.f32.mrb[0].mxu0
      %v2237 = vadd.f32 0.0, %v2236
      %v2238 = vpop.f32.mrb[0].mxu0
      %2239 = vmatprep.mubr.f32.mxu0 0.0
      %2240 = vmatmul.mubr.f32.gmra.mrb[0].mxu0 %v2075
      %v2241 = vpop.f32.mrb[0].mxu0
      %v2242 = vadd.f32 0.0, %v2241
      %v2243 = vpop.f32.mrb[0].mxu0
      %2244 = vmatprep.mubr.f32.mxu0 0.0
      %2245 = vmatmul.mubr.f32.gmra.mrb[0].mxu0 %v2076
      %v2246 = vpop.f32.mrb[0].mxu0
      %v2247 = vadd.f32 0.0, %v2246
      %v2248 = vpop.f32.mrb[0].mxu0
      %2249 = vmatprep.mubr.f32.mxu0 0.0
      %2250 = vmatmul.mubr.f32.gmra.mrb[0].mxu0 %v2077
      %v2251 = vpop.f32.mrb[0].mxu0
      %v2252 = vadd.f32 0.0, %v2251
      %v2253 = vpop.f32.mrb[0].mxu0
      %2254 = vmatprep.mubr.f32.mxu0 0.0
      %2255 = vmatmul.mubr.f32.gmra.mrb[0].mxu0 %v2078
      %v2256 = vpop.f32.mrb[0].mxu0
      %v2257 = vadd.f32 0.0, %v2256
      %v2258 = vpop.f32.mrb[0].mxu0
      %2259 = vmatprep.mubr.f32.mxu0 0.0
      %2260 = vmatmul.mubr.f32.gmra.mrb[0].mxu0 %v2079
      %v2261 = vpop.f32.mrb[0].mxu0
      %v2262 = vadd.f32 0.0, %v2261
      %v2263 = vpop.f32.mrb[0].mxu0
      %2264 = vmatprep.mubr.f32.mxu0 0.0
      %2265 = vmatmul.mubr.f32.gmra.mrb[0].mxu0 %v2080
      %v2266 = vpop.f32.mrb[0].mxu0
      %v2267 = vadd.f32 0.0, %v2266
      %v2268 = vpop.f32.mrb[0].mxu0
      %2269 = vmatprep.mubr.f32.mxu0 0.0
      %2270 = vmatmul.mubr.f32.gmra.mrb[0].mxu0 %v2081
      %v2271 = vpop.f32.mrb[0].mxu0
      %v2272 = vadd.f32 0.0, %v2271
      %v2273 = vpop.f32.mrb[0].mxu0
      %2274 = vmatprep.mubr.f32.mxu0 0.0
      %2275 = vmatmul.mubr.f32.gmra.mrb[0].mxu0 %v2082
      %v2276 = vpop.f32.mrb[0].mxu0
      %v2277 = vadd.f32 0.0, %v2276
      %v2278 = vpop.f32.mrb[0].mxu0
      %2279 = vmatprep.mubr.f32.mxu0 0.0
      %2280 = vmatmul.mubr.f32.gmra.mrb[0].mxu0 %v2083
      %v2281 = vpop.f32.mrb[0].mxu0
      %v2282 = vadd.f32 0.0, %v2281
      %v2283 = vpop.f32.mrb[0].mxu0
      %2284 = vmatprep.mubr.f32.mxu0 0.0
      %2285 = vmatmul.mubr.f32.gmra.mrb[0].mxu0 %v2084
      %v2286 = vpop.f32.mrb[0].mxu0
      %v2287 = vadd.f32 0.0, %v2286
      %v2288 = vpop.f32.mrb[0].mxu0
      %2289 = vmatprep.mubr.f32.mxu0 0.0
      %2290 = vmatmul.mubr.f32.gmra.mrb[0].mxu0 %v2085
      %v2291 = vpop.f32.mrb[0].mxu0
      %v2292 = vadd.f32 0.0, %v2291
      %v2293 = vpop.f32.mrb[0].mxu0
      %2294 = vmatprep.mubr.f32.mxu0 0.0
      %2295 = vmatmul.mubr.f32.gmra.mrb[0].mxu0 %v2086
      %v2296 = vpop.f32.mrb[0].mxu0
      %v2297 = vadd.f32 0.0, %v2296
      %v2298 = vpop.f32.mrb[0].mxu0
      %2299 = vmatprep.mubr.f32.mxu0 0.0
      %2300 = vmatmul.mubr.f32.gmra.mrb[0].mxu0 %v2087
      %v2301 = vpop.f32.mrb[0].mxu0
      %v2302 = vadd.f32 0.0, %v2301
      %v2303 = vpop.f32.mrb[0].mxu0
      %2304 = vmatprep.mubr.f32.mxu0 0.0
      %2305 = vmatmul.mubr.f32.gmra.mrb[0].mxu0 %v2088
      %v2306 = vpop.f32.mrb[0].mxu0
      %v2307 = vadd.f32 0.0, %v2306
      %v2308 = vpop.f32.mrb[0].mxu0
      %2309 = vmatprep.mubr.f32.mxu0 0.0
      %2310 = vmatmul.mubr.f32.gmra.mrb[0].mxu0 %v2089
      %v2311 = vpop.f32.mrb[0].mxu0
      %v2312 = vadd.f32 0.0, %v2311
      %v2313 = vpop.f32.mrb[0].mxu0
      %2314 = vmatprep.mubr.f32.mxu0 0.0
      %2315 = vmatmul.mubr.f32.gmra.mrb[0].mxu0 %v2090
      %v2316 = vpop.f32.mrb[0].mxu0
      %v2317 = vadd.f32 0.0, %v2316
      %v2318 = vpop.f32.mrb[0].mxu0
      %2319 = vmatprep.mubr.f32.mxu0 0.0
      %2320 = vmatmul.mubr.f32.gmra.mrb[0].mxu0 %v2091
      %v2321 = vpop.f32.mrb[0].mxu0
      %v2322 = vadd.f32 0.0, %v2321
      %v2323 = vpop.f32.mrb[0].mxu0
      %2324 = vmatprep.mubr.f32.mxu0 0.0
      %2325 = vmatmul.mubr.f32.gmra.mrb[0].mxu0 %v2092
      %v2326 = vpop.f32.mrb[0].mxu0
      %v2327 = vadd.f32 0.0, %v2326
      %v2328 = vpop.f32.mrb[0].mxu0
      %2329 = vmatprep.mubr.f32.mxu0 0.0
      %2330 = vmatmul.mubr.f32.gmra.mrb[0].mxu0 %v2093
      %v2331 = vpop.f32.mrb[0].mxu0
      %v2332 = vadd.f32 0.0, %v2331
      %v2333 = vpop.f32.mrb[0].mxu0
      %2334 = vdwg.mxu0
      %v2335 = vadd.f32 %v2030, %v2177
      %v2336 = vadd.f32 %v2031, %v2182
      %v2337 = vadd.f32 %v2032, %v2187
      %v2338 = vadd.f32 %v2033, %v2192
      %v2339 = vadd.f32 %v2034, %v2197
      %v2340 = vadd.f32 %v2035, %v2202
      %v2341 = vadd.f32 %v2036, %v2207
      %v2342 = vadd.f32 %v2037, %v2212
      %v2343 = vadd.f32 %v2038, %v2217
      %v2344 = vadd.f32 %v2039, %v2222
      %v2345 = vadd.f32 %v2040, %v2227
      %v2346 = vadd.f32 %v2041, %v2232
      %v2347 = vadd.f32 %v2042, %v2237
      %v2348 = vadd.f32 %v2043, %v2242
      %v2349 = vadd.f32 %v2044, %v2247
      %v2350 = vadd.f32 %v2045, %v2252
      %v2351 = vadd.f32 %v2046, %v2257
      %v2352 = vadd.f32 %v2047, %v2262
      %v2353 = vadd.f32 %v2048, %v2267
      %v2354 = vadd.f32 %v2049, %v2272
      %v2355 = vadd.f32 %v2050, %v2277
      %v2356 = vadd.f32 %v2051, %v2282
      %v2357 = vadd.f32 %v2052, %v2287
      %v2358 = vadd.f32 %v2053, %v2292
      %v2359 = vadd.f32 %v2054, %v2297
      %v2360 = vadd.f32 %v2055, %v2302
      %v2361 = vadd.f32 %v2056, %v2307
      %v2362 = vadd.f32 %v2057, %v2312
      %v2363 = vadd.f32 %v2058, %v2317
      %v2364 = vadd.f32 %v2059, %v2322
      %v2365 = vadd.f32 %v2060, %v2327
      %v2366 = vadd.f32 %v2061, %v2332
      %s2367 = scalar_lea.vmem [#allocation2], 64
      %v2368 = vld [vmem:[%s2367 + $0x7] sm:$0xff]
      %v2369 = vld [vmem:[%s2367 + $0xf] sm:$0xff]
      %v2370 = vld [vmem:[%s2367 + $0x27] sm:$0xff]
      %v2371 = vld [vmem:[%s2367 + $0x2f] sm:$0xff]
      %v2372 = vld [vmem:[%s2367 + $0x47] sm:$0xff]
      %v2373 = vld [vmem:[%s2367 + $0x4f] sm:$0xff]
      %v2374 = vld [vmem:[%s2367 + $0x67] sm:$0xff]
      %v2375 = vld [vmem:[%s2367 + $0x6f] sm:$0xff]
      %v2376 = vld [vmem:[%s2367 + $0x87] sm:$0xff]
      %v2377 = vld [vmem:[%s2367 + $0x8f] sm:$0xff]
      %v2378 = vld [vmem:[%s2367 + $0xa7] sm:$0xff]
      %v2379 = vld [vmem:[%s2367 + $0xaf] sm:$0xff]
      %v2380 = vld [vmem:[%s2367 + $0xc7] sm:$0xff]
      %v2381 = vld [vmem:[%s2367 + $0xcf] sm:$0xff]
      %v2382 = vld [vmem:[%s2367 + $0xe7] sm:$0xff]
      %v2383 = vld [vmem:[%s2367 + $0xef] sm:$0xff]
      %v2384 = vld [vmem:[%s2367 + $0x107] sm:$0xff]
      %v2385 = vld [vmem:[%s2367 + $0x10f] sm:$0xff]
      %v2386 = vld [vmem:[%s2367 + $0x127] sm:$0xff]
      %v2387 = vld [vmem:[%s2367 + $0x12f] sm:$0xff]
      %v2388 = vld [vmem:[%s2367 + $0x147] sm:$0xff]
      %v2389 = vld [vmem:[%s2367 + $0x14f] sm:$0xff]
      %v2390 = vld [vmem:[%s2367 + $0x167] sm:$0xff]
      %v2391 = vld [vmem:[%s2367 + $0x16f] sm:$0xff]
      %v2392 = vld [vmem:[%s2367 + $0x187] sm:$0xff]
      %v2393 = vld [vmem:[%s2367 + $0x18f] sm:$0xff]
      %v2394 = vld [vmem:[%s2367 + $0x1a7] sm:$0xff]
      %v2395 = vld [vmem:[%s2367 + $0x1af] sm:$0xff]
      %v2396 = vld [vmem:[%s2367 + $0x1c7] sm:$0xff]
      %v2397 = vld [vmem:[%s2367 + $0x1cf] sm:$0xff]
      %v2398 = vld [vmem:[%s2367 + $0x1e7] sm:$0xff]
      %v2399 = vld [vmem:[%s2367 + $0x1ef] sm:$0xff]
      %v2400 = vld [vmem:[%s8 + $0x300] sm:$0xff]
      %v2401 = vld [vmem:[%s8 + $0x308] sm:$0xff]
      %v2402 = vld [vmem:[%s8 + $0x310] sm:$0xff]
      %v2403 = vld [vmem:[%s8 + $0x318] sm:$0xff]
      %v2404 = vld [vmem:[%s8 + $0x320] sm:$0xff]
      %v2405 = vld [vmem:[%s8 + $0x328] sm:$0xff]
      %v2406 = vld [vmem:[%s8 + $0x330] sm:$0xff]
      %v2407 = vld [vmem:[%s8 + $0x338] sm:$0xff]
      %v2408 = vld [vmem:[%s8 + $0x340] sm:$0xff]
      %v2409 = vld [vmem:[%s8 + $0x348] sm:$0xff]
      %v2410 = vld [vmem:[%s8 + $0x350] sm:$0xff]
      %v2411 = vld [vmem:[%s8 + $0x358] sm:$0xff]
      %v2412 = vld [vmem:[%s8 + $0x360] sm:$0xff]
      %v2413 = vld [vmem:[%s8 + $0x368] sm:$0xff]
      %v2414 = vld [vmem:[%s8 + $0x370] sm:$0xff]
      %v2415 = vld [vmem:[%s8 + $0x378] sm:$0xff]
      %2416 = vmatprep.subr.mxu0 0.0
      %2417 = vmatpush1.msra.mxu0 %v2400
      %2418 = vmatprep.subr.mxu0 0.0
      %2419 = vmatpush1.msra.mxu0 %v2401
      %2420 = vmatprep.subr.mxu0 0.0
      %2421 = vmatpush1.msra.mxu0 %v2402
      %2422 = vmatprep.subr.mxu0 0.0
      %2423 = vmatpush1.msra.mxu0 %v2403
      %2424 = vmatprep.subr.mxu0 0.0
      %2425 = vmatpush1.msra.mxu0 %v2404
      %2426 = vmatprep.subr.mxu0 0.0
      %2427 = vmatpush1.msra.mxu0 %v2405
      %2428 = vmatprep.subr.mxu0 0.0
      %2429 = vmatpush1.msra.mxu0 %v2406
      %2430 = vmatprep.subr.mxu0 0.0
      %2431 = vmatpush1.msra.mxu0 %v2407
      %2432 = vmatprep.subr.mxu0 0.0
      %2433 = vmatpush1.msra.mxu0 %v2408
      %2434 = vmatprep.subr.mxu0 0.0
      %2435 = vmatpush1.msra.mxu0 %v2409
      %2436 = vmatprep.subr.mxu0 0.0
      %2437 = vmatpush1.msra.mxu0 %v2410
      %2438 = vmatprep.subr.mxu0 0.0
      %2439 = vmatpush1.msra.mxu0 %v2411
      %2440 = vmatprep.subr.mxu0 0.0
      %2441 = vmatpush1.msra.mxu0 %v2412
      %2442 = vmatprep.subr.mxu0 0.0
      %2443 = vmatpush1.msra.mxu0 %v2413
      %2444 = vmatprep.subr.mxu0 0.0
      %2445 = vmatpush1.msra.mxu0 %v2414
      %2446 = vmatprep.subr.mxu0 0.0
      %2447 = vmatpush1.msra.mxu0 %v2415
      %2448 = vmatprep.subr.mxu0 0.0
      %2449 = vmatpush1.msra.mxu0 0.0
      %2450 = vmatprep.subr.mxu0 0.0
      %2451 = vmatpush1.msra.mxu0 0.0
      %2452 = vmatprep.subr.mxu0 0.0
      %2453 = vmatpush1.msra.mxu0 0.0
      %2454 = vmatprep.subr.mxu0 0.0
      %2455 = vmatpush1.msra.mxu0 0.0
      %2456 = vmatprep.subr.mxu0 0.0
      %2457 = vmatpush1.msra.mxu0 0.0
      %2458 = vmatprep.subr.mxu0 0.0
      %2459 = vmatpush1.msra.mxu0 0.0
      %2460 = vmatprep.subr.mxu0 0.0
      %2461 = vmatpush1.msra.mxu0 0.0
      %2462 = vmatprep.subr.mxu0 0.0
      %2463 = vmatpush1.msra.mxu0 0.0
      %2464 = vmatprep.subr.mxu0 0.0
      %2465 = vmatpush1.msra.mxu0 0.0
      %2466 = vmatprep.subr.mxu0 0.0
      %2467 = vmatpush1.msra.mxu0 0.0
      %2468 = vmatprep.subr.mxu0 0.0
      %2469 = vmatpush1.msra.mxu0 0.0
      %2470 = vmatprep.subr.mxu0 0.0
      %2471 = vmatpush1.msra.mxu0 0.0
      %2472 = vmatprep.subr.mxu0 0.0
      %2473 = vmatpush1.msra.mxu0 0.0
      %2474 = vmatprep.subr.mxu0 0.0
      %2475 = vmatpush1.msra.mxu0 0.0
      %2476 = vmatprep.subr.mxu0 0.0
      %2477 = vmatpush1.msra.mxu0 0.0
      %2478 = vmatprep.subr.mxu0 0.0
      %2479 = vmatpush1.msra.mxu0 0.0
      %2480 = vmatprep.mubr.f32.mxu0 0.0
      %2481 = vmatmul.mubr.f32.gmra.mrb[0].mxu0 %v2368
      %v2482 = vpop.f32.mrb[0].mxu0
      %v2483 = vadd.f32 0.0, %v2482
      %v2484 = vpop.f32.mrb[0].mxu0
      %2485 = vmatprep.mubr.f32.mxu0 0.0
      %2486 = vmatmul.mubr.f32.gmra.mrb[0].mxu0 %v2369
      %v2487 = vpop.f32.mrb[0].mxu0
      %v2488 = vadd.f32 0.0, %v2487
      %v2489 = vpop.f32.mrb[0].mxu0
      %2490 = vmatprep.mubr.f32.mxu0 0.0
      %2491 = vmatmul.mubr.f32.gmra.mrb[0].mxu0 %v2370
      %v2492 = vpop.f32.mrb[0].mxu0
      %v2493 = vadd.f32 0.0, %v2492
      %v2494 = vpop.f32.mrb[0].mxu0
      %2495 = vmatprep.mubr.f32.mxu0 0.0
      %2496 = vmatmul.mubr.f32.gmra.mrb[0].mxu0 %v2371
      %v2497 = vpop.f32.mrb[0].mxu0
      %v2498 = vadd.f32 0.0, %v2497
      %v2499 = vpop.f32.mrb[0].mxu0
      %2500 = vmatprep.mubr.f32.mxu0 0.0
      %2501 = vmatmul.mubr.f32.gmra.mrb[0].mxu0 %v2372
      %v2502 = vpop.f32.mrb[0].mxu0
      %v2503 = vadd.f32 0.0, %v2502
      %v2504 = vpop.f32.mrb[0].mxu0
      %2505 = vmatprep.mubr.f32.mxu0 0.0
      %2506 = vmatmul.mubr.f32.gmra.mrb[0].mxu0 %v2373
      %v2507 = vpop.f32.mrb[0].mxu0
      %v2508 = vadd.f32 0.0, %v2507
      %v2509 = vpop.f32.mrb[0].mxu0
      %2510 = vmatprep.mubr.f32.mxu0 0.0
      %2511 = vmatmul.mubr.f32.gmra.mrb[0].mxu0 %v2374
      %v2512 = vpop.f32.mrb[0].mxu0
      %v2513 = vadd.f32 0.0, %v2512
      %v2514 = vpop.f32.mrb[0].mxu0
      %2515 = vmatprep.mubr.f32.mxu0 0.0
      %2516 = vmatmul.mubr.f32.gmra.mrb[0].mxu0 %v2375
      %v2517 = vpop.f32.mrb[0].mxu0
      %v2518 = vadd.f32 0.0, %v2517
      %v2519 = vpop.f32.mrb[0].mxu0
      %2520 = vmatprep.mubr.f32.mxu0 0.0
      %2521 = vmatmul.mubr.f32.gmra.mrb[0].mxu0 %v2376
      %v2522 = vpop.f32.mrb[0].mxu0
      %v2523 = vadd.f32 0.0, %v2522
      %v2524 = vpop.f32.mrb[0].mxu0
      %2525 = vmatprep.mubr.f32.mxu0 0.0
      %2526 = vmatmul.mubr.f32.gmra.mrb[0].mxu0 %v2377
      %v2527 = vpop.f32.mrb[0].mxu0
      %v2528 = vadd.f32 0.0, %v2527
      %v2529 = vpop.f32.mrb[0].mxu0
      %2530 = vmatprep.mubr.f32.mxu0 0.0
      %2531 = vmatmul.mubr.f32.gmra.mrb[0].mxu0 %v2378
      %v2532 = vpop.f32.mrb[0].mxu0
      %v2533 = vadd.f32 0.0, %v2532
      %v2534 = vpop.f32.mrb[0].mxu0
      %2535 = vmatprep.mubr.f32.mxu0 0.0
      %2536 = vmatmul.mubr.f32.gmra.mrb[0].mxu0 %v2379
      %v2537 = vpop.f32.mrb[0].mxu0
      %v2538 = vadd.f32 0.0, %v2537
      %v2539 = vpop.f32.mrb[0].mxu0
      %2540 = vmatprep.mubr.f32.mxu0 0.0
      %2541 = vmatmul.mubr.f32.gmra.mrb[0].mxu0 %v2380
      %v2542 = vpop.f32.mrb[0].mxu0
      %v2543 = vadd.f32 0.0, %v2542
      %v2544 = vpop.f32.mrb[0].mxu0
      %2545 = vmatprep.mubr.f32.mxu0 0.0
      %2546 = vmatmul.mubr.f32.gmra.mrb[0].mxu0 %v2381
      %v2547 = vpop.f32.mrb[0].mxu0
      %v2548 = vadd.f32 0.0, %v2547
      %v2549 = vpop.f32.mrb[0].mxu0
      %2550 = vmatprep.mubr.f32.mxu0 0.0
      %2551 = vmatmul.mubr.f32.gmra.mrb[0].mxu0 %v2382
      %v2552 = vpop.f32.mrb[0].mxu0
      %v2553 = vadd.f32 0.0, %v2552
      %v2554 = vpop.f32.mrb[0].mxu0
      %2555 = vmatprep.mubr.f32.mxu0 0.0
      %2556 = vmatmul.mubr.f32.gmra.mrb[0].mxu0 %v2383
      %v2557 = vpop.f32.mrb[0].mxu0
      %v2558 = vadd.f32 0.0, %v2557
      %v2559 = vpop.f32.mrb[0].mxu0
      %2560 = vmatprep.mubr.f32.mxu0 0.0
      %2561 = vmatmul.mubr.f32.gmra.mrb[0].mxu0 %v2384
      %v2562 = vpop.f32.mrb[0].mxu0
      %v2563 = vadd.f32 0.0, %v2562
      %v2564 = vpop.f32.mrb[0].mxu0
      %2565 = vmatprep.mubr.f32.mxu0 0.0
      %2566 = vmatmul.mubr.f32.gmra.mrb[0].mxu0 %v2385
      %v2567 = vpop.f32.mrb[0].mxu0
      %v2568 = vadd.f32 0.0, %v2567
      %v2569 = vpop.f32.mrb[0].mxu0
      %2570 = vmatprep.mubr.f32.mxu0 0.0
      %2571 = vmatmul.mubr.f32.gmra.mrb[0].mxu0 %v2386
      %v2572 = vpop.f32.mrb[0].mxu0
      %v2573 = vadd.f32 0.0, %v2572
      %v2574 = vpop.f32.mrb[0].mxu0
      %2575 = vmatprep.mubr.f32.mxu0 0.0
      %2576 = vmatmul.mubr.f32.gmra.mrb[0].mxu0 %v2387
      %v2577 = vpop.f32.mrb[0].mxu0
      %v2578 = vadd.f32 0.0, %v2577
      %v2579 = vpop.f32.mrb[0].mxu0
      %2580 = vmatprep.mubr.f32.mxu0 0.0
      %2581 = vmatmul.mubr.f32.gmra.mrb[0].mxu0 %v2388
      %v2582 = vpop.f32.mrb[0].mxu0
      %v2583 = vadd.f32 0.0, %v2582
      %v2584 = vpop.f32.mrb[0].mxu0
      %2585 = vmatprep.mubr.f32.mxu0 0.0
      %2586 = vmatmul.mubr.f32.gmra.mrb[0].mxu0 %v2389
      %v2587 = vpop.f32.mrb[0].mxu0
      %v2588 = vadd.f32 0.0, %v2587
      %v2589 = vpop.f32.mrb[0].mxu0
      %2590 = vmatprep.mubr.f32.mxu0 0.0
      %2591 = vmatmul.mubr.f32.gmra.mrb[0].mxu0 %v2390
      %v2592 = vpop.f32.mrb[0].mxu0
      %v2593 = vadd.f32 0.0, %v2592
      %v2594 = vpop.f32.mrb[0].mxu0
      %2595 = vmatprep.mubr.f32.mxu0 0.0
      %2596 = vmatmul.mubr.f32.gmra.mrb[0].mxu0 %v2391
      %v2597 = vpop.f32.mrb[0].mxu0
      %v2598 = vadd.f32 0.0, %v2597
      %v2599 = vpop.f32.mrb[0].mxu0
      %2600 = vmatprep.mubr.f32.mxu0 0.0
      %2601 = vmatmul.mubr.f32.gmra.mrb[0].mxu0 %v2392
      %v2602 = vpop.f32.mrb[0].mxu0
      %v2603 = vadd.f32 0.0, %v2602
      %v2604 = vpop.f32.mrb[0].mxu0
      %2605 = vmatprep.mubr.f32.mxu0 0.0
      %2606 = vmatmul.mubr.f32.gmra.mrb[0].mxu0 %v2393
      %v2607 = vpop.f32.mrb[0].mxu0
      %v2608 = vadd.f32 0.0, %v2607
      %v2609 = vpop.f32.mrb[0].mxu0
      %2610 = vmatprep.mubr.f32.mxu0 0.0
      %2611 = vmatmul.mubr.f32.gmra.mrb[0].mxu0 %v2394
      %v2612 = vpop.f32.mrb[0].mxu0
      %v2613 = vadd.f32 0.0, %v2612
      %v2614 = vpop.f32.mrb[0].mxu0
      %2615 = vmatprep.mubr.f32.mxu0 0.0
      %2616 = vmatmul.mubr.f32.gmra.mrb[0].mxu0 %v2395
      %v2617 = vpop.f32.mrb[0].mxu0
      %v2618 = vadd.f32 0.0, %v2617
      %v2619 = vpop.f32.mrb[0].mxu0
      %2620 = vmatprep.mubr.f32.mxu0 0.0
      %2621 = vmatmul.mubr.f32.gmra.mrb[0].mxu0 %v2396
      %v2622 = vpop.f32.mrb[0].mxu0
      %v2623 = vadd.f32 0.0, %v2622
      %v2624 = vpop.f32.mrb[0].mxu0
      %2625 = vmatprep.mubr.f32.mxu0 0.0
      %2626 = vmatmul.mubr.f32.gmra.mrb[0].mxu0 %v2397
      %v2627 = vpop.f32.mrb[0].mxu0
      %v2628 = vadd.f32 0.0, %v2627
      %v2629 = vpop.f32.mrb[0].mxu0
      %2630 = vmatprep.mubr.f32.mxu0 0.0
      %2631 = vmatmul.mubr.f32.gmra.mrb[0].mxu0 %v2398
      %v2632 = vpop.f32.mrb[0].mxu0
      %v2633 = vadd.f32 0.0, %v2632
      %v2634 = vpop.f32.mrb[0].mxu0
      %2635 = vmatprep.mubr.f32.mxu0 0.0
      %2636 = vmatmul.mubr.f32.gmra.mrb[0].mxu0 %v2399
      %v2637 = vpop.f32.mrb[0].mxu0
      %v2638 = vadd.f32 0.0, %v2637
      %v2639 = vpop.f32.mrb[0].mxu0
      %2640 = vdwg.mxu0
      %v2641 = vadd.f32 %v2335, %v2483
      %v2642 = vadd.f32 %v2336, %v2488
      %v2643 = vadd.f32 %v2337, %v2493
      %v2644 = vadd.f32 %v2338, %v2498
      %v2645 = vadd.f32 %v2339, %v2503
      %v2646 = vadd.f32 %v2340, %v2508
      %v2647 = vadd.f32 %v2341, %v2513
      %v2648 = vadd.f32 %v2342, %v2518
      %v2649 = vadd.f32 %v2343, %v2523
      %v2650 = vadd.f32 %v2344, %v2528
      %v2651 = vadd.f32 %v2345, %v2533
      %v2652 = vadd.f32 %v2346, %v2538
      %v2653 = vadd.f32 %v2347, %v2543
      %v2654 = vadd.f32 %v2348, %v2548
      %v2655 = vadd.f32 %v2349, %v2553
      %v2656 = vadd.f32 %v2350, %v2558
      %v2657 = vadd.f32 %v2351, %v2563
      %v2658 = vadd.f32 %v2352, %v2568
      %v2659 = vadd.f32 %v2353, %v2573
      %v2660 = vadd.f32 %v2354, %v2578
      %v2661 = vadd.f32 %v2355, %v2583
      %v2662 = vadd.f32 %v2356, %v2588
      %v2663 = vadd.f32 %v2357, %v2593
      %v2664 = vadd.f32 %v2358, %v2598
      %v2665 = vadd.f32 %v2359, %v2603
      %v2666 = vadd.f32 %v2360, %v2608
      %v2667 = vadd.f32 %v2361, %v2613
      %v2668 = vadd.f32 %v2362, %v2618
      %v2669 = vadd.f32 %v2363, %v2623
      %v2670 = vadd.f32 %v2364, %v2628
      %v2671 = vadd.f32 %v2365, %v2633
      %v2672 = vadd.f32 %v2366, %v2638
      %v2673 = vld [vmem:[%s2367 + $0x8] sm:$0xff]
      %v2674 = vld [vmem:[%s2367 + $0x10] sm:$0xff]
      %v2675 = vld [vmem:[%s2367 + $0x28] sm:$0xff]
      %v2676 = vld [vmem:[%s2367 + $0x30] sm:$0xff]
      %v2677 = vld [vmem:[%s2367 + $0x48] sm:$0xff]
      %v2678 = vld [vmem:[%s2367 + $0x50] sm:$0xff]
      %v2679 = vld [vmem:[%s2367 + $0x68] sm:$0xff]
      %v2680 = vld [vmem:[%s2367 + $0x70] sm:$0xff]
      %v2681 = vld [vmem:[%s2367 + $0x88] sm:$0xff]
      %v2682 = vld [vmem:[%s2367 + $0x90] sm:$0xff]
      %v2683 = vld [vmem:[%s2367 + $0xa8] sm:$0xff]
      %v2684 = vld [vmem:[%s2367 + $0xb0] sm:$0xff]
      %v2685 = vld [vmem:[%s2367 + $0xc8] sm:$0xff]
      %v2686 = vld [vmem:[%s2367 + $0xd0] sm:$0xff]
      %v2687 = vld [vmem:[%s2367 + $0xe8] sm:$0xff]
      %v2688 = vld [vmem:[%s2367 + $0xf0] sm:$0xff]
      %v2689 = vld [vmem:[%s2367 + $0x108] sm:$0xff]
      %v2690 = vld [vmem:[%s2367 + $0x110] sm:$0xff]
      %v2691 = vld [vmem:[%s2367 + $0x128] sm:$0xff]
      %v2692 = vld [vmem:[%s2367 + $0x130] sm:$0xff]
      %v2693 = vld [vmem:[%s2367 + $0x148] sm:$0xff]
      %v2694 = vld [vmem:[%s2367 + $0x150] sm:$0xff]
      %v2695 = vld [vmem:[%s2367 + $0x168] sm:$0xff]
      %v2696 = vld [vmem:[%s2367 + $0x170] sm:$0xff]
      %v2697 = vld [vmem:[%s2367 + $0x188] sm:$0xff]
      %v2698 = vld [vmem:[%s2367 + $0x190] sm:$0xff]
      %v2699 = vld [vmem:[%s2367 + $0x1a8] sm:$0xff]
      %v2700 = vld [vmem:[%s2367 + $0x1b0] sm:$0xff]
      %v2701 = vld [vmem:[%s2367 + $0x1c8] sm:$0xff]
      %v2702 = vld [vmem:[%s2367 + $0x1d0] sm:$0xff]
      %v2703 = vld [vmem:[%s2367 + $0x1e8] sm:$0xff]
      %v2704 = vld [vmem:[%s2367 + $0x1f0] sm:$0xff]
      %v2705 = vld [vmem:[%s8 + $0x380] sm:$0xff]
      %v2706 = vld [vmem:[%s8 + $0x388] sm:$0xff]
      %v2707 = vld [vmem:[%s8 + $0x390] sm:$0xff]
      %v2708 = vld [vmem:[%s8 + $0x398] sm:$0xff]
      %v2709 = vld [vmem:[%s8 + $0x3a0] sm:$0xff]
      %v2710 = vld [vmem:[%s8 + $0x3a8] sm:$0xff]
      %v2711 = vld [vmem:[%s8 + $0x3b0] sm:$0xff]
      %v2712 = vld [vmem:[%s8 + $0x3b8] sm:$0xff]
      %v2713 = vld [vmem:[%s8 + $0x3c0] sm:$0xff]
      %v2714 = vld [vmem:[%s8 + $0x3c8] sm:$0xff]
      %v2715 = vld [vmem:[%s8 + $0x3d0] sm:$0xff]
      %v2716 = vld [vmem:[%s8 + $0x3d8] sm:$0xff]
      %v2717 = vld [vmem:[%s8 + $0x3e0] sm:$0xff]
      %v2718 = vld [vmem:[%s8 + $0x3e8] sm:$0xff]
      %v2719 = vld [vmem:[%s8 + $0x3f0] sm:$0xff]
      %v2720 = vld [vmem:[%s8 + $0x3f8] sm:$0xff]
      %2721 = vmatprep.subr.mxu0 0.0
      %2722 = vmatpush1.msra.mxu0 %v2705
      %2723 = vmatprep.subr.mxu0 0.0
      %2724 = vmatpush1.msra.mxu0 %v2706
      %2725 = vmatprep.subr.mxu0 0.0
      %2726 = vmatpush1.msra.mxu0 %v2707
      %2727 = vmatprep.subr.mxu0 0.0
      %2728 = vmatpush1.msra.mxu0 %v2708
      %2729 = vmatprep.subr.mxu0 0.0
      %2730 = vmatpush1.msra.mxu0 %v2709
      %2731 = vmatprep.subr.mxu0 0.0
      %2732 = vmatpush1.msra.mxu0 %v2710
      %2733 = vmatprep.subr.mxu0 0.0
      %2734 = vmatpush1.msra.mxu0 %v2711
      %2735 = vmatprep.subr.mxu0 0.0
      %2736 = vmatpush1.msra.mxu0 %v2712
      %2737 = vmatprep.subr.mxu0 0.0
      %2738 = vmatpush1.msra.mxu0 %v2713
      %2739 = vmatprep.subr.mxu0 0.0
      %2740 = vmatpush1.msra.mxu0 %v2714
      %2741 = vmatprep.subr.mxu0 0.0
      %2742 = vmatpush1.msra.mxu0 %v2715
      %2743 = vmatprep.subr.mxu0 0.0
      %2744 = vmatpush1.msra.mxu0 %v2716
      %2745 = vmatprep.subr.mxu0 0.0
      %2746 = vmatpush1.msra.mxu0 %v2717
      %2747 = vmatprep.subr.mxu0 0.0
      %2748 = vmatpush1.msra.mxu0 %v2718
      %2749 = vmatprep.subr.mxu0 0.0
      %2750 = vmatpush1.msra.mxu0 %v2719
      %2751 = vmatprep.subr.mxu0 0.0
      %2752 = vmatpush1.msra.mxu0 %v2720
      %2753 = vmatprep.subr.mxu0 0.0
      %2754 = vmatpush1.msra.mxu0 0.0
      %2755 = vmatprep.subr.mxu0 0.0
      %2756 = vmatpush1.msra.mxu0 0.0
      %2757 = vmatprep.subr.mxu0 0.0
      %2758 = vmatpush1.msra.mxu0 0.0
      %2759 = vmatprep.subr.mxu0 0.0
      %2760 = vmatpush1.msra.mxu0 0.0
      %2761 = vmatprep.subr.mxu0 0.0
      %2762 = vmatpush1.msra.mxu0 0.0
      %2763 = vmatprep.subr.mxu0 0.0
      %2764 = vmatpush1.msra.mxu0 0.0
      %2765 = vmatprep.subr.mxu0 0.0
      %2766 = vmatpush1.msra.mxu0 0.0
      %2767 = vmatprep.subr.mxu0 0.0
      %2768 = vmatpush1.msra.mxu0 0.0
      %2769 = vmatprep.subr.mxu0 0.0
      %2770 = vmatpush1.msra.mxu0 0.0
      %2771 = vmatprep.subr.mxu0 0.0
      %2772 = vmatpush1.msra.mxu0 0.0
      %2773 = vmatprep.subr.mxu0 0.0
      %2774 = vmatpush1.msra.mxu0 0.0
      %2775 = vmatprep.subr.mxu0 0.0
      %2776 = vmatpush1.msra.mxu0 0.0
      %2777 = vmatprep.subr.mxu0 0.0
      %2778 = vmatpush1.msra.mxu0 0.0
      %2779 = vmatprep.subr.mxu0 0.0
      %2780 = vmatpush1.msra.mxu0 0.0
      %2781 = vmatprep.subr.mxu0 0.0
      %2782 = vmatpush1.msra.mxu0 0.0
      %2783 = vmatprep.subr.mxu0 0.0
      %2784 = vmatpush1.msra.mxu0 0.0
      %2785 = vmatprep.mubr.f32.mxu0 0.0
      %2786 = vmatmul.mubr.f32.gmra.mrb[0].mxu0 %v2673
      %v2787 = vpop.f32.mrb[0].mxu0
      %v2788 = vadd.f32 0.0, %v2787
      %v2789 = vpop.f32.mrb[0].mxu0
      %2790 = vmatprep.mubr.f32.mxu0 0.0
      %2791 = vmatmul.mubr.f32.gmra.mrb[0].mxu0 %v2674
      %v2792 = vpop.f32.mrb[0].mxu0
      %v2793 = vadd.f32 0.0, %v2792
      %v2794 = vpop.f32.mrb[0].mxu0
      %2795 = vmatprep.mubr.f32.mxu0 0.0
      %2796 = vmatmul.mubr.f32.gmra.mrb[0].mxu0 %v2675
      %v2797 = vpop.f32.mrb[0].mxu0
      %v2798 = vadd.f32 0.0, %v2797
      %v2799 = vpop.f32.mrb[0].mxu0
      %2800 = vmatprep.mubr.f32.mxu0 0.0
      %2801 = vmatmul.mubr.f32.gmra.mrb[0].mxu0 %v2676
      %v2802 = vpop.f32.mrb[0].mxu0
      %v2803 = vadd.f32 0.0, %v2802
      %v2804 = vpop.f32.mrb[0].mxu0
      %2805 = vmatprep.mubr.f32.mxu0 0.0
      %2806 = vmatmul.mubr.f32.gmra.mrb[0].mxu0 %v2677
      %v2807 = vpop.f32.mrb[0].mxu0
      %v2808 = vadd.f32 0.0, %v2807
      %v2809 = vpop.f32.mrb[0].mxu0
      %2810 = vmatprep.mubr.f32.mxu0 0.0
      %2811 = vmatmul.mubr.f32.gmra.mrb[0].mxu0 %v2678
      %v2812 = vpop.f32.mrb[0].mxu0
      %v2813 = vadd.f32 0.0, %v2812
      %v2814 = vpop.f32.mrb[0].mxu0
      %2815 = vmatprep.mubr.f32.mxu0 0.0
      %2816 = vmatmul.mubr.f32.gmra.mrb[0].mxu0 %v2679
      %v2817 = vpop.f32.mrb[0].mxu0
      %v2818 = vadd.f32 0.0, %v2817
      %v2819 = vpop.f32.mrb[0].mxu0
      %2820 = vmatprep.mubr.f32.mxu0 0.0
      %2821 = vmatmul.mubr.f32.gmra.mrb[0].mxu0 %v2680
      %v2822 = vpop.f32.mrb[0].mxu0
      %v2823 = vadd.f32 0.0, %v2822
      %v2824 = vpop.f32.mrb[0].mxu0
      %2825 = vmatprep.mubr.f32.mxu0 0.0
      %2826 = vmatmul.mubr.f32.gmra.mrb[0].mxu0 %v2681
      %v2827 = vpop.f32.mrb[0].mxu0
      %v2828 = vadd.f32 0.0, %v2827
      %v2829 = vpop.f32.mrb[0].mxu0
      %2830 = vmatprep.mubr.f32.mxu0 0.0
      %2831 = vmatmul.mubr.f32.gmra.mrb[0].mxu0 %v2682
      %v2832 = vpop.f32.mrb[0].mxu0
      %v2833 = vadd.f32 0.0, %v2832
      %v2834 = vpop.f32.mrb[0].mxu0
      %2835 = vmatprep.mubr.f32.mxu0 0.0
      %2836 = vmatmul.mubr.f32.gmra.mrb[0].mxu0 %v2683
      %v2837 = vpop.f32.mrb[0].mxu0
      %v2838 = vadd.f32 0.0, %v2837
      %v2839 = vpop.f32.mrb[0].mxu0
      %2840 = vmatprep.mubr.f32.mxu0 0.0
      %2841 = vmatmul.mubr.f32.gmra.mrb[0].mxu0 %v2684
      %v2842 = vpop.f32.mrb[0].mxu0
      %v2843 = vadd.f32 0.0, %v2842
      %v2844 = vpop.f32.mrb[0].mxu0
      %2845 = vmatprep.mubr.f32.mxu0 0.0
      %2846 = vmatmul.mubr.f32.gmra.mrb[0].mxu0 %v2685
      %v2847 = vpop.f32.mrb[0].mxu0
      %v2848 = vadd.f32 0.0, %v2847
      %v2849 = vpop.f32.mrb[0].mxu0
      %2850 = vmatprep.mubr.f32.mxu0 0.0
      %2851 = vmatmul.mubr.f32.gmra.mrb[0].mxu0 %v2686
      %v2852 = vpop.f32.mrb[0].mxu0
      %v2853 = vadd.f32 0.0, %v2852
      %v2854 = vpop.f32.mrb[0].mxu0
      %2855 = vmatprep.mubr.f32.mxu0 0.0
      %2856 = vmatmul.mubr.f32.gmra.mrb[0].mxu0 %v2687
      %v2857 = vpop.f32.mrb[0].mxu0
      %v2858 = vadd.f32 0.0, %v2857
      %v2859 = vpop.f32.mrb[0].mxu0
      %2860 = vmatprep.mubr.f32.mxu0 0.0
      %2861 = vmatmul.mubr.f32.gmra.mrb[0].mxu0 %v2688
      %v2862 = vpop.f32.mrb[0].mxu0
      %v2863 = vadd.f32 0.0, %v2862
      %v2864 = vpop.f32.mrb[0].mxu0
      %2865 = vmatprep.mubr.f32.mxu0 0.0
      %2866 = vmatmul.mubr.f32.gmra.mrb[0].mxu0 %v2689
      %v2867 = vpop.f32.mrb[0].mxu0
      %v2868 = vadd.f32 0.0, %v2867
      %v2869 = vpop.f32.mrb[0].mxu0
      %2870 = vmatprep.mubr.f32.mxu0 0.0
      %2871 = vmatmul.mubr.f32.gmra.mrb[0].mxu0 %v2690
      %v2872 = vpop.f32.mrb[0].mxu0
      %v2873 = vadd.f32 0.0, %v2872
      %v2874 = vpop.f32.mrb[0].mxu0
      %2875 = vmatprep.mubr.f32.mxu0 0.0
      %2876 = vmatmul.mubr.f32.gmra.mrb[0].mxu0 %v2691
      %v2877 = vpop.f32.mrb[0].mxu0
      %v2878 = vadd.f32 0.0, %v2877
      %v2879 = vpop.f32.mrb[0].mxu0
      %2880 = vmatprep.mubr.f32.mxu0 0.0
      %2881 = vmatmul.mubr.f32.gmra.mrb[0].mxu0 %v2692
      %v2882 = vpop.f32.mrb[0].mxu0
      %v2883 = vadd.f32 0.0, %v2882
      %v2884 = vpop.f32.mrb[0].mxu0
      %2885 = vmatprep.mubr.f32.mxu0 0.0
      %2886 = vmatmul.mubr.f32.gmra.mrb[0].mxu0 %v2693
      %v2887 = vpop.f32.mrb[0].mxu0
      %v2888 = vadd.f32 0.0, %v2887
      %v2889 = vpop.f32.mrb[0].mxu0
      %2890 = vmatprep.mubr.f32.mxu0 0.0
      %2891 = vmatmul.mubr.f32.gmra.mrb[0].mxu0 %v2694
      %v2892 = vpop.f32.mrb[0].mxu0
      %v2893 = vadd.f32 0.0, %v2892
      %v2894 = vpop.f32.mrb[0].mxu0
      %2895 = vmatprep.mubr.f32.mxu0 0.0
      %2896 = vmatmul.mubr.f32.gmra.mrb[0].mxu0 %v2695
      %v2897 = vpop.f32.mrb[0].mxu0
      %v2898 = vadd.f32 0.0, %v2897
      %v2899 = vpop.f32.mrb[0].mxu0
      %2900 = vmatprep.mubr.f32.mxu0 0.0
      %2901 = vmatmul.mubr.f32.gmra.mrb[0].mxu0 %v2696
      %v2902 = vpop.f32.mrb[0].mxu0
      %v2903 = vadd.f32 0.0, %v2902
      %v2904 = vpop.f32.mrb[0].mxu0
      %2905 = vmatprep.mubr.f32.mxu0 0.0
      %2906 = vmatmul.mubr.f32.gmra.mrb[0].mxu0 %v2697
      %v2907 = vpop.f32.mrb[0].mxu0
      %v2908 = vadd.f32 0.0, %v2907
      %v2909 = vpop.f32.mrb[0].mxu0
      %2910 = vmatprep.mubr.f32.mxu0 0.0
      %2911 = vmatmul.mubr.f32.gmra.mrb[0].mxu0 %v2698
      %v2912 = vpop.f32.mrb[0].mxu0
      %v2913 = vadd.f32 0.0, %v2912
      %v2914 = vpop.f32.mrb[0].mxu0
      %2915 = vmatprep.mubr.f32.mxu0 0.0
      %2916 = vmatmul.mubr.f32.gmra.mrb[0].mxu0 %v2699
      %v2917 = vpop.f32.mrb[0].mxu0
      %v2918 = vadd.f32 0.0, %v2917
      %v2919 = vpop.f32.mrb[0].mxu0
      %2920 = vmatprep.mubr.f32.mxu0 0.0
      %2921 = vmatmul.mubr.f32.gmra.mrb[0].mxu0 %v2700
      %v2922 = vpop.f32.mrb[0].mxu0
      %v2923 = vadd.f32 0.0, %v2922
      %v2924 = vpop.f32.mrb[0].mxu0
      %2925 = vmatprep.mubr.f32.mxu0 0.0
      %2926 = vmatmul.mubr.f32.gmra.mrb[0].mxu0 %v2701
      %v2927 = vpop.f32.mrb[0].mxu0
      %v2928 = vadd.f32 0.0, %v2927
      %v2929 = vpop.f32.mrb[0].mxu0
      %2930 = vmatprep.mubr.f32.mxu0 0.0
      %2931 = vmatmul.mubr.f32.gmra.mrb[0].mxu0 %v2702
      %v2932 = vpop.f32.mrb[0].mxu0
      %v2933 = vadd.f32 0.0, %v2932
      %v2934 = vpop.f32.mrb[0].mxu0
      %2935 = vmatprep.mubr.f32.mxu0 0.0
      %2936 = vmatmul.mubr.f32.gmra.mrb[0].mxu0 %v2703
      %v2937 = vpop.f32.mrb[0].mxu0
      %v2938 = vadd.f32 0.0, %v2937
      %v2939 = vpop.f32.mrb[0].mxu0
      %2940 = vmatprep.mubr.f32.mxu0 0.0
      %2941 = vmatmul.mubr.f32.gmra.mrb[0].mxu0 %v2704
      %v2942 = vpop.f32.mrb[0].mxu0
      %v2943 = vadd.f32 0.0, %v2942
      %v2944 = vpop.f32.mrb[0].mxu0
      %2945 = vdwg.mxu0
      %v2946 = vadd.f32 %v2641, %v2788
      %v2947 = vadd.f32 %v2642, %v2793
      %v2948 = vadd.f32 %v2643, %v2798
      %v2949 = vadd.f32 %v2644, %v2803
      %v2950 = vadd.f32 %v2645, %v2808
      %v2951 = vadd.f32 %v2646, %v2813
      %v2952 = vadd.f32 %v2647, %v2818
      %v2953 = vadd.f32 %v2648, %v2823
      %v2954 = vadd.f32 %v2649, %v2828
      %v2955 = vadd.f32 %v2650, %v2833
      %v2956 = vadd.f32 %v2651, %v2838
      %v2957 = vadd.f32 %v2652, %v2843
      %v2958 = vadd.f32 %v2653, %v2848
      %v2959 = vadd.f32 %v2654, %v2853
      %v2960 = vadd.f32 %v2655, %v2858
      %v2961 = vadd.f32 %v2656, %v2863
      %v2962 = vadd.f32 %v2657, %v2868
      %v2963 = vadd.f32 %v2658, %v2873
      %v2964 = vadd.f32 %v2659, %v2878
      %v2965 = vadd.f32 %v2660, %v2883
      %v2966 = vadd.f32 %v2661, %v2888
      %v2967 = vadd.f32 %v2662, %v2893
      %v2968 = vadd.f32 %v2663, %v2898
      %v2969 = vadd.f32 %v2664, %v2903
      %v2970 = vadd.f32 %v2665, %v2908
      %v2971 = vadd.f32 %v2666, %v2913
      %v2972 = vadd.f32 %v2667, %v2918
      %v2973 = vadd.f32 %v2668, %v2923
      %v2974 = vadd.f32 %v2669, %v2928
      %v2975 = vadd.f32 %v2670, %v2933
      %v2976 = vadd.f32 %v2671, %v2938
      %v2977 = vadd.f32 %v2672, %v2943
      %v2978 = vld [vmem:[%s2367 + $0x9] sm:$0xff]
      %v2979 = vld [vmem:[%s2367 + $0x11] sm:$0xff]
      %v2980 = vld [vmem:[%s2367 + $0x29] sm:$0xff]
      %v2981 = vld [vmem:[%s2367 + $0x31] sm:$0xff]
      %v2982 = vld [vmem:[%s2367 + $0x49] sm:$0xff]
      %v2983 = vld [vmem:[%s2367 + $0x51] sm:$0xff]
      %v2984 = vld [vmem:[%s2367 + $0x69] sm:$0xff]
      %v2985 = vld [vmem:[%s2367 + $0x71] sm:$0xff]
      %v2986 = vld [vmem:[%s2367 + $0x89] sm:$0xff]
      %v2987 = vld [vmem:[%s2367 + $0x91] sm:$0xff]
      %v2988 = vld [vmem:[%s2367 + $0xa9] sm:$0xff]
      %v2989 = vld [vmem:[%s2367 + $0xb1] sm:$0xff]
      %v2990 = vld [vmem:[%s2367 + $0xc9] sm:$0xff]
      %v2991 = vld [vmem:[%s2367 + $0xd1] sm:$0xff]
      %v2992 = vld [vmem:[%s2367 + $0xe9] sm:$0xff]
      %v2993 = vld [vmem:[%s2367 + $0xf1] sm:$0xff]
      %v2994 = vld [vmem:[%s2367 + $0x109] sm:$0xff]
      %v2995 = vld [vmem:[%s2367 + $0x111] sm:$0xff]
      %v2996 = vld [vmem:[%s2367 + $0x129] sm:$0xff]
      %v2997 = vld [vmem:[%s2367 + $0x131] sm:$0xff]
      %v2998 = vld [vmem:[%s2367 + $0x149] sm:$0xff]
      %v2999 = vld [vmem:[%s2367 + $0x151] sm:$0xff]
      %v3000 = vld [vmem:[%s2367 + $0x169] sm:$0xff]
      %v3001 = vld [vmem:[%s2367 + $0x171] sm:$0xff]
      %v3002 = vld [vmem:[%s2367 + $0x189] sm:$0xff]
      %v3003 = vld [vmem:[%s2367 + $0x191] sm:$0xff]
      %v3004 = vld [vmem:[%s2367 + $0x1a9] sm:$0xff]
      %v3005 = vld [vmem:[%s2367 + $0x1b1] sm:$0xff]
      %v3006 = vld [vmem:[%s2367 + $0x1c9] sm:$0xff]
      %v3007 = vld [vmem:[%s2367 + $0x1d1] sm:$0xff]
      %v3008 = vld [vmem:[%s2367 + $0x1e9] sm:$0xff]
      %v3009 = vld [vmem:[%s2367 + $0x1f1] sm:$0xff]
      %v3010 = vld [vmem:[%s8 + $0x400] sm:$0xff]
      %v3011 = vld [vmem:[%s8 + $0x408] sm:$0xff]
      %v3012 = vld [vmem:[%s8 + $0x410] sm:$0xff]
      %v3013 = vld [vmem:[%s8 + $0x418] sm:$0xff]
      %v3014 = vld [vmem:[%s8 + $0x420] sm:$0xff]
      %v3015 = vld [vmem:[%s8 + $0x428] sm:$0xff]
      %v3016 = vld [vmem:[%s8 + $0x430] sm:$0xff]
      %v3017 = vld [vmem:[%s8 + $0x438] sm:$0xff]
      %v3018 = vld [vmem:[%s8 + $0x440] sm:$0xff]
      %v3019 = vld [vmem:[%s8 + $0x448] sm:$0xff]
      %v3020 = vld [vmem:[%s8 + $0x450] sm:$0xff]
      %v3021 = vld [vmem:[%s8 + $0x458] sm:$0xff]
      %v3022 = vld [vmem:[%s8 + $0x460] sm:$0xff]
      %v3023 = vld [vmem:[%s8 + $0x468] sm:$0xff]
      %v3024 = vld [vmem:[%s8 + $0x470] sm:$0xff]
      %v3025 = vld [vmem:[%s8 + $0x478] sm:$0xff]
      %3026 = vmatprep.subr.mxu0 0.0
      %3027 = vmatpush1.msra.mxu0 %v3010
      %3028 = vmatprep.subr.mxu0 0.0
      %3029 = vmatpush1.msra.mxu0 %v3011
      %3030 = vmatprep.subr.mxu0 0.0
      %3031 = vmatpush1.msra.mxu0 %v3012
      %3032 = vmatprep.subr.mxu0 0.0
      %3033 = vmatpush1.msra.mxu0 %v3013
      %3034 = vmatprep.subr.mxu0 0.0
      %3035 = vmatpush1.msra.mxu0 %v3014
      %3036 = vmatprep.subr.mxu0 0.0
      %3037 = vmatpush1.msra.mxu0 %v3015
      %3038 = vmatprep.subr.mxu0 0.0
      %3039 = vmatpush1.msra.mxu0 %v3016
      %3040 = vmatprep.subr.mxu0 0.0
      %3041 = vmatpush1.msra.mxu0 %v3017
      %3042 = vmatprep.subr.mxu0 0.0
      %3043 = vmatpush1.msra.mxu0 %v3018
      %3044 = vmatprep.subr.mxu0 0.0
      %3045 = vmatpush1.msra.mxu0 %v3019
      %3046 = vmatprep.subr.mxu0 0.0
      %3047 = vmatpush1.msra.mxu0 %v3020
      %3048 = vmatprep.subr.mxu0 0.0
      %3049 = vmatpush1.msra.mxu0 %v3021
      %3050 = vmatprep.subr.mxu0 0.0
      %3051 = vmatpush1.msra.mxu0 %v3022
      %3052 = vmatprep.subr.mxu0 0.0
      %3053 = vmatpush1.msra.mxu0 %v3023
      %3054 = vmatprep.subr.mxu0 0.0
      %3055 = vmatpush1.msra.mxu0 %v3024
      %3056 = vmatprep.subr.mxu0 0.0
      %3057 = vmatpush1.msra.mxu0 %v3025
      %3058 = vmatprep.subr.mxu0 0.0
      %3059 = vmatpush1.msra.mxu0 0.0
      %3060 = vmatprep.subr.mxu0 0.0
      %3061 = vmatpush1.msra.mxu0 0.0
      %3062 = vmatprep.subr.mxu0 0.0
      %3063 = vmatpush1.msra.mxu0 0.0
      %3064 = vmatprep.subr.mxu0 0.0
      %3065 = vmatpush1.msra.mxu0 0.0
      %3066 = vmatprep.subr.mxu0 0.0
      %3067 = vmatpush1.msra.mxu0 0.0
      %3068 = vmatprep.subr.mxu0 0.0
      %3069 = vmatpush1.msra.mxu0 0.0
      %3070 = vmatprep.subr.mxu0 0.0
      %3071 = vmatpush1.msra.mxu0 0.0
      %3072 = vmatprep.subr.mxu0 0.0
      %3073 = vmatpush1.msra.mxu0 0.0
      %3074 = vmatprep.subr.mxu0 0.0
      %3075 = vmatpush1.msra.mxu0 0.0
      %3076 = vmatprep.subr.mxu0 0.0
      %3077 = vmatpush1.msra.mxu0 0.0
      %3078 = vmatprep.subr.mxu0 0.0
      %3079 = vmatpush1.msra.mxu0 0.0
      %3080 = vmatprep.subr.mxu0 0.0
      %3081 = vmatpush1.msra.mxu0 0.0
      %3082 = vmatprep.subr.mxu0 0.0
      %3083 = vmatpush1.msra.mxu0 0.0
      %3084 = vmatprep.subr.mxu0 0.0
      %3085 = vmatpush1.msra.mxu0 0.0
      %3086 = vmatprep.subr.mxu0 0.0
      %3087 = vmatpush1.msra.mxu0 0.0
      %3088 = vmatprep.subr.mxu0 0.0
      %3089 = vmatpush1.msra.mxu0 0.0
      %3090 = vmatprep.mubr.f32.mxu0 0.0
      %3091 = vmatmul.mubr.f32.gmra.mrb[0].mxu0 %v2978
      %v3092 = vpop.f32.mrb[0].mxu0
      %v3093 = vadd.f32 0.0, %v3092
      %v3094 = vpop.f32.mrb[0].mxu0
      %3095 = vmatprep.mubr.f32.mxu0 0.0
      %3096 = vmatmul.mubr.f32.gmra.mrb[0].mxu0 %v2979
      %v3097 = vpop.f32.mrb[0].mxu0
      %v3098 = vadd.f32 0.0, %v3097
      %v3099 = vpop.f32.mrb[0].mxu0
      %3100 = vmatprep.mubr.f32.mxu0 0.0
      %3101 = vmatmul.mubr.f32.gmra.mrb[0].mxu0 %v2980
      %v3102 = vpop.f32.mrb[0].mxu0
      %v3103 = vadd.f32 0.0, %v3102
      %v3104 = vpop.f32.mrb[0].mxu0
      %3105 = vmatprep.mubr.f32.mxu0 0.0
      %3106 = vmatmul.mubr.f32.gmra.mrb[0].mxu0 %v2981
      %v3107 = vpop.f32.mrb[0].mxu0
      %v3108 = vadd.f32 0.0, %v3107
      %v3109 = vpop.f32.mrb[0].mxu0
      %3110 = vmatprep.mubr.f32.mxu0 0.0
      %3111 = vmatmul.mubr.f32.gmra.mrb[0].mxu0 %v2982
      %v3112 = vpop.f32.mrb[0].mxu0
      %v3113 = vadd.f32 0.0, %v3112
      %v3114 = vpop.f32.mrb[0].mxu0
      %3115 = vmatprep.mubr.f32.mxu0 0.0
      %3116 = vmatmul.mubr.f32.gmra.mrb[0].mxu0 %v2983
      %v3117 = vpop.f32.mrb[0].mxu0
      %v3118 = vadd.f32 0.0, %v3117
      %v3119 = vpop.f32.mrb[0].mxu0
      %3120 = vmatprep.mubr.f32.mxu0 0.0
      %3121 = vmatmul.mubr.f32.gmra.mrb[0].mxu0 %v2984
      %v3122 = vpop.f32.mrb[0].mxu0
      %v3123 = vadd.f32 0.0, %v3122
      %v3124 = vpop.f32.mrb[0].mxu0
      %3125 = vmatprep.mubr.f32.mxu0 0.0
      %3126 = vmatmul.mubr.f32.gmra.mrb[0].mxu0 %v2985
      %v3127 = vpop.f32.mrb[0].mxu0
      %v3128 = vadd.f32 0.0, %v3127
      %v3129 = vpop.f32.mrb[0].mxu0
      %3130 = vmatprep.mubr.f32.mxu0 0.0
      %3131 = vmatmul.mubr.f32.gmra.mrb[0].mxu0 %v2986
      %v3132 = vpop.f32.mrb[0].mxu0
      %v3133 = vadd.f32 0.0, %v3132
      %v3134 = vpop.f32.mrb[0].mxu0
      %3135 = vmatprep.mubr.f32.mxu0 0.0
      %3136 = vmatmul.mubr.f32.gmra.mrb[0].mxu0 %v2987
      %v3137 = vpop.f32.mrb[0].mxu0
      %v3138 = vadd.f32 0.0, %v3137
      %v3139 = vpop.f32.mrb[0].mxu0
      %3140 = vmatprep.mubr.f32.mxu0 0.0
      %3141 = vmatmul.mubr.f32.gmra.mrb[0].mxu0 %v2988
      %v3142 = vpop.f32.mrb[0].mxu0
      %v3143 = vadd.f32 0.0, %v3142
      %v3144 = vpop.f32.mrb[0].mxu0
      %3145 = vmatprep.mubr.f32.mxu0 0.0
      %3146 = vmatmul.mubr.f32.gmra.mrb[0].mxu0 %v2989
      %v3147 = vpop.f32.mrb[0].mxu0
      %v3148 = vadd.f32 0.0, %v3147
      %v3149 = vpop.f32.mrb[0].mxu0
      %3150 = vmatprep.mubr.f32.mxu0 0.0
      %3151 = vmatmul.mubr.f32.gmra.mrb[0].mxu0 %v2990
      %v3152 = vpop.f32.mrb[0].mxu0
      %v3153 = vadd.f32 0.0, %v3152
      %v3154 = vpop.f32.mrb[0].mxu0
      %3155 = vmatprep.mubr.f32.mxu0 0.0
      %3156 = vmatmul.mubr.f32.gmra.mrb[0].mxu0 %v2991
      %v3157 = vpop.f32.mrb[0].mxu0
      %v3158 = vadd.f32 0.0, %v3157
      %v3159 = vpop.f32.mrb[0].mxu0
      %3160 = vmatprep.mubr.f32.mxu0 0.0
      %3161 = vmatmul.mubr.f32.gmra.mrb[0].mxu0 %v2992
      %v3162 = vpop.f32.mrb[0].mxu0
      %v3163 = vadd.f32 0.0, %v3162
      %v3164 = vpop.f32.mrb[0].mxu0
      %3165 = vmatprep.mubr.f32.mxu0 0.0
      %3166 = vmatmul.mubr.f32.gmra.mrb[0].mxu0 %v2993
      %v3167 = vpop.f32.mrb[0].mxu0
      %v3168 = vadd.f32 0.0, %v3167
      %v3169 = vpop.f32.mrb[0].mxu0
      %3170 = vmatprep.mubr.f32.mxu0 0.0
      %3171 = vmatmul.mubr.f32.gmra.mrb[0].mxu0 %v2994
      %v3172 = vpop.f32.mrb[0].mxu0
      %v3173 = vadd.f32 0.0, %v3172
      %v3174 = vpop.f32.mrb[0].mxu0
      %3175 = vmatprep.mubr.f32.mxu0 0.0
      %3176 = vmatmul.mubr.f32.gmra.mrb[0].mxu0 %v2995
      %v3177 = vpop.f32.mrb[0].mxu0
      %v3178 = vadd.f32 0.0, %v3177
      %v3179 = vpop.f32.mrb[0].mxu0
      %3180 = vmatprep.mubr.f32.mxu0 0.0
      %3181 = vmatmul.mubr.f32.gmra.mrb[0].mxu0 %v2996
      %v3182 = vpop.f32.mrb[0].mxu0
      %v3183 = vadd.f32 0.0, %v3182
      %v3184 = vpop.f32.mrb[0].mxu0
      %3185 = vmatprep.mubr.f32.mxu0 0.0
      %3186 = vmatmul.mubr.f32.gmra.mrb[0].mxu0 %v2997
      %v3187 = vpop.f32.mrb[0].mxu0
      %v3188 = vadd.f32 0.0, %v3187
      %v3189 = vpop.f32.mrb[0].mxu0
      %3190 = vmatprep.mubr.f32.mxu0 0.0
      %3191 = vmatmul.mubr.f32.gmra.mrb[0].mxu0 %v2998
      %v3192 = vpop.f32.mrb[0].mxu0
      %v3193 = vadd.f32 0.0, %v3192
      %v3194 = vpop.f32.mrb[0].mxu0
      %3195 = vmatprep.mubr.f32.mxu0 0.0
      %3196 = vmatmul.mubr.f32.gmra.mrb[0].mxu0 %v2999
      %v3197 = vpop.f32.mrb[0].mxu0
      %v3198 = vadd.f32 0.0, %v3197
      %v3199 = vpop.f32.mrb[0].mxu0
      %3200 = vmatprep.mubr.f32.mxu0 0.0
      %3201 = vmatmul.mubr.f32.gmra.mrb[0].mxu0 %v3000
      %v3202 = vpop.f32.mrb[0].mxu0
      %v3203 = vadd.f32 0.0, %v3202
      %v3204 = vpop.f32.mrb[0].mxu0
      %3205 = vmatprep.mubr.f32.mxu0 0.0
      %3206 = vmatmul.mubr.f32.gmra.mrb[0].mxu0 %v3001
      %v3207 = vpop.f32.mrb[0].mxu0
      %v3208 = vadd.f32 0.0, %v3207
      %v3209 = vpop.f32.mrb[0].mxu0
      %3210 = vmatprep.mubr.f32.mxu0 0.0
      %3211 = vmatmul.mubr.f32.gmra.mrb[0].mxu0 %v3002
      %v3212 = vpop.f32.mrb[0].mxu0
      %v3213 = vadd.f32 0.0, %v3212
      %v3214 = vpop.f32.mrb[0].mxu0
      %3215 = vmatprep.mubr.f32.mxu0 0.0
      %3216 = vmatmul.mubr.f32.gmra.mrb[0].mxu0 %v3003
      %v3217 = vpop.f32.mrb[0].mxu0
      %v3218 = vadd.f32 0.0, %v3217
      %v3219 = vpop.f32.mrb[0].mxu0
      %3220 = vmatprep.mubr.f32.mxu0 0.0
      %3221 = vmatmul.mubr.f32.gmra.mrb[0].mxu0 %v3004
      %v3222 = vpop.f32.mrb[0].mxu0
      %v3223 = vadd.f32 0.0, %v3222
      %v3224 = vpop.f32.mrb[0].mxu0
      %3225 = vmatprep.mubr.f32.mxu0 0.0
      %3226 = vmatmul.mubr.f32.gmra.mrb[0].mxu0 %v3005
      %v3227 = vpop.f32.mrb[0].mxu0
      %v3228 = vadd.f32 0.0, %v3227
      %v3229 = vpop.f32.mrb[0].mxu0
      %3230 = vmatprep.mubr.f32.mxu0 0.0
      %3231 = vmatmul.mubr.f32.gmra.mrb[0].mxu0 %v3006
      %v3232 = vpop.f32.mrb[0].mxu0
      %v3233 = vadd.f32 0.0, %v3232
      %v3234 = vpop.f32.mrb[0].mxu0
      %3235 = vmatprep.mubr.f32.mxu0 0.0
      %3236 = vmatmul.mubr.f32.gmra.mrb[0].mxu0 %v3007
      %v3237 = vpop.f32.mrb[0].mxu0
      %v3238 = vadd.f32 0.0, %v3237
      %v3239 = vpop.f32.mrb[0].mxu0
      %3240 = vmatprep.mubr.f32.mxu0 0.0
      %3241 = vmatmul.mubr.f32.gmra.mrb[0].mxu0 %v3008
      %v3242 = vpop.f32.mrb[0].mxu0
      %v3243 = vadd.f32 0.0, %v3242
      %v3244 = vpop.f32.mrb[0].mxu0
      %3245 = vmatprep.mubr.f32.mxu0 0.0
      %3246 = vmatmul.mubr.f32.gmra.mrb[0].mxu0 %v3009
      %v3247 = vpop.f32.mrb[0].mxu0
      %v3248 = vadd.f32 0.0, %v3247
      %v3249 = vpop.f32.mrb[0].mxu0
      %3250 = vdwg.mxu0
      %v3251 = vadd.f32 %v2946, %v3093
      %v3252 = vadd.f32 %v2947, %v3098
      %v3253 = vadd.f32 %v2948, %v3103
      %v3254 = vadd.f32 %v2949, %v3108
      %v3255 = vadd.f32 %v2950, %v3113
      %v3256 = vadd.f32 %v2951, %v3118
      %v3257 = vadd.f32 %v2952, %v3123
      %v3258 = vadd.f32 %v2953, %v3128
      %v3259 = vadd.f32 %v2954, %v3133
      %v3260 = vadd.f32 %v2955, %v3138
      %v3261 = vadd.f32 %v2956, %v3143
      %v3262 = vadd.f32 %v2957, %v3148
      %v3263 = vadd.f32 %v2958, %v3153
      %v3264 = vadd.f32 %v2959, %v3158
      %v3265 = vadd.f32 %v2960, %v3163
      %v3266 = vadd.f32 %v2961, %v3168
      %v3267 = vadd.f32 %v2962, %v3173
      %v3268 = vadd.f32 %v2963, %v3178
      %v3269 = vadd.f32 %v2964, %v3183
      %v3270 = vadd.f32 %v2965, %v3188
      %v3271 = vadd.f32 %v2966, %v3193
      %v3272 = vadd.f32 %v2967, %v3198
      %v3273 = vadd.f32 %v2968, %v3203
      %v3274 = vadd.f32 %v2969, %v3208
      %v3275 = vadd.f32 %v2970, %v3213
      %v3276 = vadd.f32 %v2971, %v3218
      %v3277 = vadd.f32 %v2972, %v3223
      %v3278 = vadd.f32 %v2973, %v3228
      %v3279 = vadd.f32 %v2974, %v3233
      %v3280 = vadd.f32 %v2975, %v3238
      %v3281 = vadd.f32 %v2976, %v3243
      %v3282 = vadd.f32 %v2977, %v3248
      %v3283 = vld [vmem:[%s9] sm:$0x1]
      %v3285 = vlaneseq
      %v3286 = vshrl.u32 %v3285, 7
      %v3287 = vsub.s32 0, %v3286
      %v3288 = vrot.slane %v3283, %v3287
      %v3290 = vadd.f32 %v3251, %v3288
      %v3291 = vadd.f32 %v3252, %v3288
      %v3292 = vadd.f32 %v3253, %v3288
      %v3293 = vadd.f32 %v3254, %v3288
      %v3294 = vadd.f32 %v3255, %v3288
      %v3295 = vadd.f32 %v3256, %v3288
      %v3296 = vadd.f32 %v3257, %v3288
      %v3297 = vadd.f32 %v3258, %v3288
      %v3298 = vadd.f32 %v3259, %v3288
      %v3299 = vadd.f32 %v3260, %v3288
      %v3300 = vadd.f32 %v3261, %v3288
      %v3301 = vadd.f32 %v3262, %v3288
      %v3302 = vadd.f32 %v3263, %v3288
      %v3303 = vadd.f32 %v3264, %v3288
      %v3304 = vadd.f32 %v3265, %v3288
      %v3305 = vadd.f32 %v3266, %v3288
      %v3306 = vadd.f32 %v3267, %v3288
      %v3307 = vadd.f32 %v3268, %v3288
      %v3308 = vadd.f32 %v3269, %v3288
      %v3309 = vadd.f32 %v3270, %v3288
      %v3310 = vadd.f32 %v3271, %v3288
      %v3311 = vadd.f32 %v3272, %v3288
      %v3312 = vadd.f32 %v3273, %v3288
      %v3313 = vadd.f32 %v3274, %v3288
      %v3314 = vadd.f32 %v3275, %v3288
      %v3315 = vadd.f32 %v3276, %v3288
      %v3316 = vadd.f32 %v3277, %v3288
      %v3317 = vadd.f32 %v3278, %v3288
      %v3318 = vadd.f32 %v3279, %v3288
      %v3319 = vadd.f32 %v3280, %v3288
      %v3320 = vadd.f32 %v3281, %v3288
      %v3321 = vadd.f32 %v3282, %v3288
      %v3322 = vld [vmem:[%s369] sm:$0xff]
      %v3323 = vld [vmem:[%s369 + $0x8] sm:$0xff]
      %v3324 = vld [vmem:[%s369 + $0x10] sm:$0xff]
      %v3325 = vld [vmem:[%s369 + $0x18] sm:$0xff]
      %v3326 = vld [vmem:[%s369 + $0x20] sm:$0xff]
      %v3327 = vld [vmem:[%s369 + $0x28] sm:$0xff]
      %v3328 = vld [vmem:[%s369 + $0x30] sm:$0xff]
      %v3329 = vld [vmem:[%s369 + $0x38] sm:$0xff]
      %v3330 = vld [vmem:[%s369 + $0x40] sm:$0xff]
      %v3331 = vld [vmem:[%s369 + $0x48] sm:$0xff]
      %v3332 = vld [vmem:[%s369 + $0x50] sm:$0xff]
      %v3333 = vld [vmem:[%s369 + $0x58] sm:$0xff]
      %v3334 = vld [vmem:[%s369 + $0x60] sm:$0xff]
      %v3335 = vld [vmem:[%s369 + $0x68] sm:$0xff]
      %v3336 = vld [vmem:[%s369 + $0x70] sm:$0xff]
      %v3337 = vld [vmem:[%s369 + $0x78] sm:$0xff]
      %v3338 = vld [vmem:[%s369 + $0x80] sm:$0xff]
      %v3339 = vld [vmem:[%s369 + $0x88] sm:$0xff]
      %v3340 = vld [vmem:[%s369 + $0x90] sm:$0xff]
      %v3341 = vld [vmem:[%s369 + $0x98] sm:$0xff]
      %v3342 = vld [vmem:[%s369 + $0xa0] sm:$0xff]
      %v3343 = vld [vmem:[%s369 + $0xa8] sm:$0xff]
      %v3344 = vld [vmem:[%s369 + $0xb0] sm:$0xff]
      %v3345 = vld [vmem:[%s369 + $0xb8] sm:$0xff]
      %v3346 = vld [vmem:[%s369 + $0xc0] sm:$0xff]
      %v3347 = vld [vmem:[%s369 + $0xc8] sm:$0xff]
      %v3348 = vld [vmem:[%s369 + $0xd0] sm:$0xff]
      %v3349 = vld [vmem:[%s369 + $0xd8] sm:$0xff]
      %v3350 = vld [vmem:[%s369 + $0xe0] sm:$0xff]
      %v3351 = vld [vmem:[%s369 + $0xe8] sm:$0xff]
      %v3352 = vld [vmem:[%s369 + $0xf0] sm:$0xff]
      %v3353 = vld [vmem:[%s369 + $0xf8] sm:$0xff]
      %v3354 = vld [vmem:[%s2] sm:$0x1]
      %v3356 = vlaneseq
      %v3357 = vshrl.u32 %v3356, 7
      %v3358 = vsub.s32 0, %v3357
      %v3359 = vrot.slane %v3354, %v3358
      %v3361 = vmul.f32 %v3322, %v3359
      %v3362 = vmul.f32 %v3323, %v3359
      %v3363 = vmul.f32 %v3324, %v3359
      %v3364 = vmul.f32 %v3325, %v3359
      %v3365 = vmul.f32 %v3326, %v3359
      %v3366 = vmul.f32 %v3327, %v3359
      %v3367 = vmul.f32 %v3328, %v3359
      %v3368 = vmul.f32 %v3329, %v3359
      %v3369 = vmul.f32 %v3330, %v3359
      %v3370 = vmul.f32 %v3331, %v3359
      %v3371 = vmul.f32 %v3332, %v3359
      %v3372 = vmul.f32 %v3333, %v3359
      %v3373 = vmul.f32 %v3334, %v3359
      %v3374 = vmul.f32 %v3335, %v3359
      %v3375 = vmul.f32 %v3336, %v3359
      %v3376 = vmul.f32 %v3337, %v3359
      %v3377 = vmul.f32 %v3338, %v3359
      %v3378 = vmul.f32 %v3339, %v3359
      %v3379 = vmul.f32 %v3340, %v3359
      %v3380 = vmul.f32 %v3341, %v3359
      %v3381 = vmul.f32 %v3342, %v3359
      %v3382 = vmul.f32 %v3343, %v3359
      %v3383 = vmul.f32 %v3344, %v3359
      %v3384 = vmul.f32 %v3345, %v3359
      %v3385 = vmul.f32 %v3346, %v3359
      %v3386 = vmul.f32 %v3347, %v3359
      %v3387 = vmul.f32 %v3348, %v3359
      %v3388 = vmul.f32 %v3349, %v3359
      %v3389 = vmul.f32 %v3350, %v3359
      %v3390 = vmul.f32 %v3351, %v3359
      %v3391 = vmul.f32 %v3352, %v3359
      %v3392 = vmul.f32 %v3353, %v3359
      %v3393 = vld [vmem:[%s3] sm:$0x1]
      %v3395 = vlaneseq
      %v3396 = vshrl.u32 %v3395, 7
      %v3397 = vsub.s32 0, %v3396
      %v3398 = vrot.slane %v3393, %v3397
      %v3400 = vadd.f32 %v3361, %v3398
      %v3401 = vadd.f32 %v3362, %v3398
      %v3402 = vadd.f32 %v3363, %v3398
      %v3403 = vadd.f32 %v3364, %v3398
      %v3404 = vadd.f32 %v3365, %v3398
      %v3405 = vadd.f32 %v3366, %v3398
      %v3406 = vadd.f32 %v3367, %v3398
      %v3407 = vadd.f32 %v3368, %v3398
      %v3408 = vadd.f32 %v3369, %v3398
      %v3409 = vadd.f32 %v3370, %v3398
      %v3410 = vadd.f32 %v3371, %v3398
      %v3411 = vadd.f32 %v3372, %v3398
      %v3412 = vadd.f32 %v3373, %v3398
      %v3413 = vadd.f32 %v3374, %v3398
      %v3414 = vadd.f32 %v3375, %v3398
      %v3415 = vadd.f32 %v3376, %v3398
      %v3416 = vadd.f32 %v3377, %v3398
      %v3417 = vadd.f32 %v3378, %v3398
      %v3418 = vadd.f32 %v3379, %v3398
      %v3419 = vadd.f32 %v3380, %v3398
      %v3420 = vadd.f32 %v3381, %v3398
      %v3421 = vadd.f32 %v3382, %v3398
      %v3422 = vadd.f32 %v3383, %v3398
      %v3423 = vadd.f32 %v3384, %v3398
      %v3424 = vadd.f32 %v3385, %v3398
      %v3425 = vadd.f32 %v3386, %v3398
      %v3426 = vadd.f32 %v3387, %v3398
      %v3427 = vadd.f32 %v3388, %v3398
      %v3428 = vadd.f32 %v3389, %v3398
      %v3429 = vadd.f32 %v3390, %v3398
      %v3430 = vadd.f32 %v3391, %v3398
      %v3431 = vadd.f32 %v3392, %v3398
      %v3432 = vmax.f32 %v3400, 0.0
      %v3433 = vmax.f32 %v3401, 0.0
      %v3434 = vmax.f32 %v3402, 0.0
      %v3435 = vmax.f32 %v3403, 0.0
      %v3436 = vmax.f32 %v3404, 0.0
      %v3437 = vmax.f32 %v3405, 0.0
      %v3438 = vmax.f32 %v3406, 0.0
      %v3439 = vmax.f32 %v3407, 0.0
      %v3440 = vmax.f32 %v3408, 0.0
      %v3441 = vmax.f32 %v3409, 0.0
      %v3442 = vmax.f32 %v3410, 0.0
      %v3443 = vmax.f32 %v3411, 0.0
      %v3444 = vmax.f32 %v3412, 0.0
      %v3445 = vmax.f32 %v3413, 0.0
      %v3446 = vmax.f32 %v3414, 0.0
      %v3447 = vmax.f32 %v3415, 0.0
      %v3448 = vmax.f32 %v3416, 0.0
      %v3449 = vmax.f32 %v3417, 0.0
      %v3450 = vmax.f32 %v3418, 0.0
      %v3451 = vmax.f32 %v3419, 0.0
      %v3452 = vmax.f32 %v3420, 0.0
      %v3453 = vmax.f32 %v3421, 0.0
      %v3454 = vmax.f32 %v3422, 0.0
      %v3455 = vmax.f32 %v3423, 0.0
      %v3456 = vmax.f32 %v3424, 0.0
      %v3457 = vmax.f32 %v3425, 0.0
      %v3458 = vmax.f32 %v3426, 0.0
      %v3459 = vmax.f32 %v3427, 0.0
      %v3460 = vmax.f32 %v3428, 0.0
      %v3461 = vmax.f32 %v3429, 0.0
      %v3462 = vmax.f32 %v3430, 0.0
      %v3463 = vmax.f32 %v3431, 0.0
      %vm3464 = vcmask 64512
      %v3465 = vsel %vm3464, %v3432, 0.0
      %v3466 = vsel %vm3464, %v3433, 0.0
      %v3467 = vsel %vm3464, %v3434, 0.0
      %v3468 = vsel %vm3464, %v3435, 0.0
      %v3469 = vsel %vm3464, %v3436, 0.0
      %v3470 = vsel %vm3464, %v3437, 0.0
      %v3471 = vsel %vm3464, %v3438, 0.0
      %v3472 = vsel %vm3464, %v3439, 0.0
      %v3473 = vsel %vm3464, %v3440, 0.0
      %v3474 = vsel %vm3464, %v3441, 0.0
      %v3475 = vsel %vm3464, %v3442, 0.0
      %v3476 = vsel %vm3464, %v3443, 0.0
      %v3477 = vsel %vm3464, %v3444, 0.0
      %v3478 = vsel %vm3464, %v3445, 0.0
      %v3479 = vsel %vm3464, %v3446, 0.0
      %v3480 = vsel %vm3464, %v3447, 0.0
      %v3481 = vsel %vm3464, %v3448, 0.0
      %v3482 = vsel %vm3464, %v3449, 0.0
      %v3483 = vsel %vm3464, %v3450, 0.0
      %v3484 = vsel %vm3464, %v3451, 0.0
      %v3485 = vsel %vm3464, %v3452, 0.0
      %v3486 = vsel %vm3464, %v3453, 0.0
      %v3487 = vsel %vm3464, %v3454, 0.0
      %v3488 = vsel %vm3464, %v3455, 0.0
      %v3489 = vsel %vm3464, %v3456, 0.0
      %v3490 = vsel %vm3464, %v3457, 0.0
      %v3491 = vsel %vm3464, %v3458, 0.0
      %v3492 = vsel %vm3464, %v3459, 0.0
      %v3493 = vsel %vm3464, %v3460, 0.0
      %v3494 = vsel %vm3464, %v3461, 0.0
      %v3495 = vsel %vm3464, %v3462, 0.0
      %v3496 = vsel %vm3464, %v3463, 0.0
      %3497 = vst [vmem:[%s568 + $0x8] sm:$0xff] %v3465
      %3498 = vst [vmem:[%s568 + $0x10] sm:$0xff] %v3466
      %3499 = vst [vmem:[%s568 + $0x28] sm:$0xff] %v3467
      %3500 = vst [vmem:[%s568 + $0x30] sm:$0xff] %v3468
      %3501 = vst [vmem:[%s568 + $0x48] sm:$0xff] %v3469
      %3502 = vst [vmem:[%s568 + $0x50] sm:$0xff] %v3470
      %3503 = vst [vmem:[%s568 + $0x68] sm:$0xff] %v3471
      %3504 = vst [vmem:[%s568 + $0x70] sm:$0xff] %v3472
      %3505 = vst [vmem:[%s568 + $0x88] sm:$0xff] %v3473
      %3506 = vst [vmem:[%s568 + $0x90] sm:$0xff] %v3474
      %3507 = vst [vmem:[%s568 + $0xa8] sm:$0xff] %v3475
      %3508 = vst [vmem:[%s568 + $0xb0] sm:$0xff] %v3476
      %3509 = vst [vmem:[%s568 + $0xc8] sm:$0xff] %v3477
      %3510 = vst [vmem:[%s568 + $0xd0] sm:$0xff] %v3478
      %3511 = vst [vmem:[%s568 + $0xe8] sm:$0xff] %v3479
      %3512 = vst [vmem:[%s568 + $0xf0] sm:$0xff] %v3480
      %3513 = vst [vmem:[%s568 + $0x108] sm:$0xff] %v3481
      %3514 = vst [vmem:[%s568 + $0x110] sm:$0xff] %v3482
      %3515 = vst [vmem:[%s568 + $0x128] sm:$0xff] %v3483
      %3516 = vst [vmem:[%s568 + $0x130] sm:$0xff] %v3484
      %3517 = vst [vmem:[%s568 + $0x148] sm:$0xff] %v3485
      %3518 = vst [vmem:[%s568 + $0x150] sm:$0xff] %v3486
      %3519 = vst [vmem:[%s568 + $0x168] sm:$0xff] %v3487
      %3520 = vst [vmem:[%s568 + $0x170] sm:$0xff] %v3488
      %3521 = vst [vmem:[%s568 + $0x188] sm:$0xff] %v3489
      %3522 = vst [vmem:[%s568 + $0x190] sm:$0xff] %v3490
      %3523 = vst [vmem:[%s568 + $0x1a8] sm:$0xff] %v3491
      %3524 = vst [vmem:[%s568 + $0x1b0] sm:$0xff] %v3492
      %3525 = vst [vmem:[%s568 + $0x1c8] sm:$0xff] %v3493
      %3526 = vst [vmem:[%s568 + $0x1d0] sm:$0xff] %v3494
      %3527 = vst [vmem:[%s568 + $0x1e8] sm:$0xff] %v3495
      %3528 = vst [vmem:[%s568 + $0x1f0] sm:$0xff] %v3496
      %v3529 = vld [vmem:[#allocation2 + $0x7] sm:$0xff]
      %v3530 = vld [vmem:[#allocation2 + $0xf] sm:$0xff]
      %v3531 = vld [vmem:[#allocation2 + $0x27] sm:$0xff]
      %v3532 = vld [vmem:[#allocation2 + $0x2f] sm:$0xff]
      %v3533 = vld [vmem:[#allocation2 + $0x47] sm:$0xff]
      %v3534 = vld [vmem:[#allocation2 + $0x4f] sm:$0xff]
      %v3535 = vld [vmem:[#allocation2 + $0x67] sm:$0xff]
      %v3536 = vld [vmem:[#allocation2 + $0x6f] sm:$0xff]
      %v3537 = vld [vmem:[#allocation2 + $0x87] sm:$0xff]
      %v3538 = vld [vmem:[#allocation2 + $0x8f] sm:$0xff]
      %v3539 = vld [vmem:[#allocation2 + $0xa7] sm:$0xff]
      %v3540 = vld [vmem:[#allocation2 + $0xaf] sm:$0xff]
      %v3541 = vld [vmem:[#allocation2 + $0xc7] sm:$0xff]
      %v3542 = vld [vmem:[#allocation2 + $0xcf] sm:$0xff]
      %v3543 = vld [vmem:[#allocation2 + $0xe7] sm:$0xff]
      %v3544 = vld [vmem:[#allocation2 + $0xef] sm:$0xff]
      %v3545 = vld [vmem:[#allocation2 + $0x107] sm:$0xff]
      %v3546 = vld [vmem:[#allocation2 + $0x10f] sm:$0xff]
      %v3547 = vld [vmem:[#allocation2 + $0x127] sm:$0xff]
      %v3548 = vld [vmem:[#allocation2 + $0x12f] sm:$0xff]
      %v3549 = vld [vmem:[#allocation2 + $0x147] sm:$0xff]
      %v3550 = vld [vmem:[#allocation2 + $0x14f] sm:$0xff]
      %v3551 = vld [vmem:[#allocation2 + $0x167] sm:$0xff]
      %v3552 = vld [vmem:[#allocation2 + $0x16f] sm:$0xff]
      %v3553 = vld [vmem:[#allocation2 + $0x187] sm:$0xff]
      %v3554 = vld [vmem:[#allocation2 + $0x18f] sm:$0xff]
      %v3555 = vld [vmem:[#allocation2 + $0x1a7] sm:$0xff]
      %v3556 = vld [vmem:[#allocation2 + $0x1af] sm:$0xff]
      %v3557 = vld [vmem:[#allocation2 + $0x1c7] sm:$0xff]
      %v3558 = vld [vmem:[#allocation2 + $0x1cf] sm:$0xff]
      %v3559 = vld [vmem:[#allocation2 + $0x1e7] sm:$0xff]
      %v3560 = vld [vmem:[#allocation2 + $0x1ef] sm:$0xff]
      %v3561 = vld [vmem:[%s4] sm:$0xff]
      %v3562 = vld [vmem:[%s4 + $0x8] sm:$0xff]
      %v3563 = vld [vmem:[%s4 + $0x10] sm:$0xff]
      %v3564 = vld [vmem:[%s4 + $0x18] sm:$0xff]
      %v3565 = vld [vmem:[%s4 + $0x20] sm:$0xff]
      %v3566 = vld [vmem:[%s4 + $0x28] sm:$0xff]
      %v3567 = vld [vmem:[%s4 + $0x30] sm:$0xff]
      %v3568 = vld [vmem:[%s4 + $0x38] sm:$0xff]
      %v3569 = vld [vmem:[%s4 + $0x40] sm:$0xff]
      %v3570 = vld [vmem:[%s4 + $0x48] sm:$0xff]
      %v3571 = vld [vmem:[%s4 + $0x50] sm:$0xff]
      %v3572 = vld [vmem:[%s4 + $0x58] sm:$0xff]
      %v3573 = vld [vmem:[%s4 + $0x60] sm:$0xff]
      %v3574 = vld [vmem:[%s4 + $0x68] sm:$0xff]
      %v3575 = vld [vmem:[%s4 + $0x70] sm:$0xff]
      %v3576 = vld [vmem:[%s4 + $0x78] sm:$0xff]
      %3577 = vmatprep.subr.mxu0 0.0
      %3578 = vmatpush1.msra.mxu0 %v3561
      %3579 = vmatprep.subr.mxu0 0.0
      %3580 = vmatpush1.msra.mxu0 %v3562
      %3581 = vmatprep.subr.mxu0 0.0
      %3582 = vmatpush1.msra.mxu0 %v3563
      %3583 = vmatprep.subr.mxu0 0.0
      %3584 = vmatpush1.msra.mxu0 %v3564
      %3585 = vmatprep.subr.mxu0 0.0
      %3586 = vmatpush1.msra.mxu0 %v3565
      %3587 = vmatprep.subr.mxu0 0.0
      %3588 = vmatpush1.msra.mxu0 %v3566
      %3589 = vmatprep.subr.mxu0 0.0
      %3590 = vmatpush1.msra.mxu0 %v3567
      %3591 = vmatprep.subr.mxu0 0.0
      %3592 = vmatpush1.msra.mxu0 %v3568
      %3593 = vmatprep.subr.mxu0 0.0
      %3594 = vmatpush1.msra.mxu0 %v3569
      %3595 = vmatprep.subr.mxu0 0.0
      %3596 = vmatpush1.msra.mxu0 %v3570
      %3597 = vmatprep.subr.mxu0 0.0
      %3598 = vmatpush1.msra.mxu0 %v3571
      %3599 = vmatprep.subr.mxu0 0.0
      %3600 = vmatpush1.msra.mxu0 %v3572
      %3601 = vmatprep.subr.mxu0 0.0
      %3602 = vmatpush1.msra.mxu0 %v3573
      %3603 = vmatprep.subr.mxu0 0.0
      %3604 = vmatpush1.msra.mxu0 %v3574
      %3605 = vmatprep.subr.mxu0 0.0
      %3606 = vmatpush1.msra.mxu0 %v3575
      %3607 = vmatprep.subr.mxu0 0.0
      %3608 = vmatpush1.msra.mxu0 %v3576
      %3609 = vmatprep.subr.mxu0 0.0
      %3610 = vmatpush1.msra.mxu0 0.0
      %3611 = vmatprep.subr.mxu0 0.0
      %3612 = vmatpush1.msra.mxu0 0.0
      %3613 = vmatprep.subr.mxu0 0.0
      %3614 = vmatpush1.msra.mxu0 0.0
      %3615 = vmatprep.subr.mxu0 0.0
      %3616 = vmatpush1.msra.mxu0 0.0
      %3617 = vmatprep.subr.mxu0 0.0
      %3618 = vmatpush1.msra.mxu0 0.0
      %3619 = vmatprep.subr.mxu0 0.0
      %3620 = vmatpush1.msra.mxu0 0.0
      %3621 = vmatprep.subr.mxu0 0.0
      %3622 = vmatpush1.msra.mxu0 0.0
      %3623 = vmatprep.subr.mxu0 0.0
      %3624 = vmatpush1.msra.mxu0 0.0
      %3625 = vmatprep.subr.mxu0 0.0
      %3626 = vmatpush1.msra.mxu0 0.0
      %3627 = vmatprep.subr.mxu0 0.0
      %3628 = vmatpush1.msra.mxu0 0.0
      %3629 = vmatprep.subr.mxu0 0.0
      %3630 = vmatpush1.msra.mxu0 0.0
      %3631 = vmatprep.subr.mxu0 0.0
      %3632 = vmatpush1.msra.mxu0 0.0
      %3633 = vmatprep.subr.mxu0 0.0
      %3634 = vmatpush1.msra.mxu0 0.0
      %3635 = vmatprep.subr.mxu0 0.0
      %3636 = vmatpush1.msra.mxu0 0.0
      %3637 = vmatprep.subr.mxu0 0.0
      %3638 = vmatpush1.msra.mxu0 0.0
      %3639 = vmatprep.subr.mxu0 0.0
      %3640 = vmatpush1.msra.mxu0 0.0
      %3641 = vmatprep.mubr.f32.mxu0 0.0
      %3642 = vmatmul.mubr.f32.gmra.mrb[0].mxu0 %v3529
      %v3643 = vpop.f32.mrb[0].mxu0
      %v3644 = vadd.f32 0.0, %v3643
      %v3645 = vpop.f32.mrb[0].mxu0
      %3646 = vmatprep.mubr.f32.mxu0 0.0
      %3647 = vmatmul.mubr.f32.gmra.mrb[0].mxu0 %v3530
      %v3648 = vpop.f32.mrb[0].mxu0
      %v3649 = vadd.f32 0.0, %v3648
      %v3650 = vpop.f32.mrb[0].mxu0
      %3651 = vmatprep.mubr.f32.mxu0 0.0
      %3652 = vmatmul.mubr.f32.gmra.mrb[0].mxu0 %v3531
      %v3653 = vpop.f32.mrb[0].mxu0
      %v3654 = vadd.f32 0.0, %v3653
      %v3655 = vpop.f32.mrb[0].mxu0
      %3656 = vmatprep.mubr.f32.mxu0 0.0
      %3657 = vmatmul.mubr.f32.gmra.mrb[0].mxu0 %v3532
      %v3658 = vpop.f32.mrb[0].mxu0
      %v3659 = vadd.f32 0.0, %v3658
      %v3660 = vpop.f32.mrb[0].mxu0
      %3661 = vmatprep.mubr.f32.mxu0 0.0
      %3662 = vmatmul.mubr.f32.gmra.mrb[0].mxu0 %v3533
      %v3663 = vpop.f32.mrb[0].mxu0
      %v3664 = vadd.f32 0.0, %v3663
      %v3665 = vpop.f32.mrb[0].mxu0
      %3666 = vmatprep.mubr.f32.mxu0 0.0
      %3667 = vmatmul.mubr.f32.gmra.mrb[0].mxu0 %v3534
      %v3668 = vpop.f32.mrb[0].mxu0
      %v3669 = vadd.f32 0.0, %v3668
      %v3670 = vpop.f32.mrb[0].mxu0
      %3671 = vmatprep.mubr.f32.mxu0 0.0
      %3672 = vmatmul.mubr.f32.gmra.mrb[0].mxu0 %v3535
      %v3673 = vpop.f32.mrb[0].mxu0
      %v3674 = vadd.f32 0.0, %v3673
      %v3675 = vpop.f32.mrb[0].mxu0
      %3676 = vmatprep.mubr.f32.mxu0 0.0
      %3677 = vmatmul.mubr.f32.gmra.mrb[0].mxu0 %v3536
      %v3678 = vpop.f32.mrb[0].mxu0
      %v3679 = vadd.f32 0.0, %v3678
      %v3680 = vpop.f32.mrb[0].mxu0
      %3681 = vmatprep.mubr.f32.mxu0 0.0
      %3682 = vmatmul.mubr.f32.gmra.mrb[0].mxu0 %v3537
      %v3683 = vpop.f32.mrb[0].mxu0
      %v3684 = vadd.f32 0.0, %v3683
      %v3685 = vpop.f32.mrb[0].mxu0
      %3686 = vmatprep.mubr.f32.mxu0 0.0
      %3687 = vmatmul.mubr.f32.gmra.mrb[0].mxu0 %v3538
      %v3688 = vpop.f32.mrb[0].mxu0
      %v3689 = vadd.f32 0.0, %v3688
      %v3690 = vpop.f32.mrb[0].mxu0
      %3691 = vmatprep.mubr.f32.mxu0 0.0
      %3692 = vmatmul.mubr.f32.gmra.mrb[0].mxu0 %v3539
      %v3693 = vpop.f32.mrb[0].mxu0
      %v3694 = vadd.f32 0.0, %v3693
      %v3695 = vpop.f32.mrb[0].mxu0
      %3696 = vmatprep.mubr.f32.mxu0 0.0
      %3697 = vmatmul.mubr.f32.gmra.mrb[0].mxu0 %v3540
      %v3698 = vpop.f32.mrb[0].mxu0
      %v3699 = vadd.f32 0.0, %v3698
      %v3700 = vpop.f32.mrb[0].mxu0
      %3701 = vmatprep.mubr.f32.mxu0 0.0
      %3702 = vmatmul.mubr.f32.gmra.mrb[0].mxu0 %v3541
      %v3703 = vpop.f32.mrb[0].mxu0
      %v3704 = vadd.f32 0.0, %v3703
      %v3705 = vpop.f32.mrb[0].mxu0
      %3706 = vmatprep.mubr.f32.mxu0 0.0
      %3707 = vmatmul.mubr.f32.gmra.mrb[0].mxu0 %v3542
      %v3708 = vpop.f32.mrb[0].mxu0
      %v3709 = vadd.f32 0.0, %v3708
      %v3710 = vpop.f32.mrb[0].mxu0
      %3711 = vmatprep.mubr.f32.mxu0 0.0
      %3712 = vmatmul.mubr.f32.gmra.mrb[0].mxu0 %v3543
      %v3713 = vpop.f32.mrb[0].mxu0
      %v3714 = vadd.f32 0.0, %v3713
      %v3715 = vpop.f32.mrb[0].mxu0
      %3716 = vmatprep.mubr.f32.mxu0 0.0
      %3717 = vmatmul.mubr.f32.gmra.mrb[0].mxu0 %v3544
      %v3718 = vpop.f32.mrb[0].mxu0
      %v3719 = vadd.f32 0.0, %v3718
      %v3720 = vpop.f32.mrb[0].mxu0
      %3721 = vmatprep.mubr.f32.mxu0 0.0
      %3722 = vmatmul.mubr.f32.gmra.mrb[0].mxu0 %v3545
      %v3723 = vpop.f32.mrb[0].mxu0
      %v3724 = vadd.f32 0.0, %v3723
      %v3725 = vpop.f32.mrb[0].mxu0
      %3726 = vmatprep.mubr.f32.mxu0 0.0
      %3727 = vmatmul.mubr.f32.gmra.mrb[0].mxu0 %v3546
      %v3728 = vpop.f32.mrb[0].mxu0
      %v3729 = vadd.f32 0.0, %v3728
      %v3730 = vpop.f32.mrb[0].mxu0
      %3731 = vmatprep.mubr.f32.mxu0 0.0
      %3732 = vmatmul.mubr.f32.gmra.mrb[0].mxu0 %v3547
      %v3733 = vpop.f32.mrb[0].mxu0
      %v3734 = vadd.f32 0.0, %v3733
      %v3735 = vpop.f32.mrb[0].mxu0
      %3736 = vmatprep.mubr.f32.mxu0 0.0
      %3737 = vmatmul.mubr.f32.gmra.mrb[0].mxu0 %v3548
      %v3738 = vpop.f32.mrb[0].mxu0
      %v3739 = vadd.f32 0.0, %v3738
      %v3740 = vpop.f32.mrb[0].mxu0
      %3741 = vmatprep.mubr.f32.mxu0 0.0
      %3742 = vmatmul.mubr.f32.gmra.mrb[0].mxu0 %v3549
      %v3743 = vpop.f32.mrb[0].mxu0
      %v3744 = vadd.f32 0.0, %v3743
      %v3745 = vpop.f32.mrb[0].mxu0
      %3746 = vmatprep.mubr.f32.mxu0 0.0
      %3747 = vmatmul.mubr.f32.gmra.mrb[0].mxu0 %v3550
      %v3748 = vpop.f32.mrb[0].mxu0
      %v3749 = vadd.f32 0.0, %v3748
      %v3750 = vpop.f32.mrb[0].mxu0
      %3751 = vmatprep.mubr.f32.mxu0 0.0
      %3752 = vmatmul.mubr.f32.gmra.mrb[0].mxu0 %v3551
      %v3753 = vpop.f32.mrb[0].mxu0
      %v3754 = vadd.f32 0.0, %v3753
      %v3755 = vpop.f32.mrb[0].mxu0
      %3756 = vmatprep.mubr.f32.mxu0 0.0
      %3757 = vmatmul.mubr.f32.gmra.mrb[0].mxu0 %v3552
      %v3758 = vpop.f32.mrb[0].mxu0
      %v3759 = vadd.f32 0.0, %v3758
      %v3760 = vpop.f32.mrb[0].mxu0
      %3761 = vmatprep.mubr.f32.mxu0 0.0
      %3762 = vmatmul.mubr.f32.gmra.mrb[0].mxu0 %v3553
      %v3763 = vpop.f32.mrb[0].mxu0
      %v3764 = vadd.f32 0.0, %v3763
      %v3765 = vpop.f32.mrb[0].mxu0
      %3766 = vmatprep.mubr.f32.mxu0 0.0
      %3767 = vmatmul.mubr.f32.gmra.mrb[0].mxu0 %v3554
      %v3768 = vpop.f32.mrb[0].mxu0
      %v3769 = vadd.f32 0.0, %v3768
      %v3770 = vpop.f32.mrb[0].mxu0
      %3771 = vmatprep.mubr.f32.mxu0 0.0
      %3772 = vmatmul.mubr.f32.gmra.mrb[0].mxu0 %v3555
      %v3773 = vpop.f32.mrb[0].mxu0
      %v3774 = vadd.f32 0.0, %v3773
      %v3775 = vpop.f32.mrb[0].mxu0
      %3776 = vmatprep.mubr.f32.mxu0 0.0
      %3777 = vmatmul.mubr.f32.gmra.mrb[0].mxu0 %v3556
      %v3778 = vpop.f32.mrb[0].mxu0
      %v3779 = vadd.f32 0.0, %v3778
      %v3780 = vpop.f32.mrb[0].mxu0
      %3781 = vmatprep.mubr.f32.mxu0 0.0
      %3782 = vmatmul.mubr.f32.gmra.mrb[0].mxu0 %v3557
      %v3783 = vpop.f32.mrb[0].mxu0
      %v3784 = vadd.f32 0.0, %v3783
      %v3785 = vpop.f32.mrb[0].mxu0
      %3786 = vmatprep.mubr.f32.mxu0 0.0
      %3787 = vmatmul.mubr.f32.gmra.mrb[0].mxu0 %v3558
      %v3788 = vpop.f32.mrb[0].mxu0
      %v3789 = vadd.f32 0.0, %v3788
      %v3790 = vpop.f32.mrb[0].mxu0
      %3791 = vmatprep.mubr.f32.mxu0 0.0
      %3792 = vmatmul.mubr.f32.gmra.mrb[0].mxu0 %v3559
      %v3793 = vpop.f32.mrb[0].mxu0
      %v3794 = vadd.f32 0.0, %v3793
      %v3795 = vpop.f32.mrb[0].mxu0
      %3796 = vmatprep.mubr.f32.mxu0 0.0
      %3797 = vmatmul.mubr.f32.gmra.mrb[0].mxu0 %v3560
      %v3798 = vpop.f32.mrb[0].mxu0
      %v3799 = vadd.f32 0.0, %v3798
      %v3800 = vpop.f32.mrb[0].mxu0
      %3801 = vdwg.mxu0
      %v3802 = vadd.f32 %v3290, %v3644
      %v3803 = vadd.f32 %v3291, %v3649
      %v3804 = vadd.f32 %v3292, %v3654
      %v3805 = vadd.f32 %v3293, %v3659
      %v3806 = vadd.f32 %v3294, %v3664
      %v3807 = vadd.f32 %v3295, %v3669
      %v3808 = vadd.f32 %v3296, %v3674
      %v3809 = vadd.f32 %v3297, %v3679
      %v3810 = vadd.f32 %v3298, %v3684
      %v3811 = vadd.f32 %v3299, %v3689
      %v3812 = vadd.f32 %v3300, %v3694
      %v3813 = vadd.f32 %v3301, %v3699
      %v3814 = vadd.f32 %v3302, %v3704
      %v3815 = vadd.f32 %v3303, %v3709
      %v3816 = vadd.f32 %v3304, %v3714
      %v3817 = vadd.f32 %v3305, %v3719
      %v3818 = vadd.f32 %v3306, %v3724
      %v3819 = vadd.f32 %v3307, %v3729
      %v3820 = vadd.f32 %v3308, %v3734
      %v3821 = vadd.f32 %v3309, %v3739
      %v3822 = vadd.f32 %v3310, %v3744
      %v3823 = vadd.f32 %v3311, %v3749
      %v3824 = vadd.f32 %v3312, %v3754
      %v3825 = vadd.f32 %v3313, %v3759
      %v3826 = vadd.f32 %v3314, %v3764
      %v3827 = vadd.f32 %v3315, %v3769
      %v3828 = vadd.f32 %v3316, %v3774
      %v3829 = vadd.f32 %v3317, %v3779
      %v3830 = vadd.f32 %v3318, %v3784
      %v3831 = vadd.f32 %v3319, %v3789
      %v3832 = vadd.f32 %v3320, %v3794
      %v3833 = vadd.f32 %v3321, %v3799
      %v3834 = vld [vmem:[#allocation2 + $0x8] sm:$0xff]
      %v3835 = vld [vmem:[#allocation2 + $0x10] sm:$0xff]
      %v3836 = vld [vmem:[#allocation2 + $0x28] sm:$0xff]
      %v3837 = vld [vmem:[#allocation2 + $0x30] sm:$0xff]
      %v3838 = vld [vmem:[#allocation2 + $0x48] sm:$0xff]
      %v3839 = vld [vmem:[#allocation2 + $0x50] sm:$0xff]
      %v3840 = vld [vmem:[#allocation2 + $0x68] sm:$0xff]
      %v3841 = vld [vmem:[#allocation2 + $0x70] sm:$0xff]
      %v3842 = vld [vmem:[#allocation2 + $0x88] sm:$0xff]
      %v3843 = vld [vmem:[#allocation2 + $0x90] sm:$0xff]
      %v3844 = vld [vmem:[#allocation2 + $0xa8] sm:$0xff]
      %v3845 = vld [vmem:[#allocation2 + $0xb0] sm:$0xff]
      %v3846 = vld [vmem:[#allocation2 + $0xc8] sm:$0xff]
      %v3847 = vld [vmem:[#allocation2 + $0xd0] sm:$0xff]
      %v3848 = vld [vmem:[#allocation2 + $0xe8] sm:$0xff]
      %v3849 = vld [vmem:[#allocation2 + $0xf0] sm:$0xff]
      %v3850 = vld [vmem:[#allocation2 + $0x108] sm:$0xff]
      %v3851 = vld [vmem:[#allocation2 + $0x110] sm:$0xff]
      %v3852 = vld [vmem:[#allocation2 + $0x128] sm:$0xff]
      %v3853 = vld [vmem:[#allocation2 + $0x130] sm:$0xff]
      %v3854 = vld [vmem:[#allocation2 + $0x148] sm:$0xff]
      %v3855 = vld [vmem:[#allocation2 + $0x150] sm:$0xff]
      %v3856 = vld [vmem:[#allocation2 + $0x168] sm:$0xff]
      %v3857 = vld [vmem:[#allocation2 + $0x170] sm:$0xff]
      %v3858 = vld [vmem:[#allocation2 + $0x188] sm:$0xff]
      %v3859 = vld [vmem:[#allocation2 + $0x190] sm:$0xff]
      %v3860 = vld [vmem:[#allocation2 + $0x1a8] sm:$0xff]
      %v3861 = vld [vmem:[#allocation2 + $0x1b0] sm:$0xff]
      %v3862 = vld [vmem:[#allocation2 + $0x1c8] sm:$0xff]
      %v3863 = vld [vmem:[#allocation2 + $0x1d0] sm:$0xff]
      %v3864 = vld [vmem:[#allocation2 + $0x1e8] sm:$0xff]
      %v3865 = vld [vmem:[#allocation2 + $0x1f0] sm:$0xff]
      %v3866 = vld [vmem:[%s4 + $0x80] sm:$0xff]
      %v3867 = vld [vmem:[%s4 + $0x88] sm:$0xff]
      %v3868 = vld [vmem:[%s4 + $0x90] sm:$0xff]
      %v3869 = vld [vmem:[%s4 + $0x98] sm:$0xff]
      %v3870 = vld [vmem:[%s4 + $0xa0] sm:$0xff]
      %v3871 = vld [vmem:[%s4 + $0xa8] sm:$0xff]
      %v3872 = vld [vmem:[%s4 + $0xb0] sm:$0xff]
      %v3873 = vld [vmem:[%s4 + $0xb8] sm:$0xff]
      %v3874 = vld [vmem:[%s4 + $0xc0] sm:$0xff]
      %v3875 = vld [vmem:[%s4 + $0xc8] sm:$0xff]
      %v3876 = vld [vmem:[%s4 + $0xd0] sm:$0xff]
      %v3877 = vld [vmem:[%s4 + $0xd8] sm:$0xff]
      %v3878 = vld [vmem:[%s4 + $0xe0] sm:$0xff]
      %v3879 = vld [vmem:[%s4 + $0xe8] sm:$0xff]
      %v3880 = vld [vmem:[%s4 + $0xf0] sm:$0xff]
      %v3881 = vld [vmem:[%s4 + $0xf8] sm:$0xff]
      %3882 = vmatprep.subr.mxu0 0.0
      %3883 = vmatpush1.msra.mxu0 %v3866
      %3884 = vmatprep.subr.mxu0 0.0
      %3885 = vmatpush1.msra.mxu0 %v3867
      %3886 = vmatprep.subr.mxu0 0.0
      %3887 = vmatpush1.msra.mxu0 %v3868
      %3888 = vmatprep.subr.mxu0 0.0
      %3889 = vmatpush1.msra.mxu0 %v3869
      %3890 = vmatprep.subr.mxu0 0.0
      %3891 = vmatpush1.msra.mxu0 %v3870
      %3892 = vmatprep.subr.mxu0 0.0
      %3893 = vmatpush1.msra.mxu0 %v3871
      %3894 = vmatprep.subr.mxu0 0.0
      %3895 = vmatpush1.msra.mxu0 %v3872
      %3896 = vmatprep.subr.mxu0 0.0
      %3897 = vmatpush1.msra.mxu0 %v3873
      %3898 = vmatprep.subr.mxu0 0.0
      %3899 = vmatpush1.msra.mxu0 %v3874
      %3900 = vmatprep.subr.mxu0 0.0
      %3901 = vmatpush1.msra.mxu0 %v3875
      %3902 = vmatprep.subr.mxu0 0.0
      %3903 = vmatpush1.msra.mxu0 %v3876
      %3904 = vmatprep.subr.mxu0 0.0
      %3905 = vmatpush1.msra.mxu0 %v3877
      %3906 = vmatprep.subr.mxu0 0.0
      %3907 = vmatpush1.msra.mxu0 %v3878
      %3908 = vmatprep.subr.mxu0 0.0
      %3909 = vmatpush1.msra.mxu0 %v3879
      %3910 = vmatprep.subr.mxu0 0.0
      %3911 = vmatpush1.msra.mxu0 %v3880
      %3912 = vmatprep.subr.mxu0 0.0
      %3913 = vmatpush1.msra.mxu0 %v3881
      %3914 = vmatprep.subr.mxu0 0.0
      %3915 = vmatpush1.msra.mxu0 0.0
      %3916 = vmatprep.subr.mxu0 0.0
      %3917 = vmatpush1.msra.mxu0 0.0
      %3918 = vmatprep.subr.mxu0 0.0
      %3919 = vmatpush1.msra.mxu0 0.0
      %3920 = vmatprep.subr.mxu0 0.0
      %3921 = vmatpush1.msra.mxu0 0.0
      %3922 = vmatprep.subr.mxu0 0.0
      %3923 = vmatpush1.msra.mxu0 0.0
      %3924 = vmatprep.subr.mxu0 0.0
      %3925 = vmatpush1.msra.mxu0 0.0
      %3926 = vmatprep.subr.mxu0 0.0
      %3927 = vmatpush1.msra.mxu0 0.0
      %3928 = vmatprep.subr.mxu0 0.0
      %3929 = vmatpush1.msra.mxu0 0.0
      %3930 = vmatprep.subr.mxu0 0.0
      %3931 = vmatpush1.msra.mxu0 0.0
      %3932 = vmatprep.subr.mxu0 0.0
      %3933 = vmatpush1.msra.mxu0 0.0
      %3934 = vmatprep.subr.mxu0 0.0
      %3935 = vmatpush1.msra.mxu0 0.0
      %3936 = vmatprep.subr.mxu0 0.0
      %3937 = vmatpush1.msra.mxu0 0.0
      %3938 = vmatprep.subr.mxu0 0.0
      %3939 = vmatpush1.msra.mxu0 0.0
      %3940 = vmatprep.subr.mxu0 0.0
      %3941 = vmatpush1.msra.mxu0 0.0
      %3942 = vmatprep.subr.mxu0 0.0
      %3943 = vmatpush1.msra.mxu0 0.0
      %3944 = vmatprep.subr.mxu0 0.0
      %3945 = vmatpush1.msra.mxu0 0.0
      %3946 = vmatprep.mubr.f32.mxu0 0.0
      %3947 = vmatmul.mubr.f32.gmra.mrb[0].mxu0 %v3834
      %v3948 = vpop.f32.mrb[0].mxu0
      %v3949 = vadd.f32 0.0, %v3948
      %v3950 = vpop.f32.mrb[0].mxu0
      %3951 = vmatprep.mubr.f32.mxu0 0.0
      %3952 = vmatmul.mubr.f32.gmra.mrb[0].mxu0 %v3835
      %v3953 = vpop.f32.mrb[0].mxu0
      %v3954 = vadd.f32 0.0, %v3953
      %v3955 = vpop.f32.mrb[0].mxu0
      %3956 = vmatprep.mubr.f32.mxu0 0.0
      %3957 = vmatmul.mubr.f32.gmra.mrb[0].mxu0 %v3836
      %v3958 = vpop.f32.mrb[0].mxu0
      %v3959 = vadd.f32 0.0, %v3958
      %v3960 = vpop.f32.mrb[0].mxu0
      %3961 = vmatprep.mubr.f32.mxu0 0.0
      %3962 = vmatmul.mubr.f32.gmra.mrb[0].mxu0 %v3837
      %v3963 = vpop.f32.mrb[0].mxu0
      %v3964 = vadd.f32 0.0, %v3963
      %v3965 = vpop.f32.mrb[0].mxu0
      %3966 = vmatprep.mubr.f32.mxu0 0.0
      %3967 = vmatmul.mubr.f32.gmra.mrb[0].mxu0 %v3838
      %v3968 = vpop.f32.mrb[0].mxu0
      %v3969 = vadd.f32 0.0, %v3968
      %v3970 = vpop.f32.mrb[0].mxu0
      %3971 = vmatprep.mubr.f32.mxu0 0.0
      %3972 = vmatmul.mubr.f32.gmra.mrb[0].mxu0 %v3839
      %v3973 = vpop.f32.mrb[0].mxu0
      %v3974 = vadd.f32 0.0, %v3973
      %v3975 = vpop.f32.mrb[0].mxu0
      %3976 = vmatprep.mubr.f32.mxu0 0.0
      %3977 = vmatmul.mubr.f32.gmra.mrb[0].mxu0 %v3840
      %v3978 = vpop.f32.mrb[0].mxu0
      %v3979 = vadd.f32 0.0, %v3978
      %v3980 = vpop.f32.mrb[0].mxu0
      %3981 = vmatprep.mubr.f32.mxu0 0.0
      %3982 = vmatmul.mubr.f32.gmra.mrb[0].mxu0 %v3841
      %v3983 = vpop.f32.mrb[0].mxu0
      %v3984 = vadd.f32 0.0, %v3983
      %v3985 = vpop.f32.mrb[0].mxu0
      %3986 = vmatprep.mubr.f32.mxu0 0.0
      %3987 = vmatmul.mubr.f32.gmra.mrb[0].mxu0 %v3842
      %v3988 = vpop.f32.mrb[0].mxu0
      %v3989 = vadd.f32 0.0, %v3988
      %v3990 = vpop.f32.mrb[0].mxu0
      %3991 = vmatprep.mubr.f32.mxu0 0.0
      %3992 = vmatmul.mubr.f32.gmra.mrb[0].mxu0 %v3843
      %v3993 = vpop.f32.mrb[0].mxu0
      %v3994 = vadd.f32 0.0, %v3993
      %v3995 = vpop.f32.mrb[0].mxu0
      %3996 = vmatprep.mubr.f32.mxu0 0.0
      %3997 = vmatmul.mubr.f32.gmra.mrb[0].mxu0 %v3844
      %v3998 = vpop.f32.mrb[0].mxu0
      %v3999 = vadd.f32 0.0, %v3998
      %v4000 = vpop.f32.mrb[0].mxu0
      %4001 = vmatprep.mubr.f32.mxu0 0.0
      %4002 = vmatmul.mubr.f32.gmra.mrb[0].mxu0 %v3845
      %v4003 = vpop.f32.mrb[0].mxu0
      %v4004 = vadd.f32 0.0, %v4003
      %v4005 = vpop.f32.mrb[0].mxu0
      %4006 = vmatprep.mubr.f32.mxu0 0.0
      %4007 = vmatmul.mubr.f32.gmra.mrb[0].mxu0 %v3846
      %v4008 = vpop.f32.mrb[0].mxu0
      %v4009 = vadd.f32 0.0, %v4008
      %v4010 = vpop.f32.mrb[0].mxu0
      %4011 = vmatprep.mubr.f32.mxu0 0.0
      %4012 = vmatmul.mubr.f32.gmra.mrb[0].mxu0 %v3847
      %v4013 = vpop.f32.mrb[0].mxu0
      %v4014 = vadd.f32 0.0, %v4013
      %v4015 = vpop.f32.mrb[0].mxu0
      %4016 = vmatprep.mubr.f32.mxu0 0.0
      %4017 = vmatmul.mubr.f32.gmra.mrb[0].mxu0 %v3848
      %v4018 = vpop.f32.mrb[0].mxu0
      %v4019 = vadd.f32 0.0, %v4018
      %v4020 = vpop.f32.mrb[0].mxu0
      %4021 = vmatprep.mubr.f32.mxu0 0.0
      %4022 = vmatmul.mubr.f32.gmra.mrb[0].mxu0 %v3849
      %v4023 = vpop.f32.mrb[0].mxu0
      %v4024 = vadd.f32 0.0, %v4023
      %v4025 = vpop.f32.mrb[0].mxu0
      %4026 = vmatprep.mubr.f32.mxu0 0.0
      %4027 = vmatmul.mubr.f32.gmra.mrb[0].mxu0 %v3850
      %v4028 = vpop.f32.mrb[0].mxu0
      %v4029 = vadd.f32 0.0, %v4028
      %v4030 = vpop.f32.mrb[0].mxu0
      %4031 = vmatprep.mubr.f32.mxu0 0.0
      %4032 = vmatmul.mubr.f32.gmra.mrb[0].mxu0 %v3851
      %v4033 = vpop.f32.mrb[0].mxu0
      %v4034 = vadd.f32 0.0, %v4033
      %v4035 = vpop.f32.mrb[0].mxu0
      %4036 = vmatprep.mubr.f32.mxu0 0.0
      %4037 = vmatmul.mubr.f32.gmra.mrb[0].mxu0 %v3852
      %v4038 = vpop.f32.mrb[0].mxu0
      %v4039 = vadd.f32 0.0, %v4038
      %v4040 = vpop.f32.mrb[0].mxu0
      %4041 = vmatprep.mubr.f32.mxu0 0.0
      %4042 = vmatmul.mubr.f32.gmra.mrb[0].mxu0 %v3853
      %v4043 = vpop.f32.mrb[0].mxu0
      %v4044 = vadd.f32 0.0, %v4043
      %v4045 = vpop.f32.mrb[0].mxu0
      %4046 = vmatprep.mubr.f32.mxu0 0.0
      %4047 = vmatmul.mubr.f32.gmra.mrb[0].mxu0 %v3854
      %v4048 = vpop.f32.mrb[0].mxu0
      %v4049 = vadd.f32 0.0, %v4048
      %v4050 = vpop.f32.mrb[0].mxu0
      %4051 = vmatprep.mubr.f32.mxu0 0.0
      %4052 = vmatmul.mubr.f32.gmra.mrb[0].mxu0 %v3855
      %v4053 = vpop.f32.mrb[0].mxu0
      %v4054 = vadd.f32 0.0, %v4053
      %v4055 = vpop.f32.mrb[0].mxu0
      %4056 = vmatprep.mubr.f32.mxu0 0.0
      %4057 = vmatmul.mubr.f32.gmra.mrb[0].mxu0 %v3856
      %v4058 = vpop.f32.mrb[0].mxu0
      %v4059 = vadd.f32 0.0, %v4058
      %v4060 = vpop.f32.mrb[0].mxu0
      %4061 = vmatprep.mubr.f32.mxu0 0.0
      %4062 = vmatmul.mubr.f32.gmra.mrb[0].mxu0 %v3857
      %v4063 = vpop.f32.mrb[0].mxu0
      %v4064 = vadd.f32 0.0, %v4063
      %v4065 = vpop.f32.mrb[0].mxu0
      %4066 = vmatprep.mubr.f32.mxu0 0.0
      %4067 = vmatmul.mubr.f32.gmra.mrb[0].mxu0 %v3858
      %v4068 = vpop.f32.mrb[0].mxu0
      %v4069 = vadd.f32 0.0, %v4068
      %v4070 = vpop.f32.mrb[0].mxu0
      %4071 = vmatprep.mubr.f32.mxu0 0.0
      %4072 = vmatmul.mubr.f32.gmra.mrb[0].mxu0 %v3859
      %v4073 = vpop.f32.mrb[0].mxu0
      %v4074 = vadd.f32 0.0, %v4073
      %v4075 = vpop.f32.mrb[0].mxu0
      %4076 = vmatprep.mubr.f32.mxu0 0.0
      %4077 = vmatmul.mubr.f32.gmra.mrb[0].mxu0 %v3860
      %v4078 = vpop.f32.mrb[0].mxu0
      %v4079 = vadd.f32 0.0, %v4078
      %v4080 = vpop.f32.mrb[0].mxu0
      %4081 = vmatprep.mubr.f32.mxu0 0.0
      %4082 = vmatmul.mubr.f32.gmra.mrb[0].mxu0 %v3861
      %v4083 = vpop.f32.mrb[0].mxu0
      %v4084 = vadd.f32 0.0, %v4083
      %v4085 = vpop.f32.mrb[0].mxu0
      %4086 = vmatprep.mubr.f32.mxu0 0.0
      %4087 = vmatmul.mubr.f32.gmra.mrb[0].mxu0 %v3862
      %v4088 = vpop.f32.mrb[0].mxu0
      %v4089 = vadd.f32 0.0, %v4088
      %v4090 = vpop.f32.mrb[0].mxu0
      %4091 = vmatprep.mubr.f32.mxu0 0.0
      %4092 = vmatmul.mubr.f32.gmra.mrb[0].mxu0 %v3863
      %v4093 = vpop.f32.mrb[0].mxu0
      %v4094 = vadd.f32 0.0, %v4093
      %v4095 = vpop.f32.mrb[0].mxu0
      %4096 = vmatprep.mubr.f32.mxu0 0.0
      %4097 = vmatmul.mubr.f32.gmra.mrb[0].mxu0 %v3864
      %v4098 = vpop.f32.mrb[0].mxu0
      %v4099 = vadd.f32 0.0, %v4098
      %v4100 = vpop.f32.mrb[0].mxu0
      %4101 = vmatprep.mubr.f32.mxu0 0.0
      %4102 = vmatmul.mubr.f32.gmra.mrb[0].mxu0 %v3865
      %v4103 = vpop.f32.mrb[0].mxu0
      %v4104 = vadd.f32 0.0, %v4103
      %v4105 = vpop.f32.mrb[0].mxu0
      %4106 = vdwg.mxu0
      %v4107 = vadd.f32 %v3802, %v3949
      %v4108 = vadd.f32 %v3803, %v3954
      %v4109 = vadd.f32 %v3804, %v3959
      %v4110 = vadd.f32 %v3805, %v3964
      %v4111 = vadd.f32 %v3806, %v3969
      %v4112 = vadd.f32 %v3807, %v3974
      %v4113 = vadd.f32 %v3808, %v3979
      %v4114 = vadd.f32 %v3809, %v3984
      %v4115 = vadd.f32 %v3810, %v3989
      %v4116 = vadd.f32 %v3811, %v3994
      %v4117 = vadd.f32 %v3812, %v3999
      %v4118 = vadd.f32 %v3813, %v4004
      %v4119 = vadd.f32 %v3814, %v4009
      %v4120 = vadd.f32 %v3815, %v4014
      %v4121 = vadd.f32 %v3816, %v4019
      %v4122 = vadd.f32 %v3817, %v4024
      %v4123 = vadd.f32 %v3818, %v4029
      %v4124 = vadd.f32 %v3819, %v4034
      %v4125 = vadd.f32 %v3820, %v4039
      %v4126 = vadd.f32 %v3821, %v4044
      %v4127 = vadd.f32 %v3822, %v4049
      %v4128 = vadd.f32 %v3823, %v4054
      %v4129 = vadd.f32 %v3824, %v4059
      %v4130 = vadd.f32 %v3825, %v4064
      %v4131 = vadd.f32 %v3826, %v4069
      %v4132 = vadd.f32 %v3827, %v4074
      %v4133 = vadd.f32 %v3828, %v4079
      %v4134 = vadd.f32 %v3829, %v4084
      %v4135 = vadd.f32 %v3830, %v4089
      %v4136 = vadd.f32 %v3831, %v4094
      %v4137 = vadd.f32 %v3832, %v4099
      %v4138 = vadd.f32 %v3833, %v4104
      %v4139 = vld [vmem:[#allocation2 + $0x9] sm:$0xff]
      %v4140 = vld [vmem:[#allocation2 + $0x11] sm:$0xff]
      %v4141 = vld [vmem:[#allocation2 + $0x29] sm:$0xff]
      %v4142 = vld [vmem:[#allocation2 + $0x31] sm:$0xff]
      %v4143 = vld [vmem:[#allocation2 + $0x49] sm:$0xff]
      %v4144 = vld [vmem:[#allocation2 + $0x51] sm:$0xff]
      %v4145 = vld [vmem:[#allocation2 + $0x69] sm:$0xff]
      %v4146 = vld [vmem:[#allocation2 + $0x71] sm:$0xff]
      %v4147 = vld [vmem:[#allocation2 + $0x89] sm:$0xff]
      %v4148 = vld [vmem:[#allocation2 + $0x91] sm:$0xff]
      %v4149 = vld [vmem:[#allocation2 + $0xa9] sm:$0xff]
      %v4150 = vld [vmem:[#allocation2 + $0xb1] sm:$0xff]
      %v4151 = vld [vmem:[#allocation2 + $0xc9] sm:$0xff]
      %v4152 = vld [vmem:[#allocation2 + $0xd1] sm:$0xff]
      %v4153 = vld [vmem:[#allocation2 + $0xe9] sm:$0xff]
      %v4154 = vld [vmem:[#allocation2 + $0xf1] sm:$0xff]
      %v4155 = vld [vmem:[#allocation2 + $0x109] sm:$0xff]
      %v4156 = vld [vmem:[#allocation2 + $0x111] sm:$0xff]
      %v4157 = vld [vmem:[#allocation2 + $0x129] sm:$0xff]
      %v4158 = vld [vmem:[#allocation2 + $0x131] sm:$0xff]
      %v4159 = vld [vmem:[#allocation2 + $0x149] sm:$0xff]
      %v4160 = vld [vmem:[#allocation2 + $0x151] sm:$0xff]
      %v4161 = vld [vmem:[#allocation2 + $0x169] sm:$0xff]
      %v4162 = vld [vmem:[#allocation2 + $0x171] sm:$0xff]
      %v4163 = vld [vmem:[#allocation2 + $0x189] sm:$0xff]
      %v4164 = vld [vmem:[#allocation2 + $0x191] sm:$0xff]
      %v4165 = vld [vmem:[#allocation2 + $0x1a9] sm:$0xff]
      %v4166 = vld [vmem:[#allocation2 + $0x1b1] sm:$0xff]
      %v4167 = vld [vmem:[#allocation2 + $0x1c9] sm:$0xff]
      %v4168 = vld [vmem:[#allocation2 + $0x1d1] sm:$0xff]
      %v4169 = vld [vmem:[#allocation2 + $0x1e9] sm:$0xff]
      %v4170 = vld [vmem:[#allocation2 + $0x1f1] sm:$0xff]
      %v4171 = vld [vmem:[%s4 + $0x100] sm:$0xff]
      %v4172 = vld [vmem:[%s4 + $0x108] sm:$0xff]
      %v4173 = vld [vmem:[%s4 + $0x110] sm:$0xff]
      %v4174 = vld [vmem:[%s4 + $0x118] sm:$0xff]
      %v4175 = vld [vmem:[%s4 + $0x120] sm:$0xff]
      %v4176 = vld [vmem:[%s4 + $0x128] sm:$0xff]
      %v4177 = vld [vmem:[%s4 + $0x130] sm:$0xff]
      %v4178 = vld [vmem:[%s4 + $0x138] sm:$0xff]
      %v4179 = vld [vmem:[%s4 + $0x140] sm:$0xff]
      %v4180 = vld [vmem:[%s4 + $0x148] sm:$0xff]
      %v4181 = vld [vmem:[%s4 + $0x150] sm:$0xff]
      %v4182 = vld [vmem:[%s4 + $0x158] sm:$0xff]
      %v4183 = vld [vmem:[%s4 + $0x160] sm:$0xff]
      %v4184 = vld [vmem:[%s4 + $0x168] sm:$0xff]
      %v4185 = vld [vmem:[%s4 + $0x170] sm:$0xff]
      %v4186 = vld [vmem:[%s4 + $0x178] sm:$0xff]
      %4187 = vmatprep.subr.mxu0 0.0
      %4188 = vmatpush1.msra.mxu0 %v4171
      %4189 = vmatprep.subr.mxu0 0.0
      %4190 = vmatpush1.msra.mxu0 %v4172
      %4191 = vmatprep.subr.mxu0 0.0
      %4192 = vmatpush1.msra.mxu0 %v4173
      %4193 = vmatprep.subr.mxu0 0.0
      %4194 = vmatpush1.msra.mxu0 %v4174
      %4195 = vmatprep.subr.mxu0 0.0
      %4196 = vmatpush1.msra.mxu0 %v4175
      %4197 = vmatprep.subr.mxu0 0.0
      %4198 = vmatpush1.msra.mxu0 %v4176
      %4199 = vmatprep.subr.mxu0 0.0
      %4200 = vmatpush1.msra.mxu0 %v4177
      %4201 = vmatprep.subr.mxu0 0.0
      %4202 = vmatpush1.msra.mxu0 %v4178
      %4203 = vmatprep.subr.mxu0 0.0
      %4204 = vmatpush1.msra.mxu0 %v4179
      %4205 = vmatprep.subr.mxu0 0.0
      %4206 = vmatpush1.msra.mxu0 %v4180
      %4207 = vmatprep.subr.mxu0 0.0
      %4208 = vmatpush1.msra.mxu0 %v4181
      %4209 = vmatprep.subr.mxu0 0.0
      %4210 = vmatpush1.msra.mxu0 %v4182
      %4211 = vmatprep.subr.mxu0 0.0
      %4212 = vmatpush1.msra.mxu0 %v4183
      %4213 = vmatprep.subr.mxu0 0.0
      %4214 = vmatpush1.msra.mxu0 %v4184
      %4215 = vmatprep.subr.mxu0 0.0
      %4216 = vmatpush1.msra.mxu0 %v4185
      %4217 = vmatprep.subr.mxu0 0.0
      %4218 = vmatpush1.msra.mxu0 %v4186
      %4219 = vmatprep.subr.mxu0 0.0
      %4220 = vmatpush1.msra.mxu0 0.0
      %4221 = vmatprep.subr.mxu0 0.0
      %4222 = vmatpush1.msra.mxu0 0.0
      %4223 = vmatprep.subr.mxu0 0.0
      %4224 = vmatpush1.msra.mxu0 0.0
      %4225 = vmatprep.subr.mxu0 0.0
      %4226 = vmatpush1.msra.mxu0 0.0
      %4227 = vmatprep.subr.mxu0 0.0
      %4228 = vmatpush1.msra.mxu0 0.0
      %4229 = vmatprep.subr.mxu0 0.0
      %4230 = vmatpush1.msra.mxu0 0.0
      %4231 = vmatprep.subr.mxu0 0.0
      %4232 = vmatpush1.msra.mxu0 0.0
      %4233 = vmatprep.subr.mxu0 0.0
      %4234 = vmatpush1.msra.mxu0 0.0
      %4235 = vmatprep.subr.mxu0 0.0
      %4236 = vmatpush1.msra.mxu0 0.0
      %4237 = vmatprep.subr.mxu0 0.0
      %4238 = vmatpush1.msra.mxu0 0.0
      %4239 = vmatprep.subr.mxu0 0.0
      %4240 = vmatpush1.msra.mxu0 0.0
      %4241 = vmatprep.subr.mxu0 0.0
      %4242 = vmatpush1.msra.mxu0 0.0
      %4243 = vmatprep.subr.mxu0 0.0
      %4244 = vmatpush1.msra.mxu0 0.0
      %4245 = vmatprep.subr.mxu0 0.0
      %4246 = vmatpush1.msra.mxu0 0.0
      %4247 = vmatprep.subr.mxu0 0.0
      %4248 = vmatpush1.msra.mxu0 0.0
      %4249 = vmatprep.subr.mxu0 0.0
      %4250 = vmatpush1.msra.mxu0 0.0
      %4251 = vmatprep.mubr.f32.mxu0 0.0
      %4252 = vmatmul.mubr.f32.gmra.mrb[0].mxu0 %v4139
      %v4253 = vpop.f32.mrb[0].mxu0
      %v4254 = vadd.f32 0.0, %v4253
      %v4255 = vpop.f32.mrb[0].mxu0
      %4256 = vmatprep.mubr.f32.mxu0 0.0
      %4257 = vmatmul.mubr.f32.gmra.mrb[0].mxu0 %v4140
      %v4258 = vpop.f32.mrb[0].mxu0
      %v4259 = vadd.f32 0.0, %v4258
      %v4260 = vpop.f32.mrb[0].mxu0
      %4261 = vmatprep.mubr.f32.mxu0 0.0
      %4262 = vmatmul.mubr.f32.gmra.mrb[0].mxu0 %v4141
      %v4263 = vpop.f32.mrb[0].mxu0
      %v4264 = vadd.f32 0.0, %v4263
      %v4265 = vpop.f32.mrb[0].mxu0
      %4266 = vmatprep.mubr.f32.mxu0 0.0
      %4267 = vmatmul.mubr.f32.gmra.mrb[0].mxu0 %v4142
      %v4268 = vpop.f32.mrb[0].mxu0
      %v4269 = vadd.f32 0.0, %v4268
      %v4270 = vpop.f32.mrb[0].mxu0
      %4271 = vmatprep.mubr.f32.mxu0 0.0
      %4272 = vmatmul.mubr.f32.gmra.mrb[0].mxu0 %v4143
      %v4273 = vpop.f32.mrb[0].mxu0
      %v4274 = vadd.f32 0.0, %v4273
      %v4275 = vpop.f32.mrb[0].mxu0
      %4276 = vmatprep.mubr.f32.mxu0 0.0
      %4277 = vmatmul.mubr.f32.gmra.mrb[0].mxu0 %v4144
      %v4278 = vpop.f32.mrb[0].mxu0
      %v4279 = vadd.f32 0.0, %v4278
      %v4280 = vpop.f32.mrb[0].mxu0
      %4281 = vmatprep.mubr.f32.mxu0 0.0
      %4282 = vmatmul.mubr.f32.gmra.mrb[0].mxu0 %v4145
      %v4283 = vpop.f32.mrb[0].mxu0
      %v4284 = vadd.f32 0.0, %v4283
      %v4285 = vpop.f32.mrb[0].mxu0
      %4286 = vmatprep.mubr.f32.mxu0 0.0
      %4287 = vmatmul.mubr.f32.gmra.mrb[0].mxu0 %v4146
      %v4288 = vpop.f32.mrb[0].mxu0
      %v4289 = vadd.f32 0.0, %v4288
      %v4290 = vpop.f32.mrb[0].mxu0
      %4291 = vmatprep.mubr.f32.mxu0 0.0
      %4292 = vmatmul.mubr.f32.gmra.mrb[0].mxu0 %v4147
      %v4293 = vpop.f32.mrb[0].mxu0
      %v4294 = vadd.f32 0.0, %v4293
      %v4295 = vpop.f32.mrb[0].mxu0
      %4296 = vmatprep.mubr.f32.mxu0 0.0
      %4297 = vmatmul.mubr.f32.gmra.mrb[0].mxu0 %v4148
      %v4298 = vpop.f32.mrb[0].mxu0
      %v4299 = vadd.f32 0.0, %v4298
      %v4300 = vpop.f32.mrb[0].mxu0
      %4301 = vmatprep.mubr.f32.mxu0 0.0
      %4302 = vmatmul.mubr.f32.gmra.mrb[0].mxu0 %v4149
      %v4303 = vpop.f32.mrb[0].mxu0
      %v4304 = vadd.f32 0.0, %v4303
      %v4305 = vpop.f32.mrb[0].mxu0
      %4306 = vmatprep.mubr.f32.mxu0 0.0
      %4307 = vmatmul.mubr.f32.gmra.mrb[0].mxu0 %v4150
      %v4308 = vpop.f32.mrb[0].mxu0
      %v4309 = vadd.f32 0.0, %v4308
      %v4310 = vpop.f32.mrb[0].mxu0
      %4311 = vmatprep.mubr.f32.mxu0 0.0
      %4312 = vmatmul.mubr.f32.gmra.mrb[0].mxu0 %v4151
      %v4313 = vpop.f32.mrb[0].mxu0
      %v4314 = vadd.f32 0.0, %v4313
      %v4315 = vpop.f32.mrb[0].mxu0
      %4316 = vmatprep.mubr.f32.mxu0 0.0
      %4317 = vmatmul.mubr.f32.gmra.mrb[0].mxu0 %v4152
      %v4318 = vpop.f32.mrb[0].mxu0
      %v4319 = vadd.f32 0.0, %v4318
      %v4320 = vpop.f32.mrb[0].mxu0
      %4321 = vmatprep.mubr.f32.mxu0 0.0
      %4322 = vmatmul.mubr.f32.gmra.mrb[0].mxu0 %v4153
      %v4323 = vpop.f32.mrb[0].mxu0
      %v4324 = vadd.f32 0.0, %v4323
      %v4325 = vpop.f32.mrb[0].mxu0
      %4326 = vmatprep.mubr.f32.mxu0 0.0
      %4327 = vmatmul.mubr.f32.gmra.mrb[0].mxu0 %v4154
      %v4328 = vpop.f32.mrb[0].mxu0
      %v4329 = vadd.f32 0.0, %v4328
      %v4330 = vpop.f32.mrb[0].mxu0
      %4331 = vmatprep.mubr.f32.mxu0 0.0
      %4332 = vmatmul.mubr.f32.gmra.mrb[0].mxu0 %v4155
      %v4333 = vpop.f32.mrb[0].mxu0
      %v4334 = vadd.f32 0.0, %v4333
      %v4335 = vpop.f32.mrb[0].mxu0
      %4336 = vmatprep.mubr.f32.mxu0 0.0
      %4337 = vmatmul.mubr.f32.gmra.mrb[0].mxu0 %v4156
      %v4338 = vpop.f32.mrb[0].mxu0
      %v4339 = vadd.f32 0.0, %v4338
      %v4340 = vpop.f32.mrb[0].mxu0
      %4341 = vmatprep.mubr.f32.mxu0 0.0
      %4342 = vmatmul.mubr.f32.gmra.mrb[0].mxu0 %v4157
      %v4343 = vpop.f32.mrb[0].mxu0
      %v4344 = vadd.f32 0.0, %v4343
      %v4345 = vpop.f32.mrb[0].mxu0
      %4346 = vmatprep.mubr.f32.mxu0 0.0
      %4347 = vmatmul.mubr.f32.gmra.mrb[0].mxu0 %v4158
      %v4348 = vpop.f32.mrb[0].mxu0
      %v4349 = vadd.f32 0.0, %v4348
      %v4350 = vpop.f32.mrb[0].mxu0
      %4351 = vmatprep.mubr.f32.mxu0 0.0
      %4352 = vmatmul.mubr.f32.gmra.mrb[0].mxu0 %v4159
      %v4353 = vpop.f32.mrb[0].mxu0
      %v4354 = vadd.f32 0.0, %v4353
      %v4355 = vpop.f32.mrb[0].mxu0
      %4356 = vmatprep.mubr.f32.mxu0 0.0
      %4357 = vmatmul.mubr.f32.gmra.mrb[0].mxu0 %v4160
      %v4358 = vpop.f32.mrb[0].mxu0
      %v4359 = vadd.f32 0.0, %v4358
      %v4360 = vpop.f32.mrb[0].mxu0
      %4361 = vmatprep.mubr.f32.mxu0 0.0
      %4362 = vmatmul.mubr.f32.gmra.mrb[0].mxu0 %v4161
      %v4363 = vpop.f32.mrb[0].mxu0
      %v4364 = vadd.f32 0.0, %v4363
      %v4365 = vpop.f32.mrb[0].mxu0
      %4366 = vmatprep.mubr.f32.mxu0 0.0
      %4367 = vmatmul.mubr.f32.gmra.mrb[0].mxu0 %v4162
      %v4368 = vpop.f32.mrb[0].mxu0
      %v4369 = vadd.f32 0.0, %v4368
      %v4370 = vpop.f32.mrb[0].mxu0
      %4371 = vmatprep.mubr.f32.mxu0 0.0
      %4372 = vmatmul.mubr.f32.gmra.mrb[0].mxu0 %v4163
      %v4373 = vpop.f32.mrb[0].mxu0
      %v4374 = vadd.f32 0.0, %v4373
      %v4375 = vpop.f32.mrb[0].mxu0
      %4376 = vmatprep.mubr.f32.mxu0 0.0
      %4377 = vmatmul.mubr.f32.gmra.mrb[0].mxu0 %v4164
      %v4378 = vpop.f32.mrb[0].mxu0
      %v4379 = vadd.f32 0.0, %v4378
      %v4380 = vpop.f32.mrb[0].mxu0
      %4381 = vmatprep.mubr.f32.mxu0 0.0
      %4382 = vmatmul.mubr.f32.gmra.mrb[0].mxu0 %v4165
      %v4383 = vpop.f32.mrb[0].mxu0
      %v4384 = vadd.f32 0.0, %v4383
      %v4385 = vpop.f32.mrb[0].mxu0
      %4386 = vmatprep.mubr.f32.mxu0 0.0
      %4387 = vmatmul.mubr.f32.gmra.mrb[0].mxu0 %v4166
      %v4388 = vpop.f32.mrb[0].mxu0
      %v4389 = vadd.f32 0.0, %v4388
      %v4390 = vpop.f32.mrb[0].mxu0
      %4391 = vmatprep.mubr.f32.mxu0 0.0
      %4392 = vmatmul.mubr.f32.gmra.mrb[0].mxu0 %v4167
      %v4393 = vpop.f32.mrb[0].mxu0
      %v4394 = vadd.f32 0.0, %v4393
      %v4395 = vpop.f32.mrb[0].mxu0
      %4396 = vmatprep.mubr.f32.mxu0 0.0
      %4397 = vmatmul.mubr.f32.gmra.mrb[0].mxu0 %v4168
      %v4398 = vpop.f32.mrb[0].mxu0
      %v4399 = vadd.f32 0.0, %v4398
      %v4400 = vpop.f32.mrb[0].mxu0
      %4401 = vmatprep.mubr.f32.mxu0 0.0
      %4402 = vmatmul.mubr.f32.gmra.mrb[0].mxu0 %v4169
      %v4403 = vpop.f32.mrb[0].mxu0
      %v4404 = vadd.f32 0.0, %v4403
      %v4405 = vpop.f32.mrb[0].mxu0
      %4406 = vmatprep.mubr.f32.mxu0 0.0
      %4407 = vmatmul.mubr.f32.gmra.mrb[0].mxu0 %v4170
      %v4408 = vpop.f32.mrb[0].mxu0
      %v4409 = vadd.f32 0.0, %v4408
      %v4410 = vpop.f32.mrb[0].mxu0
      %4411 = vdwg.mxu0
      %v4412 = vadd.f32 %v4107, %v4254
      %v4413 = vadd.f32 %v4108, %v4259
      %v4414 = vadd.f32 %v4109, %v4264
      %v4415 = vadd.f32 %v4110, %v4269
      %v4416 = vadd.f32 %v4111, %v4274
      %v4417 = vadd.f32 %v4112, %v4279
      %v4418 = vadd.f32 %v4113, %v4284
      %v4419 = vadd.f32 %v4114, %v4289
      %v4420 = vadd.f32 %v4115, %v4294
      %v4421 = vadd.f32 %v4116, %v4299
      %v4422 = vadd.f32 %v4117, %v4304
      %v4423 = vadd.f32 %v4118, %v4309
      %v4424 = vadd.f32 %v4119, %v4314
      %v4425 = vadd.f32 %v4120, %v4319
      %v4426 = vadd.f32 %v4121, %v4324
      %v4427 = vadd.f32 %v4122, %v4329
      %v4428 = vadd.f32 %v4123, %v4334
      %v4429 = vadd.f32 %v4124, %v4339
      %v4430 = vadd.f32 %v4125, %v4344
      %v4431 = vadd.f32 %v4126, %v4349
      %v4432 = vadd.f32 %v4127, %v4354
      %v4433 = vadd.f32 %v4128, %v4359
      %v4434 = vadd.f32 %v4129, %v4364
      %v4435 = vadd.f32 %v4130, %v4369
      %v4436 = vadd.f32 %v4131, %v4374
      %v4437 = vadd.f32 %v4132, %v4379
      %v4438 = vadd.f32 %v4133, %v4384
      %v4439 = vadd.f32 %v4134, %v4389
      %v4440 = vadd.f32 %v4135, %v4394
      %v4441 = vadd.f32 %v4136, %v4399
      %v4442 = vadd.f32 %v4137, %v4404
      %v4443 = vadd.f32 %v4138, %v4409
      %v4444 = vld [vmem:[%s568 + $0x7] sm:$0xff]
      %v4445 = vld [vmem:[%s568 + $0xf] sm:$0xff]
      %v4446 = vld [vmem:[%s568 + $0x27] sm:$0xff]
      %v4447 = vld [vmem:[%s568 + $0x2f] sm:$0xff]
      %v4448 = vld [vmem:[%s568 + $0x47] sm:$0xff]
      %v4449 = vld [vmem:[%s568 + $0x4f] sm:$0xff]
      %v4450 = vld [vmem:[%s568 + $0x67] sm:$0xff]
      %v4451 = vld [vmem:[%s568 + $0x6f] sm:$0xff]
      %v4452 = vld [vmem:[%s568 + $0x87] sm:$0xff]
      %v4453 = vld [vmem:[%s568 + $0x8f] sm:$0xff]
      %v4454 = vld [vmem:[%s568 + $0xa7] sm:$0xff]
      %v4455 = vld [vmem:[%s568 + $0xaf] sm:$0xff]
      %v4456 = vld [vmem:[%s568 + $0xc7] sm:$0xff]
      %v4457 = vld [vmem:[%s568 + $0xcf] sm:$0xff]
      %v4458 = vld [vmem:[%s568 + $0xe7] sm:$0xff]
      %v4459 = vld [vmem:[%s568 + $0xef] sm:$0xff]
      %v4460 = vld [vmem:[%s568 + $0x107] sm:$0xff]
      %v4461 = vld [vmem:[%s568 + $0x10f] sm:$0xff]
      %v4462 = vld [vmem:[%s568 + $0x127] sm:$0xff]
      %v4463 = vld [vmem:[%s568 + $0x12f] sm:$0xff]
      %v4464 = vld [vmem:[%s568 + $0x147] sm:$0xff]
      %v4465 = vld [vmem:[%s568 + $0x14f] sm:$0xff]
      %v4466 = vld [vmem:[%s568 + $0x167] sm:$0xff]
      %v4467 = vld [vmem:[%s568 + $0x16f] sm:$0xff]
      %v4468 = vld [vmem:[%s568 + $0x187] sm:$0xff]
      %v4469 = vld [vmem:[%s568 + $0x18f] sm:$0xff]
      %v4470 = vld [vmem:[%s568 + $0x1a7] sm:$0xff]
      %v4471 = vld [vmem:[%s568 + $0x1af] sm:$0xff]
      %v4472 = vld [vmem:[%s568 + $0x1c7] sm:$0xff]
      %v4473 = vld [vmem:[%s568 + $0x1cf] sm:$0xff]
      %v4474 = vld [vmem:[%s568 + $0x1e7] sm:$0xff]
      %v4475 = vld [vmem:[%s568 + $0x1ef] sm:$0xff]
      %v4476 = vld [vmem:[%s4 + $0x180] sm:$0xff]
      %v4477 = vld [vmem:[%s4 + $0x188] sm:$0xff]
      %v4478 = vld [vmem:[%s4 + $0x190] sm:$0xff]
      %v4479 = vld [vmem:[%s4 + $0x198] sm:$0xff]
      %v4480 = vld [vmem:[%s4 + $0x1a0] sm:$0xff]
      %v4481 = vld [vmem:[%s4 + $0x1a8] sm:$0xff]
      %v4482 = vld [vmem:[%s4 + $0x1b0] sm:$0xff]
      %v4483 = vld [vmem:[%s4 + $0x1b8] sm:$0xff]
      %v4484 = vld [vmem:[%s4 + $0x1c0] sm:$0xff]
      %v4485 = vld [vmem:[%s4 + $0x1c8] sm:$0xff]
      %v4486 = vld [vmem:[%s4 + $0x1d0] sm:$0xff]
      %v4487 = vld [vmem:[%s4 + $0x1d8] sm:$0xff]
      %v4488 = vld [vmem:[%s4 + $0x1e0] sm:$0xff]
      %v4489 = vld [vmem:[%s4 + $0x1e8] sm:$0xff]
      %v4490 = vld [vmem:[%s4 + $0x1f0] sm:$0xff]
      %v4491 = vld [vmem:[%s4 + $0x1f8] sm:$0xff]
      %4492 = vmatprep.subr.mxu0 0.0
      %4493 = vmatpush1.msra.mxu0 %v4476
      %4494 = vmatprep.subr.mxu0 0.0
      %4495 = vmatpush1.msra.mxu0 %v4477
      %4496 = vmatprep.subr.mxu0 0.0
      %4497 = vmatpush1.msra.mxu0 %v4478
      %4498 = vmatprep.subr.mxu0 0.0
      %4499 = vmatpush1.msra.mxu0 %v4479
      %4500 = vmatprep.subr.mxu0 0.0
      %4501 = vmatpush1.msra.mxu0 %v4480
      %4502 = vmatprep.subr.mxu0 0.0
      %4503 = vmatpush1.msra.mxu0 %v4481
      %4504 = vmatprep.subr.mxu0 0.0
      %4505 = vmatpush1.msra.mxu0 %v4482
      %4506 = vmatprep.subr.mxu0 0.0
      %4507 = vmatpush1.msra.mxu0 %v4483
      %4508 = vmatprep.subr.mxu0 0.0
      %4509 = vmatpush1.msra.mxu0 %v4484
      %4510 = vmatprep.subr.mxu0 0.0
      %4511 = vmatpush1.msra.mxu0 %v4485
      %4512 = vmatprep.subr.mxu0 0.0
      %4513 = vmatpush1.msra.mxu0 %v4486
      %4514 = vmatprep.subr.mxu0 0.0
      %4515 = vmatpush1.msra.mxu0 %v4487
      %4516 = vmatprep.subr.mxu0 0.0
      %4517 = vmatpush1.msra.mxu0 %v4488
      %4518 = vmatprep.subr.mxu0 0.0
      %4519 = vmatpush1.msra.mxu0 %v4489
      %4520 = vmatprep.subr.mxu0 0.0
      %4521 = vmatpush1.msra.mxu0 %v4490
      %4522 = vmatprep.subr.mxu0 0.0
      %4523 = vmatpush1.msra.mxu0 %v4491
      %4524 = vmatprep.subr.mxu0 0.0
      %4525 = vmatpush1.msra.mxu0 0.0
      %4526 = vmatprep.subr.mxu0 0.0
      %4527 = vmatpush1.msra.mxu0 0.0
      %4528 = vmatprep.subr.mxu0 0.0
      %4529 = vmatpush1.msra.mxu0 0.0
      %4530 = vmatprep.subr.mxu0 0.0
      %4531 = vmatpush1.msra.mxu0 0.0
      %4532 = vmatprep.subr.mxu0 0.0
      %4533 = vmatpush1.msra.mxu0 0.0
      %4534 = vmatprep.subr.mxu0 0.0
      %4535 = vmatpush1.msra.mxu0 0.0
      %4536 = vmatprep.subr.mxu0 0.0
      %4537 = vmatpush1.msra.mxu0 0.0
      %4538 = vmatprep.subr.mxu0 0.0
      %4539 = vmatpush1.msra.mxu0 0.0
      %4540 = vmatprep.subr.mxu0 0.0
      %4541 = vmatpush1.msra.mxu0 0.0
      %4542 = vmatprep.subr.mxu0 0.0
      %4543 = vmatpush1.msra.mxu0 0.0
      %4544 = vmatprep.subr.mxu0 0.0
      %4545 = vmatpush1.msra.mxu0 0.0
      %4546 = vmatprep.subr.mxu0 0.0
      %4547 = vmatpush1.msra.mxu0 0.0
      %4548 = vmatprep.subr.mxu0 0.0
      %4549 = vmatpush1.msra.mxu0 0.0
      %4550 = vmatprep.subr.mxu0 0.0
      %4551 = vmatpush1.msra.mxu0 0.0
      %4552 = vmatprep.subr.mxu0 0.0
      %4553 = vmatpush1.msra.mxu0 0.0
      %4554 = vmatprep.subr.mxu0 0.0
      %4555 = vmatpush1.msra.mxu0 0.0
      %4556 = vmatprep.mubr.f32.mxu0 0.0
      %4557 = vmatmul.mubr.f32.gmra.mrb[0].mxu0 %v4444
      %v4558 = vpop.f32.mrb[0].mxu0
      %v4559 = vadd.f32 0.0, %v4558
      %v4560 = vpop.f32.mrb[0].mxu0
      %4561 = vmatprep.mubr.f32.mxu0 0.0
      %4562 = vmatmul.mubr.f32.gmra.mrb[0].mxu0 %v4445
      %v4563 = vpop.f32.mrb[0].mxu0
      %v4564 = vadd.f32 0.0, %v4563
      %v4565 = vpop.f32.mrb[0].mxu0
      %4566 = vmatprep.mubr.f32.mxu0 0.0
      %4567 = vmatmul.mubr.f32.gmra.mrb[0].mxu0 %v4446
      %v4568 = vpop.f32.mrb[0].mxu0
      %v4569 = vadd.f32 0.0, %v4568
      %v4570 = vpop.f32.mrb[0].mxu0
      %4571 = vmatprep.mubr.f32.mxu0 0.0
      %4572 = vmatmul.mubr.f32.gmra.mrb[0].mxu0 %v4447
      %v4573 = vpop.f32.mrb[0].mxu0
      %v4574 = vadd.f32 0.0, %v4573
      %v4575 = vpop.f32.mrb[0].mxu0
      %4576 = vmatprep.mubr.f32.mxu0 0.0
      %4577 = vmatmul.mubr.f32.gmra.mrb[0].mxu0 %v4448
      %v4578 = vpop.f32.mrb[0].mxu0
      %v4579 = vadd.f32 0.0, %v4578
      %v4580 = vpop.f32.mrb[0].mxu0
      %4581 = vmatprep.mubr.f32.mxu0 0.0
      %4582 = vmatmul.mubr.f32.gmra.mrb[0].mxu0 %v4449
      %v4583 = vpop.f32.mrb[0].mxu0
      %v4584 = vadd.f32 0.0, %v4583
      %v4585 = vpop.f32.mrb[0].mxu0
      %4586 = vmatprep.mubr.f32.mxu0 0.0
      %4587 = vmatmul.mubr.f32.gmra.mrb[0].mxu0 %v4450
      %v4588 = vpop.f32.mrb[0].mxu0
      %v4589 = vadd.f32 0.0, %v4588
      %v4590 = vpop.f32.mrb[0].mxu0
      %4591 = vmatprep.mubr.f32.mxu0 0.0
      %4592 = vmatmul.mubr.f32.gmra.mrb[0].mxu0 %v4451
      %v4593 = vpop.f32.mrb[0].mxu0
      %v4594 = vadd.f32 0.0, %v4593
      %v4595 = vpop.f32.mrb[0].mxu0
      %4596 = vmatprep.mubr.f32.mxu0 0.0
      %4597 = vmatmul.mubr.f32.gmra.mrb[0].mxu0 %v4452
      %v4598 = vpop.f32.mrb[0].mxu0
      %v4599 = vadd.f32 0.0, %v4598
      %v4600 = vpop.f32.mrb[0].mxu0
      %4601 = vmatprep.mubr.f32.mxu0 0.0
      %4602 = vmatmul.mubr.f32.gmra.mrb[0].mxu0 %v4453
      %v4603 = vpop.f32.mrb[0].mxu0
      %v4604 = vadd.f32 0.0, %v4603
      %v4605 = vpop.f32.mrb[0].mxu0
      %4606 = vmatprep.mubr.f32.mxu0 0.0
      %4607 = vmatmul.mubr.f32.gmra.mrb[0].mxu0 %v4454
      %v4608 = vpop.f32.mrb[0].mxu0
      %v4609 = vadd.f32 0.0, %v4608
      %v4610 = vpop.f32.mrb[0].mxu0
      %4611 = vmatprep.mubr.f32.mxu0 0.0
      %4612 = vmatmul.mubr.f32.gmra.mrb[0].mxu0 %v4455
      %v4613 = vpop.f32.mrb[0].mxu0
      %v4614 = vadd.f32 0.0, %v4613
      %v4615 = vpop.f32.mrb[0].mxu0
      %4616 = vmatprep.mubr.f32.mxu0 0.0
      %4617 = vmatmul.mubr.f32.gmra.mrb[0].mxu0 %v4456
      %v4618 = vpop.f32.mrb[0].mxu0
      %v4619 = vadd.f32 0.0, %v4618
      %v4620 = vpop.f32.mrb[0].mxu0
      %4621 = vmatprep.mubr.f32.mxu0 0.0
      %4622 = vmatmul.mubr.f32.gmra.mrb[0].mxu0 %v4457
      %v4623 = vpop.f32.mrb[0].mxu0
      %v4624 = vadd.f32 0.0, %v4623
      %v4625 = vpop.f32.mrb[0].mxu0
      %4626 = vmatprep.mubr.f32.mxu0 0.0
      %4627 = vmatmul.mubr.f32.gmra.mrb[0].mxu0 %v4458
      %v4628 = vpop.f32.mrb[0].mxu0
      %v4629 = vadd.f32 0.0, %v4628
      %v4630 = vpop.f32.mrb[0].mxu0
      %4631 = vmatprep.mubr.f32.mxu0 0.0
      %4632 = vmatmul.mubr.f32.gmra.mrb[0].mxu0 %v4459
      %v4633 = vpop.f32.mrb[0].mxu0
      %v4634 = vadd.f32 0.0, %v4633
      %v4635 = vpop.f32.mrb[0].mxu0
      %4636 = vmatprep.mubr.f32.mxu0 0.0
      %4637 = vmatmul.mubr.f32.gmra.mrb[0].mxu0 %v4460
      %v4638 = vpop.f32.mrb[0].mxu0
      %v4639 = vadd.f32 0.0, %v4638
      %v4640 = vpop.f32.mrb[0].mxu0
      %4641 = vmatprep.mubr.f32.mxu0 0.0
      %4642 = vmatmul.mubr.f32.gmra.mrb[0].mxu0 %v4461
      %v4643 = vpop.f32.mrb[0].mxu0
      %v4644 = vadd.f32 0.0, %v4643
      %v4645 = vpop.f32.mrb[0].mxu0
      %4646 = vmatprep.mubr.f32.mxu0 0.0
      %4647 = vmatmul.mubr.f32.gmra.mrb[0].mxu0 %v4462
      %v4648 = vpop.f32.mrb[0].mxu0
      %v4649 = vadd.f32 0.0, %v4648
      %v4650 = vpop.f32.mrb[0].mxu0
      %4651 = vmatprep.mubr.f32.mxu0 0.0
      %4652 = vmatmul.mubr.f32.gmra.mrb[0].mxu0 %v4463
      %v4653 = vpop.f32.mrb[0].mxu0
      %v4654 = vadd.f32 0.0, %v4653
      %v4655 = vpop.f32.mrb[0].mxu0
      %4656 = vmatprep.mubr.f32.mxu0 0.0
      %4657 = vmatmul.mubr.f32.gmra.mrb[0].mxu0 %v4464
      %v4658 = vpop.f32.mrb[0].mxu0
      %v4659 = vadd.f32 0.0, %v4658
      %v4660 = vpop.f32.mrb[0].mxu0
      %4661 = vmatprep.mubr.f32.mxu0 0.0
      %4662 = vmatmul.mubr.f32.gmra.mrb[0].mxu0 %v4465
      %v4663 = vpop.f32.mrb[0].mxu0
      %v4664 = vadd.f32 0.0, %v4663
      %v4665 = vpop.f32.mrb[0].mxu0
      %4666 = vmatprep.mubr.f32.mxu0 0.0
      %4667 = vmatmul.mubr.f32.gmra.mrb[0].mxu0 %v4466
      %v4668 = vpop.f32.mrb[0].mxu0
      %v4669 = vadd.f32 0.0, %v4668
      %v4670 = vpop.f32.mrb[0].mxu0
      %4671 = vmatprep.mubr.f32.mxu0 0.0
      %4672 = vmatmul.mubr.f32.gmra.mrb[0].mxu0 %v4467
      %v4673 = vpop.f32.mrb[0].mxu0
      %v4674 = vadd.f32 0.0, %v4673
      %v4675 = vpop.f32.mrb[0].mxu0
      %4676 = vmatprep.mubr.f32.mxu0 0.0
      %4677 = vmatmul.mubr.f32.gmra.mrb[0].mxu0 %v4468
      %v4678 = vpop.f32.mrb[0].mxu0
      %v4679 = vadd.f32 0.0, %v4678
      %v4680 = vpop.f32.mrb[0].mxu0
      %4681 = vmatprep.mubr.f32.mxu0 0.0
      %4682 = vmatmul.mubr.f32.gmra.mrb[0].mxu0 %v4469
      %v4683 = vpop.f32.mrb[0].mxu0
      %v4684 = vadd.f32 0.0, %v4683
      %v4685 = vpop.f32.mrb[0].mxu0
      %4686 = vmatprep.mubr.f32.mxu0 0.0
      %4687 = vmatmul.mubr.f32.gmra.mrb[0].mxu0 %v4470
      %v4688 = vpop.f32.mrb[0].mxu0
      %v4689 = vadd.f32 0.0, %v4688
      %v4690 = vpop.f32.mrb[0].mxu0
      %4691 = vmatprep.mubr.f32.mxu0 0.0
      %4692 = vmatmul.mubr.f32.gmra.mrb[0].mxu0 %v4471
      %v4693 = vpop.f32.mrb[0].mxu0
      %v4694 = vadd.f32 0.0, %v4693
      %v4695 = vpop.f32.mrb[0].mxu0
      %4696 = vmatprep.mubr.f32.mxu0 0.0
      %4697 = vmatmul.mubr.f32.gmra.mrb[0].mxu0 %v4472
      %v4698 = vpop.f32.mrb[0].mxu0
      %v4699 = vadd.f32 0.0, %v4698
      %v4700 = vpop.f32.mrb[0].mxu0
      %4701 = vmatprep.mubr.f32.mxu0 0.0
      %4702 = vmatmul.mubr.f32.gmra.mrb[0].mxu0 %v4473
      %v4703 = vpop.f32.mrb[0].mxu0
      %v4704 = vadd.f32 0.0, %v4703
      %v4705 = vpop.f32.mrb[0].mxu0
      %4706 = vmatprep.mubr.f32.mxu0 0.0
      %4707 = vmatmul.mubr.f32.gmra.mrb[0].mxu0 %v4474
      %v4708 = vpop.f32.mrb[0].mxu0
      %v4709 = vadd.f32 0.0, %v4708
      %v4710 = vpop.f32.mrb[0].mxu0
      %4711 = vmatprep.mubr.f32.mxu0 0.0
      %4712 = vmatmul.mubr.f32.gmra.mrb[0].mxu0 %v4475
      %v4713 = vpop.f32.mrb[0].mxu0
      %v4714 = vadd.f32 0.0, %v4713
      %v4715 = vpop.f32.mrb[0].mxu0
      %4716 = vdwg.mxu0
      %v4717 = vadd.f32 %v4412, %v4559
      %v4718 = vadd.f32 %v4413, %v4564
      %v4719 = vadd.f32 %v4414, %v4569
      %v4720 = vadd.f32 %v4415, %v4574
      %v4721 = vadd.f32 %v4416, %v4579
      %v4722 = vadd.f32 %v4417, %v4584
      %v4723 = vadd.f32 %v4418, %v4589
      %v4724 = vadd.f32 %v4419, %v4594
      %v4725 = vadd.f32 %v4420, %v4599
      %v4726 = vadd.f32 %v4421, %v4604
      %v4727 = vadd.f32 %v4422, %v4609
      %v4728 = vadd.f32 %v4423, %v4614
      %v4729 = vadd.f32 %v4424, %v4619
      %v4730 = vadd.f32 %v4425, %v4624
      %v4731 = vadd.f32 %v4426, %v4629
      %v4732 = vadd.f32 %v4427, %v4634
      %v4733 = vadd.f32 %v4428, %v4639
      %v4734 = vadd.f32 %v4429, %v4644
      %v4735 = vadd.f32 %v4430, %v4649
      %v4736 = vadd.f32 %v4431, %v4654
      %v4737 = vadd.f32 %v4432, %v4659
      %v4738 = vadd.f32 %v4433, %v4664
      %v4739 = vadd.f32 %v4434, %v4669
      %v4740 = vadd.f32 %v4435, %v4674
      %v4741 = vadd.f32 %v4436, %v4679
      %v4742 = vadd.f32 %v4437, %v4684
      %v4743 = vadd.f32 %v4438, %v4689
      %v4744 = vadd.f32 %v4439, %v4694
      %v4745 = vadd.f32 %v4440, %v4699
      %v4746 = vadd.f32 %v4441, %v4704
      %v4747 = vadd.f32 %v4442, %v4709
      %v4748 = vadd.f32 %v4443, %v4714
      %v4749 = vld [vmem:[%s568 + $0x8] sm:$0xff]
      %v4750 = vld [vmem:[%s568 + $0x10] sm:$0xff]
      %v4751 = vld [vmem:[%s568 + $0x28] sm:$0xff]
      %v4752 = vld [vmem:[%s568 + $0x30] sm:$0xff]
      %v4753 = vld [vmem:[%s568 + $0x48] sm:$0xff]
      %v4754 = vld [vmem:[%s568 + $0x50] sm:$0xff]
      %v4755 = vld [vmem:[%s568 + $0x68] sm:$0xff]
      %v4756 = vld [vmem:[%s568 + $0x70] sm:$0xff]
      %v4757 = vld [vmem:[%s568 + $0x88] sm:$0xff]
      %v4758 = vld [vmem:[%s568 + $0x90] sm:$0xff]
      %v4759 = vld [vmem:[%s568 + $0xa8] sm:$0xff]
      %v4760 = vld [vmem:[%s568 + $0xb0] sm:$0xff]
      %v4761 = vld [vmem:[%s568 + $0xc8] sm:$0xff]
      %v4762 = vld [vmem:[%s568 + $0xd0] sm:$0xff]
      %v4763 = vld [vmem:[%s568 + $0xe8] sm:$0xff]
      %v4764 = vld [vmem:[%s568 + $0xf0] sm:$0xff]
      %v4765 = vld [vmem:[%s568 + $0x108] sm:$0xff]
      %v4766 = vld [vmem:[%s568 + $0x110] sm:$0xff]
      %v4767 = vld [vmem:[%s568 + $0x128] sm:$0xff]
      %v4768 = vld [vmem:[%s568 + $0x130] sm:$0xff]
      %v4769 = vld [vmem:[%s568 + $0x148] sm:$0xff]
      %v4770 = vld [vmem:[%s568 + $0x150] sm:$0xff]
      %v4771 = vld [vmem:[%s568 + $0x168] sm:$0xff]
      %v4772 = vld [vmem:[%s568 + $0x170] sm:$0xff]
      %v4773 = vld [vmem:[%s568 + $0x188] sm:$0xff]
      %v4774 = vld [vmem:[%s568 + $0x190] sm:$0xff]
      %v4775 = vld [vmem:[%s568 + $0x1a8] sm:$0xff]
      %v4776 = vld [vmem:[%s568 + $0x1b0] sm:$0xff]
      %v4777 = vld [vmem:[%s568 + $0x1c8] sm:$0xff]
      %v4778 = vld [vmem:[%s568 + $0x1d0] sm:$0xff]
      %v4779 = vld [vmem:[%s568 + $0x1e8] sm:$0xff]
      %v4780 = vld [vmem:[%s568 + $0x1f0] sm:$0xff]
      %v4781 = vld [vmem:[%s4 + $0x200] sm:$0xff]
      %v4782 = vld [vmem:[%s4 + $0x208] sm:$0xff]
      %v4783 = vld [vmem:[%s4 + $0x210] sm:$0xff]
      %v4784 = vld [vmem:[%s4 + $0x218] sm:$0xff]
      %v4785 = vld [vmem:[%s4 + $0x220] sm:$0xff]
      %v4786 = vld [vmem:[%s4 + $0x228] sm:$0xff]
      %v4787 = vld [vmem:[%s4 + $0x230] sm:$0xff]
      %v4788 = vld [vmem:[%s4 + $0x238] sm:$0xff]
      %v4789 = vld [vmem:[%s4 + $0x240] sm:$0xff]
      %v4790 = vld [vmem:[%s4 + $0x248] sm:$0xff]
      %v4791 = vld [vmem:[%s4 + $0x250] sm:$0xff]
      %v4792 = vld [vmem:[%s4 + $0x258] sm:$0xff]
      %v4793 = vld [vmem:[%s4 + $0x260] sm:$0xff]
      %v4794 = vld [vmem:[%s4 + $0x268] sm:$0xff]
      %v4795 = vld [vmem:[%s4 + $0x270] sm:$0xff]
      %v4796 = vld [vmem:[%s4 + $0x278] sm:$0xff]
      %4797 = vmatprep.subr.mxu0 0.0
      %4798 = vmatpush1.msra.mxu0 %v4781
      %4799 = vmatprep.subr.mxu0 0.0
      %4800 = vmatpush1.msra.mxu0 %v4782
      %4801 = vmatprep.subr.mxu0 0.0
      %4802 = vmatpush1.msra.mxu0 %v4783
      %4803 = vmatprep.subr.mxu0 0.0
      %4804 = vmatpush1.msra.mxu0 %v4784
      %4805 = vmatprep.subr.mxu0 0.0
      %4806 = vmatpush1.msra.mxu0 %v4785
      %4807 = vmatprep.subr.mxu0 0.0
      %4808 = vmatpush1.msra.mxu0 %v4786
      %4809 = vmatprep.subr.mxu0 0.0
      %4810 = vmatpush1.msra.mxu0 %v4787
      %4811 = vmatprep.subr.mxu0 0.0
      %4812 = vmatpush1.msra.mxu0 %v4788
      %4813 = vmatprep.subr.mxu0 0.0
      %4814 = vmatpush1.msra.mxu0 %v4789
      %4815 = vmatprep.subr.mxu0 0.0
      %4816 = vmatpush1.msra.mxu0 %v4790
      %4817 = vmatprep.subr.mxu0 0.0
      %4818 = vmatpush1.msra.mxu0 %v4791
      %4819 = vmatprep.subr.mxu0 0.0
      %4820 = vmatpush1.msra.mxu0 %v4792
      %4821 = vmatprep.subr.mxu0 0.0
      %4822 = vmatpush1.msra.mxu0 %v4793
      %4823 = vmatprep.subr.mxu0 0.0
      %4824 = vmatpush1.msra.mxu0 %v4794
      %4825 = vmatprep.subr.mxu0 0.0
      %4826 = vmatpush1.msra.mxu0 %v4795
      %4827 = vmatprep.subr.mxu0 0.0
      %4828 = vmatpush1.msra.mxu0 %v4796
      %4829 = vmatprep.subr.mxu0 0.0
      %4830 = vmatpush1.msra.mxu0 0.0
      %4831 = vmatprep.subr.mxu0 0.0
      %4832 = vmatpush1.msra.mxu0 0.0
      %4833 = vmatprep.subr.mxu0 0.0
      %4834 = vmatpush1.msra.mxu0 0.0
      %4835 = vmatprep.subr.mxu0 0.0
      %4836 = vmatpush1.msra.mxu0 0.0
      %4837 = vmatprep.subr.mxu0 0.0
      %4838 = vmatpush1.msra.mxu0 0.0
      %4839 = vmatprep.subr.mxu0 0.0
      %4840 = vmatpush1.msra.mxu0 0.0
      %4841 = vmatprep.subr.mxu0 0.0
      %4842 = vmatpush1.msra.mxu0 0.0
      %4843 = vmatprep.subr.mxu0 0.0
      %4844 = vmatpush1.msra.mxu0 0.0
      %4845 = vmatprep.subr.mxu0 0.0
      %4846 = vmatpush1.msra.mxu0 0.0
      %4847 = vmatprep.subr.mxu0 0.0
      %4848 = vmatpush1.msra.mxu0 0.0
      %4849 = vmatprep.subr.mxu0 0.0
      %4850 = vmatpush1.msra.mxu0 0.0
      %4851 = vmatprep.subr.mxu0 0.0
      %4852 = vmatpush1.msra.mxu0 0.0
      %4853 = vmatprep.subr.mxu0 0.0
      %4854 = vmatpush1.msra.mxu0 0.0
      %4855 = vmatprep.subr.mxu0 0.0
      %4856 = vmatpush1.msra.mxu0 0.0
      %4857 = vmatprep.subr.mxu0 0.0
      %4858 = vmatpush1.msra.mxu0 0.0
      %4859 = vmatprep.subr.mxu0 0.0
      %4860 = vmatpush1.msra.mxu0 0.0
      %4861 = vmatprep.mubr.f32.mxu0 0.0
      %4862 = vmatmul.mubr.f32.gmra.mrb[0].mxu0 %v4749
      %v4863 = vpop.f32.mrb[0].mxu0
      %v4864 = vadd.f32 0.0, %v4863
      %v4865 = vpop.f32.mrb[0].mxu0
      %4866 = vmatprep.mubr.f32.mxu0 0.0
      %4867 = vmatmul.mubr.f32.gmra.mrb[0].mxu0 %v4750
      %v4868 = vpop.f32.mrb[0].mxu0
      %v4869 = vadd.f32 0.0, %v4868
      %v4870 = vpop.f32.mrb[0].mxu0
      %4871 = vmatprep.mubr.f32.mxu0 0.0
      %4872 = vmatmul.mubr.f32.gmra.mrb[0].mxu0 %v4751
      %v4873 = vpop.f32.mrb[0].mxu0
      %v4874 = vadd.f32 0.0, %v4873
      %v4875 = vpop.f32.mrb[0].mxu0
      %4876 = vmatprep.mubr.f32.mxu0 0.0
      %4877 = vmatmul.mubr.f32.gmra.mrb[0].mxu0 %v4752
      %v4878 = vpop.f32.mrb[0].mxu0
      %v4879 = vadd.f32 0.0, %v4878
      %v4880 = vpop.f32.mrb[0].mxu0
      %4881 = vmatprep.mubr.f32.mxu0 0.0
      %4882 = vmatmul.mubr.f32.gmra.mrb[0].mxu0 %v4753
      %v4883 = vpop.f32.mrb[0].mxu0
      %v4884 = vadd.f32 0.0, %v4883
      %v4885 = vpop.f32.mrb[0].mxu0
      %4886 = vmatprep.mubr.f32.mxu0 0.0
      %4887 = vmatmul.mubr.f32.gmra.mrb[0].mxu0 %v4754
      %v4888 = vpop.f32.mrb[0].mxu0
      %v4889 = vadd.f32 0.0, %v4888
      %v4890 = vpop.f32.mrb[0].mxu0
      %4891 = vmatprep.mubr.f32.mxu0 0.0
      %4892 = vmatmul.mubr.f32.gmra.mrb[0].mxu0 %v4755
      %v4893 = vpop.f32.mrb[0].mxu0
      %v4894 = vadd.f32 0.0, %v4893
      %v4895 = vpop.f32.mrb[0].mxu0
      %4896 = vmatprep.mubr.f32.mxu0 0.0
      %4897 = vmatmul.mubr.f32.gmra.mrb[0].mxu0 %v4756
      %v4898 = vpop.f32.mrb[0].mxu0
      %v4899 = vadd.f32 0.0, %v4898
      %v4900 = vpop.f32.mrb[0].mxu0
      %4901 = vmatprep.mubr.f32.mxu0 0.0
      %4902 = vmatmul.mubr.f32.gmra.mrb[0].mxu0 %v4757
      %v4903 = vpop.f32.mrb[0].mxu0
      %v4904 = vadd.f32 0.0, %v4903
      %v4905 = vpop.f32.mrb[0].mxu0
      %4906 = vmatprep.mubr.f32.mxu0 0.0
      %4907 = vmatmul.mubr.f32.gmra.mrb[0].mxu0 %v4758
      %v4908 = vpop.f32.mrb[0].mxu0
      %v4909 = vadd.f32 0.0, %v4908
      %v4910 = vpop.f32.mrb[0].mxu0
      %4911 = vmatprep.mubr.f32.mxu0 0.0
      %4912 = vmatmul.mubr.f32.gmra.mrb[0].mxu0 %v4759
      %v4913 = vpop.f32.mrb[0].mxu0
      %v4914 = vadd.f32 0.0, %v4913
      %v4915 = vpop.f32.mrb[0].mxu0
      %4916 = vmatprep.mubr.f32.mxu0 0.0
      %4917 = vmatmul.mubr.f32.gmra.mrb[0].mxu0 %v4760
      %v4918 = vpop.f32.mrb[0].mxu0
      %v4919 = vadd.f32 0.0, %v4918
      %v4920 = vpop.f32.mrb[0].mxu0
      %4921 = vmatprep.mubr.f32.mxu0 0.0
      %4922 = vmatmul.mubr.f32.gmra.mrb[0].mxu0 %v4761
      %v4923 = vpop.f32.mrb[0].mxu0
      %v4924 = vadd.f32 0.0, %v4923
      %v4925 = vpop.f32.mrb[0].mxu0
      %4926 = vmatprep.mubr.f32.mxu0 0.0
      %4927 = vmatmul.mubr.f32.gmra.mrb[0].mxu0 %v4762
      %v4928 = vpop.f32.mrb[0].mxu0
      %v4929 = vadd.f32 0.0, %v4928
      %v4930 = vpop.f32.mrb[0].mxu0
      %4931 = vmatprep.mubr.f32.mxu0 0.0
      %4932 = vmatmul.mubr.f32.gmra.mrb[0].mxu0 %v4763
      %v4933 = vpop.f32.mrb[0].mxu0
      %v4934 = vadd.f32 0.0, %v4933
      %v4935 = vpop.f32.mrb[0].mxu0
      %4936 = vmatprep.mubr.f32.mxu0 0.0
      %4937 = vmatmul.mubr.f32.gmra.mrb[0].mxu0 %v4764
      %v4938 = vpop.f32.mrb[0].mxu0
      %v4939 = vadd.f32 0.0, %v4938
      %v4940 = vpop.f32.mrb[0].mxu0
      %4941 = vmatprep.mubr.f32.mxu0 0.0
      %4942 = vmatmul.mubr.f32.gmra.mrb[0].mxu0 %v4765
      %v4943 = vpop.f32.mrb[0].mxu0
      %v4944 = vadd.f32 0.0, %v4943
      %v4945 = vpop.f32.mrb[0].mxu0
      %4946 = vmatprep.mubr.f32.mxu0 0.0
      %4947 = vmatmul.mubr.f32.gmra.mrb[0].mxu0 %v4766
      %v4948 = vpop.f32.mrb[0].mxu0
      %v4949 = vadd.f32 0.0, %v4948
      %v4950 = vpop.f32.mrb[0].mxu0
      %4951 = vmatprep.mubr.f32.mxu0 0.0
      %4952 = vmatmul.mubr.f32.gmra.mrb[0].mxu0 %v4767
      %v4953 = vpop.f32.mrb[0].mxu0
      %v4954 = vadd.f32 0.0, %v4953
      %v4955 = vpop.f32.mrb[0].mxu0
      %4956 = vmatprep.mubr.f32.mxu0 0.0
      %4957 = vmatmul.mubr.f32.gmra.mrb[0].mxu0 %v4768
      %v4958 = vpop.f32.mrb[0].mxu0
      %v4959 = vadd.f32 0.0, %v4958
      %v4960 = vpop.f32.mrb[0].mxu0
      %4961 = vmatprep.mubr.f32.mxu0 0.0
      %4962 = vmatmul.mubr.f32.gmra.mrb[0].mxu0 %v4769
      %v4963 = vpop.f32.mrb[0].mxu0
      %v4964 = vadd.f32 0.0, %v4963
      %v4965 = vpop.f32.mrb[0].mxu0
      %4966 = vmatprep.mubr.f32.mxu0 0.0
      %4967 = vmatmul.mubr.f32.gmra.mrb[0].mxu0 %v4770
      %v4968 = vpop.f32.mrb[0].mxu0
      %v4969 = vadd.f32 0.0, %v4968
      %v4970 = vpop.f32.mrb[0].mxu0
      %4971 = vmatprep.mubr.f32.mxu0 0.0
      %4972 = vmatmul.mubr.f32.gmra.mrb[0].mxu0 %v4771
      %v4973 = vpop.f32.mrb[0].mxu0
      %v4974 = vadd.f32 0.0, %v4973
      %v4975 = vpop.f32.mrb[0].mxu0
      %4976 = vmatprep.mubr.f32.mxu0 0.0
      %4977 = vmatmul.mubr.f32.gmra.mrb[0].mxu0 %v4772
      %v4978 = vpop.f32.mrb[0].mxu0
      %v4979 = vadd.f32 0.0, %v4978
      %v4980 = vpop.f32.mrb[0].mxu0
      %4981 = vmatprep.mubr.f32.mxu0 0.0
      %4982 = vmatmul.mubr.f32.gmra.mrb[0].mxu0 %v4773
      %v4983 = vpop.f32.mrb[0].mxu0
      %v4984 = vadd.f32 0.0, %v4983
      %v4985 = vpop.f32.mrb[0].mxu0
      %4986 = vmatprep.mubr.f32.mxu0 0.0
      %4987 = vmatmul.mubr.f32.gmra.mrb[0].mxu0 %v4774
      %v4988 = vpop.f32.mrb[0].mxu0
      %v4989 = vadd.f32 0.0, %v4988
      %v4990 = vpop.f32.mrb[0].mxu0
      %4991 = vmatprep.mubr.f32.mxu0 0.0
      %4992 = vmatmul.mubr.f32.gmra.mrb[0].mxu0 %v4775
      %v4993 = vpop.f32.mrb[0].mxu0
      %v4994 = vadd.f32 0.0, %v4993
      %v4995 = vpop.f32.mrb[0].mxu0
      %4996 = vmatprep.mubr.f32.mxu0 0.0
      %4997 = vmatmul.mubr.f32.gmra.mrb[0].mxu0 %v4776
      %v4998 = vpop.f32.mrb[0].mxu0
      %v4999 = vadd.f32 0.0, %v4998
      %v5000 = vpop.f32.mrb[0].mxu0
      %5001 = vmatprep.mubr.f32.mxu0 0.0
      %5002 = vmatmul.mubr.f32.gmra.mrb[0].mxu0 %v4777
      %v5003 = vpop.f32.mrb[0].mxu0
      %v5004 = vadd.f32 0.0, %v5003
      %v5005 = vpop.f32.mrb[0].mxu0
      %5006 = vmatprep.mubr.f32.mxu0 0.0
      %5007 = vmatmul.mubr.f32.gmra.mrb[0].mxu0 %v4778
      %v5008 = vpop.f32.mrb[0].mxu0
      %v5009 = vadd.f32 0.0, %v5008
      %v5010 = vpop.f32.mrb[0].mxu0
      %5011 = vmatprep.mubr.f32.mxu0 0.0
      %5012 = vmatmul.mubr.f32.gmra.mrb[0].mxu0 %v4779
      %v5013 = vpop.f32.mrb[0].mxu0
      %v5014 = vadd.f32 0.0, %v5013
      %v5015 = vpop.f32.mrb[0].mxu0
      %5016 = vmatprep.mubr.f32.mxu0 0.0
      %5017 = vmatmul.mubr.f32.gmra.mrb[0].mxu0 %v4780
      %v5018 = vpop.f32.mrb[0].mxu0
      %v5019 = vadd.f32 0.0, %v5018
      %v5020 = vpop.f32.mrb[0].mxu0
      %5021 = vdwg.mxu0
      %v5022 = vadd.f32 %v4717, %v4864
      %v5023 = vadd.f32 %v4718, %v4869
      %v5024 = vadd.f32 %v4719, %v4874
      %v5025 = vadd.f32 %v4720, %v4879
      %v5026 = vadd.f32 %v4721, %v4884
      %v5027 = vadd.f32 %v4722, %v4889
      %v5028 = vadd.f32 %v4723, %v4894
      %v5029 = vadd.f32 %v4724, %v4899
      %v5030 = vadd.f32 %v4725, %v4904
      %v5031 = vadd.f32 %v4726, %v4909
      %v5032 = vadd.f32 %v4727, %v4914
      %v5033 = vadd.f32 %v4728, %v4919
      %v5034 = vadd.f32 %v4729, %v4924
      %v5035 = vadd.f32 %v4730, %v4929
      %v5036 = vadd.f32 %v4731, %v4934
      %v5037 = vadd.f32 %v4732, %v4939
      %v5038 = vadd.f32 %v4733, %v4944
      %v5039 = vadd.f32 %v4734, %v4949
      %v5040 = vadd.f32 %v4735, %v4954
      %v5041 = vadd.f32 %v4736, %v4959
      %v5042 = vadd.f32 %v4737, %v4964
      %v5043 = vadd.f32 %v4738, %v4969
      %v5044 = vadd.f32 %v4739, %v4974
      %v5045 = vadd.f32 %v4740, %v4979
      %v5046 = vadd.f32 %v4741, %v4984
      %v5047 = vadd.f32 %v4742, %v4989
      %v5048 = vadd.f32 %v4743, %v4994
      %v5049 = vadd.f32 %v4744, %v4999
      %v5050 = vadd.f32 %v4745, %v5004
      %v5051 = vadd.f32 %v4746, %v5009
      %v5052 = vadd.f32 %v4747, %v5014
      %v5053 = vadd.f32 %v4748, %v5019
      %v5054 = vld [vmem:[%s568 + $0x9] sm:$0xff]
      %v5055 = vld [vmem:[%s568 + $0x11] sm:$0xff]
      %v5056 = vld [vmem:[%s568 + $0x29] sm:$0xff]
      %v5057 = vld [vmem:[%s568 + $0x31] sm:$0xff]
      %v5058 = vld [vmem:[%s568 + $0x49] sm:$0xff]
      %v5059 = vld [vmem:[%s568 + $0x51] sm:$0xff]
      %v5060 = vld [vmem:[%s568 + $0x69] sm:$0xff]
      %v5061 = vld [vmem:[%s568 + $0x71] sm:$0xff]
      %v5062 = vld [vmem:[%s568 + $0x89] sm:$0xff]
      %v5063 = vld [vmem:[%s568 + $0x91] sm:$0xff]
      %v5064 = vld [vmem:[%s568 + $0xa9] sm:$0xff]
      %v5065 = vld [vmem:[%s568 + $0xb1] sm:$0xff]
      %v5066 = vld [vmem:[%s568 + $0xc9] sm:$0xff]
      %v5067 = vld [vmem:[%s568 + $0xd1] sm:$0xff]
      %v5068 = vld [vmem:[%s568 + $0xe9] sm:$0xff]
      %v5069 = vld [vmem:[%s568 + $0xf1] sm:$0xff]
      %v5070 = vld [vmem:[%s568 + $0x109] sm:$0xff]
      %v5071 = vld [vmem:[%s568 + $0x111] sm:$0xff]
      %v5072 = vld [vmem:[%s568 + $0x129] sm:$0xff]
      %v5073 = vld [vmem:[%s568 + $0x131] sm:$0xff]
      %v5074 = vld [vmem:[%s568 + $0x149] sm:$0xff]
      %v5075 = vld [vmem:[%s568 + $0x151] sm:$0xff]
      %v5076 = vld [vmem:[%s568 + $0x169] sm:$0xff]
      %v5077 = vld [vmem:[%s568 + $0x171] sm:$0xff]
      %v5078 = vld [vmem:[%s568 + $0x189] sm:$0xff]
      %v5079 = vld [vmem:[%s568 + $0x191] sm:$0xff]
      %v5080 = vld [vmem:[%s568 + $0x1a9] sm:$0xff]
      %v5081 = vld [vmem:[%s568 + $0x1b1] sm:$0xff]
      %v5082 = vld [vmem:[%s568 + $0x1c9] sm:$0xff]
      %v5083 = vld [vmem:[%s568 + $0x1d1] sm:$0xff]
      %v5084 = vld [vmem:[%s568 + $0x1e9] sm:$0xff]
      %v5085 = vld [vmem:[%s568 + $0x1f1] sm:$0xff]
      %v5086 = vld [vmem:[%s4 + $0x280] sm:$0xff]
      %v5087 = vld [vmem:[%s4 + $0x288] sm:$0xff]
      %v5088 = vld [vmem:[%s4 + $0x290] sm:$0xff]
      %v5089 = vld [vmem:[%s4 + $0x298] sm:$0xff]
      %v5090 = vld [vmem:[%s4 + $0x2a0] sm:$0xff]
      %v5091 = vld [vmem:[%s4 + $0x2a8] sm:$0xff]
      %v5092 = vld [vmem:[%s4 + $0x2b0] sm:$0xff]
      %v5093 = vld [vmem:[%s4 + $0x2b8] sm:$0xff]
      %v5094 = vld [vmem:[%s4 + $0x2c0] sm:$0xff]
      %v5095 = vld [vmem:[%s4 + $0x2c8] sm:$0xff]
      %v5096 = vld [vmem:[%s4 + $0x2d0] sm:$0xff]
      %v5097 = vld [vmem:[%s4 + $0x2d8] sm:$0xff]
      %v5098 = vld [vmem:[%s4 + $0x2e0] sm:$0xff]
      %v5099 = vld [vmem:[%s4 + $0x2e8] sm:$0xff]
      %v5100 = vld [vmem:[%s4 + $0x2f0] sm:$0xff]
      %v5101 = vld [vmem:[%s4 + $0x2f8] sm:$0xff]
      %5102 = vmatprep.subr.mxu0 0.0
      %5103 = vmatpush1.msra.mxu0 %v5086
      %5104 = vmatprep.subr.mxu0 0.0
      %5105 = vmatpush1.msra.mxu0 %v5087
      %5106 = vmatprep.subr.mxu0 0.0
      %5107 = vmatpush1.msra.mxu0 %v5088
      %5108 = vmatprep.subr.mxu0 0.0
      %5109 = vmatpush1.msra.mxu0 %v5089
      %5110 = vmatprep.subr.mxu0 0.0
      %5111 = vmatpush1.msra.mxu0 %v5090
      %5112 = vmatprep.subr.mxu0 0.0
      %5113 = vmatpush1.msra.mxu0 %v5091
      %5114 = vmatprep.subr.mxu0 0.0
      %5115 = vmatpush1.msra.mxu0 %v5092
      %5116 = vmatprep.subr.mxu0 0.0
      %5117 = vmatpush1.msra.mxu0 %v5093
      %5118 = vmatprep.subr.mxu0 0.0
      %5119 = vmatpush1.msra.mxu0 %v5094
      %5120 = vmatprep.subr.mxu0 0.0
      %5121 = vmatpush1.msra.mxu0 %v5095
      %5122 = vmatprep.subr.mxu0 0.0
      %5123 = vmatpush1.msra.mxu0 %v5096
      %5124 = vmatprep.subr.mxu0 0.0
      %5125 = vmatpush1.msra.mxu0 %v5097
      %5126 = vmatprep.subr.mxu0 0.0
      %5127 = vmatpush1.msra.mxu0 %v5098
      %5128 = vmatprep.subr.mxu0 0.0
      %5129 = vmatpush1.msra.mxu0 %v5099
      %5130 = vmatprep.subr.mxu0 0.0
      %5131 = vmatpush1.msra.mxu0 %v5100
      %5132 = vmatprep.subr.mxu0 0.0
      %5133 = vmatpush1.msra.mxu0 %v5101
      %5134 = vmatprep.subr.mxu0 0.0
      %5135 = vmatpush1.msra.mxu0 0.0
      %5136 = vmatprep.subr.mxu0 0.0
      %5137 = vmatpush1.msra.mxu0 0.0
      %5138 = vmatprep.subr.mxu0 0.0
      %5139 = vmatpush1.msra.mxu0 0.0
      %5140 = vmatprep.subr.mxu0 0.0
      %5141 = vmatpush1.msra.mxu0 0.0
      %5142 = vmatprep.subr.mxu0 0.0
      %5143 = vmatpush1.msra.mxu0 0.0
      %5144 = vmatprep.subr.mxu0 0.0
      %5145 = vmatpush1.msra.mxu0 0.0
      %5146 = vmatprep.subr.mxu0 0.0
      %5147 = vmatpush1.msra.mxu0 0.0
      %5148 = vmatprep.subr.mxu0 0.0
      %5149 = vmatpush1.msra.mxu0 0.0
      %5150 = vmatprep.subr.mxu0 0.0
      %5151 = vmatpush1.msra.mxu0 0.0
      %5152 = vmatprep.subr.mxu0 0.0
      %5153 = vmatpush1.msra.mxu0 0.0
      %5154 = vmatprep.subr.mxu0 0.0
      %5155 = vmatpush1.msra.mxu0 0.0
      %5156 = vmatprep.subr.mxu0 0.0
      %5157 = vmatpush1.msra.mxu0 0.0
      %5158 = vmatprep.subr.mxu0 0.0
      %5159 = vmatpush1.msra.mxu0 0.0
      %5160 = vmatprep.subr.mxu0 0.0
      %5161 = vmatpush1.msra.mxu0 0.0
      %5162 = vmatprep.subr.mxu0 0.0
      %5163 = vmatpush1.msra.mxu0 0.0
      %5164 = vmatprep.subr.mxu0 0.0
      %5165 = vmatpush1.msra.mxu0 0.0
      %5166 = vmatprep.mubr.f32.mxu0 0.0
      %5167 = vmatmul.mubr.f32.gmra.mrb[0].mxu0 %v5054
      %v5168 = vpop.f32.mrb[0].mxu0
      %v5169 = vadd.f32 0.0, %v5168
      %v5170 = vpop.f32.mrb[0].mxu0
      %5171 = vmatprep.mubr.f32.mxu0 0.0
      %5172 = vmatmul.mubr.f32.gmra.mrb[0].mxu0 %v5055
      %v5173 = vpop.f32.mrb[0].mxu0
      %v5174 = vadd.f32 0.0, %v5173
      %v5175 = vpop.f32.mrb[0].mxu0
      %5176 = vmatprep.mubr.f32.mxu0 0.0
      %5177 = vmatmul.mubr.f32.gmra.mrb[0].mxu0 %v5056
      %v5178 = vpop.f32.mrb[0].mxu0
      %v5179 = vadd.f32 0.0, %v5178
      %v5180 = vpop.f32.mrb[0].mxu0
      %5181 = vmatprep.mubr.f32.mxu0 0.0
      %5182 = vmatmul.mubr.f32.gmra.mrb[0].mxu0 %v5057
      %v5183 = vpop.f32.mrb[0].mxu0
      %v5184 = vadd.f32 0.0, %v5183
      %v5185 = vpop.f32.mrb[0].mxu0
      %5186 = vmatprep.mubr.f32.mxu0 0.0
      %5187 = vmatmul.mubr.f32.gmra.mrb[0].mxu0 %v5058
      %v5188 = vpop.f32.mrb[0].mxu0
      %v5189 = vadd.f32 0.0, %v5188
      %v5190 = vpop.f32.mrb[0].mxu0
      %5191 = vmatprep.mubr.f32.mxu0 0.0
      %5192 = vmatmul.mubr.f32.gmra.mrb[0].mxu0 %v5059
      %v5193 = vpop.f32.mrb[0].mxu0
      %v5194 = vadd.f32 0.0, %v5193
      %v5195 = vpop.f32.mrb[0].mxu0
      %5196 = vmatprep.mubr.f32.mxu0 0.0
      %5197 = vmatmul.mubr.f32.gmra.mrb[0].mxu0 %v5060
      %v5198 = vpop.f32.mrb[0].mxu0
      %v5199 = vadd.f32 0.0, %v5198
      %v5200 = vpop.f32.mrb[0].mxu0
      %5201 = vmatprep.mubr.f32.mxu0 0.0
      %5202 = vmatmul.mubr.f32.gmra.mrb[0].mxu0 %v5061
      %v5203 = vpop.f32.mrb[0].mxu0
      %v5204 = vadd.f32 0.0, %v5203
      %v5205 = vpop.f32.mrb[0].mxu0
      %5206 = vmatprep.mubr.f32.mxu0 0.0
      %5207 = vmatmul.mubr.f32.gmra.mrb[0].mxu0 %v5062
      %v5208 = vpop.f32.mrb[0].mxu0
      %v5209 = vadd.f32 0.0, %v5208
      %v5210 = vpop.f32.mrb[0].mxu0
      %5211 = vmatprep.mubr.f32.mxu0 0.0
      %5212 = vmatmul.mubr.f32.gmra.mrb[0].mxu0 %v5063
      %v5213 = vpop.f32.mrb[0].mxu0
      %v5214 = vadd.f32 0.0, %v5213
      %v5215 = vpop.f32.mrb[0].mxu0
      %5216 = vmatprep.mubr.f32.mxu0 0.0
      %5217 = vmatmul.mubr.f32.gmra.mrb[0].mxu0 %v5064
      %v5218 = vpop.f32.mrb[0].mxu0
      %v5219 = vadd.f32 0.0, %v5218
      %v5220 = vpop.f32.mrb[0].mxu0
      %5221 = vmatprep.mubr.f32.mxu0 0.0
      %5222 = vmatmul.mubr.f32.gmra.mrb[0].mxu0 %v5065
      %v5223 = vpop.f32.mrb[0].mxu0
      %v5224 = vadd.f32 0.0, %v5223
      %v5225 = vpop.f32.mrb[0].mxu0
      %5226 = vmatprep.mubr.f32.mxu0 0.0
      %5227 = vmatmul.mubr.f32.gmra.mrb[0].mxu0 %v5066
      %v5228 = vpop.f32.mrb[0].mxu0
      %v5229 = vadd.f32 0.0, %v5228
      %v5230 = vpop.f32.mrb[0].mxu0
      %5231 = vmatprep.mubr.f32.mxu0 0.0
      %5232 = vmatmul.mubr.f32.gmra.mrb[0].mxu0 %v5067
      %v5233 = vpop.f32.mrb[0].mxu0
      %v5234 = vadd.f32 0.0, %v5233
      %v5235 = vpop.f32.mrb[0].mxu0
      %5236 = vmatprep.mubr.f32.mxu0 0.0
      %5237 = vmatmul.mubr.f32.gmra.mrb[0].mxu0 %v5068
      %v5238 = vpop.f32.mrb[0].mxu0
      %v5239 = vadd.f32 0.0, %v5238
      %v5240 = vpop.f32.mrb[0].mxu0
      %5241 = vmatprep.mubr.f32.mxu0 0.0
      %5242 = vmatmul.mubr.f32.gmra.mrb[0].mxu0 %v5069
      %v5243 = vpop.f32.mrb[0].mxu0
      %v5244 = vadd.f32 0.0, %v5243
      %v5245 = vpop.f32.mrb[0].mxu0
      %5246 = vmatprep.mubr.f32.mxu0 0.0
      %5247 = vmatmul.mubr.f32.gmra.mrb[0].mxu0 %v5070
      %v5248 = vpop.f32.mrb[0].mxu0
      %v5249 = vadd.f32 0.0, %v5248
      %v5250 = vpop.f32.mrb[0].mxu0
      %5251 = vmatprep.mubr.f32.mxu0 0.0
      %5252 = vmatmul.mubr.f32.gmra.mrb[0].mxu0 %v5071
      %v5253 = vpop.f32.mrb[0].mxu0
      %v5254 = vadd.f32 0.0, %v5253
      %v5255 = vpop.f32.mrb[0].mxu0
      %5256 = vmatprep.mubr.f32.mxu0 0.0
      %5257 = vmatmul.mubr.f32.gmra.mrb[0].mxu0 %v5072
      %v5258 = vpop.f32.mrb[0].mxu0
      %v5259 = vadd.f32 0.0, %v5258
      %v5260 = vpop.f32.mrb[0].mxu0
      %5261 = vmatprep.mubr.f32.mxu0 0.0
      %5262 = vmatmul.mubr.f32.gmra.mrb[0].mxu0 %v5073
      %v5263 = vpop.f32.mrb[0].mxu0
      %v5264 = vadd.f32 0.0, %v5263
      %v5265 = vpop.f32.mrb[0].mxu0
      %5266 = vmatprep.mubr.f32.mxu0 0.0
      %5267 = vmatmul.mubr.f32.gmra.mrb[0].mxu0 %v5074
      %v5268 = vpop.f32.mrb[0].mxu0
      %v5269 = vadd.f32 0.0, %v5268
      %v5270 = vpop.f32.mrb[0].mxu0
      %5271 = vmatprep.mubr.f32.mxu0 0.0
      %5272 = vmatmul.mubr.f32.gmra.mrb[0].mxu0 %v5075
      %v5273 = vpop.f32.mrb[0].mxu0
      %v5274 = vadd.f32 0.0, %v5273
      %v5275 = vpop.f32.mrb[0].mxu0
      %5276 = vmatprep.mubr.f32.mxu0 0.0
      %5277 = vmatmul.mubr.f32.gmra.mrb[0].mxu0 %v5076
      %v5278 = vpop.f32.mrb[0].mxu0
      %v5279 = vadd.f32 0.0, %v5278
      %v5280 = vpop.f32.mrb[0].mxu0
      %5281 = vmatprep.mubr.f32.mxu0 0.0
      %5282 = vmatmul.mubr.f32.gmra.mrb[0].mxu0 %v5077
      %v5283 = vpop.f32.mrb[0].mxu0
      %v5284 = vadd.f32 0.0, %v5283
      %v5285 = vpop.f32.mrb[0].mxu0
      %5286 = vmatprep.mubr.f32.mxu0 0.0
      %5287 = vmatmul.mubr.f32.gmra.mrb[0].mxu0 %v5078
      %v5288 = vpop.f32.mrb[0].mxu0
      %v5289 = vadd.f32 0.0, %v5288
      %v5290 = vpop.f32.mrb[0].mxu0
      %5291 = vmatprep.mubr.f32.mxu0 0.0
      %5292 = vmatmul.mubr.f32.gmra.mrb[0].mxu0 %v5079
      %v5293 = vpop.f32.mrb[0].mxu0
      %v5294 = vadd.f32 0.0, %v5293
      %v5295 = vpop.f32.mrb[0].mxu0
      %5296 = vmatprep.mubr.f32.mxu0 0.0
      %5297 = vmatmul.mubr.f32.gmra.mrb[0].mxu0 %v5080
      %v5298 = vpop.f32.mrb[0].mxu0
      %v5299 = vadd.f32 0.0, %v5298
      %v5300 = vpop.f32.mrb[0].mxu0
      %5301 = vmatprep.mubr.f32.mxu0 0.0
      %5302 = vmatmul.mubr.f32.gmra.mrb[0].mxu0 %v5081
      %v5303 = vpop.f32.mrb[0].mxu0
      %v5304 = vadd.f32 0.0, %v5303
      %v5305 = vpop.f32.mrb[0].mxu0
      %5306 = vmatprep.mubr.f32.mxu0 0.0
      %5307 = vmatmul.mubr.f32.gmra.mrb[0].mxu0 %v5082
      %v5308 = vpop.f32.mrb[0].mxu0
      %v5309 = vadd.f32 0.0, %v5308
      %v5310 = vpop.f32.mrb[0].mxu0
      %5311 = vmatprep.mubr.f32.mxu0 0.0
      %5312 = vmatmul.mubr.f32.gmra.mrb[0].mxu0 %v5083
      %v5313 = vpop.f32.mrb[0].mxu0
      %v5314 = vadd.f32 0.0, %v5313
      %v5315 = vpop.f32.mrb[0].mxu0
      %5316 = vmatprep.mubr.f32.mxu0 0.0
      %5317 = vmatmul.mubr.f32.gmra.mrb[0].mxu0 %v5084
      %v5318 = vpop.f32.mrb[0].mxu0
      %v5319 = vadd.f32 0.0, %v5318
      %v5320 = vpop.f32.mrb[0].mxu0
      %5321 = vmatprep.mubr.f32.mxu0 0.0
      %5322 = vmatmul.mubr.f32.gmra.mrb[0].mxu0 %v5085
      %v5323 = vpop.f32.mrb[0].mxu0
      %v5324 = vadd.f32 0.0, %v5323
      %v5325 = vpop.f32.mrb[0].mxu0
      %5326 = vdwg.mxu0
      %v5327 = vadd.f32 %v5022, %v5169
      %v5328 = vadd.f32 %v5023, %v5174
      %v5329 = vadd.f32 %v5024, %v5179
      %v5330 = vadd.f32 %v5025, %v5184
      %v5331 = vadd.f32 %v5026, %v5189
      %v5332 = vadd.f32 %v5027, %v5194
      %v5333 = vadd.f32 %v5028, %v5199
      %v5334 = vadd.f32 %v5029, %v5204
      %v5335 = vadd.f32 %v5030, %v5209
      %v5336 = vadd.f32 %v5031, %v5214
      %v5337 = vadd.f32 %v5032, %v5219
      %v5338 = vadd.f32 %v5033, %v5224
      %v5339 = vadd.f32 %v5034, %v5229
      %v5340 = vadd.f32 %v5035, %v5234
      %v5341 = vadd.f32 %v5036, %v5239
      %v5342 = vadd.f32 %v5037, %v5244
      %v5343 = vadd.f32 %v5038, %v5249
      %v5344 = vadd.f32 %v5039, %v5254
      %v5345 = vadd.f32 %v5040, %v5259
      %v5346 = vadd.f32 %v5041, %v5264
      %v5347 = vadd.f32 %v5042, %v5269
      %v5348 = vadd.f32 %v5043, %v5274
      %v5349 = vadd.f32 %v5044, %v5279
      %v5350 = vadd.f32 %v5045, %v5284
      %v5351 = vadd.f32 %v5046, %v5289
      %v5352 = vadd.f32 %v5047, %v5294
      %v5353 = vadd.f32 %v5048, %v5299
      %v5354 = vadd.f32 %v5049, %v5304
      %v5355 = vadd.f32 %v5050, %v5309
      %v5356 = vadd.f32 %v5051, %v5314
      %v5357 = vadd.f32 %v5052, %v5319
      %v5358 = vadd.f32 %v5053, %v5324
      %v5359 = vld [vmem:[%s2367 + $0x7] sm:$0xff]
      %v5360 = vld [vmem:[%s2367 + $0xf] sm:$0xff]
      %v5361 = vld [vmem:[%s2367 + $0x27] sm:$0xff]
      %v5362 = vld [vmem:[%s2367 + $0x2f] sm:$0xff]
      %v5363 = vld [vmem:[%s2367 + $0x47] sm:$0xff]
      %v5364 = vld [vmem:[%s2367 + $0x4f] sm:$0xff]
      %v5365 = vld [vmem:[%s2367 + $0x67] sm:$0xff]
      %v5366 = vld [vmem:[%s2367 + $0x6f] sm:$0xff]
      %v5367 = vld [vmem:[%s2367 + $0x87] sm:$0xff]
      %v5368 = vld [vmem:[%s2367 + $0x8f] sm:$0xff]
      %v5369 = vld [vmem:[%s2367 + $0xa7] sm:$0xff]
      %v5370 = vld [vmem:[%s2367 + $0xaf] sm:$0xff]
      %v5371 = vld [vmem:[%s2367 + $0xc7] sm:$0xff]
      %v5372 = vld [vmem:[%s2367 + $0xcf] sm:$0xff]
      %v5373 = vld [vmem:[%s2367 + $0xe7] sm:$0xff]
      %v5374 = vld [vmem:[%s2367 + $0xef] sm:$0xff]
      %v5375 = vld [vmem:[%s2367 + $0x107] sm:$0xff]
      %v5376 = vld [vmem:[%s2367 + $0x10f] sm:$0xff]
      %v5377 = vld [vmem:[%s2367 + $0x127] sm:$0xff]
      %v5378 = vld [vmem:[%s2367 + $0x12f] sm:$0xff]
      %v5379 = vld [vmem:[%s2367 + $0x147] sm:$0xff]
      %v5380 = vld [vmem:[%s2367 + $0x14f] sm:$0xff]
      %v5381 = vld [vmem:[%s2367 + $0x167] sm:$0xff]
      %v5382 = vld [vmem:[%s2367 + $0x16f] sm:$0xff]
      %v5383 = vld [vmem:[%s2367 + $0x187] sm:$0xff]
      %v5384 = vld [vmem:[%s2367 + $0x18f] sm:$0xff]
      %v5385 = vld [vmem:[%s2367 + $0x1a7] sm:$0xff]
      %v5386 = vld [vmem:[%s2367 + $0x1af] sm:$0xff]
      %v5387 = vld [vmem:[%s2367 + $0x1c7] sm:$0xff]
      %v5388 = vld [vmem:[%s2367 + $0x1cf] sm:$0xff]
      %v5389 = vld [vmem:[%s2367 + $0x1e7] sm:$0xff]
      %v5390 = vld [vmem:[%s2367 + $0x1ef] sm:$0xff]
      %v5391 = vld [vmem:[%s4 + $0x300] sm:$0xff]
      %v5392 = vld [vmem:[%s4 + $0x308] sm:$0xff]
      %v5393 = vld [vmem:[%s4 + $0x310] sm:$0xff]
      %v5394 = vld [vmem:[%s4 + $0x318] sm:$0xff]
      %v5395 = vld [vmem:[%s4 + $0x320] sm:$0xff]
      %v5396 = vld [vmem:[%s4 + $0x328] sm:$0xff]
      %v5397 = vld [vmem:[%s4 + $0x330] sm:$0xff]
      %v5398 = vld [vmem:[%s4 + $0x338] sm:$0xff]
      %v5399 = vld [vmem:[%s4 + $0x340] sm:$0xff]
      %v5400 = vld [vmem:[%s4 + $0x348] sm:$0xff]
      %v5401 = vld [vmem:[%s4 + $0x350] sm:$0xff]
      %v5402 = vld [vmem:[%s4 + $0x358] sm:$0xff]
      %v5403 = vld [vmem:[%s4 + $0x360] sm:$0xff]
      %v5404 = vld [vmem:[%s4 + $0x368] sm:$0xff]
      %v5405 = vld [vmem:[%s4 + $0x370] sm:$0xff]
      %v5406 = vld [vmem:[%s4 + $0x378] sm:$0xff]
      %5407 = vmatprep.subr.mxu0 0.0
      %5408 = vmatpush1.msra.mxu0 %v5391
      %5409 = vmatprep.subr.mxu0 0.0
      %5410 = vmatpush1.msra.mxu0 %v5392
      %5411 = vmatprep.subr.mxu0 0.0
      %5412 = vmatpush1.msra.mxu0 %v5393
      %5413 = vmatprep.subr.mxu0 0.0
      %5414 = vmatpush1.msra.mxu0 %v5394
      %5415 = vmatprep.subr.mxu0 0.0
      %5416 = vmatpush1.msra.mxu0 %v5395
      %5417 = vmatprep.subr.mxu0 0.0
      %5418 = vmatpush1.msra.mxu0 %v5396
      %5419 = vmatprep.subr.mxu0 0.0
      %5420 = vmatpush1.msra.mxu0 %v5397
      %5421 = vmatprep.subr.mxu0 0.0
      %5422 = vmatpush1.msra.mxu0 %v5398
      %5423 = vmatprep.subr.mxu0 0.0
      %5424 = vmatpush1.msra.mxu0 %v5399
      %5425 = vmatprep.subr.mxu0 0.0
      %5426 = vmatpush1.msra.mxu0 %v5400
      %5427 = vmatprep.subr.mxu0 0.0
      %5428 = vmatpush1.msra.mxu0 %v5401
      %5429 = vmatprep.subr.mxu0 0.0
      %5430 = vmatpush1.msra.mxu0 %v5402
      %5431 = vmatprep.subr.mxu0 0.0
      %5432 = vmatpush1.msra.mxu0 %v5403
      %5433 = vmatprep.subr.mxu0 0.0
      %5434 = vmatpush1.msra.mxu0 %v5404
      %5435 = vmatprep.subr.mxu0 0.0
      %5436 = vmatpush1.msra.mxu0 %v5405
      %5437 = vmatprep.subr.mxu0 0.0
      %5438 = vmatpush1.msra.mxu0 %v5406
      %5439 = vmatprep.subr.mxu0 0.0
      %5440 = vmatpush1.msra.mxu0 0.0
      %5441 = vmatprep.subr.mxu0 0.0
      %5442 = vmatpush1.msra.mxu0 0.0
      %5443 = vmatprep.subr.mxu0 0.0
      %5444 = vmatpush1.msra.mxu0 0.0
      %5445 = vmatprep.subr.mxu0 0.0
      %5446 = vmatpush1.msra.mxu0 0.0
      %5447 = vmatprep.subr.mxu0 0.0
      %5448 = vmatpush1.msra.mxu0 0.0
      %5449 = vmatprep.subr.mxu0 0.0
      %5450 = vmatpush1.msra.mxu0 0.0
      %5451 = vmatprep.subr.mxu0 0.0
      %5452 = vmatpush1.msra.mxu0 0.0
      %5453 = vmatprep.subr.mxu0 0.0
      %5454 = vmatpush1.msra.mxu0 0.0
      %5455 = vmatprep.subr.mxu0 0.0
      %5456 = vmatpush1.msra.mxu0 0.0
      %5457 = vmatprep.subr.mxu0 0.0
      %5458 = vmatpush1.msra.mxu0 0.0
      %5459 = vmatprep.subr.mxu0 0.0
      %5460 = vmatpush1.msra.mxu0 0.0
      %5461 = vmatprep.subr.mxu0 0.0
      %5462 = vmatpush1.msra.mxu0 0.0
      %5463 = vmatprep.subr.mxu0 0.0
      %5464 = vmatpush1.msra.mxu0 0.0
      %5465 = vmatprep.subr.mxu0 0.0
      %5466 = vmatpush1.msra.mxu0 0.0
      %5467 = vmatprep.subr.mxu0 0.0
      %5468 = vmatpush1.msra.mxu0 0.0
      %5469 = vmatprep.subr.mxu0 0.0
      %5470 = vmatpush1.msra.mxu0 0.0
      %5471 = vmatprep.mubr.f32.mxu0 0.0
      %5472 = vmatmul.mubr.f32.gmra.mrb[0].mxu0 %v5359
      %v5473 = vpop.f32.mrb[0].mxu0
      %v5474 = vadd.f32 0.0, %v5473
      %v5475 = vpop.f32.mrb[0].mxu0
      %5476 = vmatprep.mubr.f32.mxu0 0.0
      %5477 = vmatmul.mubr.f32.gmra.mrb[0].mxu0 %v5360
      %v5478 = vpop.f32.mrb[0].mxu0
      %v5479 = vadd.f32 0.0, %v5478
      %v5480 = vpop.f32.mrb[0].mxu0
      %5481 = vmatprep.mubr.f32.mxu0 0.0
      %5482 = vmatmul.mubr.f32.gmra.mrb[0].mxu0 %v5361
      %v5483 = vpop.f32.mrb[0].mxu0
      %v5484 = vadd.f32 0.0, %v5483
      %v5485 = vpop.f32.mrb[0].mxu0
      %5486 = vmatprep.mubr.f32.mxu0 0.0
      %5487 = vmatmul.mubr.f32.gmra.mrb[0].mxu0 %v5362
      %v5488 = vpop.f32.mrb[0].mxu0
      %v5489 = vadd.f32 0.0, %v5488
      %v5490 = vpop.f32.mrb[0].mxu0
      %5491 = vmatprep.mubr.f32.mxu0 0.0
      %5492 = vmatmul.mubr.f32.gmra.mrb[0].mxu0 %v5363
      %v5493 = vpop.f32.mrb[0].mxu0
      %v5494 = vadd.f32 0.0, %v5493
      %v5495 = vpop.f32.mrb[0].mxu0
      %5496 = vmatprep.mubr.f32.mxu0 0.0
      %5497 = vmatmul.mubr.f32.gmra.mrb[0].mxu0 %v5364
      %v5498 = vpop.f32.mrb[0].mxu0
      %v5499 = vadd.f32 0.0, %v5498
      %v5500 = vpop.f32.mrb[0].mxu0
      %5501 = vmatprep.mubr.f32.mxu0 0.0
      %5502 = vmatmul.mubr.f32.gmra.mrb[0].mxu0 %v5365
      %v5503 = vpop.f32.mrb[0].mxu0
      %v5504 = vadd.f32 0.0, %v5503
      %v5505 = vpop.f32.mrb[0].mxu0
      %5506 = vmatprep.mubr.f32.mxu0 0.0
      %5507 = vmatmul.mubr.f32.gmra.mrb[0].mxu0 %v5366
      %v5508 = vpop.f32.mrb[0].mxu0
      %v5509 = vadd.f32 0.0, %v5508
      %v5510 = vpop.f32.mrb[0].mxu0
      %5511 = vmatprep.mubr.f32.mxu0 0.0
      %5512 = vmatmul.mubr.f32.gmra.mrb[0].mxu0 %v5367
      %v5513 = vpop.f32.mrb[0].mxu0
      %v5514 = vadd.f32 0.0, %v5513
      %v5515 = vpop.f32.mrb[0].mxu0
      %5516 = vmatprep.mubr.f32.mxu0 0.0
      %5517 = vmatmul.mubr.f32.gmra.mrb[0].mxu0 %v5368
      %v5518 = vpop.f32.mrb[0].mxu0
      %v5519 = vadd.f32 0.0, %v5518
      %v5520 = vpop.f32.mrb[0].mxu0
      %5521 = vmatprep.mubr.f32.mxu0 0.0
      %5522 = vmatmul.mubr.f32.gmra.mrb[0].mxu0 %v5369
      %v5523 = vpop.f32.mrb[0].mxu0
      %v5524 = vadd.f32 0.0, %v5523
      %v5525 = vpop.f32.mrb[0].mxu0
      %5526 = vmatprep.mubr.f32.mxu0 0.0
      %5527 = vmatmul.mubr.f32.gmra.mrb[0].mxu0 %v5370
      %v5528 = vpop.f32.mrb[0].mxu0
      %v5529 = vadd.f32 0.0, %v5528
      %v5530 = vpop.f32.mrb[0].mxu0
      %5531 = vmatprep.mubr.f32.mxu0 0.0
      %5532 = vmatmul.mubr.f32.gmra.mrb[0].mxu0 %v5371
      %v5533 = vpop.f32.mrb[0].mxu0
      %v5534 = vadd.f32 0.0, %v5533
      %v5535 = vpop.f32.mrb[0].mxu0
      %5536 = vmatprep.mubr.f32.mxu0 0.0
      %5537 = vmatmul.mubr.f32.gmra.mrb[0].mxu0 %v5372
      %v5538 = vpop.f32.mrb[0].mxu0
      %v5539 = vadd.f32 0.0, %v5538
      %v5540 = vpop.f32.mrb[0].mxu0
      %5541 = vmatprep.mubr.f32.mxu0 0.0
      %5542 = vmatmul.mubr.f32.gmra.mrb[0].mxu0 %v5373
      %v5543 = vpop.f32.mrb[0].mxu0
      %v5544 = vadd.f32 0.0, %v5543
      %v5545 = vpop.f32.mrb[0].mxu0
      %5546 = vmatprep.mubr.f32.mxu0 0.0
      %5547 = vmatmul.mubr.f32.gmra.mrb[0].mxu0 %v5374
      %v5548 = vpop.f32.mrb[0].mxu0
      %v5549 = vadd.f32 0.0, %v5548
      %v5550 = vpop.f32.mrb[0].mxu0
      %5551 = vmatprep.mubr.f32.mxu0 0.0
      %5552 = vmatmul.mubr.f32.gmra.mrb[0].mxu0 %v5375
      %v5553 = vpop.f32.mrb[0].mxu0
      %v5554 = vadd.f32 0.0, %v5553
      %v5555 = vpop.f32.mrb[0].mxu0
      %5556 = vmatprep.mubr.f32.mxu0 0.0
      %5557 = vmatmul.mubr.f32.gmra.mrb[0].mxu0 %v5376
      %v5558 = vpop.f32.mrb[0].mxu0
      %v5559 = vadd.f32 0.0, %v5558
      %v5560 = vpop.f32.mrb[0].mxu0
      %5561 = vmatprep.mubr.f32.mxu0 0.0
      %5562 = vmatmul.mubr.f32.gmra.mrb[0].mxu0 %v5377
      %v5563 = vpop.f32.mrb[0].mxu0
      %v5564 = vadd.f32 0.0, %v5563
      %v5565 = vpop.f32.mrb[0].mxu0
      %5566 = vmatprep.mubr.f32.mxu0 0.0
      %5567 = vmatmul.mubr.f32.gmra.mrb[0].mxu0 %v5378
      %v5568 = vpop.f32.mrb[0].mxu0
      %v5569 = vadd.f32 0.0, %v5568
      %v5570 = vpop.f32.mrb[0].mxu0
      %5571 = vmatprep.mubr.f32.mxu0 0.0
      %5572 = vmatmul.mubr.f32.gmra.mrb[0].mxu0 %v5379
      %v5573 = vpop.f32.mrb[0].mxu0
      %v5574 = vadd.f32 0.0, %v5573
      %v5575 = vpop.f32.mrb[0].mxu0
      %5576 = vmatprep.mubr.f32.mxu0 0.0
      %5577 = vmatmul.mubr.f32.gmra.mrb[0].mxu0 %v5380
      %v5578 = vpop.f32.mrb[0].mxu0
      %v5579 = vadd.f32 0.0, %v5578
      %v5580 = vpop.f32.mrb[0].mxu0
      %5581 = vmatprep.mubr.f32.mxu0 0.0
      %5582 = vmatmul.mubr.f32.gmra.mrb[0].mxu0 %v5381
      %v5583 = vpop.f32.mrb[0].mxu0
      %v5584 = vadd.f32 0.0, %v5583
      %v5585 = vpop.f32.mrb[0].mxu0
      %5586 = vmatprep.mubr.f32.mxu0 0.0
      %5587 = vmatmul.mubr.f32.gmra.mrb[0].mxu0 %v5382
      %v5588 = vpop.f32.mrb[0].mxu0
      %v5589 = vadd.f32 0.0, %v5588
      %v5590 = vpop.f32.mrb[0].mxu0
      %5591 = vmatprep.mubr.f32.mxu0 0.0
      %5592 = vmatmul.mubr.f32.gmra.mrb[0].mxu0 %v5383
      %v5593 = vpop.f32.mrb[0].mxu0
      %v5594 = vadd.f32 0.0, %v5593
      %v5595 = vpop.f32.mrb[0].mxu0
      %5596 = vmatprep.mubr.f32.mxu0 0.0
      %5597 = vmatmul.mubr.f32.gmra.mrb[0].mxu0 %v5384
      %v5598 = vpop.f32.mrb[0].mxu0
      %v5599 = vadd.f32 0.0, %v5598
      %v5600 = vpop.f32.mrb[0].mxu0
      %5601 = vmatprep.mubr.f32.mxu0 0.0
      %5602 = vmatmul.mubr.f32.gmra.mrb[0].mxu0 %v5385
      %v5603 = vpop.f32.mrb[0].mxu0
      %v5604 = vadd.f32 0.0, %v5603
      %v5605 = vpop.f32.mrb[0].mxu0
      %5606 = vmatprep.mubr.f32.mxu0 0.0
      %5607 = vmatmul.mubr.f32.gmra.mrb[0].mxu0 %v5386
      %v5608 = vpop.f32.mrb[0].mxu0
      %v5609 = vadd.f32 0.0, %v5608
      %v5610 = vpop.f32.mrb[0].mxu0
      %5611 = vmatprep.mubr.f32.mxu0 0.0
      %5612 = vmatmul.mubr.f32.gmra.mrb[0].mxu0 %v5387
      %v5613 = vpop.f32.mrb[0].mxu0
      %v5614 = vadd.f32 0.0, %v5613
      %v5615 = vpop.f32.mrb[0].mxu0
      %5616 = vmatprep.mubr.f32.mxu0 0.0
      %5617 = vmatmul.mubr.f32.gmra.mrb[0].mxu0 %v5388
      %v5618 = vpop.f32.mrb[0].mxu0
      %v5619 = vadd.f32 0.0, %v5618
      %v5620 = vpop.f32.mrb[0].mxu0
      %5621 = vmatprep.mubr.f32.mxu0 0.0
      %5622 = vmatmul.mubr.f32.gmra.mrb[0].mxu0 %v5389
      %v5623 = vpop.f32.mrb[0].mxu0
      %v5624 = vadd.f32 0.0, %v5623
      %v5625 = vpop.f32.mrb[0].mxu0
      %5626 = vmatprep.mubr.f32.mxu0 0.0
      %5627 = vmatmul.mubr.f32.gmra.mrb[0].mxu0 %v5390
      %v5628 = vpop.f32.mrb[0].mxu0
      %v5629 = vadd.f32 0.0, %v5628
      %v5630 = vpop.f32.mrb[0].mxu0
      %5631 = vdwg.mxu0
      %v5632 = vadd.f32 %v5327, %v5474
      %v5633 = vadd.f32 %v5328, %v5479
      %v5634 = vadd.f32 %v5329, %v5484
      %v5635 = vadd.f32 %v5330, %v5489
      %v5636 = vadd.f32 %v5331, %v5494
      %v5637 = vadd.f32 %v5332, %v5499
      %v5638 = vadd.f32 %v5333, %v5504
      %v5639 = vadd.f32 %v5334, %v5509
      %v5640 = vadd.f32 %v5335, %v5514
      %v5641 = vadd.f32 %v5336, %v5519
      %v5642 = vadd.f32 %v5337, %v5524
      %v5643 = vadd.f32 %v5338, %v5529
      %v5644 = vadd.f32 %v5339, %v5534
      %v5645 = vadd.f32 %v5340, %v5539
      %v5646 = vadd.f32 %v5341, %v5544
      %v5647 = vadd.f32 %v5342, %v5549
      %v5648 = vadd.f32 %v5343, %v5554
      %v5649 = vadd.f32 %v5344, %v5559
      %v5650 = vadd.f32 %v5345, %v5564
      %v5651 = vadd.f32 %v5346, %v5569
      %v5652 = vadd.f32 %v5347, %v5574
      %v5653 = vadd.f32 %v5348, %v5579
      %v5654 = vadd.f32 %v5349, %v5584
      %v5655 = vadd.f32 %v5350, %v5589
      %v5656 = vadd.f32 %v5351, %v5594
      %v5657 = vadd.f32 %v5352, %v5599
      %v5658 = vadd.f32 %v5353, %v5604
      %v5659 = vadd.f32 %v5354, %v5609
      %v5660 = vadd.f32 %v5355, %v5614
      %v5661 = vadd.f32 %v5356, %v5619
      %v5662 = vadd.f32 %v5357, %v5624
      %v5663 = vadd.f32 %v5358, %v5629
      %v5664 = vld [vmem:[%s2367 + $0x8] sm:$0xff]
      %v5665 = vld [vmem:[%s2367 + $0x10] sm:$0xff]
      %v5666 = vld [vmem:[%s2367 + $0x28] sm:$0xff]
      %v5667 = vld [vmem:[%s2367 + $0x30] sm:$0xff]
      %v5668 = vld [vmem:[%s2367 + $0x48] sm:$0xff]
      %v5669 = vld [vmem:[%s2367 + $0x50] sm:$0xff]
      %v5670 = vld [vmem:[%s2367 + $0x68] sm:$0xff]
      %v5671 = vld [vmem:[%s2367 + $0x70] sm:$0xff]
      %v5672 = vld [vmem:[%s2367 + $0x88] sm:$0xff]
      %v5673 = vld [vmem:[%s2367 + $0x90] sm:$0xff]
      %v5674 = vld [vmem:[%s2367 + $0xa8] sm:$0xff]
      %v5675 = vld [vmem:[%s2367 + $0xb0] sm:$0xff]
      %v5676 = vld [vmem:[%s2367 + $0xc8] sm:$0xff]
      %v5677 = vld [vmem:[%s2367 + $0xd0] sm:$0xff]
      %v5678 = vld [vmem:[%s2367 + $0xe8] sm:$0xff]
      %v5679 = vld [vmem:[%s2367 + $0xf0] sm:$0xff]
      %v5680 = vld [vmem:[%s2367 + $0x108] sm:$0xff]
      %v5681 = vld [vmem:[%s2367 + $0x110] sm:$0xff]
      %v5682 = vld [vmem:[%s2367 + $0x128] sm:$0xff]
      %v5683 = vld [vmem:[%s2367 + $0x130] sm:$0xff]
      %v5684 = vld [vmem:[%s2367 + $0x148] sm:$0xff]
      %v5685 = vld [vmem:[%s2367 + $0x150] sm:$0xff]
      %v5686 = vld [vmem:[%s2367 + $0x168] sm:$0xff]
      %v5687 = vld [vmem:[%s2367 + $0x170] sm:$0xff]
      %v5688 = vld [vmem:[%s2367 + $0x188] sm:$0xff]
      %v5689 = vld [vmem:[%s2367 + $0x190] sm:$0xff]
      %v5690 = vld [vmem:[%s2367 + $0x1a8] sm:$0xff]
      %v5691 = vld [vmem:[%s2367 + $0x1b0] sm:$0xff]
      %v5692 = vld [vmem:[%s2367 + $0x1c8] sm:$0xff]
      %v5693 = vld [vmem:[%s2367 + $0x1d0] sm:$0xff]
      %v5694 = vld [vmem:[%s2367 + $0x1e8] sm:$0xff]
      %v5695 = vld [vmem:[%s2367 + $0x1f0] sm:$0xff]
      %v5696 = vld [vmem:[%s4 + $0x380] sm:$0xff]
      %v5697 = vld [vmem:[%s4 + $0x388] sm:$0xff]
      %v5698 = vld [vmem:[%s4 + $0x390] sm:$0xff]
      %v5699 = vld [vmem:[%s4 + $0x398] sm:$0xff]
      %v5700 = vld [vmem:[%s4 + $0x3a0] sm:$0xff]
      %v5701 = vld [vmem:[%s4 + $0x3a8] sm:$0xff]
      %v5702 = vld [vmem:[%s4 + $0x3b0] sm:$0xff]
      %v5703 = vld [vmem:[%s4 + $0x3b8] sm:$0xff]
      %v5704 = vld [vmem:[%s4 + $0x3c0] sm:$0xff]
      %v5705 = vld [vmem:[%s4 + $0x3c8] sm:$0xff]
      %v5706 = vld [vmem:[%s4 + $0x3d0] sm:$0xff]
      %v5707 = vld [vmem:[%s4 + $0x3d8] sm:$0xff]
      %v5708 = vld [vmem:[%s4 + $0x3e0] sm:$0xff]
      %v5709 = vld [vmem:[%s4 + $0x3e8] sm:$0xff]
      %v5710 = vld [vmem:[%s4 + $0x3f0] sm:$0xff]
      %v5711 = vld [vmem:[%s4 + $0x3f8] sm:$0xff]
      %5712 = vmatprep.subr.mxu0 0.0
      %5713 = vmatpush1.msra.mxu0 %v5696
      %5714 = vmatprep.subr.mxu0 0.0
      %5715 = vmatpush1.msra.mxu0 %v5697
      %5716 = vmatprep.subr.mxu0 0.0
      %5717 = vmatpush1.msra.mxu0 %v5698
      %5718 = vmatprep.subr.mxu0 0.0
      %5719 = vmatpush1.msra.mxu0 %v5699
      %5720 = vmatprep.subr.mxu0 0.0
      %5721 = vmatpush1.msra.mxu0 %v5700
      %5722 = vmatprep.subr.mxu0 0.0
      %5723 = vmatpush1.msra.mxu0 %v5701
      %5724 = vmatprep.subr.mxu0 0.0
      %5725 = vmatpush1.msra.mxu0 %v5702
      %5726 = vmatprep.subr.mxu0 0.0
      %5727 = vmatpush1.msra.mxu0 %v5703
      %5728 = vmatprep.subr.mxu0 0.0
      %5729 = vmatpush1.msra.mxu0 %v5704
      %5730 = vmatprep.subr.mxu0 0.0
      %5731 = vmatpush1.msra.mxu0 %v5705
      %5732 = vmatprep.subr.mxu0 0.0
      %5733 = vmatpush1.msra.mxu0 %v5706
      %5734 = vmatprep.subr.mxu0 0.0
      %5735 = vmatpush1.msra.mxu0 %v5707
      %5736 = vmatprep.subr.mxu0 0.0
      %5737 = vmatpush1.msra.mxu0 %v5708
      %5738 = vmatprep.subr.mxu0 0.0
      %5739 = vmatpush1.msra.mxu0 %v5709
      %5740 = vmatprep.subr.mxu0 0.0
      %5741 = vmatpush1.msra.mxu0 %v5710
      %5742 = vmatprep.subr.mxu0 0.0
      %5743 = vmatpush1.msra.mxu0 %v5711
      %5744 = vmatprep.subr.mxu0 0.0
      %5745 = vmatpush1.msra.mxu0 0.0
      %5746 = vmatprep.subr.mxu0 0.0
      %5747 = vmatpush1.msra.mxu0 0.0
      %5748 = vmatprep.subr.mxu0 0.0
      %5749 = vmatpush1.msra.mxu0 0.0
      %5750 = vmatprep.subr.mxu0 0.0
      %5751 = vmatpush1.msra.mxu0 0.0
      %5752 = vmatprep.subr.mxu0 0.0
      %5753 = vmatpush1.msra.mxu0 0.0
      %5754 = vmatprep.subr.mxu0 0.0
      %5755 = vmatpush1.msra.mxu0 0.0
      %5756 = vmatprep.subr.mxu0 0.0
      %5757 = vmatpush1.msra.mxu0 0.0
      %5758 = vmatprep.subr.mxu0 0.0
      %5759 = vmatpush1.msra.mxu0 0.0
      %5760 = vmatprep.subr.mxu0 0.0
      %5761 = vmatpush1.msra.mxu0 0.0
      %5762 = vmatprep.subr.mxu0 0.0
      %5763 = vmatpush1.msra.mxu0 0.0
      %5764 = vmatprep.subr.mxu0 0.0
      %5765 = vmatpush1.msra.mxu0 0.0
      %5766 = vmatprep.subr.mxu0 0.0
      %5767 = vmatpush1.msra.mxu0 0.0
      %5768 = vmatprep.subr.mxu0 0.0
      %5769 = vmatpush1.msra.mxu0 0.0
      %5770 = vmatprep.subr.mxu0 0.0
      %5771 = vmatpush1.msra.mxu0 0.0
      %5772 = vmatprep.subr.mxu0 0.0
      %5773 = vmatpush1.msra.mxu0 0.0
      %5774 = vmatprep.subr.mxu0 0.0
      %5775 = vmatpush1.msra.mxu0 0.0
      %5776 = vmatprep.mubr.f32.mxu0 0.0
      %5777 = vmatmul.mubr.f32.gmra.mrb[0].mxu0 %v5664
      %v5778 = vpop.f32.mrb[0].mxu0
      %v5779 = vadd.f32 0.0, %v5778
      %v5780 = vpop.f32.mrb[0].mxu0
      %5781 = vmatprep.mubr.f32.mxu0 0.0
      %5782 = vmatmul.mubr.f32.gmra.mrb[0].mxu0 %v5665
      %v5783 = vpop.f32.mrb[0].mxu0
      %v5784 = vadd.f32 0.0, %v5783
      %v5785 = vpop.f32.mrb[0].mxu0
      %5786 = vmatprep.mubr.f32.mxu0 0.0
      %5787 = vmatmul.mubr.f32.gmra.mrb[0].mxu0 %v5666
      %v5788 = vpop.f32.mrb[0].mxu0
      %v5789 = vadd.f32 0.0, %v5788
      %v5790 = vpop.f32.mrb[0].mxu0
      %5791 = vmatprep.mubr.f32.mxu0 0.0
      %5792 = vmatmul.mubr.f32.gmra.mrb[0].mxu0 %v5667
      %v5793 = vpop.f32.mrb[0].mxu0
      %v5794 = vadd.f32 0.0, %v5793
      %v5795 = vpop.f32.mrb[0].mxu0
      %5796 = vmatprep.mubr.f32.mxu0 0.0
      %5797 = vmatmul.mubr.f32.gmra.mrb[0].mxu0 %v5668
      %v5798 = vpop.f32.mrb[0].mxu0
      %v5799 = vadd.f32 0.0, %v5798
      %v5800 = vpop.f32.mrb[0].mxu0
      %5801 = vmatprep.mubr.f32.mxu0 0.0
      %5802 = vmatmul.mubr.f32.gmra.mrb[0].mxu0 %v5669
      %v5803 = vpop.f32.mrb[0].mxu0
      %v5804 = vadd.f32 0.0, %v5803
      %v5805 = vpop.f32.mrb[0].mxu0
      %5806 = vmatprep.mubr.f32.mxu0 0.0
      %5807 = vmatmul.mubr.f32.gmra.mrb[0].mxu0 %v5670
      %v5808 = vpop.f32.mrb[0].mxu0
      %v5809 = vadd.f32 0.0, %v5808
      %v5810 = vpop.f32.mrb[0].mxu0
      %5811 = vmatprep.mubr.f32.mxu0 0.0
      %5812 = vmatmul.mubr.f32.gmra.mrb[0].mxu0 %v5671
      %v5813 = vpop.f32.mrb[0].mxu0
      %v5814 = vadd.f32 0.0, %v5813
      %v5815 = vpop.f32.mrb[0].mxu0
      %5816 = vmatprep.mubr.f32.mxu0 0.0
      %5817 = vmatmul.mubr.f32.gmra.mrb[0].mxu0 %v5672
      %v5818 = vpop.f32.mrb[0].mxu0
      %v5819 = vadd.f32 0.0, %v5818
      %v5820 = vpop.f32.mrb[0].mxu0
      %5821 = vmatprep.mubr.f32.mxu0 0.0
      %5822 = vmatmul.mubr.f32.gmra.mrb[0].mxu0 %v5673
      %v5823 = vpop.f32.mrb[0].mxu0
      %v5824 = vadd.f32 0.0, %v5823
      %v5825 = vpop.f32.mrb[0].mxu0
      %5826 = vmatprep.mubr.f32.mxu0 0.0
      %5827 = vmatmul.mubr.f32.gmra.mrb[0].mxu0 %v5674
      %v5828 = vpop.f32.mrb[0].mxu0
      %v5829 = vadd.f32 0.0, %v5828
      %v5830 = vpop.f32.mrb[0].mxu0
      %5831 = vmatprep.mubr.f32.mxu0 0.0
      %5832 = vmatmul.mubr.f32.gmra.mrb[0].mxu0 %v5675
      %v5833 = vpop.f32.mrb[0].mxu0
      %v5834 = vadd.f32 0.0, %v5833
      %v5835 = vpop.f32.mrb[0].mxu0
      %5836 = vmatprep.mubr.f32.mxu0 0.0
      %5837 = vmatmul.mubr.f32.gmra.mrb[0].mxu0 %v5676
      %v5838 = vpop.f32.mrb[0].mxu0
      %v5839 = vadd.f32 0.0, %v5838
      %v5840 = vpop.f32.mrb[0].mxu0
      %5841 = vmatprep.mubr.f32.mxu0 0.0
      %5842 = vmatmul.mubr.f32.gmra.mrb[0].mxu0 %v5677
      %v5843 = vpop.f32.mrb[0].mxu0
      %v5844 = vadd.f32 0.0, %v5843
      %v5845 = vpop.f32.mrb[0].mxu0
      %5846 = vmatprep.mubr.f32.mxu0 0.0
      %5847 = vmatmul.mubr.f32.gmra.mrb[0].mxu0 %v5678
      %v5848 = vpop.f32.mrb[0].mxu0
      %v5849 = vadd.f32 0.0, %v5848
      %v5850 = vpop.f32.mrb[0].mxu0
      %5851 = vmatprep.mubr.f32.mxu0 0.0
      %5852 = vmatmul.mubr.f32.gmra.mrb[0].mxu0 %v5679
      %v5853 = vpop.f32.mrb[0].mxu0
      %v5854 = vadd.f32 0.0, %v5853
      %v5855 = vpop.f32.mrb[0].mxu0
      %5856 = vmatprep.mubr.f32.mxu0 0.0
      %5857 = vmatmul.mubr.f32.gmra.mrb[0].mxu0 %v5680
      %v5858 = vpop.f32.mrb[0].mxu0
      %v5859 = vadd.f32 0.0, %v5858
      %v5860 = vpop.f32.mrb[0].mxu0
      %5861 = vmatprep.mubr.f32.mxu0 0.0
      %5862 = vmatmul.mubr.f32.gmra.mrb[0].mxu0 %v5681
      %v5863 = vpop.f32.mrb[0].mxu0
      %v5864 = vadd.f32 0.0, %v5863
      %v5865 = vpop.f32.mrb[0].mxu0
      %5866 = vmatprep.mubr.f32.mxu0 0.0
      %5867 = vmatmul.mubr.f32.gmra.mrb[0].mxu0 %v5682
      %v5868 = vpop.f32.mrb[0].mxu0
      %v5869 = vadd.f32 0.0, %v5868
      %v5870 = vpop.f32.mrb[0].mxu0
      %5871 = vmatprep.mubr.f32.mxu0 0.0
      %5872 = vmatmul.mubr.f32.gmra.mrb[0].mxu0 %v5683
      %v5873 = vpop.f32.mrb[0].mxu0
      %v5874 = vadd.f32 0.0, %v5873
      %v5875 = vpop.f32.mrb[0].mxu0
      %5876 = vmatprep.mubr.f32.mxu0 0.0
      %5877 = vmatmul.mubr.f32.gmra.mrb[0].mxu0 %v5684
      %v5878 = vpop.f32.mrb[0].mxu0
      %v5879 = vadd.f32 0.0, %v5878
      %v5880 = vpop.f32.mrb[0].mxu0
      %5881 = vmatprep.mubr.f32.mxu0 0.0
      %5882 = vmatmul.mubr.f32.gmra.mrb[0].mxu0 %v5685
      %v5883 = vpop.f32.mrb[0].mxu0
      %v5884 = vadd.f32 0.0, %v5883
      %v5885 = vpop.f32.mrb[0].mxu0
      %5886 = vmatprep.mubr.f32.mxu0 0.0
      %5887 = vmatmul.mubr.f32.gmra.mrb[0].mxu0 %v5686
      %v5888 = vpop.f32.mrb[0].mxu0
      %v5889 = vadd.f32 0.0, %v5888
      %v5890 = vpop.f32.mrb[0].mxu0
      %5891 = vmatprep.mubr.f32.mxu0 0.0
      %5892 = vmatmul.mubr.f32.gmra.mrb[0].mxu0 %v5687
      %v5893 = vpop.f32.mrb[0].mxu0
      %v5894 = vadd.f32 0.0, %v5893
      %v5895 = vpop.f32.mrb[0].mxu0
      %5896 = vmatprep.mubr.f32.mxu0 0.0
      %5897 = vmatmul.mubr.f32.gmra.mrb[0].mxu0 %v5688
      %v5898 = vpop.f32.mrb[0].mxu0
      %v5899 = vadd.f32 0.0, %v5898
      %v5900 = vpop.f32.mrb[0].mxu0
      %5901 = vmatprep.mubr.f32.mxu0 0.0
      %5902 = vmatmul.mubr.f32.gmra.mrb[0].mxu0 %v5689
      %v5903 = vpop.f32.mrb[0].mxu0
      %v5904 = vadd.f32 0.0, %v5903
      %v5905 = vpop.f32.mrb[0].mxu0
      %5906 = vmatprep.mubr.f32.mxu0 0.0
      %5907 = vmatmul.mubr.f32.gmra.mrb[0].mxu0 %v5690
      %v5908 = vpop.f32.mrb[0].mxu0
      %v5909 = vadd.f32 0.0, %v5908
      %v5910 = vpop.f32.mrb[0].mxu0
      %5911 = vmatprep.mubr.f32.mxu0 0.0
      %5912 = vmatmul.mubr.f32.gmra.mrb[0].mxu0 %v5691
      %v5913 = vpop.f32.mrb[0].mxu0
      %v5914 = vadd.f32 0.0, %v5913
      %v5915 = vpop.f32.mrb[0].mxu0
      %5916 = vmatprep.mubr.f32.mxu0 0.0
      %5917 = vmatmul.mubr.f32.gmra.mrb[0].mxu0 %v5692
      %v5918 = vpop.f32.mrb[0].mxu0
      %v5919 = vadd.f32 0.0, %v5918
      %v5920 = vpop.f32.mrb[0].mxu0
      %5921 = vmatprep.mubr.f32.mxu0 0.0
      %5922 = vmatmul.mubr.f32.gmra.mrb[0].mxu0 %v5693
      %v5923 = vpop.f32.mrb[0].mxu0
      %v5924 = vadd.f32 0.0, %v5923
      %v5925 = vpop.f32.mrb[0].mxu0
      %5926 = vmatprep.mubr.f32.mxu0 0.0
      %5927 = vmatmul.mubr.f32.gmra.mrb[0].mxu0 %v5694
      %v5928 = vpop.f32.mrb[0].mxu0
      %v5929 = vadd.f32 0.0, %v5928
      %v5930 = vpop.f32.mrb[0].mxu0
      %5931 = vmatprep.mubr.f32.mxu0 0.0
      %5932 = vmatmul.mubr.f32.gmra.mrb[0].mxu0 %v5695
      %v5933 = vpop.f32.mrb[0].mxu0
      %v5934 = vadd.f32 0.0, %v5933
      %v5935 = vpop.f32.mrb[0].mxu0
      %5936 = vdwg.mxu0
      %v5937 = vadd.f32 %v5632, %v5779
      %v5938 = vadd.f32 %v5633, %v5784
      %v5939 = vadd.f32 %v5634, %v5789
      %v5940 = vadd.f32 %v5635, %v5794
      %v5941 = vadd.f32 %v5636, %v5799
      %v5942 = vadd.f32 %v5637, %v5804
      %v5943 = vadd.f32 %v5638, %v5809
      %v5944 = vadd.f32 %v5639, %v5814
      %v5945 = vadd.f32 %v5640, %v5819
      %v5946 = vadd.f32 %v5641, %v5824
      %v5947 = vadd.f32 %v5642, %v5829
      %v5948 = vadd.f32 %v5643, %v5834
      %v5949 = vadd.f32 %v5644, %v5839
      %v5950 = vadd.f32 %v5645, %v5844
      %v5951 = vadd.f32 %v5646, %v5849
      %v5952 = vadd.f32 %v5647, %v5854
      %v5953 = vadd.f32 %v5648, %v5859
      %v5954 = vadd.f32 %v5649, %v5864
      %v5955 = vadd.f32 %v5650, %v5869
      %v5956 = vadd.f32 %v5651, %v5874
      %v5957 = vadd.f32 %v5652, %v5879
      %v5958 = vadd.f32 %v5653, %v5884
      %v5959 = vadd.f32 %v5654, %v5889
      %v5960 = vadd.f32 %v5655, %v5894
      %v5961 = vadd.f32 %v5656, %v5899
      %v5962 = vadd.f32 %v5657, %v5904
      %v5963 = vadd.f32 %v5658, %v5909
      %v5964 = vadd.f32 %v5659, %v5914
      %v5965 = vadd.f32 %v5660, %v5919
      %v5966 = vadd.f32 %v5661, %v5924
      %v5967 = vadd.f32 %v5662, %v5929
      %v5968 = vadd.f32 %v5663, %v5934
      %v5969 = vld [vmem:[%s2367 + $0x9] sm:$0xff]
      %v5970 = vld [vmem:[%s2367 + $0x11] sm:$0xff]
      %v5971 = vld [vmem:[%s2367 + $0x29] sm:$0xff]
      %v5972 = vld [vmem:[%s2367 + $0x31] sm:$0xff]
      %v5973 = vld [vmem:[%s2367 + $0x49] sm:$0xff]
      %v5974 = vld [vmem:[%s2367 + $0x51] sm:$0xff]
      %v5975 = vld [vmem:[%s2367 + $0x69] sm:$0xff]
      %v5976 = vld [vmem:[%s2367 + $0x71] sm:$0xff]
      %v5977 = vld [vmem:[%s2367 + $0x89] sm:$0xff]
      %v5978 = vld [vmem:[%s2367 + $0x91] sm:$0xff]
      %v5979 = vld [vmem:[%s2367 + $0xa9] sm:$0xff]
      %v5980 = vld [vmem:[%s2367 + $0xb1] sm:$0xff]
      %v5981 = vld [vmem:[%s2367 + $0xc9] sm:$0xff]
      %v5982 = vld [vmem:[%s2367 + $0xd1] sm:$0xff]
      %v5983 = vld [vmem:[%s2367 + $0xe9] sm:$0xff]
      %v5984 = vld [vmem:[%s2367 + $0xf1] sm:$0xff]
      %v5985 = vld [vmem:[%s2367 + $0x109] sm:$0xff]
      %v5986 = vld [vmem:[%s2367 + $0x111] sm:$0xff]
      %v5987 = vld [vmem:[%s2367 + $0x129] sm:$0xff]
      %v5988 = vld [vmem:[%s2367 + $0x131] sm:$0xff]
      %v5989 = vld [vmem:[%s2367 + $0x149] sm:$0xff]
      %v5990 = vld [vmem:[%s2367 + $0x151] sm:$0xff]
      %v5991 = vld [vmem:[%s2367 + $0x169] sm:$0xff]
      %v5992 = vld [vmem:[%s2367 + $0x171] sm:$0xff]
      %v5993 = vld [vmem:[%s2367 + $0x189] sm:$0xff]
      %v5994 = vld [vmem:[%s2367 + $0x191] sm:$0xff]
      %v5995 = vld [vmem:[%s2367 + $0x1a9] sm:$0xff]
      %v5996 = vld [vmem:[%s2367 + $0x1b1] sm:$0xff]
      %v5997 = vld [vmem:[%s2367 + $0x1c9] sm:$0xff]
      %v5998 = vld [vmem:[%s2367 + $0x1d1] sm:$0xff]
      %v5999 = vld [vmem:[%s2367 + $0x1e9] sm:$0xff]
      %v6000 = vld [vmem:[%s2367 + $0x1f1] sm:$0xff]
      %v6001 = vld [vmem:[%s4 + $0x400] sm:$0xff]
      %v6002 = vld [vmem:[%s4 + $0x408] sm:$0xff]
      %v6003 = vld [vmem:[%s4 + $0x410] sm:$0xff]
      %v6004 = vld [vmem:[%s4 + $0x418] sm:$0xff]
      %v6005 = vld [vmem:[%s4 + $0x420] sm:$0xff]
      %v6006 = vld [vmem:[%s4 + $0x428] sm:$0xff]
      %v6007 = vld [vmem:[%s4 + $0x430] sm:$0xff]
      %v6008 = vld [vmem:[%s4 + $0x438] sm:$0xff]
      %v6009 = vld [vmem:[%s4 + $0x440] sm:$0xff]
      %v6010 = vld [vmem:[%s4 + $0x448] sm:$0xff]
      %v6011 = vld [vmem:[%s4 + $0x450] sm:$0xff]
      %v6012 = vld [vmem:[%s4 + $0x458] sm:$0xff]
      %v6013 = vld [vmem:[%s4 + $0x460] sm:$0xff]
      %v6014 = vld [vmem:[%s4 + $0x468] sm:$0xff]
      %v6015 = vld [vmem:[%s4 + $0x470] sm:$0xff]
      %v6016 = vld [vmem:[%s4 + $0x478] sm:$0xff]
      %6017 = vmatprep.subr.mxu0 0.0
      %6018 = vmatpush1.msra.mxu0 %v6001
      %6019 = vmatprep.subr.mxu0 0.0
      %6020 = vmatpush1.msra.mxu0 %v6002
      %6021 = vmatprep.subr.mxu0 0.0
      %6022 = vmatpush1.msra.mxu0 %v6003
      %6023 = vmatprep.subr.mxu0 0.0
      %6024 = vmatpush1.msra.mxu0 %v6004
      %6025 = vmatprep.subr.mxu0 0.0
      %6026 = vmatpush1.msra.mxu0 %v6005
      %6027 = vmatprep.subr.mxu0 0.0
      %6028 = vmatpush1.msra.mxu0 %v6006
      %6029 = vmatprep.subr.mxu0 0.0
      %6030 = vmatpush1.msra.mxu0 %v6007
      %6031 = vmatprep.subr.mxu0 0.0
      %6032 = vmatpush1.msra.mxu0 %v6008
      %6033 = vmatprep.subr.mxu0 0.0
      %6034 = vmatpush1.msra.mxu0 %v6009
      %6035 = vmatprep.subr.mxu0 0.0
      %6036 = vmatpush1.msra.mxu0 %v6010
      %6037 = vmatprep.subr.mxu0 0.0
      %6038 = vmatpush1.msra.mxu0 %v6011
      %6039 = vmatprep.subr.mxu0 0.0
      %6040 = vmatpush1.msra.mxu0 %v6012
      %6041 = vmatprep.subr.mxu0 0.0
      %6042 = vmatpush1.msra.mxu0 %v6013
      %6043 = vmatprep.subr.mxu0 0.0
      %6044 = vmatpush1.msra.mxu0 %v6014
      %6045 = vmatprep.subr.mxu0 0.0
      %6046 = vmatpush1.msra.mxu0 %v6015
      %6047 = vmatprep.subr.mxu0 0.0
      %6048 = vmatpush1.msra.mxu0 %v6016
      %6049 = vmatprep.subr.mxu0 0.0
      %6050 = vmatpush1.msra.mxu0 0.0
      %6051 = vmatprep.subr.mxu0 0.0
      %6052 = vmatpush1.msra.mxu0 0.0
      %6053 = vmatprep.subr.mxu0 0.0
      %6054 = vmatpush1.msra.mxu0 0.0
      %6055 = vmatprep.subr.mxu0 0.0
      %6056 = vmatpush1.msra.mxu0 0.0
      %6057 = vmatprep.subr.mxu0 0.0
      %6058 = vmatpush1.msra.mxu0 0.0
      %6059 = vmatprep.subr.mxu0 0.0
      %6060 = vmatpush1.msra.mxu0 0.0
      %6061 = vmatprep.subr.mxu0 0.0
      %6062 = vmatpush1.msra.mxu0 0.0
      %6063 = vmatprep.subr.mxu0 0.0
      %6064 = vmatpush1.msra.mxu0 0.0
      %6065 = vmatprep.subr.mxu0 0.0
      %6066 = vmatpush1.msra.mxu0 0.0
      %6067 = vmatprep.subr.mxu0 0.0
      %6068 = vmatpush1.msra.mxu0 0.0
      %6069 = vmatprep.subr.mxu0 0.0
      %6070 = vmatpush1.msra.mxu0 0.0
      %6071 = vmatprep.subr.mxu0 0.0
      %6072 = vmatpush1.msra.mxu0 0.0
      %6073 = vmatprep.subr.mxu0 0.0
      %6074 = vmatpush1.msra.mxu0 0.0
      %6075 = vmatprep.subr.mxu0 0.0
      %6076 = vmatpush1.msra.mxu0 0.0
      %6077 = vmatprep.subr.mxu0 0.0
      %6078 = vmatpush1.msra.mxu0 0.0
      %6079 = vmatprep.subr.mxu0 0.0
      %6080 = vmatpush1.msra.mxu0 0.0
      %6081 = vmatprep.mubr.f32.mxu0 0.0
      %6082 = vmatmul.mubr.f32.gmra.mrb[0].mxu0 %v5969
      %v6083 = vpop.f32.mrb[0].mxu0
      %v6084 = vadd.f32 0.0, %v6083
      %v6085 = vpop.f32.mrb[0].mxu0
      %6086 = vmatprep.mubr.f32.mxu0 0.0
      %6087 = vmatmul.mubr.f32.gmra.mrb[0].mxu0 %v5970
      %v6088 = vpop.f32.mrb[0].mxu0
      %v6089 = vadd.f32 0.0, %v6088
      %v6090 = vpop.f32.mrb[0].mxu0
      %6091 = vmatprep.mubr.f32.mxu0 0.0
      %6092 = vmatmul.mubr.f32.gmra.mrb[0].mxu0 %v5971
      %v6093 = vpop.f32.mrb[0].mxu0
      %v6094 = vadd.f32 0.0, %v6093
      %v6095 = vpop.f32.mrb[0].mxu0
      %6096 = vmatprep.mubr.f32.mxu0 0.0
      %6097 = vmatmul.mubr.f32.gmra.mrb[0].mxu0 %v5972
      %v6098 = vpop.f32.mrb[0].mxu0
      %v6099 = vadd.f32 0.0, %v6098
      %v6100 = vpop.f32.mrb[0].mxu0
      %6101 = vmatprep.mubr.f32.mxu0 0.0
      %6102 = vmatmul.mubr.f32.gmra.mrb[0].mxu0 %v5973
      %v6103 = vpop.f32.mrb[0].mxu0
      %v6104 = vadd.f32 0.0, %v6103
      %v6105 = vpop.f32.mrb[0].mxu0
      %6106 = vmatprep.mubr.f32.mxu0 0.0
      %6107 = vmatmul.mubr.f32.gmra.mrb[0].mxu0 %v5974
      %v6108 = vpop.f32.mrb[0].mxu0
      %v6109 = vadd.f32 0.0, %v6108
      %v6110 = vpop.f32.mrb[0].mxu0
      %6111 = vmatprep.mubr.f32.mxu0 0.0
      %6112 = vmatmul.mubr.f32.gmra.mrb[0].mxu0 %v5975
      %v6113 = vpop.f32.mrb[0].mxu0
      %v6114 = vadd.f32 0.0, %v6113
      %v6115 = vpop.f32.mrb[0].mxu0
      %6116 = vmatprep.mubr.f32.mxu0 0.0
      %6117 = vmatmul.mubr.f32.gmra.mrb[0].mxu0 %v5976
      %v6118 = vpop.f32.mrb[0].mxu0
      %v6119 = vadd.f32 0.0, %v6118
      %v6120 = vpop.f32.mrb[0].mxu0
      %6121 = vmatprep.mubr.f32.mxu0 0.0
      %6122 = vmatmul.mubr.f32.gmra.mrb[0].mxu0 %v5977
      %v6123 = vpop.f32.mrb[0].mxu0
      %v6124 = vadd.f32 0.0, %v6123
      %v6125 = vpop.f32.mrb[0].mxu0
      %6126 = vmatprep.mubr.f32.mxu0 0.0
      %6127 = vmatmul.mubr.f32.gmra.mrb[0].mxu0 %v5978
      %v6128 = vpop.f32.mrb[0].mxu0
      %v6129 = vadd.f32 0.0, %v6128
      %v6130 = vpop.f32.mrb[0].mxu0
      %6131 = vmatprep.mubr.f32.mxu0 0.0
      %6132 = vmatmul.mubr.f32.gmra.mrb[0].mxu0 %v5979
      %v6133 = vpop.f32.mrb[0].mxu0
      %v6134 = vadd.f32 0.0, %v6133
      %v6135 = vpop.f32.mrb[0].mxu0
      %6136 = vmatprep.mubr.f32.mxu0 0.0
      %6137 = vmatmul.mubr.f32.gmra.mrb[0].mxu0 %v5980
      %v6138 = vpop.f32.mrb[0].mxu0
      %v6139 = vadd.f32 0.0, %v6138
      %v6140 = vpop.f32.mrb[0].mxu0
      %6141 = vmatprep.mubr.f32.mxu0 0.0
      %6142 = vmatmul.mubr.f32.gmra.mrb[0].mxu0 %v5981
      %v6143 = vpop.f32.mrb[0].mxu0
      %v6144 = vadd.f32 0.0, %v6143
      %v6145 = vpop.f32.mrb[0].mxu0
      %6146 = vmatprep.mubr.f32.mxu0 0.0
      %6147 = vmatmul.mubr.f32.gmra.mrb[0].mxu0 %v5982
      %v6148 = vpop.f32.mrb[0].mxu0
      %v6149 = vadd.f32 0.0, %v6148
      %v6150 = vpop.f32.mrb[0].mxu0
      %6151 = vmatprep.mubr.f32.mxu0 0.0
      %6152 = vmatmul.mubr.f32.gmra.mrb[0].mxu0 %v5983
      %v6153 = vpop.f32.mrb[0].mxu0
      %v6154 = vadd.f32 0.0, %v6153
      %v6155 = vpop.f32.mrb[0].mxu0
      %6156 = vmatprep.mubr.f32.mxu0 0.0
      %6157 = vmatmul.mubr.f32.gmra.mrb[0].mxu0 %v5984
      %v6158 = vpop.f32.mrb[0].mxu0
      %v6159 = vadd.f32 0.0, %v6158
      %v6160 = vpop.f32.mrb[0].mxu0
      %6161 = vmatprep.mubr.f32.mxu0 0.0
      %6162 = vmatmul.mubr.f32.gmra.mrb[0].mxu0 %v5985
      %v6163 = vpop.f32.mrb[0].mxu0
      %v6164 = vadd.f32 0.0, %v6163
      %v6165 = vpop.f32.mrb[0].mxu0
      %6166 = vmatprep.mubr.f32.mxu0 0.0
      %6167 = vmatmul.mubr.f32.gmra.mrb[0].mxu0 %v5986
      %v6168 = vpop.f32.mrb[0].mxu0
      %v6169 = vadd.f32 0.0, %v6168
      %v6170 = vpop.f32.mrb[0].mxu0
      %6171 = vmatprep.mubr.f32.mxu0 0.0
      %6172 = vmatmul.mubr.f32.gmra.mrb[0].mxu0 %v5987
      %v6173 = vpop.f32.mrb[0].mxu0
      %v6174 = vadd.f32 0.0, %v6173
      %v6175 = vpop.f32.mrb[0].mxu0
      %6176 = vmatprep.mubr.f32.mxu0 0.0
      %6177 = vmatmul.mubr.f32.gmra.mrb[0].mxu0 %v5988
      %v6178 = vpop.f32.mrb[0].mxu0
      %v6179 = vadd.f32 0.0, %v6178
      %v6180 = vpop.f32.mrb[0].mxu0
      %6181 = vmatprep.mubr.f32.mxu0 0.0
      %6182 = vmatmul.mubr.f32.gmra.mrb[0].mxu0 %v5989
      %v6183 = vpop.f32.mrb[0].mxu0
      %v6184 = vadd.f32 0.0, %v6183
      %v6185 = vpop.f32.mrb[0].mxu0
      %6186 = vmatprep.mubr.f32.mxu0 0.0
      %6187 = vmatmul.mubr.f32.gmra.mrb[0].mxu0 %v5990
      %v6188 = vpop.f32.mrb[0].mxu0
      %v6189 = vadd.f32 0.0, %v6188
      %v6190 = vpop.f32.mrb[0].mxu0
      %6191 = vmatprep.mubr.f32.mxu0 0.0
      %6192 = vmatmul.mubr.f32.gmra.mrb[0].mxu0 %v5991
      %v6193 = vpop.f32.mrb[0].mxu0
      %v6194 = vadd.f32 0.0, %v6193
      %v6195 = vpop.f32.mrb[0].mxu0
      %6196 = vmatprep.mubr.f32.mxu0 0.0
      %6197 = vmatmul.mubr.f32.gmra.mrb[0].mxu0 %v5992
      %v6198 = vpop.f32.mrb[0].mxu0
      %v6199 = vadd.f32 0.0, %v6198
      %v6200 = vpop.f32.mrb[0].mxu0
      %6201 = vmatprep.mubr.f32.mxu0 0.0
      %6202 = vmatmul.mubr.f32.gmra.mrb[0].mxu0 %v5993
      %v6203 = vpop.f32.mrb[0].mxu0
      %v6204 = vadd.f32 0.0, %v6203
      %v6205 = vpop.f32.mrb[0].mxu0
      %6206 = vmatprep.mubr.f32.mxu0 0.0
      %6207 = vmatmul.mubr.f32.gmra.mrb[0].mxu0 %v5994
      %v6208 = vpop.f32.mrb[0].mxu0
      %v6209 = vadd.f32 0.0, %v6208
      %v6210 = vpop.f32.mrb[0].mxu0
      %6211 = vmatprep.mubr.f32.mxu0 0.0
      %6212 = vmatmul.mubr.f32.gmra.mrb[0].mxu0 %v5995
      %v6213 = vpop.f32.mrb[0].mxu0
      %v6214 = vadd.f32 0.0, %v6213
      %v6215 = vpop.f32.mrb[0].mxu0
      %6216 = vmatprep.mubr.f32.mxu0 0.0
      %6217 = vmatmul.mubr.f32.gmra.mrb[0].mxu0 %v5996
      %v6218 = vpop.f32.mrb[0].mxu0
      %v6219 = vadd.f32 0.0, %v6218
      %v6220 = vpop.f32.mrb[0].mxu0
      %6221 = vmatprep.mubr.f32.mxu0 0.0
      %6222 = vmatmul.mubr.f32.gmra.mrb[0].mxu0 %v5997
      %v6223 = vpop.f32.mrb[0].mxu0
      %v6224 = vadd.f32 0.0, %v6223
      %v6225 = vpop.f32.mrb[0].mxu0
      %6226 = vmatprep.mubr.f32.mxu0 0.0
      %6227 = vmatmul.mubr.f32.gmra.mrb[0].mxu0 %v5998
      %v6228 = vpop.f32.mrb[0].mxu0
      %v6229 = vadd.f32 0.0, %v6228
      %v6230 = vpop.f32.mrb[0].mxu0
      %6231 = vmatprep.mubr.f32.mxu0 0.0
      %6232 = vmatmul.mubr.f32.gmra.mrb[0].mxu0 %v5999
      %v6233 = vpop.f32.mrb[0].mxu0
      %v6234 = vadd.f32 0.0, %v6233
      %v6235 = vpop.f32.mrb[0].mxu0
      %6236 = vmatprep.mubr.f32.mxu0 0.0
      %6237 = vmatmul.mubr.f32.gmra.mrb[0].mxu0 %v6000
      %v6238 = vpop.f32.mrb[0].mxu0
      %v6239 = vadd.f32 0.0, %v6238
      %v6240 = vpop.f32.mrb[0].mxu0
      %6241 = vdwg.mxu0
      %v6242 = vadd.f32 %v5937, %v6084
      %v6243 = vadd.f32 %v5938, %v6089
      %v6244 = vadd.f32 %v5939, %v6094
      %v6245 = vadd.f32 %v5940, %v6099
      %v6246 = vadd.f32 %v5941, %v6104
      %v6247 = vadd.f32 %v5942, %v6109
      %v6248 = vadd.f32 %v5943, %v6114
      %v6249 = vadd.f32 %v5944, %v6119
      %v6250 = vadd.f32 %v5945, %v6124
      %v6251 = vadd.f32 %v5946, %v6129
      %v6252 = vadd.f32 %v5947, %v6134
      %v6253 = vadd.f32 %v5948, %v6139
      %v6254 = vadd.f32 %v5949, %v6144
      %v6255 = vadd.f32 %v5950, %v6149
      %v6256 = vadd.f32 %v5951, %v6154
      %v6257 = vadd.f32 %v5952, %v6159
      %v6258 = vadd.f32 %v5953, %v6164
      %v6259 = vadd.f32 %v5954, %v6169
      %v6260 = vadd.f32 %v5955, %v6174
      %v6261 = vadd.f32 %v5956, %v6179
      %v6262 = vadd.f32 %v5957, %v6184
      %v6263 = vadd.f32 %v5958, %v6189
      %v6264 = vadd.f32 %v5959, %v6194
      %v6265 = vadd.f32 %v5960, %v6199
      %v6266 = vadd.f32 %v5961, %v6204
      %v6267 = vadd.f32 %v5962, %v6209
      %v6268 = vadd.f32 %v5963, %v6214
      %v6269 = vadd.f32 %v5964, %v6219
      %v6270 = vadd.f32 %v5965, %v6224
      %v6271 = vadd.f32 %v5966, %v6229
      %v6272 = vadd.f32 %v5967, %v6234
      %v6273 = vadd.f32 %v5968, %v6239
      %v6274 = vld [vmem:[%s5] sm:$0x1]
      %v6276 = vlaneseq
      %v6277 = vshrl.u32 %v6276, 7
      %v6278 = vsub.s32 0, %v6277
      %v6279 = vrot.slane %v6274, %v6278
      %v6281 = vadd.f32 %v6242, %v6279
      %v6282 = vadd.f32 %v6243, %v6279
      %v6283 = vadd.f32 %v6244, %v6279
      %v6284 = vadd.f32 %v6245, %v6279
      %v6285 = vadd.f32 %v6246, %v6279
      %v6286 = vadd.f32 %v6247, %v6279
      %v6287 = vadd.f32 %v6248, %v6279
      %v6288 = vadd.f32 %v6249, %v6279
      %v6289 = vadd.f32 %v6250, %v6279
      %v6290 = vadd.f32 %v6251, %v6279
      %v6291 = vadd.f32 %v6252, %v6279
      %v6292 = vadd.f32 %v6253, %v6279
      %v6293 = vadd.f32 %v6254, %v6279
      %v6294 = vadd.f32 %v6255, %v6279
      %v6295 = vadd.f32 %v6256, %v6279
      %v6296 = vadd.f32 %v6257, %v6279
      %v6297 = vadd.f32 %v6258, %v6279
      %v6298 = vadd.f32 %v6259, %v6279
      %v6299 = vadd.f32 %v6260, %v6279
      %v6300 = vadd.f32 %v6261, %v6279
      %v6301 = vadd.f32 %v6262, %v6279
      %v6302 = vadd.f32 %v6263, %v6279
      %v6303 = vadd.f32 %v6264, %v6279
      %v6304 = vadd.f32 %v6265, %v6279
      %v6305 = vadd.f32 %v6266, %v6279
      %v6306 = vadd.f32 %v6267, %v6279
      %v6307 = vadd.f32 %v6268, %v6279
      %v6308 = vadd.f32 %v6269, %v6279
      %v6309 = vadd.f32 %v6270, %v6279
      %v6310 = vadd.f32 %v6271, %v6279
      %v6311 = vadd.f32 %v6272, %v6279
      %v6312 = vadd.f32 %v6273, %v6279
      %6313 = vst.msk [vmem:[%s379] sm:$0xff] %vm3464, %v6281
      %6314 = vst.msk [vmem:[%s379 + $0x8] sm:$0xff] %vm3464, %v6282
      %6315 = vst.msk [vmem:[%s379 + $0x10] sm:$0xff] %vm3464, %v6283
      %6316 = vst.msk [vmem:[%s379 + $0x18] sm:$0xff] %vm3464, %v6284
      %6317 = vst.msk [vmem:[%s379 + $0x20] sm:$0xff] %vm3464, %v6285
      %6318 = vst.msk [vmem:[%s379 + $0x28] sm:$0xff] %vm3464, %v6286
      %6319 = vst.msk [vmem:[%s379 + $0x30] sm:$0xff] %vm3464, %v6287
      %6320 = vst.msk [vmem:[%s379 + $0x38] sm:$0xff] %vm3464, %v6288
      %6321 = vst.msk [vmem:[%s379 + $0x40] sm:$0xff] %vm3464, %v6289
      %6322 = vst.msk [vmem:[%s379 + $0x48] sm:$0xff] %vm3464, %v6290
      %6323 = vst.msk [vmem:[%s379 + $0x50] sm:$0xff] %vm3464, %v6291
      %6324 = vst.msk [vmem:[%s379 + $0x58] sm:$0xff] %vm3464, %v6292
      %6325 = vst.msk [vmem:[%s379 + $0x60] sm:$0xff] %vm3464, %v6293
      %6326 = vst.msk [vmem:[%s379 + $0x68] sm:$0xff] %vm3464, %v6294
      %6327 = vst.msk [vmem:[%s379 + $0x70] sm:$0xff] %vm3464, %v6295
      %6328 = vst.msk [vmem:[%s379 + $0x78] sm:$0xff] %vm3464, %v6296
      %6329 = vst.msk [vmem:[%s379 + $0x80] sm:$0xff] %vm3464, %v6297
      %6330 = vst.msk [vmem:[%s379 + $0x88] sm:$0xff] %vm3464, %v6298
      %6331 = vst.msk [vmem:[%s379 + $0x90] sm:$0xff] %vm3464, %v6299
      %6332 = vst.msk [vmem:[%s379 + $0x98] sm:$0xff] %vm3464, %v6300
      %6333 = vst.msk [vmem:[%s379 + $0xa0] sm:$0xff] %vm3464, %v6301
      %6334 = vst.msk [vmem:[%s379 + $0xa8] sm:$0xff] %vm3464, %v6302
      %6335 = vst.msk [vmem:[%s379 + $0xb0] sm:$0xff] %vm3464, %v6303
      %6336 = vst.msk [vmem:[%s379 + $0xb8] sm:$0xff] %vm3464, %v6304
      %6337 = vst.msk [vmem:[%s379 + $0xc0] sm:$0xff] %vm3464, %v6305
      %6338 = vst.msk [vmem:[%s379 + $0xc8] sm:$0xff] %vm3464, %v6306
      %6339 = vst.msk [vmem:[%s379 + $0xd0] sm:$0xff] %vm3464, %v6307
      %6340 = vst.msk [vmem:[%s379 + $0xd8] sm:$0xff] %vm3464, %v6308
      %6341 = vst.msk [vmem:[%s379 + $0xe0] sm:$0xff] %vm3464, %v6309
      %6342 = vst.msk [vmem:[%s379 + $0xe8] sm:$0xff] %vm3464, %v6310
      %6343 = vst.msk [vmem:[%s379 + $0xf0] sm:$0xff] %vm3464, %v6311
      %6344 = vst.msk [vmem:[%s379 + $0xf8] sm:$0xff] %vm3464, %v6312
      %p6345 = scmp.lt.s32.totalorder %s21, 1
      %s6346 = scalar_select %p6345, %s21, 1
      %s6347 = smul.addr %s6346, 32
      %s6348 = smul.addr %s6347, 8
      %s6349 = scalar_lea.vmem %s10, %s6348
      // Predicated region
      $region61: #{double_conv_forward.3} parent=59 // pred_check
        %p6350 = pneg %p259
      $region62: #{double_conv_forward.3} parent=59 // pred_check_branch
        %6352 = sbr.rel (%p6350) target = $region64
      $region63: #{double_conv_forward.3} parent=59 // pred_region
        _
      $region64: #{double_conv_forward.3} parent=59 // pred_fallthru
        _
    $region60: #{double_conv_forward.3} parent=5 // pred_fallthru
      _
    %p6353 = scmp.le.s32.totalorder 2, %s16
    // Predicated region
    $region65: #{double_conv_forward.3} parent=5 // pred_check
      %p6354 = pneg %p6353
    $region66: #{double_conv_forward.3} parent=5 // pred_check_branch
      %6356 = sbr.rel (%p6354) target = $region68
    $region67: #{double_conv_forward.3} parent=5 // pred_region
      %s6357 = ssub.s32 %s16, 2
      // Predicated region
      $region69: #{double_conv_forward.3} parent=67 // pred_check
        %p6358 = pneg %p265
      $region70: #{double_conv_forward.3} parent=67 // pred_check_branch
        %6360 = sbr.rel (%p6358) target = $region72
      $region71: #{double_conv_forward.3} parent=67 // pred_region
        %p6361 = scmp.lt.s32.totalorder %s22, 1
        %s6362 = scalar_select %p6361, %s22, 1
        %s6363 = smul.addr %s6362, 32
        %s6364 = smul.addr %s6363, 8
        %s6365 = scalar_lea.vmem %s10, %s6364
      $region72: #{double_conv_forward.3} parent=67 // pred_fallthru
        _
    $region68: #{double_conv_forward.3} parent=5 // pred_fallthru
      _
  $region6: #{double_conv_forward.3} parent=0 // loop_footer
    %s20 = sadd.s32 1, %s16
  $region7: #{double_conv_forward.3} parent=0 // loop_footer_branch
    %15 = sbr.rel target = $region3
  $region8: #{double_conv_forward.3} parent=0 // loop_exit
    _

</llo_original>
